<compile_context>
chip_gen: v7x
topology: tpu7x:2x2x1
jax: 0.10.0
libtpu: 0.0.40
codegen_flags: <defaults>
</compile_context>

<pallas_src>
import math

import jax
import jax.numpy as jnp
from jax.experimental import pallas as pl
from jax.experimental.pallas import tpu as pltpu

LEAK = 0.2
_CONV_NAMES = ('enc1', 'enc2', 'enc3', 'dec1', 'dec2', 'dec3')


def _leaky(x):
    # max(x, 0.2*x) == LeakyReLU(0.2) for 0 < slope < 1
    return jnp.maximum(x, LEAK * x)


# ----------------------------------------------------------------------------
# Wrapper-side constant builders (shapes only, constant-folded under jit)
# ----------------------------------------------------------------------------
def _x_masks(H, W):
    # (2, 1, H*W) f32:  [0] = "x-1 is in-row" mask,  [1] = "x+1 is in-row" mask
    x = jnp.arange(H * W, dtype=jnp.int32) % W
    left = (x >= 1).astype(jnp.float32)
    right = (x <= W - 2).astype(jnp.float32)
    return jnp.stack([left, right]).reshape(2, 1, H * W)


def _pool_select(H, W):
    # (H*W, (H/2)*(W/2)) 0/1 matrix selecting the top-left anchor of each 2x2 block
    Ho, Wo = H // 2, W // 2
    j = jnp.arange(Ho * Wo, dtype=jnp.int32)
    anchor = (2 * (j // Wo)) * W + 2 * (j % Wo)
    i = jnp.arange(H * W, dtype=jnp.int32)
    return (i[:, None] == anchor[None, :]).astype(jnp.float32)


def _up_select(Hs, Ws):
    # (Hs*Ws, (2Hs)*(2Ws)) 0/1 matrix: nearest-neighbour 2x upsample as a matmul
    Hb, Wb = 2 * Hs, 2 * Ws
    j = jnp.arange(Hb * Wb, dtype=jnp.int32)
    src = ((j // Wb) // 2) * Ws + (j % Wb) // 2
    i = jnp.arange(Hs * Ws, dtype=jnp.int32)
    return (i[:, None] == src[None, :]).astype(jnp.float32)


# ----------------------------------------------------------------------------
# Fused Pallas kernel (one batch sample per grid step)
# ----------------------------------------------------------------------------
def _build_kernel(C, H1, W1):
    H2, W2 = H1 // 2, W1 // 2
    H3, W3 = H2 // 2, W2 // 2
    HW1, HW2, HW3 = H1 * W1, H2 * W2, H3 * W3

    def kernel(x_ref, cw_ref, cb_ref, fw_ref, fb_ref,
               mx1_ref, mx2_ref, mx3_ref,
               s1_ref, s2_ref, u32_ref, u21_ref,
               o_ref, hbuf_ref, patch_ref):

        def conv3x3(inp, w2d, b2, mx_ref, W, HW):
            # inp: (C, HW) flattened activation. Zero-halo buffer: a (W+1)
            # zero prefix/suffix makes the dy=+-1 out-of-range taps read zeros;
            # x-boundary wraps are killed by the lane masks.
            hbuf_ref[...] = jnp.zeros(hbuf_ref.shape, hbuf_ref.dtype)
            hbuf_ref[:, pl.ds(W + 1, HW)] = inp
            mask_l = mx_ref[0]          # (1, HW)
            mask_r = mx_ref[1]          # (1, HW)
            t = 0
            for dyo in (-1, 0, 1):
                for dxo in (-1, 0, 1):
                    start = (W + 1) + dyo * W + dxo
                    tap = hbuf_ref[:, pl.ds(start, HW)]
                    if dxo == -1:
                        tap = tap * mask_l
                    elif dxo == 1:
                        tap = tap * mask_r
                    patch_ref[pl.ds(t * C, C), pl.ds(0, HW)] = tap
                    t += 1
            p = patch_ref[:, pl.ds(0, HW)]                       # (9C, HW)
            y = jnp.dot(w2d, p, preferred_element_type=jnp.float32) + b2
            return _leaky(y)

        def maxpool2(v, sel_ref, W, HW):
            # max of the 4 elements of every 2x2 window (via shifted reads),
            # then downsample by the 0/1 selection matmul (anchors only).
            hbuf_ref[...] = jnp.zeros(hbuf_ref.shape, hbuf_ref.dtype)
            hbuf_ref[:, pl.ds(0, HW)] = v
            m = jnp.maximum(
                jnp.maximum(v, hbuf_ref[:, pl.ds(1, HW)]),
                jnp.maximum(hbuf_ref[:, pl.ds(W, HW)],
                            hbuf_ref[:, pl.ds(W + 1, HW)]))
            return jnp.dot(m, sel_ref[...], preferred_element_type=jnp.float32)

        def fuse1x1(enc, dec_small, up_ref, w1, w2, b2):
            # leaky(W1 @ enc + upsample2x(W2 @ dec) + b); upsample == matmul by U
            t = jnp.dot(w2, dec_small, preferred_element_type=jnp.float32)
            t_up = jnp.dot(t, up_ref[...], preferred_element_type=jnp.float32)
            y = jnp.dot(w1, enc, preferred_element_type=jnp.float32) + t_up + b2
            return _leaky(y)

        x = x_ref[0]                                             # (C, HW1)

        enc1 = conv3x3(x, cw_ref[0], cb_ref[0], mx1_ref, W1, HW1)
        pool1 = maxpool2(enc1, s1_ref, W1, HW1)
        enc2 = conv3x3(pool1, cw_ref[1], cb_ref[1], mx2_ref, W2, HW2)
        pool2 = maxpool2(enc2, s2_ref, W2, HW2)
        enc3 = conv3x3(pool2, cw_ref[2], cb_ref[2], mx3_ref, W3, HW3)
        dec1 = conv3x3(enc3, cw_ref[3], cb_ref[3], mx3_ref, W3, HW3)
        fused2 = fuse1x1(enc2, dec1, u32_ref, fw_ref[0], fw_ref[1], fb_ref[0])
        dec2 = conv3x3(fused2, cw_ref[4], cb_ref[4], mx2_ref, W2, HW2)
        fused3 = fuse1x1(enc1, dec2, u21_ref, fw_ref[2], fw_ref[3], fb_ref[1])
        dec3 = conv3x3(fused3, cw_ref[5], cb_ref[5], mx1_ref, W1, HW1)

        o_ref[0] = (dec3 + x).astype(o_ref.dtype)

    return kernel


# ----------------------------------------------------------------------------
# Public forward pass (NCHW in / NCHW out, like the PyTorch module)
# ----------------------------------------------------------------------------
def encoder_decoder_block(x_nchw, p):
    B, C, H, W = x_nchw.shape
    assert H % 4 == 0 and W % 4 == 0, "spatial dims must be divisible by 4"
    H2, W2, H3, W3 = H // 2, W // 2, H // 4, W // 4
    HW1 = H * W

    xf = x_nchw.reshape(B, C, HW1)                        # channels->sublanes, HW->lanes

    def pack_conv(w_hwio):                                # (3,3,Cin,Cout) -> (Cout, 9*Cin)
        return jnp.transpose(w_hwio, (3, 0, 1, 2)).reshape(C, 9 * C)

    cw = jnp.stack([pack_conv(p[f'{n}_w']) for n in _CONV_NAMES])       # (6, C, 9C)
    cb = jnp.stack([p[f'{n}_b'].reshape(C, 1) for n in _CONV_NAMES])    # (6, C, 1)
    fw = jnp.stack([p['f2_w1'].T, p['f2_w2'].T, p['f3_w1'].T, p['f3_w2'].T])  # (4, C, C)
    fb = jnp.stack([p['f2_b'].reshape(C, 1), p['f3_b'].reshape(C, 1)])        # (2, C, 1)

    mx1, mx2, mx3 = _x_masks(H, W), _x_masks(H2, W2), _x_masks(H3, W3)
    s1, s2 = _pool_select(H, W), _pool_select(H2, W2)
    u32, u21 = _up_select(H3, W3), _up_select(H2, W2)

    consts = (cw, cb, fw, fb, mx1, mx2, mx3, s1, s2, u32, u21)

    def rep_spec(a):
        n = a.ndim
        return pl.BlockSpec(a.shape, lambda b, _n=n: (0,) * _n)

    kernel = _build_kernel(C, H, W)

    out = pl.pallas_call(
        kernel,
        out_shape=jax.ShapeDtypeStruct((B, C, HW1), jnp.float32),
        grid=(B,),
        in_specs=[pl.BlockSpec((1, C, HW1), lambda b: (b, 0, 0))]
                 + [rep_spec(a) for a in consts],
        out_specs=pl.BlockSpec((1, C, HW1), lambda b: (b, 0, 0)),
        scratch_shapes=[
            pltpu.VMEM((C, HW1 + 2 * W + 2), jnp.float32),   # zero-halo shift buffer
            pltpu.VMEM((9 * C, HW1), jnp.float32),           # im2col patch matrix
        ],
        compiler_params=pltpu.CompilerParams(
            dimension_semantics=("parallel",)),              # batch -> 2 TCs on v7x
    )(xf, *consts)

    return out.reshape(B, C, H, W)


# ----------------------------------------------------------------------------
# Deterministic parameter init (fusion2_1 of the module is unused in forward()).
# ----------------------------------------------------------------------------
def init_params(key, C):
    keys = jax.random.split(key, 18)

    def cwi(k):
        return jax.random.normal(k, (3, 3, C, C), jnp.float32) / math.sqrt(9 * C)

    def cbi(k):
        return jax.random.normal(k, (1, C), jnp.float32) * 0.05

    def fwi(k):
        return jax.random.normal(k, (C, C), jnp.float32) / math.sqrt(2 * C)

    p = {}
    for i, n in enumerate(_CONV_NAMES):
        p[f'{n}_w'] = cwi(keys[2 * i])
        p[f'{n}_b'] = cbi(keys[2 * i + 1])
    p['f2_w1'], p['f2_w2'], p['f2_b'] = fwi(keys[12]), fwi(keys[13]), cbi(keys[14])
    p['f3_w1'], p['f3_w2'], p['f3_b'] = fwi(keys[15]), fwi(keys[16]), cbi(keys[17])
    return p


# ----------------------------------------------------------------------------
# Pure-JAX reference (correctness check only)
# ----------------------------------------------------------------------------
def _upsample2x_nearest(x_nhwc):
    return jnp.repeat(jnp.repeat(x_nhwc, 2, axis=1), 2, axis=2)


def _ref_conv(x, w, b):
    y = jax.lax.conv_general_dilated(
        x, w, window_strides=(1, 1), padding='SAME',
        dimension_numbers=('NHWC', 'HWIO', 'NHWC'),
        precision=jax.lax.Precision.HIGHEST)
    return _leaky(y + b.reshape(1, 1, 1, -1))


def _ref_pool(x):
    return jax.lax.reduce_window(x, -jnp.inf, jax.lax.max,
                                 (1, 2, 2, 1), (1, 2, 2, 1), 'VALID')


def _ref_fuse(a, b, w1, w2, bias):
    hp = jax.lax.Precision.HIGHEST
    y = (jnp.einsum('bhwc,cd->bhwd', a, w1, precision=hp)
         + jnp.einsum('bhwc,cd->bhwd', b, w2, precision=hp)
         + bias.reshape(1, 1, 1, -1))
    return _leaky(y)


def ref_forward(x_nchw, p):
    x = jnp.transpose(x_nchw, (0, 2, 3, 1))
    enc1 = _ref_conv(x, p['enc1_w'], p['enc1_b'])
    enc2 = _ref_conv(_ref_pool(enc1), p['enc2_w'], p['enc2_b'])
    enc3 = _ref_conv(_ref_pool(enc2), p['enc3_w'], p['enc3_b'])
    dec1 = _ref_conv(enc3, p['dec1_w'], p['dec1_b'])
    fused2 = _ref_fuse(enc2, _upsample2x_nearest(dec1),
                       p['f2_w1'], p['f2_w2'], p['f2_b'])
    dec2 = _ref_conv(fused2, p['dec2_w'], p['dec2_b'])
    fused3 = _ref_fuse(enc1, _upsample2x_nearest(dec2),
                       p['f3_w1'], p['f3_w2'], p['f3_b'])
    dec3 = _ref_conv(fused3, p['dec3_w'], p['dec3_b']) + x
    return jnp.transpose(dec3, (0, 3, 1, 2))


if __name__ == "__main__":
    # H*W = 1024 at level 1 keeps the flattened lane dim a multiple of 128.
    B, C, H, W = 2, 8, 32, 32
    key = jax.random.PRNGKey(0)
    kx, kp = jax.random.split(key)
    x = jax.random.normal(kx, (B, C, H, W), jnp.float32)   # NCHW, like PyTorch
    params = init_params(kp, C)

    out = jax.jit(encoder_decoder_block)(x, params)
    out = jax.block_until_ready(out)

    ref = ref_forward(x, params)
    assert out.shape == (B, C, H, W) and out.dtype == jnp.float32
    err = float(jnp.max(jnp.abs(out - ref)))
    assert err < 1e-2, f"max abs error {err}"
    print("KERNEL_OK")
</pallas_src>

<mosaic_0001>
module attributes {stable_mosaic.version = 11 : i64} {
  func.func @kernel(%arg0: i32, %arg1: memref<1x8x1024xf32, #tpu.memory_space<vmem>>, %arg2: memref<6x8x72xf32, #tpu.memory_space<vmem>>, %arg3: memref<6x8x1xf32, #tpu.memory_space<vmem>>, %arg4: memref<4x8x8xf32, #tpu.memory_space<vmem>>, %arg5: memref<2x8x1xf32, #tpu.memory_space<vmem>>, %arg6: memref<2x1x1024xf32, #tpu.memory_space<vmem>>, %arg7: memref<2x1x256xf32, #tpu.memory_space<vmem>>, %arg8: memref<2x1x64xf32, #tpu.memory_space<vmem>>, %arg9: memref<1024x256xf32, #tpu.memory_space<vmem>>, %arg10: memref<256x64xf32, #tpu.memory_space<vmem>>, %arg11: memref<64x256xf32, #tpu.memory_space<vmem>>, %arg12: memref<256x1024xf32, #tpu.memory_space<vmem>>, %arg13: memref<1x8x1024xf32, #tpu.memory_space<vmem>>, %arg14: memref<8x1090xf32, #tpu.memory_space<vmem>>, %arg15: memref<72x1024xf32, #tpu.memory_space<vmem>>) attributes {dimension_semantics = [#tpu.dimension_semantics<parallel>], iteration_bounds = array<i64: 2>, scalar_prefetch = 0 : i64, scratch_operands = 2 : i64, tpu.core_type = #tpu.core_type<tc>, window_params = [{transform_indices = @transform_0, window_bounds = array<i64: 1, 8, 1024>}, {pipeline_mode = #tpu.pipeline_mode<synchronous>, transform_indices = @transform_1, window_bounds = array<i64: 6, 8, 72>}, {pipeline_mode = #tpu.pipeline_mode<synchronous>, transform_indices = @transform_2, window_bounds = array<i64: 6, 8, 1>}, {pipeline_mode = #tpu.pipeline_mode<synchronous>, transform_indices = @transform_3, window_bounds = array<i64: 4, 8, 8>}, {pipeline_mode = #tpu.pipeline_mode<synchronous>, transform_indices = @transform_4, window_bounds = array<i64: 2, 8, 1>}, {pipeline_mode = #tpu.pipeline_mode<synchronous>, transform_indices = @transform_5, window_bounds = array<i64: 2, 1, 1024>}, {pipeline_mode = #tpu.pipeline_mode<synchronous>, transform_indices = @transform_6, window_bounds = array<i64: 2, 1, 256>}, {pipeline_mode = #tpu.pipeline_mode<synchronous>, transform_indices = @transform_7, window_bounds = array<i64: 2, 1, 64>}, {pipeline_mode = #tpu.pipeline_mode<synchronous>, transform_indices = @transform_8, window_bounds = array<i64: 1024, 256>}, {pipeline_mode = #tpu.pipeline_mode<synchronous>, transform_indices = @transform_9, window_bounds = array<i64: 256, 64>}, {pipeline_mode = #tpu.pipeline_mode<synchronous>, transform_indices = @transform_10, window_bounds = array<i64: 64, 256>}, {pipeline_mode = #tpu.pipeline_mode<synchronous>, transform_indices = @transform_11, window_bounds = array<i64: 256, 1024>}, {transform_indices = @transform_12, window_bounds = array<i64: 1, 8, 1024>}]} {
    %c0 = arith.constant 0 : index
    %c0_0 = arith.constant 0 : index
    %c0_1 = arith.constant 0 : index
    %0 = vector.load %arg1[%c0, %c0_0, %c0_1] : memref<1x8x1024xf32, #tpu.memory_space<vmem>>, vector<1x8x1024xf32>
    %1 = vector.shape_cast %0 : vector<1x8x1024xf32> to vector<8x1024xf32>
    %c0_2 = arith.constant 0 : index
    %c0_3 = arith.constant 0 : index
    %c0_4 = arith.constant 0 : index
    %2 = vector.load %arg2[%c0_2, %c0_3, %c0_4] : memref<6x8x72xf32, #tpu.memory_space<vmem>>, vector<1x8x72xf32>
    %3 = vector.shape_cast %2 : vector<1x8x72xf32> to vector<8x72xf32>
    %c0_5 = arith.constant 0 : index
    %c0_6 = arith.constant 0 : index
    %c0_7 = arith.constant 0 : index
    %4 = vector.load %arg3[%c0_5, %c0_6, %c0_7] : memref<6x8x1xf32, #tpu.memory_space<vmem>>, vector<1x8x1xf32>
    %5 = vector.shape_cast %4 : vector<1x8x1xf32> to vector<8x1xf32>
    %cst = arith.constant 0.000000e+00 : f32
    %6 = vector.broadcast %cst : f32 to vector<8x1090xf32>
    %c0_8 = arith.constant 0 : index
    %c0_9 = arith.constant 0 : index
    %7 = vector.load %arg14[%c0_8, %c0_9] : memref<8x1090xf32, #tpu.memory_space<vmem>>, vector<8x1090xf32>
    tpu.vector_store %arg14[%c0_8, %c0_9], %6 {strides = array<i32>} : memref<8x1090xf32, #tpu.memory_space<vmem>>, vector<8x1090xf32>,
    %c0_10 = arith.constant 0 : index
    %c33 = arith.constant 33 : index
    %8 = vector.load %arg14[%c0_10, %c33] : memref<8x1090xf32, #tpu.memory_space<vmem>>, vector<8x1024xf32>
    tpu.vector_store %arg14[%c0_10, %c33], %1 {strides = array<i32>} : memref<8x1090xf32, #tpu.memory_space<vmem>>, vector<8x1024xf32>,
    %c0_11 = arith.constant 0 : index
    %c0_12 = arith.constant 0 : index
    %c0_13 = arith.constant 0 : index
    %9 = vector.load %arg6[%c0_11, %c0_12, %c0_13] : memref<2x1x1024xf32, #tpu.memory_space<vmem>>, vector<1x1x1024xf32>
    %10 = vector.shape_cast %9 : vector<1x1x1024xf32> to vector<1x1024xf32>
    %c1 = arith.constant 1 : index
    %c0_14 = arith.constant 0 : index
    %c0_15 = arith.constant 0 : index
    %11 = vector.load %arg6[%c1, %c0_14, %c0_15] : memref<2x1x1024xf32, #tpu.memory_space<vmem>>, vector<1x1x1024xf32>
    %12 = vector.shape_cast %11 : vector<1x1x1024xf32> to vector<1x1024xf32>
    %c0_16 = arith.constant 0 : index
    %c0_17 = arith.constant 0 : index
    %13 = vector.load %arg14[%c0_16, %c0_17] : memref<8x1090xf32, #tpu.memory_space<vmem>>, vector<8x1024xf32>
    %14 = vector.broadcast %10 : vector<1x1024xf32> to vector<8x1024xf32>
    %15 = arith.mulf %13, %14 : vector<8x1024xf32>
    %c0_18 = arith.constant 0 : index
    %c0_19 = arith.constant 0 : index
    %16 = vector.load %arg15[%c0_18, %c0_19] : memref<72x1024xf32, #tpu.memory_space<vmem>>, vector<8x1024xf32>
    tpu.vector_store %arg15[%c0_18, %c0_19], %15 {strides = array<i32>} : memref<72x1024xf32, #tpu.memory_space<vmem>>, vector<8x1024xf32>,
    %c0_20 = arith.constant 0 : index
    %c1_21 = arith.constant 1 : index
    %17 = vector.load %arg14[%c0_20, %c1_21] : memref<8x1090xf32, #tpu.memory_space<vmem>>, vector<8x1024xf32>
    %c8 = arith.constant 8 : index
    %c0_22 = arith.constant 0 : index
    %18 = vector.load %arg15[%c8, %c0_22] : memref<72x1024xf32, #tpu.memory_space<vmem>>, vector<8x1024xf32>
    tpu.vector_store %arg15[%c8, %c0_22], %17 {strides = array<i32>} : memref<72x1024xf32, #tpu.memory_space<vmem>>, vector<8x1024xf32>,
    %c0_23 = arith.constant 0 : index
    %c2 = arith.constant 2 : index
    %19 = vector.load %arg14[%c0_23, %c2] : memref<8x1090xf32, #tpu.memory_space<vmem>>, vector<8x1024xf32>
    %20 = vector.broadcast %12 : vector<1x1024xf32> to vector<8x1024xf32>
    %21 = arith.mulf %19, %20 : vector<8x1024xf32>
    %c16 = arith.constant 16 : index
    %c0_24 = arith.constant 0 : index
    %22 = vector.load %arg15[%c16, %c0_24] : memref<72x1024xf32, #tpu.memory_space<vmem>>, vector<8x1024xf32>
    tpu.vector_store %arg15[%c16, %c0_24], %21 {strides = array<i32>} : memref<72x1024xf32, #tpu.memory_space<vmem>>, vector<8x1024xf32>,
    %c0_25 = arith.constant 0 : index
    %c32 = arith.constant 32 : index
    %23 = vector.load %arg14[%c0_25, %c32] : memref<8x1090xf32, #tpu.memory_space<vmem>>, vector<8x1024xf32>
    %24 = vector.broadcast %10 : vector<1x1024xf32> to vector<8x1024xf32>
    %25 = arith.mulf %23, %24 : vector<8x1024xf32>
    %c24 = arith.constant 24 : index
    %c0_26 = arith.constant 0 : index
    %26 = vector.load %arg15[%c24, %c0_26] : memref<72x1024xf32, #tpu.memory_space<vmem>>, vector<8x1024xf32>
    tpu.vector_store %arg15[%c24, %c0_26], %25 {strides = array<i32>} : memref<72x1024xf32, #tpu.memory_space<vmem>>, vector<8x1024xf32>,
    %c0_27 = arith.constant 0 : index
    %c33_28 = arith.constant 33 : index
    %27 = vector.load %arg14[%c0_27, %c33_28] : memref<8x1090xf32, #tpu.memory_space<vmem>>, vector<8x1024xf32>
    %c32_29 = arith.constant 32 : index
    %c0_30 = arith.constant 0 : index
    %28 = vector.load %arg15[%c32_29, %c0_30] : memref<72x1024xf32, #tpu.memory_space<vmem>>, vector<8x1024xf32>
    tpu.vector_store %arg15[%c32_29, %c0_30], %27 {strides = array<i32>} : memref<72x1024xf32, #tpu.memory_space<vmem>>, vector<8x1024xf32>,
    %c0_31 = arith.constant 0 : index
    %c34 = arith.constant 34 : index
    %29 = vector.load %arg14[%c0_31, %c34] : memref<8x1090xf32, #tpu.memory_space<vmem>>, vector<8x1024xf32>
    %30 = vector.broadcast %12 : vector<1x1024xf32> to vector<8x1024xf32>
    %31 = arith.mulf %29, %30 : vector<8x1024xf32>
    %c40 = arith.constant 40 : index
    %c0_32 = arith.constant 0 : index
    %32 = vector.load %arg15[%c40, %c0_32] : memref<72x1024xf32, #tpu.memory_space<vmem>>, vector<8x1024xf32>
    tpu.vector_store %arg15[%c40, %c0_32], %31 {strides = array<i32>} : memref<72x1024xf32, #tpu.memory_space<vmem>>, vector<8x1024xf32>,
    %c0_33 = arith.constant 0 : index
    %c64 = arith.constant 64 : index
    %33 = vector.load %arg14[%c0_33, %c64] : memref<8x1090xf32, #tpu.memory_space<vmem>>, vector<8x1024xf32>
    %34 = vector.broadcast %10 : vector<1x1024xf32> to vector<8x1024xf32>
    %35 = arith.mulf %33, %34 : vector<8x1024xf32>
    %c48 = arith.constant 48 : index
    %c0_34 = arith.constant 0 : index
    %36 = vector.load %arg15[%c48, %c0_34] : memref<72x1024xf32, #tpu.memory_space<vmem>>, vector<8x1024xf32>
    tpu.vector_store %arg15[%c48, %c0_34], %35 {strides = array<i32>} : memref<72x1024xf32, #tpu.memory_space<vmem>>, vector<8x1024xf32>,
    %c0_35 = arith.constant 0 : index
    %c65 = arith.constant 65 : index
    %37 = vector.load %arg14[%c0_35, %c65] : memref<8x1090xf32, #tpu.memory_space<vmem>>, vector<8x1024xf32>
    %c56 = arith.constant 56 : index
    %c0_36 = arith.constant 0 : index
    %38 = vector.load %arg15[%c56, %c0_36] : memref<72x1024xf32, #tpu.memory_space<vmem>>, vector<8x1024xf32>
    tpu.vector_store %arg15[%c56, %c0_36], %37 {strides = array<i32>} : memref<72x1024xf32, #tpu.memory_space<vmem>>, vector<8x1024xf32>,
    %c0_37 = arith.constant 0 : index
    %c66 = arith.constant 66 : index
    %39 = vector.load %arg14[%c0_37, %c66] : memref<8x1090xf32, #tpu.memory_space<vmem>>, vector<8x1024xf32>
    %40 = vector.broadcast %12 : vector<1x1024xf32> to vector<8x1024xf32>
    %41 = arith.mulf %39, %40 : vector<8x1024xf32>
    %c64_38 = arith.constant 64 : index
    %c0_39 = arith.constant 0 : index
    %42 = vector.load %arg15[%c64_38, %c0_39] : memref<72x1024xf32, #tpu.memory_space<vmem>>, vector<8x1024xf32>
    tpu.vector_store %arg15[%c64_38, %c0_39], %41 {strides = array<i32>} : memref<72x1024xf32, #tpu.memory_space<vmem>>, vector<8x1024xf32>,
    %c0_40 = arith.constant 0 : index
    %c0_41 = arith.constant 0 : index
    %43 = vector.load %arg15[%c0_40, %c0_41] : memref<72x1024xf32, #tpu.memory_space<vmem>>, vector<72x1024xf32>
    %cst_42 = arith.constant dense<0.000000e+00> : vector<8x1024xf32>
    %44 = tpu.matmul %3, %43, %cst_42 {dimension_numbers = #tpu.dot_dimension_numbers<[1], [0], [0], [1], [0, 0, 1, 1], [], []>} : vector<8x72xf32>, vector<72x1024xf32>, vector<8x1024xf32> -> vector<8x1024xf32>
    %45 = vector.broadcast %5 : vector<8x1xf32> to vector<8x1024xf32>
    %46 = arith.addf %44, %45 : vector<8x1024xf32>
    %cst_43 = arith.constant 2.000000e-01 : f32
    %47 = vector.broadcast %cst_43 : f32 to vector<8x1024xf32>
    %48 = arith.mulf %47, %46 : vector<8x1024xf32>
    %49 = arith.maximumf %46, %48 : vector<8x1024xf32>
    %cst_44 = arith.constant 0.000000e+00 : f32
    %50 = vector.broadcast %cst_44 : f32 to vector<8x1090xf32>
    %c0_45 = arith.constant 0 : index
    %c0_46 = arith.constant 0 : index
    %51 = vector.load %arg14[%c0_45, %c0_46] : memref<8x1090xf32, #tpu.memory_space<vmem>>, vector<8x1090xf32>
    tpu.vector_store %arg14[%c0_45, %c0_46], %50 {strides = array<i32>} : memref<8x1090xf32, #tpu.memory_space<vmem>>, vector<8x1090xf32>,
    %c0_47 = arith.constant 0 : index
    %c0_48 = arith.constant 0 : index
    %52 = vector.load %arg14[%c0_47, %c0_48] : memref<8x1090xf32, #tpu.memory_space<vmem>>, vector<8x1024xf32>
    tpu.vector_store %arg14[%c0_47, %c0_48], %49 {strides = array<i32>} : memref<8x1090xf32, #tpu.memory_space<vmem>>, vector<8x1024xf32>,
    %c0_49 = arith.constant 0 : index
    %c1_50 = arith.constant 1 : index
    %53 = vector.load %arg14[%c0_49, %c1_50] : memref<8x1090xf32, #tpu.memory_space<vmem>>, vector<8x1024xf32>
    %54 = arith.maximumf %49, %53 : vector<8x1024xf32>
    %c0_51 = arith.constant 0 : index
    %c32_52 = arith.constant 32 : index
    %55 = vector.load %arg14[%c0_51, %c32_52] : memref<8x1090xf32, #tpu.memory_space<vmem>>, vector<8x1024xf32>
    %c0_53 = arith.constant 0 : index
    %c33_54 = arith.constant 33 : index
    %56 = vector.load %arg14[%c0_53, %c33_54] : memref<8x1090xf32, #tpu.memory_space<vmem>>, vector<8x1024xf32>
    %57 = arith.maximumf %55, %56 : vector<8x1024xf32>
    %58 = arith.maximumf %54, %57 : vector<8x1024xf32>
    %c0_55 = arith.constant 0 : index
    %c0_56 = arith.constant 0 : index
    %59 = vector.load %arg9[%c0_55, %c0_56] : memref<1024x256xf32, #tpu.memory_space<vmem>>, vector<1024x256xf32>
    %cst_57 = arith.constant dense<0.000000e+00> : vector<8x256xf32>
    %60 = tpu.matmul %58, %59, %cst_57 {dimension_numbers = #tpu.dot_dimension_numbers<[1], [0], [0], [1], [0, 0, 1, 1], [], []>} : vector<8x1024xf32>, vector<1024x256xf32>, vector<8x256xf32> -> vector<8x256xf32>
    %c1_58 = arith.constant 1 : index
    %c0_59 = arith.constant 0 : index
    %c0_60 = arith.constant 0 : index
    %61 = vector.load %arg2[%c1_58, %c0_59, %c0_60] : memref<6x8x72xf32, #tpu.memory_space<vmem>>, vector<1x8x72xf32>
    %62 = vector.shape_cast %61 : vector<1x8x72xf32> to vector<8x72xf32>
    %c1_61 = arith.constant 1 : index
    %c0_62 = arith.constant 0 : index
    %c0_63 = arith.constant 0 : index
    %63 = vector.load %arg3[%c1_61, %c0_62, %c0_63] : memref<6x8x1xf32, #tpu.memory_space<vmem>>, vector<1x8x1xf32>
    %64 = vector.shape_cast %63 : vector<1x8x1xf32> to vector<8x1xf32>
    %cst_64 = arith.constant 0.000000e+00 : f32
    %65 = vector.broadcast %cst_64 : f32 to vector<8x1090xf32>
    %c0_65 = arith.constant 0 : index
    %c0_66 = arith.constant 0 : index
    %66 = vector.load %arg14[%c0_65, %c0_66] : memref<8x1090xf32, #tpu.memory_space<vmem>>, vector<8x1090xf32>
    tpu.vector_store %arg14[%c0_65, %c0_66], %65 {strides = array<i32>} : memref<8x1090xf32, #tpu.memory_space<vmem>>, vector<8x1090xf32>,
    %c0_67 = arith.constant 0 : index
    %c17 = arith.constant 17 : index
    %67 = vector.load %arg14[%c0_67, %c17] : memref<8x1090xf32, #tpu.memory_space<vmem>>, vector<8x256xf32>
    tpu.vector_store %arg14[%c0_67, %c17], %60 {strides = array<i32>} : memref<8x1090xf32, #tpu.memory_space<vmem>>, vector<8x256xf32>,
    %c0_68 = arith.constant 0 : index
    %c0_69 = arith.constant 0 : index
    %c0_70 = arith.constant 0 : index
    %68 = vector.load %arg7[%c0_68, %c0_69, %c0_70] : memref<2x1x256xf32, #tpu.memory_space<vmem>>, vector<1x1x256xf32>
    %69 = vector.shape_cast %68 : vector<1x1x256xf32> to vector<1x256xf32>
    %c1_71 = arith.constant 1 : index
    %c0_72 = arith.constant 0 : index
    %c0_73 = arith.constant 0 : index
    %70 = vector.load %arg7[%c1_71, %c0_72, %c0_73] : memref<2x1x256xf32, #tpu.memory_space<vmem>>, vector<1x1x256xf32>
    %71 = vector.shape_cast %70 : vector<1x1x256xf32> to vector<1x256xf32>
    %c0_74 = arith.constant 0 : index
    %c0_75 = arith.constant 0 : index
    %72 = vector.load %arg14[%c0_74, %c0_75] : memref<8x1090xf32, #tpu.memory_space<vmem>>, vector<8x256xf32>
    %73 = vector.broadcast %69 : vector<1x256xf32> to vector<8x256xf32>
    %74 = arith.mulf %72, %73 : vector<8x256xf32>
    %c0_76 = arith.constant 0 : index
    %c0_77 = arith.constant 0 : index
    %75 = vector.load %arg15[%c0_76, %c0_77] : memref<72x1024xf32, #tpu.memory_space<vmem>>, vector<8x256xf32>
    tpu.vector_store %arg15[%c0_76, %c0_77], %74 {strides = array<i32>} : memref<72x1024xf32, #tpu.memory_space<vmem>>, vector<8x256xf32>,
    %c0_78 = arith.constant 0 : index
    %c1_79 = arith.constant 1 : index
    %76 = vector.load %arg14[%c0_78, %c1_79] : memref<8x1090xf32, #tpu.memory_space<vmem>>, vector<8x256xf32>
    %c8_80 = arith.constant 8 : index
    %c0_81 = arith.constant 0 : index
    %77 = vector.load %arg15[%c8_80, %c0_81] : memref<72x1024xf32, #tpu.memory_space<vmem>>, vector<8x256xf32>
    tpu.vector_store %arg15[%c8_80, %c0_81], %76 {strides = array<i32>} : memref<72x1024xf32, #tpu.memory_space<vmem>>, vector<8x256xf32>,
    %c0_82 = arith.constant 0 : index
    %c2_83 = arith.constant 2 : index
    %78 = vector.load %arg14[%c0_82, %c2_83] : memref<8x1090xf32, #tpu.memory_space<vmem>>, vector<8x256xf32>
    %79 = vector.broadcast %71 : vector<1x256xf32> to vector<8x256xf32>
    %80 = arith.mulf %78, %79 : vector<8x256xf32>
    %c16_84 = arith.constant 16 : index
    %c0_85 = arith.constant 0 : index
    %81 = vector.load %arg15[%c16_84, %c0_85] : memref<72x1024xf32, #tpu.memory_space<vmem>>, vector<8x256xf32>
    tpu.vector_store %arg15[%c16_84, %c0_85], %80 {strides = array<i32>} : memref<72x1024xf32, #tpu.memory_space<vmem>>, vector<8x256xf32>,
    %c0_86 = arith.constant 0 : index
    %c16_87 = arith.constant 16 : index
    %82 = vector.load %arg14[%c0_86, %c16_87] : memref<8x1090xf32, #tpu.memory_space<vmem>>, vector<8x256xf32>
    %83 = vector.broadcast %69 : vector<1x256xf32> to vector<8x256xf32>
    %84 = arith.mulf %82, %83 : vector<8x256xf32>
    %c24_88 = arith.constant 24 : index
    %c0_89 = arith.constant 0 : index
    %85 = vector.load %arg15[%c24_88, %c0_89] : memref<72x1024xf32, #tpu.memory_space<vmem>>, vector<8x256xf32>
    tpu.vector_store %arg15[%c24_88, %c0_89], %84 {strides = array<i32>} : memref<72x1024xf32, #tpu.memory_space<vmem>>, vector<8x256xf32>,
    %c0_90 = arith.constant 0 : index
    %c17_91 = arith.constant 17 : index
    %86 = vector.load %arg14[%c0_90, %c17_91] : memref<8x1090xf32, #tpu.memory_space<vmem>>, vector<8x256xf32>
    %c32_92 = arith.constant 32 : index
    %c0_93 = arith.constant 0 : index
    %87 = vector.load %arg15[%c32_92, %c0_93] : memref<72x1024xf32, #tpu.memory_space<vmem>>, vector<8x256xf32>
    tpu.vector_store %arg15[%c32_92, %c0_93], %86 {strides = array<i32>} : memref<72x1024xf32, #tpu.memory_space<vmem>>, vector<8x256xf32>,
    %c0_94 = arith.constant 0 : index
    %c18 = arith.constant 18 : index
    %88 = vector.load %arg14[%c0_94, %c18] : memref<8x1090xf32, #tpu.memory_space<vmem>>, vector<8x256xf32>
    %89 = vector.broadcast %71 : vector<1x256xf32> to vector<8x256xf32>
    %90 = arith.mulf %88, %89 : vector<8x256xf32>
    %c40_95 = arith.constant 40 : index
    %c0_96 = arith.constant 0 : index
    %91 = vector.load %arg15[%c40_95, %c0_96] : memref<72x1024xf32, #tpu.memory_space<vmem>>, vector<8x256xf32>
    tpu.vector_store %arg15[%c40_95, %c0_96], %90 {strides = array<i32>} : memref<72x1024xf32, #tpu.memory_space<vmem>>, vector<8x256xf32>,
    %c0_97 = arith.constant 0 : index
    %c32_98 = arith.constant 32 : index
    %92 = vector.load %arg14[%c0_97, %c32_98] : memref<8x1090xf32, #tpu.memory_space<vmem>>, vector<8x256xf32>
    %93 = vector.broadcast %69 : vector<1x256xf32> to vector<8x256xf32>
    %94 = arith.mulf %92, %93 : vector<8x256xf32>
    %c48_99 = arith.constant 48 : index
    %c0_100 = arith.constant 0 : index
    %95 = vector.load %arg15[%c48_99, %c0_100] : memref<72x1024xf32, #tpu.memory_space<vmem>>, vector<8x256xf32>
    tpu.vector_store %arg15[%c48_99, %c0_100], %94 {strides = array<i32>} : memref<72x1024xf32, #tpu.memory_space<vmem>>, vector<8x256xf32>,
    %c0_101 = arith.constant 0 : index
    %c33_102 = arith.constant 33 : index
    %96 = vector.load %arg14[%c0_101, %c33_102] : memref<8x1090xf32, #tpu.memory_space<vmem>>, vector<8x256xf32>
    %c56_103 = arith.constant 56 : index
    %c0_104 = arith.constant 0 : index
    %97 = vector.load %arg15[%c56_103, %c0_104] : memref<72x1024xf32, #tpu.memory_space<vmem>>, vector<8x256xf32>
    tpu.vector_store %arg15[%c56_103, %c0_104], %96 {strides = array<i32>} : memref<72x1024xf32, #tpu.memory_space<vmem>>, vector<8x256xf32>,
    %c0_105 = arith.constant 0 : index
    %c34_106 = arith.constant 34 : index
    %98 = vector.load %arg14[%c0_105, %c34_106] : memref<8x1090xf32, #tpu.memory_space<vmem>>, vector<8x256xf32>
    %99 = vector.broadcast %71 : vector<1x256xf32> to vector<8x256xf32>
    %100 = arith.mulf %98, %99 : vector<8x256xf32>
    %c64_107 = arith.constant 64 : index
    %c0_108 = arith.constant 0 : index
    %101 = vector.load %arg15[%c64_107, %c0_108] : memref<72x1024xf32, #tpu.memory_space<vmem>>, vector<8x256xf32>
    tpu.vector_store %arg15[%c64_107, %c0_108], %100 {strides = array<i32>} : memref<72x1024xf32, #tpu.memory_space<vmem>>, vector<8x256xf32>,
    %c0_109 = arith.constant 0 : index
    %c0_110 = arith.constant 0 : index
    %102 = vector.load %arg15[%c0_109, %c0_110] : memref<72x1024xf32, #tpu.memory_space<vmem>>, vector<72x256xf32>
    %cst_111 = arith.constant dense<0.000000e+00> : vector<8x256xf32>
    %103 = tpu.matmul %62, %102, %cst_111 {dimension_numbers = #tpu.dot_dimension_numbers<[1], [0], [0], [1], [0, 0, 1, 1], [], []>} : vector<8x72xf32>, vector<72x256xf32>, vector<8x256xf32> -> vector<8x256xf32>
    %104 = vector.broadcast %64 : vector<8x1xf32> to vector<8x256xf32>
    %105 = arith.addf %103, %104 : vector<8x256xf32>
    %cst_112 = arith.constant 2.000000e-01 : f32
    %106 = vector.broadcast %cst_112 : f32 to vector<8x256xf32>
    %107 = arith.mulf %106, %105 : vector<8x256xf32>
    %108 = arith.maximumf %105, %107 : vector<8x256xf32>
    %cst_113 = arith.constant 0.000000e+00 : f32
    %109 = vector.broadcast %cst_113 : f32 to vector<8x1090xf32>
    %c0_114 = arith.constant 0 : index
    %c0_115 = arith.constant 0 : index
    %110 = vector.load %arg14[%c0_114, %c0_115] : memref<8x1090xf32, #tpu.memory_space<vmem>>, vector<8x1090xf32>
    tpu.vector_store %arg14[%c0_114, %c0_115], %109 {strides = array<i32>} : memref<8x1090xf32, #tpu.memory_space<vmem>>, vector<8x1090xf32>,
    %c0_116 = arith.constant 0 : index
    %c0_117 = arith.constant 0 : index
    %111 = vector.load %arg14[%c0_116, %c0_117] : memref<8x1090xf32, #tpu.memory_space<vmem>>, vector<8x256xf32>
    tpu.vector_store %arg14[%c0_116, %c0_117], %108 {strides = array<i32>} : memref<8x1090xf32, #tpu.memory_space<vmem>>, vector<8x256xf32>,
    %c0_118 = arith.constant 0 : index
    %c1_119 = arith.constant 1 : index
    %112 = vector.load %arg14[%c0_118, %c1_119] : memref<8x1090xf32, #tpu.memory_space<vmem>>, vector<8x256xf32>
    %113 = arith.maximumf %108, %112 : vector<8x256xf32>
    %c0_120 = arith.constant 0 : index
    %c16_121 = arith.constant 16 : index
    %114 = vector.load %arg14[%c0_120, %c16_121] : memref<8x1090xf32, #tpu.memory_space<vmem>>, vector<8x256xf32>
    %c0_122 = arith.constant 0 : index
    %c17_123 = arith.constant 17 : index
    %115 = vector.load %arg14[%c0_122, %c17_123] : memref<8x1090xf32, #tpu.memory_space<vmem>>, vector<8x256xf32>
    %116 = arith.maximumf %114, %115 : vector<8x256xf32>
    %117 = arith.maximumf %113, %116 : vector<8x256xf32>
    %c0_124 = arith.constant 0 : index
    %c0_125 = arith.constant 0 : index
    %118 = vector.load %arg10[%c0_124, %c0_125] : memref<256x64xf32, #tpu.memory_space<vmem>>, vector<256x64xf32>
    %cst_126 = arith.constant dense<0.000000e+00> : vector<8x64xf32>
    %119 = tpu.matmul %117, %118, %cst_126 {dimension_numbers = #tpu.dot_dimension_numbers<[1], [0], [0], [1], [0, 0, 1, 1], [], []>} : vector<8x256xf32>, vector<256x64xf32>, vector<8x64xf32> -> vector<8x64xf32>
    %c2_127 = arith.constant 2 : index
    %c0_128 = arith.constant 0 : index
    %c0_129 = arith.constant 0 : index
    %120 = vector.load %arg2[%c2_127, %c0_128, %c0_129] : memref<6x8x72xf32, #tpu.memory_space<vmem>>, vector<1x8x72xf32>
    %121 = vector.shape_cast %120 : vector<1x8x72xf32> to vector<8x72xf32>
    %c2_130 = arith.constant 2 : index
    %c0_131 = arith.constant 0 : index
    %c0_132 = arith.constant 0 : index
    %122 = vector.load %arg3[%c2_130, %c0_131, %c0_132] : memref<6x8x1xf32, #tpu.memory_space<vmem>>, vector<1x8x1xf32>
    %123 = vector.shape_cast %122 : vector<1x8x1xf32> to vector<8x1xf32>
    %cst_133 = arith.constant 0.000000e+00 : f32
    %124 = vector.broadcast %cst_133 : f32 to vector<8x1090xf32>
    %c0_134 = arith.constant 0 : index
    %c0_135 = arith.constant 0 : index
    %125 = vector.load %arg14[%c0_134, %c0_135] : memref<8x1090xf32, #tpu.memory_space<vmem>>, vector<8x1090xf32>
    tpu.vector_store %arg14[%c0_134, %c0_135], %124 {strides = array<i32>} : memref<8x1090xf32, #tpu.memory_space<vmem>>, vector<8x1090xf32>,
    %c0_136 = arith.constant 0 : index
    %c9 = arith.constant 9 : index
    %126 = vector.load %arg14[%c0_136, %c9] : memref<8x1090xf32, #tpu.memory_space<vmem>>, vector<8x64xf32>
    tpu.vector_store %arg14[%c0_136, %c9], %119 {strides = array<i32>} : memref<8x1090xf32, #tpu.memory_space<vmem>>, vector<8x64xf32>,
    %c0_137 = arith.constant 0 : index
    %c0_138 = arith.constant 0 : index
    %c0_139 = arith.constant 0 : index
    %127 = vector.load %arg8[%c0_137, %c0_138, %c0_139] : memref<2x1x64xf32, #tpu.memory_space<vmem>>, vector<1x1x64xf32>
    %128 = vector.shape_cast %127 : vector<1x1x64xf32> to vector<1x64xf32>
    %c1_140 = arith.constant 1 : index
    %c0_141 = arith.constant 0 : index
    %c0_142 = arith.constant 0 : index
    %129 = vector.load %arg8[%c1_140, %c0_141, %c0_142] : memref<2x1x64xf32, #tpu.memory_space<vmem>>, vector<1x1x64xf32>
    %130 = vector.shape_cast %129 : vector<1x1x64xf32> to vector<1x64xf32>
    %c0_143 = arith.constant 0 : index
    %c0_144 = arith.constant 0 : index
    %131 = vector.load %arg14[%c0_143, %c0_144] : memref<8x1090xf32, #tpu.memory_space<vmem>>, vector<8x64xf32>
    %132 = vector.broadcast %128 : vector<1x64xf32> to vector<8x64xf32>
    %133 = arith.mulf %131, %132 : vector<8x64xf32>
    %c0_145 = arith.constant 0 : index
    %c0_146 = arith.constant 0 : index
    %134 = vector.load %arg15[%c0_145, %c0_146] : memref<72x1024xf32, #tpu.memory_space<vmem>>, vector<8x64xf32>
    tpu.vector_store %arg15[%c0_145, %c0_146], %133 {strides = array<i32>} : memref<72x1024xf32, #tpu.memory_space<vmem>>, vector<8x64xf32>,
    %c0_147 = arith.constant 0 : index
    %c1_148 = arith.constant 1 : index
    %135 = vector.load %arg14[%c0_147, %c1_148] : memref<8x1090xf32, #tpu.memory_space<vmem>>, vector<8x64xf32>
    %c8_149 = arith.constant 8 : index
    %c0_150 = arith.constant 0 : index
    %136 = vector.load %arg15[%c8_149, %c0_150] : memref<72x1024xf32, #tpu.memory_space<vmem>>, vector<8x64xf32>
    tpu.vector_store %arg15[%c8_149, %c0_150], %135 {strides = array<i32>} : memref<72x1024xf32, #tpu.memory_space<vmem>>, vector<8x64xf32>,
    %c0_151 = arith.constant 0 : index
    %c2_152 = arith.constant 2 : index
    %137 = vector.load %arg14[%c0_151, %c2_152] : memref<8x1090xf32, #tpu.memory_space<vmem>>, vector<8x64xf32>
    %138 = vector.broadcast %130 : vector<1x64xf32> to vector<8x64xf32>
    %139 = arith.mulf %137, %138 : vector<8x64xf32>
    %c16_153 = arith.constant 16 : index
    %c0_154 = arith.constant 0 : index
    %140 = vector.load %arg15[%c16_153, %c0_154] : memref<72x1024xf32, #tpu.memory_space<vmem>>, vector<8x64xf32>
    tpu.vector_store %arg15[%c16_153, %c0_154], %139 {strides = array<i32>} : memref<72x1024xf32, #tpu.memory_space<vmem>>, vector<8x64xf32>,
    %c0_155 = arith.constant 0 : index
    %c8_156 = arith.constant 8 : index
    %141 = vector.load %arg14[%c0_155, %c8_156] : memref<8x1090xf32, #tpu.memory_space<vmem>>, vector<8x64xf32>
    %142 = vector.broadcast %128 : vector<1x64xf32> to vector<8x64xf32>
    %143 = arith.mulf %141, %142 : vector<8x64xf32>
    %c24_157 = arith.constant 24 : index
    %c0_158 = arith.constant 0 : index
    %144 = vector.load %arg15[%c24_157, %c0_158] : memref<72x1024xf32, #tpu.memory_space<vmem>>, vector<8x64xf32>
    tpu.vector_store %arg15[%c24_157, %c0_158], %143 {strides = array<i32>} : memref<72x1024xf32, #tpu.memory_space<vmem>>, vector<8x64xf32>,
    %c0_159 = arith.constant 0 : index
    %c9_160 = arith.constant 9 : index
    %145 = vector.load %arg14[%c0_159, %c9_160] : memref<8x1090xf32, #tpu.memory_space<vmem>>, vector<8x64xf32>
    %c32_161 = arith.constant 32 : index
    %c0_162 = arith.constant 0 : index
    %146 = vector.load %arg15[%c32_161, %c0_162] : memref<72x1024xf32, #tpu.memory_space<vmem>>, vector<8x64xf32>
    tpu.vector_store %arg15[%c32_161, %c0_162], %145 {strides = array<i32>} : memref<72x1024xf32, #tpu.memory_space<vmem>>, vector<8x64xf32>,
    %c0_163 = arith.constant 0 : index
    %c10 = arith.constant 10 : index
    %147 = vector.load %arg14[%c0_163, %c10] : memref<8x1090xf32, #tpu.memory_space<vmem>>, vector<8x64xf32>
    %148 = vector.broadcast %130 : vector<1x64xf32> to vector<8x64xf32>
    %149 = arith.mulf %147, %148 : vector<8x64xf32>
    %c40_164 = arith.constant 40 : index
    %c0_165 = arith.constant 0 : index
    %150 = vector.load %arg15[%c40_164, %c0_165] : memref<72x1024xf32, #tpu.memory_space<vmem>>, vector<8x64xf32>
    tpu.vector_store %arg15[%c40_164, %c0_165], %149 {strides = array<i32>} : memref<72x1024xf32, #tpu.memory_space<vmem>>, vector<8x64xf32>,
    %c0_166 = arith.constant 0 : index
    %c16_167 = arith.constant 16 : index
    %151 = vector.load %arg14[%c0_166, %c16_167] : memref<8x1090xf32, #tpu.memory_space<vmem>>, vector<8x64xf32>
    %152 = vector.broadcast %128 : vector<1x64xf32> to vector<8x64xf32>
    %153 = arith.mulf %151, %152 : vector<8x64xf32>
    %c48_168 = arith.constant 48 : index
    %c0_169 = arith.constant 0 : index
    %154 = vector.load %arg15[%c48_168, %c0_169] : memref<72x1024xf32, #tpu.memory_space<vmem>>, vector<8x64xf32>
    tpu.vector_store %arg15[%c48_168, %c0_169], %153 {strides = array<i32>} : memref<72x1024xf32, #tpu.memory_space<vmem>>, vector<8x64xf32>,
    %c0_170 = arith.constant 0 : index
    %c17_171 = arith.constant 17 : index
    %155 = vector.load %arg14[%c0_170, %c17_171] : memref<8x1090xf32, #tpu.memory_space<vmem>>, vector<8x64xf32>
    %c56_172 = arith.constant 56 : index
    %c0_173 = arith.constant 0 : index
    %156 = vector.load %arg15[%c56_172, %c0_173] : memref<72x1024xf32, #tpu.memory_space<vmem>>, vector<8x64xf32>
    tpu.vector_store %arg15[%c56_172, %c0_173], %155 {strides = array<i32>} : memref<72x1024xf32, #tpu.memory_space<vmem>>, vector<8x64xf32>,
    %c0_174 = arith.constant 0 : index
    %c18_175 = arith.constant 18 : index
    %157 = vector.load %arg14[%c0_174, %c18_175] : memref<8x1090xf32, #tpu.memory_space<vmem>>, vector<8x64xf32>
    %158 = vector.broadcast %130 : vector<1x64xf32> to vector<8x64xf32>
    %159 = arith.mulf %157, %158 : vector<8x64xf32>
    %c64_176 = arith.constant 64 : index
    %c0_177 = arith.constant 0 : index
    %160 = vector.load %arg15[%c64_176, %c0_177] : memref<72x1024xf32, #tpu.memory_space<vmem>>, vector<8x64xf32>
    tpu.vector_store %arg15[%c64_176, %c0_177], %159 {strides = array<i32>} : memref<72x1024xf32, #tpu.memory_space<vmem>>, vector<8x64xf32>,
    %c0_178 = arith.constant 0 : index
    %c0_179 = arith.constant 0 : index
    %161 = vector.load %arg15[%c0_178, %c0_179] : memref<72x1024xf32, #tpu.memory_space<vmem>>, vector<72x64xf32>
    %cst_180 = arith.constant dense<0.000000e+00> : vector<8x64xf32>
    %162 = tpu.matmul %121, %161, %cst_180 {dimension_numbers = #tpu.dot_dimension_numbers<[1], [0], [0], [1], [0, 0, 1, 1], [], []>} : vector<8x72xf32>, vector<72x64xf32>, vector<8x64xf32> -> vector<8x64xf32>
    %163 = vector.broadcast %123 : vector<8x1xf32> to vector<8x64xf32>
    %164 = arith.addf %162, %163 : vector<8x64xf32>
    %cst_181 = arith.constant 2.000000e-01 : f32
    %165 = vector.broadcast %cst_181 : f32 to vector<8x64xf32>
    %166 = arith.mulf %165, %164 : vector<8x64xf32>
    %167 = arith.maximumf %164, %166 : vector<8x64xf32>
    %c3 = arith.constant 3 : index
    %c0_182 = arith.constant 0 : index
    %c0_183 = arith.constant 0 : index
    %168 = vector.load %arg2[%c3, %c0_182, %c0_183] : memref<6x8x72xf32, #tpu.memory_space<vmem>>, vector<1x8x72xf32>
    %169 = vector.shape_cast %168 : vector<1x8x72xf32> to vector<8x72xf32>
    %c3_184 = arith.constant 3 : index
    %c0_185 = arith.constant 0 : index
    %c0_186 = arith.constant 0 : index
    %170 = vector.load %arg3[%c3_184, %c0_185, %c0_186] : memref<6x8x1xf32, #tpu.memory_space<vmem>>, vector<1x8x1xf32>
    %171 = vector.shape_cast %170 : vector<1x8x1xf32> to vector<8x1xf32>
    %cst_187 = arith.constant 0.000000e+00 : f32
    %172 = vector.broadcast %cst_187 : f32 to vector<8x1090xf32>
    %c0_188 = arith.constant 0 : index
    %c0_189 = arith.constant 0 : index
    %173 = vector.load %arg14[%c0_188, %c0_189] : memref<8x1090xf32, #tpu.memory_space<vmem>>, vector<8x1090xf32>
    tpu.vector_store %arg14[%c0_188, %c0_189], %172 {strides = array<i32>} : memref<8x1090xf32, #tpu.memory_space<vmem>>, vector<8x1090xf32>,
    %c0_190 = arith.constant 0 : index
    %c9_191 = arith.constant 9 : index
    %174 = vector.load %arg14[%c0_190, %c9_191] : memref<8x1090xf32, #tpu.memory_space<vmem>>, vector<8x64xf32>
    tpu.vector_store %arg14[%c0_190, %c9_191], %167 {strides = array<i32>} : memref<8x1090xf32, #tpu.memory_space<vmem>>, vector<8x64xf32>,
    %c0_192 = arith.constant 0 : index
    %c0_193 = arith.constant 0 : index
    %c0_194 = arith.constant 0 : index
    %175 = vector.load %arg8[%c0_192, %c0_193, %c0_194] : memref<2x1x64xf32, #tpu.memory_space<vmem>>, vector<1x1x64xf32>
    %176 = vector.shape_cast %175 : vector<1x1x64xf32> to vector<1x64xf32>
    %c1_195 = arith.constant 1 : index
    %c0_196 = arith.constant 0 : index
    %c0_197 = arith.constant 0 : index
    %177 = vector.load %arg8[%c1_195, %c0_196, %c0_197] : memref<2x1x64xf32, #tpu.memory_space<vmem>>, vector<1x1x64xf32>
    %178 = vector.shape_cast %177 : vector<1x1x64xf32> to vector<1x64xf32>
    %c0_198 = arith.constant 0 : index
    %c0_199 = arith.constant 0 : index
    %179 = vector.load %arg14[%c0_198, %c0_199] : memref<8x1090xf32, #tpu.memory_space<vmem>>, vector<8x64xf32>
    %180 = vector.broadcast %176 : vector<1x64xf32> to vector<8x64xf32>
    %181 = arith.mulf %179, %180 : vector<8x64xf32>
    %c0_200 = arith.constant 0 : index
    %c0_201 = arith.constant 0 : index
    %182 = vector.load %arg15[%c0_200, %c0_201] : memref<72x1024xf32, #tpu.memory_space<vmem>>, vector<8x64xf32>
    tpu.vector_store %arg15[%c0_200, %c0_201], %181 {strides = array<i32>} : memref<72x1024xf32, #tpu.memory_space<vmem>>, vector<8x64xf32>,
    %c0_202 = arith.constant 0 : index
    %c1_203 = arith.constant 1 : index
    %183 = vector.load %arg14[%c0_202, %c1_203] : memref<8x1090xf32, #tpu.memory_space<vmem>>, vector<8x64xf32>
    %c8_204 = arith.constant 8 : index
    %c0_205 = arith.constant 0 : index
    %184 = vector.load %arg15[%c8_204, %c0_205] : memref<72x1024xf32, #tpu.memory_space<vmem>>, vector<8x64xf32>
    tpu.vector_store %arg15[%c8_204, %c0_205], %183 {strides = array<i32>} : memref<72x1024xf32, #tpu.memory_space<vmem>>, vector<8x64xf32>,
    %c0_206 = arith.constant 0 : index
    %c2_207 = arith.constant 2 : index
    %185 = vector.load %arg14[%c0_206, %c2_207] : memref<8x1090xf32, #tpu.memory_space<vmem>>, vector<8x64xf32>
    %186 = vector.broadcast %178 : vector<1x64xf32> to vector<8x64xf32>
    %187 = arith.mulf %185, %186 : vector<8x64xf32>
    %c16_208 = arith.constant 16 : index
    %c0_209 = arith.constant 0 : index
    %188 = vector.load %arg15[%c16_208, %c0_209] : memref<72x1024xf32, #tpu.memory_space<vmem>>, vector<8x64xf32>
    tpu.vector_store %arg15[%c16_208, %c0_209], %187 {strides = array<i32>} : memref<72x1024xf32, #tpu.memory_space<vmem>>, vector<8x64xf32>,
    %c0_210 = arith.constant 0 : index
    %c8_211 = arith.constant 8 : index
    %189 = vector.load %arg14[%c0_210, %c8_211] : memref<8x1090xf32, #tpu.memory_space<vmem>>, vector<8x64xf32>
    %190 = vector.broadcast %176 : vector<1x64xf32> to vector<8x64xf32>
    %191 = arith.mulf %189, %190 : vector<8x64xf32>
    %c24_212 = arith.constant 24 : index
    %c0_213 = arith.constant 0 : index
    %192 = vector.load %arg15[%c24_212, %c0_213] : memref<72x1024xf32, #tpu.memory_space<vmem>>, vector<8x64xf32>
    tpu.vector_store %arg15[%c24_212, %c0_213], %191 {strides = array<i32>} : memref<72x1024xf32, #tpu.memory_space<vmem>>, vector<8x64xf32>,
    %c0_214 = arith.constant 0 : index
    %c9_215 = arith.constant 9 : index
    %193 = vector.load %arg14[%c0_214, %c9_215] : memref<8x1090xf32, #tpu.memory_space<vmem>>, vector<8x64xf32>
    %c32_216 = arith.constant 32 : index
    %c0_217 = arith.constant 0 : index
    %194 = vector.load %arg15[%c32_216, %c0_217] : memref<72x1024xf32, #tpu.memory_space<vmem>>, vector<8x64xf32>
    tpu.vector_store %arg15[%c32_216, %c0_217], %193 {strides = array<i32>} : memref<72x1024xf32, #tpu.memory_space<vmem>>, vector<8x64xf32>,
    %c0_218 = arith.constant 0 : index
    %c10_219 = arith.constant 10 : index
    %195 = vector.load %arg14[%c0_218, %c10_219] : memref<8x1090xf32, #tpu.memory_space<vmem>>, vector<8x64xf32>
    %196 = vector.broadcast %178 : vector<1x64xf32> to vector<8x64xf32>
    %197 = arith.mulf %195, %196 : vector<8x64xf32>
    %c40_220 = arith.constant 40 : index
    %c0_221 = arith.constant 0 : index
    %198 = vector.load %arg15[%c40_220, %c0_221] : memref<72x1024xf32, #tpu.memory_space<vmem>>, vector<8x64xf32>
    tpu.vector_store %arg15[%c40_220, %c0_221], %197 {strides = array<i32>} : memref<72x1024xf32, #tpu.memory_space<vmem>>, vector<8x64xf32>,
    %c0_222 = arith.constant 0 : index
    %c16_223 = arith.constant 16 : index
    %199 = vector.load %arg14[%c0_222, %c16_223] : memref<8x1090xf32, #tpu.memory_space<vmem>>, vector<8x64xf32>
    %200 = vector.broadcast %176 : vector<1x64xf32> to vector<8x64xf32>
    %201 = arith.mulf %199, %200 : vector<8x64xf32>
    %c48_224 = arith.constant 48 : index
    %c0_225 = arith.constant 0 : index
    %202 = vector.load %arg15[%c48_224, %c0_225] : memref<72x1024xf32, #tpu.memory_space<vmem>>, vector<8x64xf32>
    tpu.vector_store %arg15[%c48_224, %c0_225], %201 {strides = array<i32>} : memref<72x1024xf32, #tpu.memory_space<vmem>>, vector<8x64xf32>,
    %c0_226 = arith.constant 0 : index
    %c17_227 = arith.constant 17 : index
    %203 = vector.load %arg14[%c0_226, %c17_227] : memref<8x1090xf32, #tpu.memory_space<vmem>>, vector<8x64xf32>
    %c56_228 = arith.constant 56 : index
    %c0_229 = arith.constant 0 : index
    %204 = vector.load %arg15[%c56_228, %c0_229] : memref<72x1024xf32, #tpu.memory_space<vmem>>, vector<8x64xf32>
    tpu.vector_store %arg15[%c56_228, %c0_229], %203 {strides = array<i32>} : memref<72x1024xf32, #tpu.memory_space<vmem>>, vector<8x64xf32>,
    %c0_230 = arith.constant 0 : index
    %c18_231 = arith.constant 18 : index
    %205 = vector.load %arg14[%c0_230, %c18_231] : memref<8x1090xf32, #tpu.memory_space<vmem>>, vector<8x64xf32>
    %206 = vector.broadcast %178 : vector<1x64xf32> to vector<8x64xf32>
    %207 = arith.mulf %205, %206 : vector<8x64xf32>
    %c64_232 = arith.constant 64 : index
    %c0_233 = arith.constant 0 : index
    %208 = vector.load %arg15[%c64_232, %c0_233] : memref<72x1024xf32, #tpu.memory_space<vmem>>, vector<8x64xf32>
    tpu.vector_store %arg15[%c64_232, %c0_233], %207 {strides = array<i32>} : memref<72x1024xf32, #tpu.memory_space<vmem>>, vector<8x64xf32>,
    %c0_234 = arith.constant 0 : index
    %c0_235 = arith.constant 0 : index
    %209 = vector.load %arg15[%c0_234, %c0_235] : memref<72x1024xf32, #tpu.memory_space<vmem>>, vector<72x64xf32>
    %cst_236 = arith.constant dense<0.000000e+00> : vector<8x64xf32>
    %210 = tpu.matmul %169, %209, %cst_236 {dimension_numbers = #tpu.dot_dimension_numbers<[1], [0], [0], [1], [0, 0, 1, 1], [], []>} : vector<8x72xf32>, vector<72x64xf32>, vector<8x64xf32> -> vector<8x64xf32>
    %211 = vector.broadcast %171 : vector<8x1xf32> to vector<8x64xf32>
    %212 = arith.addf %210, %211 : vector<8x64xf32>
    %cst_237 = arith.constant 2.000000e-01 : f32
    %213 = vector.broadcast %cst_237 : f32 to vector<8x64xf32>
    %214 = arith.mulf %213, %212 : vector<8x64xf32>
    %215 = arith.maximumf %212, %214 : vector<8x64xf32>
    %c0_238 = arith.constant 0 : index
    %c0_239 = arith.constant 0 : index
    %c0_240 = arith.constant 0 : index
    %216 = vector.load %arg4[%c0_238, %c0_239, %c0_240] : memref<4x8x8xf32, #tpu.memory_space<vmem>>, vector<1x8x8xf32>
    %217 = vector.shape_cast %216 : vector<1x8x8xf32> to vector<8x8xf32>
    %c1_241 = arith.constant 1 : index
    %c0_242 = arith.constant 0 : index
    %c0_243 = arith.constant 0 : index
    %218 = vector.load %arg4[%c1_241, %c0_242, %c0_243] : memref<4x8x8xf32, #tpu.memory_space<vmem>>, vector<1x8x8xf32>
    %219 = vector.shape_cast %218 : vector<1x8x8xf32> to vector<8x8xf32>
    %c0_244 = arith.constant 0 : index
    %c0_245 = arith.constant 0 : index
    %c0_246 = arith.constant 0 : index
    %220 = vector.load %arg5[%c0_244, %c0_245, %c0_246] : memref<2x8x1xf32, #tpu.memory_space<vmem>>, vector<1x8x1xf32>
    %221 = vector.shape_cast %220 : vector<1x8x1xf32> to vector<8x1xf32>
    %cst_247 = arith.constant dense<0.000000e+00> : vector<8x64xf32>
    %222 = tpu.matmul %219, %215, %cst_247 {dimension_numbers = #tpu.dot_dimension_numbers<[1], [0], [0], [1], [0, 0, 1, 1], [], []>} : vector<8x8xf32>, vector<8x64xf32>, vector<8x64xf32> -> vector<8x64xf32>
    %c0_248 = arith.constant 0 : index
    %c0_249 = arith.constant 0 : index
    %223 = vector.load %arg11[%c0_248, %c0_249] : memref<64x256xf32, #tpu.memory_space<vmem>>, vector<64x256xf32>
    %cst_250 = arith.constant dense<0.000000e+00> : vector<8x256xf32>
    %224 = tpu.matmul %222, %223, %cst_250 {dimension_numbers = #tpu.dot_dimension_numbers<[1], [0], [0], [1], [0, 0, 1, 1], [], []>} : vector<8x64xf32>, vector<64x256xf32>, vector<8x256xf32> -> vector<8x256xf32>
    %cst_251 = arith.constant dense<0.000000e+00> : vector<8x256xf32>
    %225 = tpu.matmul %217, %108, %cst_251 {dimension_numbers = #tpu.dot_dimension_numbers<[1], [0], [0], [1], [0, 0, 1, 1], [], []>} : vector<8x8xf32>, vector<8x256xf32>, vector<8x256xf32> -> vector<8x256xf32>
    %226 = arith.addf %225, %224 : vector<8x256xf32>
    %227 = vector.broadcast %221 : vector<8x1xf32> to vector<8x256xf32>
    %228 = arith.addf %226, %227 : vector<8x256xf32>
    %cst_252 = arith.constant 2.000000e-01 : f32
    %229 = vector.broadcast %cst_252 : f32 to vector<8x256xf32>
    %230 = arith.mulf %229, %228 : vector<8x256xf32>
    %231 = arith.maximumf %228, %230 : vector<8x256xf32>
    %c4 = arith.constant 4 : index
    %c0_253 = arith.constant 0 : index
    %c0_254 = arith.constant 0 : index
    %232 = vector.load %arg2[%c4, %c0_253, %c0_254] : memref<6x8x72xf32, #tpu.memory_space<vmem>>, vector<1x8x72xf32>
    %233 = vector.shape_cast %232 : vector<1x8x72xf32> to vector<8x72xf32>
    %c4_255 = arith.constant 4 : index
    %c0_256 = arith.constant 0 : index
    %c0_257 = arith.constant 0 : index
    %234 = vector.load %arg3[%c4_255, %c0_256, %c0_257] : memref<6x8x1xf32, #tpu.memory_space<vmem>>, vector<1x8x1xf32>
    %235 = vector.shape_cast %234 : vector<1x8x1xf32> to vector<8x1xf32>
    %cst_258 = arith.constant 0.000000e+00 : f32
    %236 = vector.broadcast %cst_258 : f32 to vector<8x1090xf32>
    %c0_259 = arith.constant 0 : index
    %c0_260 = arith.constant 0 : index
    %237 = vector.load %arg14[%c0_259, %c0_260] : memref<8x1090xf32, #tpu.memory_space<vmem>>, vector<8x1090xf32>
    tpu.vector_store %arg14[%c0_259, %c0_260], %236 {strides = array<i32>} : memref<8x1090xf32, #tpu.memory_space<vmem>>, vector<8x1090xf32>,
    %c0_261 = arith.constant 0 : index
    %c17_262 = arith.constant 17 : index
    %238 = vector.load %arg14[%c0_261, %c17_262] : memref<8x1090xf32, #tpu.memory_space<vmem>>, vector<8x256xf32>
    tpu.vector_store %arg14[%c0_261, %c17_262], %231 {strides = array<i32>} : memref<8x1090xf32, #tpu.memory_space<vmem>>, vector<8x256xf32>,
    %c0_263 = arith.constant 0 : index
    %c0_264 = arith.constant 0 : index
    %c0_265 = arith.constant 0 : index
    %239 = vector.load %arg7[%c0_263, %c0_264, %c0_265] : memref<2x1x256xf32, #tpu.memory_space<vmem>>, vector<1x1x256xf32>
    %240 = vector.shape_cast %239 : vector<1x1x256xf32> to vector<1x256xf32>
    %c1_266 = arith.constant 1 : index
    %c0_267 = arith.constant 0 : index
    %c0_268 = arith.constant 0 : index
    %241 = vector.load %arg7[%c1_266, %c0_267, %c0_268] : memref<2x1x256xf32, #tpu.memory_space<vmem>>, vector<1x1x256xf32>
    %242 = vector.shape_cast %241 : vector<1x1x256xf32> to vector<1x256xf32>
    %c0_269 = arith.constant 0 : index
    %c0_270 = arith.constant 0 : index
    %243 = vector.load %arg14[%c0_269, %c0_270] : memref<8x1090xf32, #tpu.memory_space<vmem>>, vector<8x256xf32>
    %244 = vector.broadcast %240 : vector<1x256xf32> to vector<8x256xf32>
    %245 = arith.mulf %243, %244 : vector<8x256xf32>
    %c0_271 = arith.constant 0 : index
    %c0_272 = arith.constant 0 : index
    %246 = vector.load %arg15[%c0_271, %c0_272] : memref<72x1024xf32, #tpu.memory_space<vmem>>, vector<8x256xf32>
    tpu.vector_store %arg15[%c0_271, %c0_272], %245 {strides = array<i32>} : memref<72x1024xf32, #tpu.memory_space<vmem>>, vector<8x256xf32>,
    %c0_273 = arith.constant 0 : index
    %c1_274 = arith.constant 1 : index
    %247 = vector.load %arg14[%c0_273, %c1_274] : memref<8x1090xf32, #tpu.memory_space<vmem>>, vector<8x256xf32>
    %c8_275 = arith.constant 8 : index
    %c0_276 = arith.constant 0 : index
    %248 = vector.load %arg15[%c8_275, %c0_276] : memref<72x1024xf32, #tpu.memory_space<vmem>>, vector<8x256xf32>
    tpu.vector_store %arg15[%c8_275, %c0_276], %247 {strides = array<i32>} : memref<72x1024xf32, #tpu.memory_space<vmem>>, vector<8x256xf32>,
    %c0_277 = arith.constant 0 : index
    %c2_278 = arith.constant 2 : index
    %249 = vector.load %arg14[%c0_277, %c2_278] : memref<8x1090xf32, #tpu.memory_space<vmem>>, vector<8x256xf32>
    %250 = vector.broadcast %242 : vector<1x256xf32> to vector<8x256xf32>
    %251 = arith.mulf %249, %250 : vector<8x256xf32>
    %c16_279 = arith.constant 16 : index
    %c0_280 = arith.constant 0 : index
    %252 = vector.load %arg15[%c16_279, %c0_280] : memref<72x1024xf32, #tpu.memory_space<vmem>>, vector<8x256xf32>
    tpu.vector_store %arg15[%c16_279, %c0_280], %251 {strides = array<i32>} : memref<72x1024xf32, #tpu.memory_space<vmem>>, vector<8x256xf32>,
    %c0_281 = arith.constant 0 : index
    %c16_282 = arith.constant 16 : index
    %253 = vector.load %arg14[%c0_281, %c16_282] : memref<8x1090xf32, #tpu.memory_space<vmem>>, vector<8x256xf32>
    %254 = vector.broadcast %240 : vector<1x256xf32> to vector<8x256xf32>
    %255 = arith.mulf %253, %254 : vector<8x256xf32>
    %c24_283 = arith.constant 24 : index
    %c0_284 = arith.constant 0 : index
    %256 = vector.load %arg15[%c24_283, %c0_284] : memref<72x1024xf32, #tpu.memory_space<vmem>>, vector<8x256xf32>
    tpu.vector_store %arg15[%c24_283, %c0_284], %255 {strides = array<i32>} : memref<72x1024xf32, #tpu.memory_space<vmem>>, vector<8x256xf32>,
    %c0_285 = arith.constant 0 : index
    %c17_286 = arith.constant 17 : index
    %257 = vector.load %arg14[%c0_285, %c17_286] : memref<8x1090xf32, #tpu.memory_space<vmem>>, vector<8x256xf32>
    %c32_287 = arith.constant 32 : index
    %c0_288 = arith.constant 0 : index
    %258 = vector.load %arg15[%c32_287, %c0_288] : memref<72x1024xf32, #tpu.memory_space<vmem>>, vector<8x256xf32>
    tpu.vector_store %arg15[%c32_287, %c0_288], %257 {strides = array<i32>} : memref<72x1024xf32, #tpu.memory_space<vmem>>, vector<8x256xf32>,
    %c0_289 = arith.constant 0 : index
    %c18_290 = arith.constant 18 : index
    %259 = vector.load %arg14[%c0_289, %c18_290] : memref<8x1090xf32, #tpu.memory_space<vmem>>, vector<8x256xf32>
    %260 = vector.broadcast %242 : vector<1x256xf32> to vector<8x256xf32>
    %261 = arith.mulf %259, %260 : vector<8x256xf32>
    %c40_291 = arith.constant 40 : index
    %c0_292 = arith.constant 0 : index
    %262 = vector.load %arg15[%c40_291, %c0_292] : memref<72x1024xf32, #tpu.memory_space<vmem>>, vector<8x256xf32>
    tpu.vector_store %arg15[%c40_291, %c0_292], %261 {strides = array<i32>} : memref<72x1024xf32, #tpu.memory_space<vmem>>, vector<8x256xf32>,
    %c0_293 = arith.constant 0 : index
    %c32_294 = arith.constant 32 : index
    %263 = vector.load %arg14[%c0_293, %c32_294] : memref<8x1090xf32, #tpu.memory_space<vmem>>, vector<8x256xf32>
    %264 = vector.broadcast %240 : vector<1x256xf32> to vector<8x256xf32>
    %265 = arith.mulf %263, %264 : vector<8x256xf32>
    %c48_295 = arith.constant 48 : index
    %c0_296 = arith.constant 0 : index
    %266 = vector.load %arg15[%c48_295, %c0_296] : memref<72x1024xf32, #tpu.memory_space<vmem>>, vector<8x256xf32>
    tpu.vector_store %arg15[%c48_295, %c0_296], %265 {strides = array<i32>} : memref<72x1024xf32, #tpu.memory_space<vmem>>, vector<8x256xf32>,
    %c0_297 = arith.constant 0 : index
    %c33_298 = arith.constant 33 : index
    %267 = vector.load %arg14[%c0_297, %c33_298] : memref<8x1090xf32, #tpu.memory_space<vmem>>, vector<8x256xf32>
    %c56_299 = arith.constant 56 : index
    %c0_300 = arith.constant 0 : index
    %268 = vector.load %arg15[%c56_299, %c0_300] : memref<72x1024xf32, #tpu.memory_space<vmem>>, vector<8x256xf32>
    tpu.vector_store %arg15[%c56_299, %c0_300], %267 {strides = array<i32>} : memref<72x1024xf32, #tpu.memory_space<vmem>>, vector<8x256xf32>,
    %c0_301 = arith.constant 0 : index
    %c34_302 = arith.constant 34 : index
    %269 = vector.load %arg14[%c0_301, %c34_302] : memref<8x1090xf32, #tpu.memory_space<vmem>>, vector<8x256xf32>
    %270 = vector.broadcast %242 : vector<1x256xf32> to vector<8x256xf32>
    %271 = arith.mulf %269, %270 : vector<8x256xf32>
    %c64_303 = arith.constant 64 : index
    %c0_304 = arith.constant 0 : index
    %272 = vector.load %arg15[%c64_303, %c0_304] : memref<72x1024xf32, #tpu.memory_space<vmem>>, vector<8x256xf32>
    tpu.vector_store %arg15[%c64_303, %c0_304], %271 {strides = array<i32>} : memref<72x1024xf32, #tpu.memory_space<vmem>>, vector<8x256xf32>,
    %c0_305 = arith.constant 0 : index
    %c0_306 = arith.constant 0 : index
    %273 = vector.load %arg15[%c0_305, %c0_306] : memref<72x1024xf32, #tpu.memory_space<vmem>>, vector<72x256xf32>
    %cst_307 = arith.constant dense<0.000000e+00> : vector<8x256xf32>
    %274 = tpu.matmul %233, %273, %cst_307 {dimension_numbers = #tpu.dot_dimension_numbers<[1], [0], [0], [1], [0, 0, 1, 1], [], []>} : vector<8x72xf32>, vector<72x256xf32>, vector<8x256xf32> -> vector<8x256xf32>
    %275 = vector.broadcast %235 : vector<8x1xf32> to vector<8x256xf32>
    %276 = arith.addf %274, %275 : vector<8x256xf32>
    %cst_308 = arith.constant 2.000000e-01 : f32
    %277 = vector.broadcast %cst_308 : f32 to vector<8x256xf32>
    %278 = arith.mulf %277, %276 : vector<8x256xf32>
    %279 = arith.maximumf %276, %278 : vector<8x256xf32>
    %c2_309 = arith.constant 2 : index
    %c0_310 = arith.constant 0 : index
    %c0_311 = arith.constant 0 : index
    %280 = vector.load %arg4[%c2_309, %c0_310, %c0_311] : memref<4x8x8xf32, #tpu.memory_space<vmem>>, vector<1x8x8xf32>
    %281 = vector.shape_cast %280 : vector<1x8x8xf32> to vector<8x8xf32>
    %c3_312 = arith.constant 3 : index
    %c0_313 = arith.constant 0 : index
    %c0_314 = arith.constant 0 : index
    %282 = vector.load %arg4[%c3_312, %c0_313, %c0_314] : memref<4x8x8xf32, #tpu.memory_space<vmem>>, vector<1x8x8xf32>
    %283 = vector.shape_cast %282 : vector<1x8x8xf32> to vector<8x8xf32>
    %c1_315 = arith.constant 1 : index
    %c0_316 = arith.constant 0 : index
    %c0_317 = arith.constant 0 : index
    %284 = vector.load %arg5[%c1_315, %c0_316, %c0_317] : memref<2x8x1xf32, #tpu.memory_space<vmem>>, vector<1x8x1xf32>
    %285 = vector.shape_cast %284 : vector<1x8x1xf32> to vector<8x1xf32>
    %cst_318 = arith.constant dense<0.000000e+00> : vector<8x256xf32>
    %286 = tpu.matmul %283, %279, %cst_318 {dimension_numbers = #tpu.dot_dimension_numbers<[1], [0], [0], [1], [0, 0, 1, 1], [], []>} : vector<8x8xf32>, vector<8x256xf32>, vector<8x256xf32> -> vector<8x256xf32>
    %c0_319 = arith.constant 0 : index
    %c0_320 = arith.constant 0 : index
    %287 = vector.load %arg12[%c0_319, %c0_320] : memref<256x1024xf32, #tpu.memory_space<vmem>>, vector<256x1024xf32>
    %cst_321 = arith.constant dense<0.000000e+00> : vector<8x1024xf32>
    %288 = tpu.matmul %286, %287, %cst_321 {dimension_numbers = #tpu.dot_dimension_numbers<[1], [0], [0], [1], [0, 0, 1, 1], [], []>} : vector<8x256xf32>, vector<256x1024xf32>, vector<8x1024xf32> -> vector<8x1024xf32>
    %cst_322 = arith.constant dense<0.000000e+00> : vector<8x1024xf32>
    %289 = tpu.matmul %281, %49, %cst_322 {dimension_numbers = #tpu.dot_dimension_numbers<[1], [0], [0], [1], [0, 0, 1, 1], [], []>} : vector<8x8xf32>, vector<8x1024xf32>, vector<8x1024xf32> -> vector<8x1024xf32>
    %290 = arith.addf %289, %288 : vector<8x1024xf32>
    %291 = vector.broadcast %285 : vector<8x1xf32> to vector<8x1024xf32>
    %292 = arith.addf %290, %291 : vector<8x1024xf32>
    %cst_323 = arith.constant 2.000000e-01 : f32
    %293 = vector.broadcast %cst_323 : f32 to vector<8x1024xf32>
    %294 = arith.mulf %293, %292 : vector<8x1024xf32>
    %295 = arith.maximumf %292, %294 : vector<8x1024xf32>
    %c5 = arith.constant 5 : index
    %c0_324 = arith.constant 0 : index
    %c0_325 = arith.constant 0 : index
    %296 = vector.load %arg2[%c5, %c0_324, %c0_325] : memref<6x8x72xf32, #tpu.memory_space<vmem>>, vector<1x8x72xf32>
    %297 = vector.shape_cast %296 : vector<1x8x72xf32> to vector<8x72xf32>
    %c5_326 = arith.constant 5 : index
    %c0_327 = arith.constant 0 : index
    %c0_328 = arith.constant 0 : index
    %298 = vector.load %arg3[%c5_326, %c0_327, %c0_328] : memref<6x8x1xf32, #tpu.memory_space<vmem>>, vector<1x8x1xf32>
    %299 = vector.shape_cast %298 : vector<1x8x1xf32> to vector<8x1xf32>
    %cst_329 = arith.constant 0.000000e+00 : f32
    %300 = vector.broadcast %cst_329 : f32 to vector<8x1090xf32>
    %c0_330 = arith.constant 0 : index
    %c0_331 = arith.constant 0 : index
    %301 = vector.load %arg14[%c0_330, %c0_331] : memref<8x1090xf32, #tpu.memory_space<vmem>>, vector<8x1090xf32>
    tpu.vector_store %arg14[%c0_330, %c0_331], %300 {strides = array<i32>} : memref<8x1090xf32, #tpu.memory_space<vmem>>, vector<8x1090xf32>,
    %c0_332 = arith.constant 0 : index
    %c33_333 = arith.constant 33 : index
    %302 = vector.load %arg14[%c0_332, %c33_333] : memref<8x1090xf32, #tpu.memory_space<vmem>>, vector<8x1024xf32>
    tpu.vector_store %arg14[%c0_332, %c33_333], %295 {strides = array<i32>} : memref<8x1090xf32, #tpu.memory_space<vmem>>, vector<8x1024xf32>,
    %c0_334 = arith.constant 0 : index
    %c0_335 = arith.constant 0 : index
    %c0_336 = arith.constant 0 : index
    %303 = vector.load %arg6[%c0_334, %c0_335, %c0_336] : memref<2x1x1024xf32, #tpu.memory_space<vmem>>, vector<1x1x1024xf32>
    %304 = vector.shape_cast %303 : vector<1x1x1024xf32> to vector<1x1024xf32>
    %c1_337 = arith.constant 1 : index
    %c0_338 = arith.constant 0 : index
    %c0_339 = arith.constant 0 : index
    %305 = vector.load %arg6[%c1_337, %c0_338, %c0_339] : memref<2x1x1024xf32, #tpu.memory_space<vmem>>, vector<1x1x1024xf32>
    %306 = vector.shape_cast %305 : vector<1x1x1024xf32> to vector<1x1024xf32>
    %c0_340 = arith.constant 0 : index
    %c0_341 = arith.constant 0 : index
    %307 = vector.load %arg14[%c0_340, %c0_341] : memref<8x1090xf32, #tpu.memory_space<vmem>>, vector<8x1024xf32>
    %308 = vector.broadcast %304 : vector<1x1024xf32> to vector<8x1024xf32>
    %309 = arith.mulf %307, %308 : vector<8x1024xf32>
    %c0_342 = arith.constant 0 : index
    %c0_343 = arith.constant 0 : index
    %310 = vector.load %arg15[%c0_342, %c0_343] : memref<72x1024xf32, #tpu.memory_space<vmem>>, vector<8x1024xf32>
    tpu.vector_store %arg15[%c0_342, %c0_343], %309 {strides = array<i32>} : memref<72x1024xf32, #tpu.memory_space<vmem>>, vector<8x1024xf32>,
    %c0_344 = arith.constant 0 : index
    %c1_345 = arith.constant 1 : index
    %311 = vector.load %arg14[%c0_344, %c1_345] : memref<8x1090xf32, #tpu.memory_space<vmem>>, vector<8x1024xf32>
    %c8_346 = arith.constant 8 : index
    %c0_347 = arith.constant 0 : index
    %312 = vector.load %arg15[%c8_346, %c0_347] : memref<72x1024xf32, #tpu.memory_space<vmem>>, vector<8x1024xf32>
    tpu.vector_store %arg15[%c8_346, %c0_347], %311 {strides = array<i32>} : memref<72x1024xf32, #tpu.memory_space<vmem>>, vector<8x1024xf32>,
    %c0_348 = arith.constant 0 : index
    %c2_349 = arith.constant 2 : index
    %313 = vector.load %arg14[%c0_348, %c2_349] : memref<8x1090xf32, #tpu.memory_space<vmem>>, vector<8x1024xf32>
    %314 = vector.broadcast %306 : vector<1x1024xf32> to vector<8x1024xf32>
    %315 = arith.mulf %313, %314 : vector<8x1024xf32>
    %c16_350 = arith.constant 16 : index
    %c0_351 = arith.constant 0 : index
    %316 = vector.load %arg15[%c16_350, %c0_351] : memref<72x1024xf32, #tpu.memory_space<vmem>>, vector<8x1024xf32>
    tpu.vector_store %arg15[%c16_350, %c0_351], %315 {strides = array<i32>} : memref<72x1024xf32, #tpu.memory_space<vmem>>, vector<8x1024xf32>,
    %c0_352 = arith.constant 0 : index
    %c32_353 = arith.constant 32 : index
    %317 = vector.load %arg14[%c0_352, %c32_353] : memref<8x1090xf32, #tpu.memory_space<vmem>>, vector<8x1024xf32>
    %318 = vector.broadcast %304 : vector<1x1024xf32> to vector<8x1024xf32>
    %319 = arith.mulf %317, %318 : vector<8x1024xf32>
    %c24_354 = arith.constant 24 : index
    %c0_355 = arith.constant 0 : index
    %320 = vector.load %arg15[%c24_354, %c0_355] : memref<72x1024xf32, #tpu.memory_space<vmem>>, vector<8x1024xf32>
    tpu.vector_store %arg15[%c24_354, %c0_355], %319 {strides = array<i32>} : memref<72x1024xf32, #tpu.memory_space<vmem>>, vector<8x1024xf32>,
    %c0_356 = arith.constant 0 : index
    %c33_357 = arith.constant 33 : index
    %321 = vector.load %arg14[%c0_356, %c33_357] : memref<8x1090xf32, #tpu.memory_space<vmem>>, vector<8x1024xf32>
    %c32_358 = arith.constant 32 : index
    %c0_359 = arith.constant 0 : index
    %322 = vector.load %arg15[%c32_358, %c0_359] : memref<72x1024xf32, #tpu.memory_space<vmem>>, vector<8x1024xf32>
    tpu.vector_store %arg15[%c32_358, %c0_359], %321 {strides = array<i32>} : memref<72x1024xf32, #tpu.memory_space<vmem>>, vector<8x1024xf32>,
    %c0_360 = arith.constant 0 : index
    %c34_361 = arith.constant 34 : index
    %323 = vector.load %arg14[%c0_360, %c34_361] : memref<8x1090xf32, #tpu.memory_space<vmem>>, vector<8x1024xf32>
    %324 = vector.broadcast %306 : vector<1x1024xf32> to vector<8x1024xf32>
    %325 = arith.mulf %323, %324 : vector<8x1024xf32>
    %c40_362 = arith.constant 40 : index
    %c0_363 = arith.constant 0 : index
    %326 = vector.load %arg15[%c40_362, %c0_363] : memref<72x1024xf32, #tpu.memory_space<vmem>>, vector<8x1024xf32>
    tpu.vector_store %arg15[%c40_362, %c0_363], %325 {strides = array<i32>} : memref<72x1024xf32, #tpu.memory_space<vmem>>, vector<8x1024xf32>,
    %c0_364 = arith.constant 0 : index
    %c64_365 = arith.constant 64 : index
    %327 = vector.load %arg14[%c0_364, %c64_365] : memref<8x1090xf32, #tpu.memory_space<vmem>>, vector<8x1024xf32>
    %328 = vector.broadcast %304 : vector<1x1024xf32> to vector<8x1024xf32>
    %329 = arith.mulf %327, %328 : vector<8x1024xf32>
    %c48_366 = arith.constant 48 : index
    %c0_367 = arith.constant 0 : index
    %330 = vector.load %arg15[%c48_366, %c0_367] : memref<72x1024xf32, #tpu.memory_space<vmem>>, vector<8x1024xf32>
    tpu.vector_store %arg15[%c48_366, %c0_367], %329 {strides = array<i32>} : memref<72x1024xf32, #tpu.memory_space<vmem>>, vector<8x1024xf32>,
    %c0_368 = arith.constant 0 : index
    %c65_369 = arith.constant 65 : index
    %331 = vector.load %arg14[%c0_368, %c65_369] : memref<8x1090xf32, #tpu.memory_space<vmem>>, vector<8x1024xf32>
    %c56_370 = arith.constant 56 : index
    %c0_371 = arith.constant 0 : index
    %332 = vector.load %arg15[%c56_370, %c0_371] : memref<72x1024xf32, #tpu.memory_space<vmem>>, vector<8x1024xf32>
    tpu.vector_store %arg15[%c56_370, %c0_371], %331 {strides = array<i32>} : memref<72x1024xf32, #tpu.memory_space<vmem>>, vector<8x1024xf32>,
    %c0_372 = arith.constant 0 : index
    %c66_373 = arith.constant 66 : index
    %333 = vector.load %arg14[%c0_372, %c66_373] : memref<8x1090xf32, #tpu.memory_space<vmem>>, vector<8x1024xf32>
    %334 = vector.broadcast %306 : vector<1x1024xf32> to vector<8x1024xf32>
    %335 = arith.mulf %333, %334 : vector<8x1024xf32>
    %c64_374 = arith.constant 64 : index
    %c0_375 = arith.constant 0 : index
    %336 = vector.load %arg15[%c64_374, %c0_375] : memref<72x1024xf32, #tpu.memory_space<vmem>>, vector<8x1024xf32>
    tpu.vector_store %arg15[%c64_374, %c0_375], %335 {strides = array<i32>} : memref<72x1024xf32, #tpu.memory_space<vmem>>, vector<8x1024xf32>,
    %c0_376 = arith.constant 0 : index
    %c0_377 = arith.constant 0 : index
    %337 = vector.load %arg15[%c0_376, %c0_377] : memref<72x1024xf32, #tpu.memory_space<vmem>>, vector<72x1024xf32>
    %cst_378 = arith.constant dense<0.000000e+00> : vector<8x1024xf32>
    %338 = tpu.matmul %297, %337, %cst_378 {dimension_numbers = #tpu.dot_dimension_numbers<[1], [0], [0], [1], [0, 0, 1, 1], [], []>} : vector<8x72xf32>, vector<72x1024xf32>, vector<8x1024xf32> -> vector<8x1024xf32>
    %339 = vector.broadcast %299 : vector<8x1xf32> to vector<8x1024xf32>
    %340 = arith.addf %338, %339 : vector<8x1024xf32>
    %cst_379 = arith.constant 2.000000e-01 : f32
    %341 = vector.broadcast %cst_379 : f32 to vector<8x1024xf32>
    %342 = arith.mulf %341, %340 : vector<8x1024xf32>
    %343 = arith.maximumf %340, %342 : vector<8x1024xf32>
    %344 = arith.addf %343, %1 : vector<8x1024xf32>
    %c0_380 = arith.constant 0 : index
    %c0_381 = arith.constant 0 : index
    %c0_382 = arith.constant 0 : index
    %345 = vector.load %arg13[%c0_380, %c0_381, %c0_382] : memref<1x8x1024xf32, #tpu.memory_space<vmem>>, vector<1x8x1024xf32>
    %346 = vector.shape_cast %345 : vector<1x8x1024xf32> to vector<8x1024xf32>
    %347 = vector.shape_cast %344 : vector<8x1024xf32> to vector<1x8x1024xf32>
    tpu.vector_store %arg13[%c0_380, %c0_381, %c0_382], %347 {strides = array<i32>} : memref<1x8x1024xf32, #tpu.memory_space<vmem>>, vector<1x8x1024xf32>,
    return
  }
  func.func @transform_0(%arg0: i32) -> (i32, i32, i32) {
    %c0_i32 = arith.constant 0 : i32
    %c0_i32_0 = arith.constant 0 : i32
    %c0_i32_1 = arith.constant 0 : i32
    return %arg0, %c0_i32, %c0_i32_0 : i32, i32, i32
  }
  func.func @transform_1(%arg0: i32) -> (i32, i32, i32) {
    %c0_i32 = arith.constant 0 : i32
    %c0_i32_0 = arith.constant 0 : i32
    %c0_i32_1 = arith.constant 0 : i32
    %c0_i32_2 = arith.constant 0 : i32
    return %c0_i32, %c0_i32_0, %c0_i32_1 : i32, i32, i32
  }
  func.func @transform_2(%arg0: i32) -> (i32, i32, i32) {
    %c0_i32 = arith.constant 0 : i32
    %c0_i32_0 = arith.constant 0 : i32
    %c0_i32_1 = arith.constant 0 : i32
    %c0_i32_2 = arith.constant 0 : i32
    return %c0_i32, %c0_i32_0, %c0_i32_1 : i32, i32, i32
  }
  func.func @transform_3(%arg0: i32) -> (i32, i32, i32) {
    %c0_i32 = arith.constant 0 : i32
    %c0_i32_0 = arith.constant 0 : i32
    %c0_i32_1 = arith.constant 0 : i32
    %c0_i32_2 = arith.constant 0 : i32
    return %c0_i32, %c0_i32_0, %c0_i32_1 : i32, i32, i32
  }
  func.func @transform_4(%arg0: i32) -> (i32, i32, i32) {
    %c0_i32 = arith.constant 0 : i32
    %c0_i32_0 = arith.constant 0 : i32
    %c0_i32_1 = arith.constant 0 : i32
    %c0_i32_2 = arith.constant 0 : i32
    return %c0_i32, %c0_i32_0, %c0_i32_1 : i32, i32, i32
  }
  func.func @transform_5(%arg0: i32) -> (i32, i32, i32) {
    %c0_i32 = arith.constant 0 : i32
    %c0_i32_0 = arith.constant 0 : i32
    %c0_i32_1 = arith.constant 0 : i32
    %c0_i32_2 = arith.constant 0 : i32
    return %c0_i32, %c0_i32_0, %c0_i32_1 : i32, i32, i32
  }
  func.func @transform_6(%arg0: i32) -> (i32, i32, i32) {
    %c0_i32 = arith.constant 0 : i32
    %c0_i32_0 = arith.constant 0 : i32
    %c0_i32_1 = arith.constant 0 : i32
    %c0_i32_2 = arith.constant 0 : i32
    return %c0_i32, %c0_i32_0, %c0_i32_1 : i32, i32, i32
  }
  func.func @transform_7(%arg0: i32) -> (i32, i32, i32) {
    %c0_i32 = arith.constant 0 : i32
    %c0_i32_0 = arith.constant 0 : i32
    %c0_i32_1 = arith.constant 0 : i32
    %c0_i32_2 = arith.constant 0 : i32
    return %c0_i32, %c0_i32_0, %c0_i32_1 : i32, i32, i32
  }
  func.func @transform_8(%arg0: i32) -> (i32, i32) {
    %c0_i32 = arith.constant 0 : i32
    %c0_i32_0 = arith.constant 0 : i32
    %c0_i32_1 = arith.constant 0 : i32
    return %c0_i32, %c0_i32_0 : i32, i32
  }
  func.func @transform_9(%arg0: i32) -> (i32, i32) {
    %c0_i32 = arith.constant 0 : i32
    %c0_i32_0 = arith.constant 0 : i32
    %c0_i32_1 = arith.constant 0 : i32
    return %c0_i32, %c0_i32_0 : i32, i32
  }
  func.func @transform_10(%arg0: i32) -> (i32, i32) {
    %c0_i32 = arith.constant 0 : i32
    %c0_i32_0 = arith.constant 0 : i32
    %c0_i32_1 = arith.constant 0 : i32
    return %c0_i32, %c0_i32_0 : i32, i32
  }
  func.func @transform_11(%arg0: i32) -> (i32, i32) {
    %c0_i32 = arith.constant 0 : i32
    %c0_i32_0 = arith.constant 0 : i32
    %c0_i32_1 = arith.constant 0 : i32
    return %c0_i32, %c0_i32_0 : i32, i32
  }
  func.func @transform_12(%arg0: i32) -> (i32, i32, i32) {
    %c0_i32 = arith.constant 0 : i32
    %c0_i32_0 = arith.constant 0 : i32
    %c0_i32_1 = arith.constant 0 : i32
    return %arg0, %c0_i32, %c0_i32_0 : i32, i32, i32
  }
}

</mosaic_0001>

<llo_original>
// kernel: encoder_decoder_block.1
$region0: #{encoder_decoder_block.1}
  #allocation0 [shape = 'u32[]', space=smem, size = 0x4, offset = 0x4, fixed_abs, tag = 'smem constant byte address 0x4 - core index']
  #allocation1 [shape = 'u32[144,128]{1,0:T(1,128)}', space=vmem, size = 0x12000, scoped, tag = 'internal scratch']
  #allocation2 [shape = 'f32[8,1090]{1,0:T(8,128)}', space=vmem, size = 0x9000, scoped, tag = 'scratch operand']
  #allocation3 [shape = 'f32[72,1024]{1,0:T(8,128)}', space=vmem, size = 0x48000, scoped, tag = 'scratch operand']
  %s0 = inlined_call_operand.vmem [shape: f32[2,8,1024], index: 0, kind: input, shape index: {}]
  %s1 = inlined_call_operand.vmem [shape: f32[6,8,72], index: 1, kind: input, shape index: {}]
  %s2 = inlined_call_operand.vmem [shape: f32[6,8,1], index: 2, kind: input, shape index: {}]
  %s3 = inlined_call_operand.vmem [shape: f32[4,8,8], index: 3, kind: input, shape index: {}]
  %s4 = inlined_call_operand.vmem [shape: f32[2,8,1], index: 4, kind: input, shape index: {}]
  %s5 = inlined_call_operand.vmem [shape: f32[2,1,1024], index: 5, kind: input, shape index: {}]
  %s6 = inlined_call_operand.vmem [shape: f32[2,1,256], index: 6, kind: input, shape index: {}]
  %s7 = inlined_call_operand.vmem [shape: f32[2,1,64], index: 7, kind: input, shape index: {}]
  %s8 = inlined_call_operand.vmem [shape: f32[1024,256], index: 8, kind: input, shape index: {}]
  %s9 = inlined_call_operand.vmem [shape: f32[256,64], index: 9, kind: input, shape index: {}]
  %s10 = inlined_call_operand.vmem [shape: f32[64,256], index: 10, kind: input, shape index: {}]
  %s11 = inlined_call_operand.vmem [shape: f32[256,1024], index: 11, kind: input, shape index: {}]
  %s12 = inlined_call_operand.vmem [shape: f32[2,8,1024], index: 12, kind: output, shape index: {}]
  %s13 = sld [smem:[#allocation0]]
  $region81: #{encoder_decoder_block.1} parent=0
    _
  %s15 = ssub.s32 1, %s13
  %s16 = scalar_select 0, %s15, %s13
  loop: start=0, step=1, limit=4
  $region2: #{encoder_decoder_block.1} parent=0 // loop_pre_header
    _
  $region3: #{encoder_decoder_block.1} parent=0 // loop_header
    %s18 = sphi 0, %s22
    %p19 = scmp.ge.s32.totalorder %s18, 4
    %s28 = sphi 0, %s30
    %s31 = sphi 0, %s28
    %s32 = sphi 0, %s31
    %s48 = sphi 0, %s32
    %s52 = sphi 0, %s52
    %s54 = sphi 0, %s52
    %s55 = sphi 0, %s54
    %s69 = sphi 0, %s55
    %s73 = sphi 0, %s73
    %s75 = sphi 0, %s73
    %s76 = sphi 0, %s75
    %s90 = sphi 0, %s76
    %s94 = sphi 0, %s94
    %s96 = sphi 0, %s94
    %s97 = sphi 0, %s96
    %s111 = sphi 0, %s97
    %s115 = sphi 0, %s115
    %s117 = sphi 0, %s115
    %s118 = sphi 0, %s117
    %s132 = sphi 0, %s118
    %s136 = sphi 0, %s136
    %s138 = sphi 0, %s136
    %s139 = sphi 0, %s138
    %s153 = sphi 0, %s139
    %s157 = sphi 0, %s157
    %s159 = sphi 0, %s157
    %s160 = sphi 0, %s159
    %s174 = sphi 0, %s160
    %s178 = sphi 0, %s178
    %s180 = sphi 0, %s178
    %s181 = sphi 0, %s180
    %s195 = sphi 0, %s181
    %s199 = sphi 0, %s199
    %s201 = sphi 0, %s199
    %s202 = sphi 0, %s201
    %s216 = sphi 0, %s202
    %s220 = sphi 0, %s220
    %s222 = sphi 0, %s220
    %s223 = sphi 0, %s222
    %s237 = sphi 0, %s223
    %s241 = sphi 0, %s241
    %s243 = sphi 0, %s241
    %s244 = sphi 0, %s243
    %s258 = sphi 0, %s244
    %s262 = sphi 0, %s262
    %s264 = sphi 0, %s262
    %s265 = sphi 0, %s264
    %s279 = sphi 0, %s265
    %s285 = sphi 0, %s287
    %s288 = sphi 0, %s285
    %s289 = sphi 0, %s288
    %s305 = sphi 0, %s289
  $region4: #{encoder_decoder_block.1} parent=0 // loop_header_branch
    %21 = sbr.rel (%p19) target = $region8
  $region5: #{encoder_decoder_block.1} parent=0 // loop_body
    %s23 = ssub.s32 %s18, 1
    %s24 = ssub.s32 %s18, 2
    %s25 = sadd.s32 %s18, 1
    %s26 = ssub.s32 %s18, %s25
    %p27 = scmp.eq.s32.totalorder %s26, 0
    %s29 = sadd.s32 %s28, 1
    %s30 = scalar_select %p27, %s28, %s29
    %p33 = pneg %p27
    %p34 = scmp.eq.s32.totalorder %s18, 1
    %p35 = por %p33, %p34
    %p36 = scmp.ne.s32.totalorder %s28, %s31
    %p37 = scmp.eq.s32.totalorder %s18, 0
    %p38 = por %p36, %p37
    %p39 = scmp.ne.s32.totalorder %s28, %s31
    %p40 = scmp.eq.s32.totalorder %s23, 1
    %p41 = por %p39, %p40
    %p42 = scmp.ne.s32.totalorder %s31, %s32
    %p43 = scmp.eq.s32.totalorder %s23, 0
    %p44 = por %p42, %p43
    %p45 = scmp.ne.s32.totalorder %s31, %s32
    %p46 = scmp.eq.s32.totalorder %s24, 1
    %p47 = por %p45, %p46
    %p49 = scmp.ne.s32.totalorder %s32, %s48
    %p50 = scmp.eq.s32.totalorder %s24, 0
    %p51 = por %p49, %p50
    %s53 = sadd.s32 %s52, 1
    %p56 = scmp.eq.s32.totalorder %s18, 1
    %p57 = scmp.ne.s32.totalorder %s52, %s54
    %p58 = scmp.eq.s32.totalorder %s18, 0
    %p59 = por %p57, %p58
    %p60 = scmp.ne.s32.totalorder %s52, %s54
    %p61 = scmp.eq.s32.totalorder %s23, 1
    %p62 = por %p60, %p61
    %p63 = scmp.ne.s32.totalorder %s54, %s55
    %p64 = scmp.eq.s32.totalorder %s23, 0
    %p65 = por %p63, %p64
    %p66 = scmp.ne.s32.totalorder %s54, %s55
    %p67 = scmp.eq.s32.totalorder %s24, 1
    %p68 = por %p66, %p67
    %p70 = scmp.ne.s32.totalorder %s55, %s69
    %p71 = scmp.eq.s32.totalorder %s24, 0
    %p72 = por %p70, %p71
    %s74 = sadd.s32 %s73, 1
    %p77 = scmp.eq.s32.totalorder %s18, 1
    %p78 = scmp.ne.s32.totalorder %s73, %s75
    %p79 = scmp.eq.s32.totalorder %s18, 0
    %p80 = por %p78, %p79
    %p81 = scmp.ne.s32.totalorder %s73, %s75
    %p82 = scmp.eq.s32.totalorder %s23, 1
    %p83 = por %p81, %p82
    %p84 = scmp.ne.s32.totalorder %s75, %s76
    %p85 = scmp.eq.s32.totalorder %s23, 0
    %p86 = por %p84, %p85
    %p87 = scmp.ne.s32.totalorder %s75, %s76
    %p88 = scmp.eq.s32.totalorder %s24, 1
    %p89 = por %p87, %p88
    %p91 = scmp.ne.s32.totalorder %s76, %s90
    %p92 = scmp.eq.s32.totalorder %s24, 0
    %p93 = por %p91, %p92
    %s95 = sadd.s32 %s94, 1
    %p98 = scmp.eq.s32.totalorder %s18, 1
    %p99 = scmp.ne.s32.totalorder %s94, %s96
    %p100 = scmp.eq.s32.totalorder %s18, 0
    %p101 = por %p99, %p100
    %p102 = scmp.ne.s32.totalorder %s94, %s96
    %p103 = scmp.eq.s32.totalorder %s23, 1
    %p104 = por %p102, %p103
    %p105 = scmp.ne.s32.totalorder %s96, %s97
    %p106 = scmp.eq.s32.totalorder %s23, 0
    %p107 = por %p105, %p106
    %p108 = scmp.ne.s32.totalorder %s96, %s97
    %p109 = scmp.eq.s32.totalorder %s24, 1
    %p110 = por %p108, %p109
    %p112 = scmp.ne.s32.totalorder %s97, %s111
    %p113 = scmp.eq.s32.totalorder %s24, 0
    %p114 = por %p112, %p113
    %s116 = sadd.s32 %s115, 1
    %p119 = scmp.eq.s32.totalorder %s18, 1
    %p120 = scmp.ne.s32.totalorder %s115, %s117
    %p121 = scmp.eq.s32.totalorder %s18, 0
    %p122 = por %p120, %p121
    %p123 = scmp.ne.s32.totalorder %s115, %s117
    %p124 = scmp.eq.s32.totalorder %s23, 1
    %p125 = por %p123, %p124
    %p126 = scmp.ne.s32.totalorder %s117, %s118
    %p127 = scmp.eq.s32.totalorder %s23, 0
    %p128 = por %p126, %p127
    %p129 = scmp.ne.s32.totalorder %s117, %s118
    %p130 = scmp.eq.s32.totalorder %s24, 1
    %p131 = por %p129, %p130
    %p133 = scmp.ne.s32.totalorder %s118, %s132
    %p134 = scmp.eq.s32.totalorder %s24, 0
    %p135 = por %p133, %p134
    %s137 = sadd.s32 %s136, 1
    %p140 = scmp.eq.s32.totalorder %s18, 1
    %p141 = scmp.ne.s32.totalorder %s136, %s138
    %p142 = scmp.eq.s32.totalorder %s18, 0
    %p143 = por %p141, %p142
    %p144 = scmp.ne.s32.totalorder %s136, %s138
    %p145 = scmp.eq.s32.totalorder %s23, 1
    %p146 = por %p144, %p145
    %p147 = scmp.ne.s32.totalorder %s138, %s139
    %p148 = scmp.eq.s32.totalorder %s23, 0
    %p149 = por %p147, %p148
    %p150 = scmp.ne.s32.totalorder %s138, %s139
    %p151 = scmp.eq.s32.totalorder %s24, 1
    %p152 = por %p150, %p151
    %p154 = scmp.ne.s32.totalorder %s139, %s153
    %p155 = scmp.eq.s32.totalorder %s24, 0
    %p156 = por %p154, %p155
    %s158 = sadd.s32 %s157, 1
    %p161 = scmp.eq.s32.totalorder %s18, 1
    %p162 = scmp.ne.s32.totalorder %s157, %s159
    %p163 = scmp.eq.s32.totalorder %s18, 0
    %p164 = por %p162, %p163
    %p165 = scmp.ne.s32.totalorder %s157, %s159
    %p166 = scmp.eq.s32.totalorder %s23, 1
    %p167 = por %p165, %p166
    %p168 = scmp.ne.s32.totalorder %s159, %s160
    %p169 = scmp.eq.s32.totalorder %s23, 0
    %p170 = por %p168, %p169
    %p171 = scmp.ne.s32.totalorder %s159, %s160
    %p172 = scmp.eq.s32.totalorder %s24, 1
    %p173 = por %p171, %p172
    %p175 = scmp.ne.s32.totalorder %s160, %s174
    %p176 = scmp.eq.s32.totalorder %s24, 0
    %p177 = por %p175, %p176
    %s179 = sadd.s32 %s178, 1
    %p182 = scmp.eq.s32.totalorder %s18, 1
    %p183 = scmp.ne.s32.totalorder %s178, %s180
    %p184 = scmp.eq.s32.totalorder %s18, 0
    %p185 = por %p183, %p184
    %p186 = scmp.ne.s32.totalorder %s178, %s180
    %p187 = scmp.eq.s32.totalorder %s23, 1
    %p188 = por %p186, %p187
    %p189 = scmp.ne.s32.totalorder %s180, %s181
    %p190 = scmp.eq.s32.totalorder %s23, 0
    %p191 = por %p189, %p190
    %p192 = scmp.ne.s32.totalorder %s180, %s181
    %p193 = scmp.eq.s32.totalorder %s24, 1
    %p194 = por %p192, %p193
    %p196 = scmp.ne.s32.totalorder %s181, %s195
    %p197 = scmp.eq.s32.totalorder %s24, 0
    %p198 = por %p196, %p197
    %s200 = sadd.s32 %s199, 1
    %p203 = scmp.eq.s32.totalorder %s18, 1
    %p204 = scmp.ne.s32.totalorder %s199, %s201
    %p205 = scmp.eq.s32.totalorder %s18, 0
    %p206 = por %p204, %p205
    %p207 = scmp.ne.s32.totalorder %s199, %s201
    %p208 = scmp.eq.s32.totalorder %s23, 1
    %p209 = por %p207, %p208
    %p210 = scmp.ne.s32.totalorder %s201, %s202
    %p211 = scmp.eq.s32.totalorder %s23, 0
    %p212 = por %p210, %p211
    %p213 = scmp.ne.s32.totalorder %s201, %s202
    %p214 = scmp.eq.s32.totalorder %s24, 1
    %p215 = por %p213, %p214
    %p217 = scmp.ne.s32.totalorder %s202, %s216
    %p218 = scmp.eq.s32.totalorder %s24, 0
    %p219 = por %p217, %p218
    %s221 = sadd.s32 %s220, 1
    %p224 = scmp.eq.s32.totalorder %s18, 1
    %p225 = scmp.ne.s32.totalorder %s220, %s222
    %p226 = scmp.eq.s32.totalorder %s18, 0
    %p227 = por %p225, %p226
    %p228 = scmp.ne.s32.totalorder %s220, %s222
    %p229 = scmp.eq.s32.totalorder %s23, 1
    %p230 = por %p228, %p229
    %p231 = scmp.ne.s32.totalorder %s222, %s223
    %p232 = scmp.eq.s32.totalorder %s23, 0
    %p233 = por %p231, %p232
    %p234 = scmp.ne.s32.totalorder %s222, %s223
    %p235 = scmp.eq.s32.totalorder %s24, 1
    %p236 = por %p234, %p235
    %p238 = scmp.ne.s32.totalorder %s223, %s237
    %p239 = scmp.eq.s32.totalorder %s24, 0
    %p240 = por %p238, %p239
    %s242 = sadd.s32 %s241, 1
    %p245 = scmp.eq.s32.totalorder %s18, 1
    %p246 = scmp.ne.s32.totalorder %s241, %s243
    %p247 = scmp.eq.s32.totalorder %s18, 0
    %p248 = por %p246, %p247
    %p249 = scmp.ne.s32.totalorder %s241, %s243
    %p250 = scmp.eq.s32.totalorder %s23, 1
    %p251 = por %p249, %p250
    %p252 = scmp.ne.s32.totalorder %s243, %s244
    %p253 = scmp.eq.s32.totalorder %s23, 0
    %p254 = por %p252, %p253
    %p255 = scmp.ne.s32.totalorder %s243, %s244
    %p256 = scmp.eq.s32.totalorder %s24, 1
    %p257 = por %p255, %p256
    %p259 = scmp.ne.s32.totalorder %s244, %s258
    %p260 = scmp.eq.s32.totalorder %s24, 0
    %p261 = por %p259, %p260
    %s263 = sadd.s32 %s262, 1
    %p266 = scmp.eq.s32.totalorder %s18, 1
    %p267 = scmp.ne.s32.totalorder %s262, %s264
    %p268 = scmp.eq.s32.totalorder %s18, 0
    %p269 = por %p267, %p268
    %p270 = scmp.ne.s32.totalorder %s262, %s264
    %p271 = scmp.eq.s32.totalorder %s23, 1
    %p272 = por %p270, %p271
    %p273 = scmp.ne.s32.totalorder %s264, %s265
    %p274 = scmp.eq.s32.totalorder %s23, 0
    %p275 = por %p273, %p274
    %p276 = scmp.ne.s32.totalorder %s264, %s265
    %p277 = scmp.eq.s32.totalorder %s24, 1
    %p278 = por %p276, %p277
    %p280 = scmp.ne.s32.totalorder %s265, %s279
    %p281 = scmp.eq.s32.totalorder %s24, 0
    %p282 = por %p280, %p281
    %s283 = ssub.s32 %s18, %s25
    %p284 = scmp.eq.s32.totalorder %s283, 0
    %s286 = sadd.s32 %s285, 1
    %s287 = scalar_select %p284, %s285, %s286
    %p290 = pneg %p284
    %p291 = scmp.eq.s32.totalorder %s18, 1
    %p292 = por %p290, %p291
    %p293 = scmp.ne.s32.totalorder %s285, %s288
    %p294 = scmp.eq.s32.totalorder %s18, 0
    %p295 = por %p293, %p294
    %p296 = scmp.ne.s32.totalorder %s285, %s288
    %p297 = scmp.eq.s32.totalorder %s23, 1
    %p298 = por %p296, %p297
    %p299 = scmp.ne.s32.totalorder %s288, %s289
    %p300 = scmp.eq.s32.totalorder %s23, 0
    %p301 = por %p299, %p300
    %p302 = scmp.ne.s32.totalorder %s288, %s289
    %p303 = scmp.eq.s32.totalorder %s24, 1
    %p304 = por %p302, %p303
    %p306 = scmp.ne.s32.totalorder %s289, %s305
    %p307 = scmp.eq.s32.totalorder %s24, 0
    %p308 = por %p306, %p307
    %p309 = scmp.le.s32.totalorder 1, %s18
    %p310 = scmp.lt.s32.totalorder %s18, 3
    %p311 = pnand %p309, %p310
    %p312 = pneg %p311
    // Predicated region
    $region9: #{encoder_decoder_block.1} parent=5 // pred_check
      _
    $region10: #{encoder_decoder_block.1} parent=5 // pred_check_branch
      %314 = sbr.rel (%p311) target = $region12
    $region11: #{encoder_decoder_block.1} parent=5 // pred_region
      %s315 = ssub.s32 %s18, 1
      // Predicated region
      $region13: #{encoder_decoder_block.1} parent=11 // pred_check
        %p316 = pneg %p65
      $region14: #{encoder_decoder_block.1} parent=11 // pred_check_branch
        %318 = sbr.rel (%p316) target = $region16
      $region15: #{encoder_decoder_block.1} parent=11 // pred_region
        _
      $region16: #{encoder_decoder_block.1} parent=11 // pred_fallthru
        _
      // Predicated region
      $region17: #{encoder_decoder_block.1} parent=11 // pred_check
        %p319 = pneg %p86
      $region18: #{encoder_decoder_block.1} parent=11 // pred_check_branch
        %321 = sbr.rel (%p319) target = $region20
      $region19: #{encoder_decoder_block.1} parent=11 // pred_region
        _
      $region20: #{encoder_decoder_block.1} parent=11 // pred_fallthru
        _
      // Predicated region
      $region21: #{encoder_decoder_block.1} parent=11 // pred_check
        %p322 = pneg %p107
      $region22: #{encoder_decoder_block.1} parent=11 // pred_check_branch
        %324 = sbr.rel (%p322) target = $region24
      $region23: #{encoder_decoder_block.1} parent=11 // pred_region
        _
      $region24: #{encoder_decoder_block.1} parent=11 // pred_fallthru
        _
      // Predicated region
      $region25: #{encoder_decoder_block.1} parent=11 // pred_check
        %p325 = pneg %p128
      $region26: #{encoder_decoder_block.1} parent=11 // pred_check_branch
        %327 = sbr.rel (%p325) target = $region28
      $region27: #{encoder_decoder_block.1} parent=11 // pred_region
        _
      $region28: #{encoder_decoder_block.1} parent=11 // pred_fallthru
        _
      // Predicated region
      $region29: #{encoder_decoder_block.1} parent=11 // pred_check
        %p328 = pneg %p149
      $region30: #{encoder_decoder_block.1} parent=11 // pred_check_branch
        %330 = sbr.rel (%p328) target = $region32
      $region31: #{encoder_decoder_block.1} parent=11 // pred_region
        _
      $region32: #{encoder_decoder_block.1} parent=11 // pred_fallthru
        _
      // Predicated region
      $region33: #{encoder_decoder_block.1} parent=11 // pred_check
        %p331 = pneg %p170
      $region34: #{encoder_decoder_block.1} parent=11 // pred_check_branch
        %333 = sbr.rel (%p331) target = $region36
      $region35: #{encoder_decoder_block.1} parent=11 // pred_region
        _
      $region36: #{encoder_decoder_block.1} parent=11 // pred_fallthru
        _
      // Predicated region
      $region37: #{encoder_decoder_block.1} parent=11 // pred_check
        %p334 = pneg %p191
      $region38: #{encoder_decoder_block.1} parent=11 // pred_check_branch
        %336 = sbr.rel (%p334) target = $region40
      $region39: #{encoder_decoder_block.1} parent=11 // pred_region
        _
      $region40: #{encoder_decoder_block.1} parent=11 // pred_fallthru
        _
      // Predicated region
      $region41: #{encoder_decoder_block.1} parent=11 // pred_check
        %p337 = pneg %p212
      $region42: #{encoder_decoder_block.1} parent=11 // pred_check_branch
        %339 = sbr.rel (%p337) target = $region44
      $region43: #{encoder_decoder_block.1} parent=11 // pred_region
        _
      $region44: #{encoder_decoder_block.1} parent=11 // pred_fallthru
        _
      // Predicated region
      $region45: #{encoder_decoder_block.1} parent=11 // pred_check
        %p340 = pneg %p233
      $region46: #{encoder_decoder_block.1} parent=11 // pred_check_branch
        %342 = sbr.rel (%p340) target = $region48
      $region47: #{encoder_decoder_block.1} parent=11 // pred_region
        _
      $region48: #{encoder_decoder_block.1} parent=11 // pred_fallthru
        _
      // Predicated region
      $region49: #{encoder_decoder_block.1} parent=11 // pred_check
        %p343 = pneg %p254
      $region50: #{encoder_decoder_block.1} parent=11 // pred_check_branch
        %345 = sbr.rel (%p343) target = $region52
      $region51: #{encoder_decoder_block.1} parent=11 // pred_region
        _
      $region52: #{encoder_decoder_block.1} parent=11 // pred_fallthru
        _
      // Predicated region
      $region53: #{encoder_decoder_block.1} parent=11 // pred_check
        %p346 = pneg %p275
      $region54: #{encoder_decoder_block.1} parent=11 // pred_check_branch
        %348 = sbr.rel (%p346) target = $region56
      $region55: #{encoder_decoder_block.1} parent=11 // pred_region
        _
      $region56: #{encoder_decoder_block.1} parent=11 // pred_fallthru
        _
    $region12: #{encoder_decoder_block.1} parent=5 // pred_fallthru
      _
    %p349 = scmp.lt.s32.totalorder %s18, 2
    // Predicated region
    $region57: #{encoder_decoder_block.1} parent=5 // pred_check
      %p350 = pneg %p349
    $region58: #{encoder_decoder_block.1} parent=5 // pred_check_branch
      %352 = sbr.rel (%p350) target = $region60
    $region59: #{encoder_decoder_block.1} parent=5 // pred_region
      // Predicated region
      $region61: #{encoder_decoder_block.1} parent=59 // pred_check
        %p353 = pneg %p38
      $region62: #{encoder_decoder_block.1} parent=59 // pred_check_branch
        %355 = sbr.rel (%p353) target = $region64
      $region63: #{encoder_decoder_block.1} parent=59 // pred_region
        %p356 = scmp.lt.s32.totalorder %s18, 1
        %s357 = scalar_select %p356, %s18, 1
        %s358 = smul.addr %s357, 8
        %s359 = smul.addr %s358, 8
        %s360 = scalar_lea.vmem %s0, %s359
      $region64: #{encoder_decoder_block.1} parent=59 // pred_fallthru
        _
    $region60: #{encoder_decoder_block.1} parent=5 // pred_fallthru
      _
    %p361 = scmp.le.s32.totalorder 1, %s18
    %p362 = scmp.lt.s32.totalorder %s18, 3
    %p363 = pnand %p361, %p362
    %p364 = pneg %p363
    // Predicated region
    $region65: #{encoder_decoder_block.1} parent=5 // pred_check
      _
    $region66: #{encoder_decoder_block.1} parent=5 // pred_check_branch
      %366 = sbr.rel (%p363) target = $region68
    $region67: #{encoder_decoder_block.1} parent=5 // pred_region
      %s367 = ssub.s32 %s18, 1
      %p368 = scmp.lt.s32.totalorder %s23, 1
      %s369 = scalar_select %p368, %s23, 1
      %s370 = smul.addr %s369, 8
      %s371 = smul.addr %s370, 8
      %s372 = scalar_lea.vmem %s0, %s371
      %p373 = pneg %p44
      %p374 = pneg %p41
      %p375 = pneg %p65
      %p376 = pneg %p62
      %p377 = pneg %p86
      %p378 = pneg %p83
      %p379 = pneg %p107
      %p380 = pneg %p104
      %p381 = pneg %p128
      %p382 = pneg %p125
      %p383 = pneg %p149
      %p384 = pneg %p146
      %p385 = pneg %p170
      %p386 = pneg %p167
      %p387 = pneg %p191
      %p388 = pneg %p188
      %p389 = pneg %p212
      %p390 = pneg %p209
      %p391 = pneg %p233
      %p392 = pneg %p230
      %p393 = pneg %p254
      %p394 = pneg %p251
      %p395 = pneg %p275
      %p396 = pneg %p272
      %p397 = pneg %p301
      %p398 = pneg %p298
      %p399 = scmp.lt.s32.totalorder %s23, 1
      %s400 = scalar_select %p399, %s23, 1
      %s401 = smul.addr %s400, 8
      %s402 = smul.addr %s401, 8
      %s403 = scalar_lea.vmem %s12, %s402
      %p404 = scmp.lt.s32.totalorder %s23, 1
      %s405 = scalar_select %p404, %s23, 1
      %s406 = smul.addr %s405, 8
      %s407 = smul.addr %s406, 8
      %s408 = scalar_lea.vmem %s0, %s407
      %p409 = scmp.lt.s32.totalorder %s23, 1
      %s410 = scalar_select %p409, %s23, 1
      %s411 = smul.addr %s410, 8
      %s412 = smul.addr %s411, 8
      %s413 = scalar_lea.vmem %s12, %s412
      %v414 = vld [vmem:[%s408] sm:$0xff]
      %v415 = vld [vmem:[%s408 + $0x8] sm:$0xff]
      %v416 = vld [vmem:[%s408 + $0x10] sm:$0xff]
      %v417 = vld [vmem:[%s408 + $0x18] sm:$0xff]
      %v418 = vld [vmem:[%s408 + $0x20] sm:$0xff]
      %v419 = vld [vmem:[%s408 + $0x28] sm:$0xff]
      %v420 = vld [vmem:[%s408 + $0x30] sm:$0xff]
      %v421 = vld [vmem:[%s408 + $0x38] sm:$0xff]
      %v422 = vld [vmem:[%s1] sm:$0xff]
      %v423 = vld [vmem:[%s2] sm:$0xff]
      %424 = vst [vmem:[#allocation2] sm:$0xff] 0.0
      %425 = vst [vmem:[#allocation2 + $0x8] sm:$0xff] 0.0
      %426 = vst [vmem:[#allocation2 + $0x10] sm:$0xff] 0.0
      %427 = vst [vmem:[#allocation2 + $0x18] sm:$0xff] 0.0
      %428 = vst [vmem:[#allocation2 + $0x20] sm:$0xff] 0.0
      %429 = vst [vmem:[#allocation2 + $0x28] sm:$0xff] 0.0
      %430 = vst [vmem:[#allocation2 + $0x30] sm:$0xff] 0.0
      %431 = vst [vmem:[#allocation2 + $0x38] sm:$0xff] 0.0
      %vm432 = vcmask 539648
      %433 = vst.msk [vmem:[#allocation2 + $0x40] sm:$0xff] %vm432, 0.0
      %442 = vrot.lane.b32.xlu0 %v414, 33
      %v443 = vpop.permute.xlu0 %442
      %444 = vrot.lane.b32.xlu0 %v415, 33
      %v445 = vpop.permute.xlu0 %444
      %446 = vrot.lane.b32.xlu0 %v416, 33
      %v447 = vpop.permute.xlu0 %446
      %448 = vrot.lane.b32.xlu0 %v417, 33
      %v449 = vpop.permute.xlu0 %448
      %450 = vrot.lane.b32.xlu0 %v418, 33
      %v451 = vpop.permute.xlu0 %450
      %452 = vrot.lane.b32.xlu0 %v419, 33
      %v453 = vpop.permute.xlu0 %452
      %454 = vrot.lane.b32.xlu0 %v420, 33
      %v455 = vpop.permute.xlu0 %454
      %456 = vrot.lane.b32.xlu0 %v421, 33
      %v457 = vpop.permute.xlu0 %456
      %vm458 = vcmask 269312
      %v459 = vsel %vm458, %v443, %v445
      %v460 = vsel %vm458, %v445, %v447
      %v461 = vsel %vm458, %v447, %v449
      %v462 = vsel %vm458, %v449, %v451
      %v463 = vsel %vm458, %v451, %v453
      %v464 = vsel %vm458, %v453, %v455
      %v465 = vsel %vm458, %v455, %v457
      %vm475 = vcmask 1047816
      %476 = vst.msk [vmem:[#allocation2] sm:$0xff] %vm475, %v443
      %477 = vst [vmem:[#allocation2 + $0x8] sm:$0xff] %v459
      %478 = vst [vmem:[#allocation2 + $0x10] sm:$0xff] %v460
      %479 = vst [vmem:[#allocation2 + $0x18] sm:$0xff] %v461
      %480 = vst [vmem:[#allocation2 + $0x20] sm:$0xff] %v462
      %481 = vst [vmem:[#allocation2 + $0x28] sm:$0xff] %v463
      %482 = vst [vmem:[#allocation2 + $0x30] sm:$0xff] %v464
      %483 = vst [vmem:[#allocation2 + $0x38] sm:$0xff] %v465
      %484 = vst.msk [vmem:[#allocation2 + $0x40] sm:$0xff] %vm458, %v457
      %v485 = vld [vmem:[%s5] sm:$0xff]
      %s486 = scalar_lea.vmem %s5, 8
      %v487 = vld [vmem:[%s486] sm:$0xff]
      %v488 = vld [vmem:[#allocation2] sm:$0xff]
      %v489 = vld [vmem:[#allocation2 + $0x8] sm:$0xff]
      %v490 = vld [vmem:[#allocation2 + $0x10] sm:$0xff]
      %v491 = vld [vmem:[#allocation2 + $0x18] sm:$0xff]
      %v492 = vld [vmem:[#allocation2 + $0x20] sm:$0xff]
      %v493 = vld [vmem:[#allocation2 + $0x28] sm:$0xff]
      %v494 = vld [vmem:[#allocation2 + $0x30] sm:$0xff]
      %v495 = vld [vmem:[#allocation2 + $0x38] sm:$0xff]
      %v497 = vlaneseq
      %v498 = vshrl.u32 %v497, 7
      %v499 = vsub.s32 0, %v498
      %v500 = vrot.slane %v485, %v499
      %v501 = vlaneseq
      %v502 = vshrl.u32 %v501, 7
      %v503 = vsub.s32 1, %v502
      %v504 = vrot.slane %v485, %v503
      %v505 = vlaneseq
      %v506 = vshrl.u32 %v505, 7
      %v507 = vsub.s32 2, %v506
      %v508 = vrot.slane %v485, %v507
      %v509 = vlaneseq
      %v510 = vshrl.u32 %v509, 7
      %v511 = vsub.s32 3, %v510
      %v512 = vrot.slane %v485, %v511
      %v513 = vlaneseq
      %v514 = vshrl.u32 %v513, 7
      %v515 = vsub.s32 4, %v514
      %v516 = vrot.slane %v485, %v515
      %v517 = vlaneseq
      %v518 = vshrl.u32 %v517, 7
      %v519 = vsub.s32 5, %v518
      %v520 = vrot.slane %v485, %v519
      %v521 = vlaneseq
      %v522 = vshrl.u32 %v521, 7
      %v523 = vsub.s32 6, %v522
      %v524 = vrot.slane %v485, %v523
      %v525 = vlaneseq
      %v526 = vshrl.u32 %v525, 7
      %v527 = vsub.s32 7, %v526
      %v528 = vrot.slane %v485, %v527
      %v537 = vmul.f32 %v488, %v500
      %v538 = vmul.f32 %v489, %v504
      %v539 = vmul.f32 %v490, %v508
      %v540 = vmul.f32 %v491, %v512
      %v541 = vmul.f32 %v492, %v516
      %v542 = vmul.f32 %v493, %v520
      %v543 = vmul.f32 %v494, %v524
      %v544 = vmul.f32 %v495, %v528
      %545 = vst [vmem:[#allocation3] sm:$0xff] %v537
      %546 = vst [vmem:[#allocation3 + $0x8] sm:$0xff] %v538
      %547 = vst [vmem:[#allocation3 + $0x10] sm:$0xff] %v539
      %548 = vst [vmem:[#allocation3 + $0x18] sm:$0xff] %v540
      %549 = vst [vmem:[#allocation3 + $0x20] sm:$0xff] %v541
      %550 = vst [vmem:[#allocation3 + $0x28] sm:$0xff] %v542
      %551 = vst [vmem:[#allocation3 + $0x30] sm:$0xff] %v543
      %552 = vst [vmem:[#allocation3 + $0x38] sm:$0xff] %v544
      %v553 = vld [vmem:[#allocation2] sm:$0xff]
      %v554 = vld [vmem:[#allocation2 + $0x8] sm:$0xff]
      %v555 = vld [vmem:[#allocation2 + $0x10] sm:$0xff]
      %v556 = vld [vmem:[#allocation2 + $0x18] sm:$0xff]
      %v557 = vld [vmem:[#allocation2 + $0x20] sm:$0xff]
      %v558 = vld [vmem:[#allocation2 + $0x28] sm:$0xff]
      %v559 = vld [vmem:[#allocation2 + $0x30] sm:$0xff]
      %v560 = vld [vmem:[#allocation2 + $0x38] sm:$0xff]
      %v561 = vld [vmem:[#allocation2 + $0x40] sm:$0xff]
      %571 = vrot.lane.b32.xlu0 %v553, 127
      %v572 = vpop.permute.xlu0 %571
      %573 = vrot.lane.b32.xlu0 %v554, 127
      %v574 = vpop.permute.xlu0 %573
      %575 = vrot.lane.b32.xlu0 %v555, 127
      %v576 = vpop.permute.xlu0 %575
      %577 = vrot.lane.b32.xlu0 %v556, 127
      %v578 = vpop.permute.xlu0 %577
      %579 = vrot.lane.b32.xlu0 %v557, 127
      %v580 = vpop.permute.xlu0 %579
      %581 = vrot.lane.b32.xlu0 %v558, 127
      %v582 = vpop.permute.xlu0 %581
      %583 = vrot.lane.b32.xlu0 %v559, 127
      %v584 = vpop.permute.xlu0 %583
      %585 = vrot.lane.b32.xlu0 %v560, 127
      %v586 = vpop.permute.xlu0 %585
      %587 = vrot.lane.b32.xlu0 %v561, 127
      %v588 = vpop.permute.xlu0 %587
      %vm589 = vcmask 1039360
      %v590 = vsel %vm589, %v572, %v574
      %v591 = vsel %vm589, %v574, %v576
      %v592 = vsel %vm589, %v576, %v578
      %v593 = vsel %vm589, %v578, %v580
      %v594 = vsel %vm589, %v580, %v582
      %v595 = vsel %vm589, %v582, %v584
      %v596 = vsel %vm589, %v584, %v586
      %v597 = vsel %vm589, %v586, %v588
      %606 = vst [vmem:[#allocation3 + $0x40] sm:$0xff] %v590
      %607 = vst [vmem:[#allocation3 + $0x48] sm:$0xff] %v591
      %608 = vst [vmem:[#allocation3 + $0x50] sm:$0xff] %v592
      %609 = vst [vmem:[#allocation3 + $0x58] sm:$0xff] %v593
      %610 = vst [vmem:[#allocation3 + $0x60] sm:$0xff] %v594
      %611 = vst [vmem:[#allocation3 + $0x68] sm:$0xff] %v595
      %612 = vst [vmem:[#allocation3 + $0x70] sm:$0xff] %v596
      %613 = vst [vmem:[#allocation3 + $0x78] sm:$0xff] %v597
      %v614 = vld [vmem:[#allocation2] sm:$0xff]
      %v615 = vld [vmem:[#allocation2 + $0x8] sm:$0xff]
      %v616 = vld [vmem:[#allocation2 + $0x10] sm:$0xff]
      %v617 = vld [vmem:[#allocation2 + $0x18] sm:$0xff]
      %v618 = vld [vmem:[#allocation2 + $0x20] sm:$0xff]
      %v619 = vld [vmem:[#allocation2 + $0x28] sm:$0xff]
      %v620 = vld [vmem:[#allocation2 + $0x30] sm:$0xff]
      %v621 = vld [vmem:[#allocation2 + $0x38] sm:$0xff]
      %v622 = vld [vmem:[#allocation2 + $0x40] sm:$0xff]
      %v624 = vlaneseq
      %v625 = vshrl.u32 %v624, 7
      %v626 = vsub.s32 0, %v625
      %v627 = vrot.slane %v487, %v626
      %v628 = vlaneseq
      %v629 = vshrl.u32 %v628, 7
      %v630 = vsub.s32 1, %v629
      %v631 = vrot.slane %v487, %v630
      %v632 = vlaneseq
      %v633 = vshrl.u32 %v632, 7
      %v634 = vsub.s32 2, %v633
      %v635 = vrot.slane %v487, %v634
      %v636 = vlaneseq
      %v637 = vshrl.u32 %v636, 7
      %v638 = vsub.s32 3, %v637
      %v639 = vrot.slane %v487, %v638
      %v640 = vlaneseq
      %v641 = vshrl.u32 %v640, 7
      %v642 = vsub.s32 4, %v641
      %v643 = vrot.slane %v487, %v642
      %v644 = vlaneseq
      %v645 = vshrl.u32 %v644, 7
      %v646 = vsub.s32 5, %v645
      %v647 = vrot.slane %v487, %v646
      %v648 = vlaneseq
      %v649 = vshrl.u32 %v648, 7
      %v650 = vsub.s32 6, %v649
      %v651 = vrot.slane %v487, %v650
      %v652 = vlaneseq
      %v653 = vshrl.u32 %v652, 7
      %v654 = vsub.s32 7, %v653
      %v655 = vrot.slane %v487, %v654
      %656 = vrot.lane.b32.xlu0 %v627, 2
      %v657 = vpop.permute.xlu0 %656
      %658 = vrot.lane.b32.xlu0 %v631, 2
      %v659 = vpop.permute.xlu0 %658
      %660 = vrot.lane.b32.xlu0 %v635, 2
      %v661 = vpop.permute.xlu0 %660
      %662 = vrot.lane.b32.xlu0 %v639, 2
      %v663 = vpop.permute.xlu0 %662
      %664 = vrot.lane.b32.xlu0 %v643, 2
      %v665 = vpop.permute.xlu0 %664
      %666 = vrot.lane.b32.xlu0 %v647, 2
      %v667 = vpop.permute.xlu0 %666
      %668 = vrot.lane.b32.xlu0 %v651, 2
      %v669 = vpop.permute.xlu0 %668
      %670 = vrot.lane.b32.xlu0 %v655, 2
      %v671 = vpop.permute.xlu0 %670
      %vm672 = vcmask 15360
      %v673 = vsel %vm672, %v657, %v659
      %v674 = vsel %vm672, %v659, %v661
      %v675 = vsel %vm672, %v661, %v663
      %v676 = vsel %vm672, %v663, %v665
      %v677 = vsel %vm672, %v665, %v667
      %v678 = vsel %vm672, %v667, %v669
      %v679 = vsel %vm672, %v669, %v671
      %v689 = vmul.f32 %v614, %v657
      %v690 = vmul.f32 %v615, %v673
      %v691 = vmul.f32 %v616, %v674
      %v692 = vmul.f32 %v617, %v675
      %v693 = vmul.f32 %v618, %v676
      %v694 = vmul.f32 %v619, %v677
      %v695 = vmul.f32 %v620, %v678
      %v696 = vmul.f32 %v621, %v679
      %v697 = vmul.f32 %v622, %v671
      %707 = vrot.lane.b32.xlu0 %v689, 126
      %v708 = vpop.permute.xlu0 %707
      %709 = vrot.lane.b32.xlu0 %v690, 126
      %v710 = vpop.permute.xlu0 %709
      %711 = vrot.lane.b32.xlu0 %v691, 126
      %v712 = vpop.permute.xlu0 %711
      %713 = vrot.lane.b32.xlu0 %v692, 126
      %v714 = vpop.permute.xlu0 %713
      %715 = vrot.lane.b32.xlu0 %v693, 126
      %v716 = vpop.permute.xlu0 %715
      %717 = vrot.lane.b32.xlu0 %v694, 126
      %v718 = vpop.permute.xlu0 %717
      %719 = vrot.lane.b32.xlu0 %v695, 126
      %v720 = vpop.permute.xlu0 %719
      %721 = vrot.lane.b32.xlu0 %v696, 126
      %v722 = vpop.permute.xlu0 %721
      %723 = vrot.lane.b32.xlu0 %v697, 126
      %v724 = vpop.permute.xlu0 %723
      %vm725 = vcmask 1031168
      %v726 = vsel %vm725, %v708, %v710
      %v727 = vsel %vm725, %v710, %v712
      %v728 = vsel %vm725, %v712, %v714
      %v729 = vsel %vm725, %v714, %v716
      %v730 = vsel %vm725, %v716, %v718
      %v731 = vsel %vm725, %v718, %v720
      %v732 = vsel %vm725, %v720, %v722
      %v733 = vsel %vm725, %v722, %v724
      %742 = vst [vmem:[#allocation3 + $0x80] sm:$0xff] %v726
      %743 = vst [vmem:[#allocation3 + $0x88] sm:$0xff] %v727
      %744 = vst [vmem:[#allocation3 + $0x90] sm:$0xff] %v728
      %745 = vst [vmem:[#allocation3 + $0x98] sm:$0xff] %v729
      %746 = vst [vmem:[#allocation3 + $0xa0] sm:$0xff] %v730
      %747 = vst [vmem:[#allocation3 + $0xa8] sm:$0xff] %v731
      %748 = vst [vmem:[#allocation3 + $0xb0] sm:$0xff] %v732
      %749 = vst [vmem:[#allocation3 + $0xb8] sm:$0xff] %v733
      %v750 = vld [vmem:[#allocation2] sm:$0xff]
      %v751 = vld [vmem:[#allocation2 + $0x8] sm:$0xff]
      %v752 = vld [vmem:[#allocation2 + $0x10] sm:$0xff]
      %v753 = vld [vmem:[#allocation2 + $0x18] sm:$0xff]
      %v754 = vld [vmem:[#allocation2 + $0x20] sm:$0xff]
      %v755 = vld [vmem:[#allocation2 + $0x28] sm:$0xff]
      %v756 = vld [vmem:[#allocation2 + $0x30] sm:$0xff]
      %v757 = vld [vmem:[#allocation2 + $0x38] sm:$0xff]
      %v758 = vld [vmem:[#allocation2 + $0x40] sm:$0xff]
      %759 = vrot.lane.b32.xlu0 %v500, 32
      %v760 = vpop.permute.xlu0 %759
      %761 = vrot.lane.b32.xlu0 %v504, 32
      %v762 = vpop.permute.xlu0 %761
      %763 = vrot.lane.b32.xlu0 %v508, 32
      %v764 = vpop.permute.xlu0 %763
      %765 = vrot.lane.b32.xlu0 %v512, 32
      %v766 = vpop.permute.xlu0 %765
      %767 = vrot.lane.b32.xlu0 %v516, 32
      %v768 = vpop.permute.xlu0 %767
      %769 = vrot.lane.b32.xlu0 %v520, 32
      %v770 = vpop.permute.xlu0 %769
      %771 = vrot.lane.b32.xlu0 %v524, 32
      %v772 = vpop.permute.xlu0 %771
      %773 = vrot.lane.b32.xlu0 %v528, 32
      %v774 = vpop.permute.xlu0 %773
      %vm775 = vcmask 261120
      %v776 = vsel %vm775, %v760, %v762
      %v777 = vsel %vm775, %v762, %v764
      %v778 = vsel %vm775, %v764, %v766
      %v779 = vsel %vm775, %v766, %v768
      %v780 = vsel %vm775, %v768, %v770
      %v781 = vsel %vm775, %v770, %v772
      %v782 = vsel %vm775, %v772, %v774
      %v792 = vmul.f32 %v750, %v760
      %v793 = vmul.f32 %v751, %v776
      %v794 = vmul.f32 %v752, %v777
      %v795 = vmul.f32 %v753, %v778
      %v796 = vmul.f32 %v754, %v779
      %v797 = vmul.f32 %v755, %v780
      %v798 = vmul.f32 %v756, %v781
      %v799 = vmul.f32 %v757, %v782
      %v800 = vmul.f32 %v758, %v774
      %810 = vrot.lane.b32.xlu0 %v792, 96
      %v811 = vpop.permute.xlu0 %810
      %812 = vrot.lane.b32.xlu0 %v793, 96
      %v813 = vpop.permute.xlu0 %812
      %814 = vrot.lane.b32.xlu0 %v794, 96
      %v815 = vpop.permute.xlu0 %814
      %816 = vrot.lane.b32.xlu0 %v795, 96
      %v817 = vpop.permute.xlu0 %816
      %818 = vrot.lane.b32.xlu0 %v796, 96
      %v819 = vpop.permute.xlu0 %818
      %820 = vrot.lane.b32.xlu0 %v797, 96
      %v821 = vpop.permute.xlu0 %820
      %822 = vrot.lane.b32.xlu0 %v798, 96
      %v823 = vpop.permute.xlu0 %822
      %824 = vrot.lane.b32.xlu0 %v799, 96
      %v825 = vpop.permute.xlu0 %824
      %826 = vrot.lane.b32.xlu0 %v800, 96
      %v827 = vpop.permute.xlu0 %826
      %vm828 = vcmask 785408
      %v829 = vsel %vm828, %v811, %v813
      %v830 = vsel %vm828, %v813, %v815
      %v831 = vsel %vm828, %v815, %v817
      %v832 = vsel %vm828, %v817, %v819
      %v833 = vsel %vm828, %v819, %v821
      %v834 = vsel %vm828, %v821, %v823
      %v835 = vsel %vm828, %v823, %v825
      %v836 = vsel %vm828, %v825, %v827
      %845 = vst [vmem:[#allocation3 + $0xc0] sm:$0xff] %v829
      %846 = vst [vmem:[#allocation3 + $0xc8] sm:$0xff] %v830
      %847 = vst [vmem:[#allocation3 + $0xd0] sm:$0xff] %v831
      %848 = vst [vmem:[#allocation3 + $0xd8] sm:$0xff] %v832
      %849 = vst [vmem:[#allocation3 + $0xe0] sm:$0xff] %v833
      %850 = vst [vmem:[#allocation3 + $0xe8] sm:$0xff] %v834
      %851 = vst [vmem:[#allocation3 + $0xf0] sm:$0xff] %v835
      %852 = vst [vmem:[#allocation3 + $0xf8] sm:$0xff] %v836
      %v853 = vld [vmem:[#allocation2] sm:$0xff]
      %v854 = vld [vmem:[#allocation2 + $0x8] sm:$0xff]
      %v855 = vld [vmem:[#allocation2 + $0x10] sm:$0xff]
      %v856 = vld [vmem:[#allocation2 + $0x18] sm:$0xff]
      %v857 = vld [vmem:[#allocation2 + $0x20] sm:$0xff]
      %v858 = vld [vmem:[#allocation2 + $0x28] sm:$0xff]
      %v859 = vld [vmem:[#allocation2 + $0x30] sm:$0xff]
      %v860 = vld [vmem:[#allocation2 + $0x38] sm:$0xff]
      %v861 = vld [vmem:[#allocation2 + $0x40] sm:$0xff]
      %871 = vrot.lane.b32.xlu0 %v853, 95
      %v872 = vpop.permute.xlu0 %871
      %873 = vrot.lane.b32.xlu0 %v854, 95
      %v874 = vpop.permute.xlu0 %873
      %875 = vrot.lane.b32.xlu0 %v855, 95
      %v876 = vpop.permute.xlu0 %875
      %877 = vrot.lane.b32.xlu0 %v856, 95
      %v878 = vpop.permute.xlu0 %877
      %879 = vrot.lane.b32.xlu0 %v857, 95
      %v880 = vpop.permute.xlu0 %879
      %881 = vrot.lane.b32.xlu0 %v858, 95
      %v882 = vpop.permute.xlu0 %881
      %883 = vrot.lane.b32.xlu0 %v859, 95
      %v884 = vpop.permute.xlu0 %883
      %885 = vrot.lane.b32.xlu0 %v860, 95
      %v886 = vpop.permute.xlu0 %885
      %887 = vrot.lane.b32.xlu0 %v861, 95
      %v888 = vpop.permute.xlu0 %887
      %vm889 = vcmask 777216
      %v890 = vsel %vm889, %v872, %v874
      %v891 = vsel %vm889, %v874, %v876
      %v892 = vsel %vm889, %v876, %v878
      %v893 = vsel %vm889, %v878, %v880
      %v894 = vsel %vm889, %v880, %v882
      %v895 = vsel %vm889, %v882, %v884
      %v896 = vsel %vm889, %v884, %v886
      %v897 = vsel %vm889, %v886, %v888
      %906 = vst [vmem:[#allocation3 + $0x100] sm:$0xff] %v890
      %907 = vst [vmem:[#allocation3 + $0x108] sm:$0xff] %v891
      %908 = vst [vmem:[#allocation3 + $0x110] sm:$0xff] %v892
      %909 = vst [vmem:[#allocation3 + $0x118] sm:$0xff] %v893
      %910 = vst [vmem:[#allocation3 + $0x120] sm:$0xff] %v894
      %911 = vst [vmem:[#allocation3 + $0x128] sm:$0xff] %v895
      %912 = vst [vmem:[#allocation3 + $0x130] sm:$0xff] %v896
      %913 = vst [vmem:[#allocation3 + $0x138] sm:$0xff] %v897
      %v914 = vld [vmem:[#allocation2] sm:$0xff]
      %v915 = vld [vmem:[#allocation2 + $0x8] sm:$0xff]
      %v916 = vld [vmem:[#allocation2 + $0x10] sm:$0xff]
      %v917 = vld [vmem:[#allocation2 + $0x18] sm:$0xff]
      %v918 = vld [vmem:[#allocation2 + $0x20] sm:$0xff]
      %v919 = vld [vmem:[#allocation2 + $0x28] sm:$0xff]
      %v920 = vld [vmem:[#allocation2 + $0x30] sm:$0xff]
      %v921 = vld [vmem:[#allocation2 + $0x38] sm:$0xff]
      %v922 = vld [vmem:[#allocation2 + $0x40] sm:$0xff]
      %923 = vrot.lane.b32.xlu0 %v627, 34
      %v924 = vpop.permute.xlu0 %923
      %925 = vrot.lane.b32.xlu0 %v631, 34
      %v926 = vpop.permute.xlu0 %925
      %927 = vrot.lane.b32.xlu0 %v635, 34
      %v928 = vpop.permute.xlu0 %927
      %929 = vrot.lane.b32.xlu0 %v639, 34
      %v930 = vpop.permute.xlu0 %929
      %931 = vrot.lane.b32.xlu0 %v643, 34
      %v932 = vpop.permute.xlu0 %931
      %933 = vrot.lane.b32.xlu0 %v647, 34
      %v934 = vpop.permute.xlu0 %933
      %935 = vrot.lane.b32.xlu0 %v651, 34
      %v936 = vpop.permute.xlu0 %935
      %937 = vrot.lane.b32.xlu0 %v655, 34
      %v938 = vpop.permute.xlu0 %937
      %vm939 = vcmask 277504
      %v940 = vsel %vm939, %v924, %v926
      %v941 = vsel %vm939, %v926, %v928
      %v942 = vsel %vm939, %v928, %v930
      %v943 = vsel %vm939, %v930, %v932
      %v944 = vsel %vm939, %v932, %v934
      %v945 = vsel %vm939, %v934, %v936
      %v946 = vsel %vm939, %v936, %v938
      %v956 = vmul.f32 %v914, %v924
      %v957 = vmul.f32 %v915, %v940
      %v958 = vmul.f32 %v916, %v941
      %v959 = vmul.f32 %v917, %v942
      %v960 = vmul.f32 %v918, %v943
      %v961 = vmul.f32 %v919, %v944
      %v962 = vmul.f32 %v920, %v945
      %v963 = vmul.f32 %v921, %v946
      %v964 = vmul.f32 %v922, %v938
      %974 = vrot.lane.b32.xlu0 %v956, 94
      %v975 = vpop.permute.xlu0 %974
      %976 = vrot.lane.b32.xlu0 %v957, 94
      %v977 = vpop.permute.xlu0 %976
      %978 = vrot.lane.b32.xlu0 %v958, 94
      %v979 = vpop.permute.xlu0 %978
      %980 = vrot.lane.b32.xlu0 %v959, 94
      %v981 = vpop.permute.xlu0 %980
      %982 = vrot.lane.b32.xlu0 %v960, 94
      %v983 = vpop.permute.xlu0 %982
      %984 = vrot.lane.b32.xlu0 %v961, 94
      %v985 = vpop.permute.xlu0 %984
      %986 = vrot.lane.b32.xlu0 %v962, 94
      %v987 = vpop.permute.xlu0 %986
      %988 = vrot.lane.b32.xlu0 %v963, 94
      %v989 = vpop.permute.xlu0 %988
      %990 = vrot.lane.b32.xlu0 %v964, 94
      %v991 = vpop.permute.xlu0 %990
      %vm992 = vcmask 769024
      %v993 = vsel %vm992, %v975, %v977
      %v994 = vsel %vm992, %v977, %v979
      %v995 = vsel %vm992, %v979, %v981
      %v996 = vsel %vm992, %v981, %v983
      %v997 = vsel %vm992, %v983, %v985
      %v998 = vsel %vm992, %v985, %v987
      %v999 = vsel %vm992, %v987, %v989
      %v1000 = vsel %vm992, %v989, %v991
      %1009 = vst [vmem:[#allocation3 + $0x140] sm:$0xff] %v993
      %1010 = vst [vmem:[#allocation3 + $0x148] sm:$0xff] %v994
      %1011 = vst [vmem:[#allocation3 + $0x150] sm:$0xff] %v995
      %1012 = vst [vmem:[#allocation3 + $0x158] sm:$0xff] %v996
      %1013 = vst [vmem:[#allocation3 + $0x160] sm:$0xff] %v997
      %1014 = vst [vmem:[#allocation3 + $0x168] sm:$0xff] %v998
      %1015 = vst [vmem:[#allocation3 + $0x170] sm:$0xff] %v999
      %1016 = vst [vmem:[#allocation3 + $0x178] sm:$0xff] %v1000
      %v1017 = vld [vmem:[#allocation2] sm:$0xff]
      %v1018 = vld [vmem:[#allocation2 + $0x8] sm:$0xff]
      %v1019 = vld [vmem:[#allocation2 + $0x10] sm:$0xff]
      %v1020 = vld [vmem:[#allocation2 + $0x18] sm:$0xff]
      %v1021 = vld [vmem:[#allocation2 + $0x20] sm:$0xff]
      %v1022 = vld [vmem:[#allocation2 + $0x28] sm:$0xff]
      %v1023 = vld [vmem:[#allocation2 + $0x30] sm:$0xff]
      %v1024 = vld [vmem:[#allocation2 + $0x38] sm:$0xff]
      %v1025 = vld [vmem:[#allocation2 + $0x40] sm:$0xff]
      %1026 = vrot.lane.b32.xlu0 %v500, 64
      %v1027 = vpop.permute.xlu0 %1026
      %1028 = vrot.lane.b32.xlu0 %v504, 64
      %v1029 = vpop.permute.xlu0 %1028
      %1030 = vrot.lane.b32.xlu0 %v508, 64
      %v1031 = vpop.permute.xlu0 %1030
      %1032 = vrot.lane.b32.xlu0 %v512, 64
      %v1033 = vpop.permute.xlu0 %1032
      %1034 = vrot.lane.b32.xlu0 %v516, 64
      %v1035 = vpop.permute.xlu0 %1034
      %1036 = vrot.lane.b32.xlu0 %v520, 64
      %v1037 = vpop.permute.xlu0 %1036
      %1038 = vrot.lane.b32.xlu0 %v524, 64
      %v1039 = vpop.permute.xlu0 %1038
      %1040 = vrot.lane.b32.xlu0 %v528, 64
      %v1041 = vpop.permute.xlu0 %1040
      %vm1042 = vcmask 523264
      %v1043 = vsel %vm1042, %v1027, %v1029
      %v1044 = vsel %vm1042, %v1029, %v1031
      %v1045 = vsel %vm1042, %v1031, %v1033
      %v1046 = vsel %vm1042, %v1033, %v1035
      %v1047 = vsel %vm1042, %v1035, %v1037
      %v1048 = vsel %vm1042, %v1037, %v1039
      %v1049 = vsel %vm1042, %v1039, %v1041
      %v1059 = vmul.f32 %v1017, %v1027
      %v1060 = vmul.f32 %v1018, %v1043
      %v1061 = vmul.f32 %v1019, %v1044
      %v1062 = vmul.f32 %v1020, %v1045
      %v1063 = vmul.f32 %v1021, %v1046
      %v1064 = vmul.f32 %v1022, %v1047
      %v1065 = vmul.f32 %v1023, %v1048
      %v1066 = vmul.f32 %v1024, %v1049
      %v1067 = vmul.f32 %v1025, %v1041
      %1077 = vrot.lane.b32.xlu0 %v1059, 64
      %v1078 = vpop.permute.xlu0 %1077
      %1079 = vrot.lane.b32.xlu0 %v1060, 64
      %v1080 = vpop.permute.xlu0 %1079
      %1081 = vrot.lane.b32.xlu0 %v1061, 64
      %v1082 = vpop.permute.xlu0 %1081
      %1083 = vrot.lane.b32.xlu0 %v1062, 64
      %v1084 = vpop.permute.xlu0 %1083
      %1085 = vrot.lane.b32.xlu0 %v1063, 64
      %v1086 = vpop.permute.xlu0 %1085
      %1087 = vrot.lane.b32.xlu0 %v1064, 64
      %v1088 = vpop.permute.xlu0 %1087
      %1089 = vrot.lane.b32.xlu0 %v1065, 64
      %v1090 = vpop.permute.xlu0 %1089
      %1091 = vrot.lane.b32.xlu0 %v1066, 64
      %v1092 = vpop.permute.xlu0 %1091
      %1093 = vrot.lane.b32.xlu0 %v1067, 64
      %v1094 = vpop.permute.xlu0 %1093
      %v1095 = vsel %vm1042, %v1078, %v1080
      %v1096 = vsel %vm1042, %v1080, %v1082
      %v1097 = vsel %vm1042, %v1082, %v1084
      %v1098 = vsel %vm1042, %v1084, %v1086
      %v1099 = vsel %vm1042, %v1086, %v1088
      %v1100 = vsel %vm1042, %v1088, %v1090
      %v1101 = vsel %vm1042, %v1090, %v1092
      %v1102 = vsel %vm1042, %v1092, %v1094
      %1111 = vst [vmem:[#allocation3 + $0x180] sm:$0xff] %v1095
      %1112 = vst [vmem:[#allocation3 + $0x188] sm:$0xff] %v1096
      %1113 = vst [vmem:[#allocation3 + $0x190] sm:$0xff] %v1097
      %1114 = vst [vmem:[#allocation3 + $0x198] sm:$0xff] %v1098
      %1115 = vst [vmem:[#allocation3 + $0x1a0] sm:$0xff] %v1099
      %1116 = vst [vmem:[#allocation3 + $0x1a8] sm:$0xff] %v1100
      %1117 = vst [vmem:[#allocation3 + $0x1b0] sm:$0xff] %v1101
      %1118 = vst [vmem:[#allocation3 + $0x1b8] sm:$0xff] %v1102
      %v1119 = vld [vmem:[#allocation2] sm:$0xff]
      %v1120 = vld [vmem:[#allocation2 + $0x8] sm:$0xff]
      %v1121 = vld [vmem:[#allocation2 + $0x10] sm:$0xff]
      %v1122 = vld [vmem:[#allocation2 + $0x18] sm:$0xff]
      %v1123 = vld [vmem:[#allocation2 + $0x20] sm:$0xff]
      %v1124 = vld [vmem:[#allocation2 + $0x28] sm:$0xff]
      %v1125 = vld [vmem:[#allocation2 + $0x30] sm:$0xff]
      %v1126 = vld [vmem:[#allocation2 + $0x38] sm:$0xff]
      %v1127 = vld [vmem:[#allocation2 + $0x40] sm:$0xff]
      %1137 = vrot.lane.b32.xlu0 %v1119, 63
      %v1138 = vpop.permute.xlu0 %1137
      %1139 = vrot.lane.b32.xlu0 %v1120, 63
      %v1140 = vpop.permute.xlu0 %1139
      %1141 = vrot.lane.b32.xlu0 %v1121, 63
      %v1142 = vpop.permute.xlu0 %1141
      %1143 = vrot.lane.b32.xlu0 %v1122, 63
      %v1144 = vpop.permute.xlu0 %1143
      %1145 = vrot.lane.b32.xlu0 %v1123, 63
      %v1146 = vpop.permute.xlu0 %1145
      %1147 = vrot.lane.b32.xlu0 %v1124, 63
      %v1148 = vpop.permute.xlu0 %1147
      %1149 = vrot.lane.b32.xlu0 %v1125, 63
      %v1150 = vpop.permute.xlu0 %1149
      %1151 = vrot.lane.b32.xlu0 %v1126, 63
      %v1152 = vpop.permute.xlu0 %1151
      %1153 = vrot.lane.b32.xlu0 %v1127, 63
      %v1154 = vpop.permute.xlu0 %1153
      %vm1155 = vcmask 515072
      %v1156 = vsel %vm1155, %v1138, %v1140
      %v1157 = vsel %vm1155, %v1140, %v1142
      %v1158 = vsel %vm1155, %v1142, %v1144
      %v1159 = vsel %vm1155, %v1144, %v1146
      %v1160 = vsel %vm1155, %v1146, %v1148
      %v1161 = vsel %vm1155, %v1148, %v1150
      %v1162 = vsel %vm1155, %v1150, %v1152
      %v1163 = vsel %vm1155, %v1152, %v1154
      %1172 = vst [vmem:[#allocation3 + $0x1c0] sm:$0xff] %v1156
      %1173 = vst [vmem:[#allocation3 + $0x1c8] sm:$0xff] %v1157
      %1174 = vst [vmem:[#allocation3 + $0x1d0] sm:$0xff] %v1158
      %1175 = vst [vmem:[#allocation3 + $0x1d8] sm:$0xff] %v1159
      %1176 = vst [vmem:[#allocation3 + $0x1e0] sm:$0xff] %v1160
      %1177 = vst [vmem:[#allocation3 + $0x1e8] sm:$0xff] %v1161
      %1178 = vst [vmem:[#allocation3 + $0x1f0] sm:$0xff] %v1162
      %1179 = vst [vmem:[#allocation3 + $0x1f8] sm:$0xff] %v1163
      %v1180 = vld [vmem:[#allocation2] sm:$0xff]
      %v1181 = vld [vmem:[#allocation2 + $0x8] sm:$0xff]
      %v1182 = vld [vmem:[#allocation2 + $0x10] sm:$0xff]
      %v1183 = vld [vmem:[#allocation2 + $0x18] sm:$0xff]
      %v1184 = vld [vmem:[#allocation2 + $0x20] sm:$0xff]
      %v1185 = vld [vmem:[#allocation2 + $0x28] sm:$0xff]
      %v1186 = vld [vmem:[#allocation2 + $0x30] sm:$0xff]
      %v1187 = vld [vmem:[#allocation2 + $0x38] sm:$0xff]
      %v1188 = vld [vmem:[#allocation2 + $0x40] sm:$0xff]
      %1189 = vrot.lane.b32.xlu0 %v627, 66
      %v1190 = vpop.permute.xlu0 %1189
      %1191 = vrot.lane.b32.xlu0 %v631, 66
      %v1192 = vpop.permute.xlu0 %1191
      %1193 = vrot.lane.b32.xlu0 %v635, 66
      %v1194 = vpop.permute.xlu0 %1193
      %1195 = vrot.lane.b32.xlu0 %v639, 66
      %v1196 = vpop.permute.xlu0 %1195
      %1197 = vrot.lane.b32.xlu0 %v643, 66
      %v1198 = vpop.permute.xlu0 %1197
      %1199 = vrot.lane.b32.xlu0 %v647, 66
      %v1200 = vpop.permute.xlu0 %1199
      %1201 = vrot.lane.b32.xlu0 %v651, 66
      %v1202 = vpop.permute.xlu0 %1201
      %1203 = vrot.lane.b32.xlu0 %v655, 66
      %v1204 = vpop.permute.xlu0 %1203
      %v1205 = vsel %vm432, %v1190, %v1192
      %v1206 = vsel %vm432, %v1192, %v1194
      %v1207 = vsel %vm432, %v1194, %v1196
      %v1208 = vsel %vm432, %v1196, %v1198
      %v1209 = vsel %vm432, %v1198, %v1200
      %v1210 = vsel %vm432, %v1200, %v1202
      %v1211 = vsel %vm432, %v1202, %v1204
      %v1221 = vmul.f32 %v1180, %v1190
      %v1222 = vmul.f32 %v1181, %v1205
      %v1223 = vmul.f32 %v1182, %v1206
      %v1224 = vmul.f32 %v1183, %v1207
      %v1225 = vmul.f32 %v1184, %v1208
      %v1226 = vmul.f32 %v1185, %v1209
      %v1227 = vmul.f32 %v1186, %v1210
      %v1228 = vmul.f32 %v1187, %v1211
      %v1229 = vmul.f32 %v1188, %v1204
      %1239 = vrot.lane.b32.xlu0 %v1221, 62
      %v1240 = vpop.permute.xlu0 %1239
      %1241 = vrot.lane.b32.xlu0 %v1222, 62
      %v1242 = vpop.permute.xlu0 %1241
      %1243 = vrot.lane.b32.xlu0 %v1223, 62
      %v1244 = vpop.permute.xlu0 %1243
      %1245 = vrot.lane.b32.xlu0 %v1224, 62
      %v1246 = vpop.permute.xlu0 %1245
      %1247 = vrot.lane.b32.xlu0 %v1225, 62
      %v1248 = vpop.permute.xlu0 %1247
      %1249 = vrot.lane.b32.xlu0 %v1226, 62
      %v1250 = vpop.permute.xlu0 %1249
      %1251 = vrot.lane.b32.xlu0 %v1227, 62
      %v1252 = vpop.permute.xlu0 %1251
      %1253 = vrot.lane.b32.xlu0 %v1228, 62
      %v1254 = vpop.permute.xlu0 %1253
      %1255 = vrot.lane.b32.xlu0 %v1229, 62
      %v1256 = vpop.permute.xlu0 %1255
      %vm1257 = vcmask 506880
      %v1258 = vsel %vm1257, %v1240, %v1242
      %v1259 = vsel %vm1257, %v1242, %v1244
      %v1260 = vsel %vm1257, %v1244, %v1246
      %v1261 = vsel %vm1257, %v1246, %v1248
      %v1262 = vsel %vm1257, %v1248, %v1250
      %v1263 = vsel %vm1257, %v1250, %v1252
      %v1264 = vsel %vm1257, %v1252, %v1254
      %v1265 = vsel %vm1257, %v1254, %v1256
      %1274 = vst [vmem:[#allocation3 + $0x200] sm:$0xff] %v1258
      %1275 = vst [vmem:[#allocation3 + $0x208] sm:$0xff] %v1259
      %1276 = vst [vmem:[#allocation3 + $0x210] sm:$0xff] %v1260
      %1277 = vst [vmem:[#allocation3 + $0x218] sm:$0xff] %v1261
      %1278 = vst [vmem:[#allocation3 + $0x220] sm:$0xff] %v1262
      %1279 = vst [vmem:[#allocation3 + $0x228] sm:$0xff] %v1263
      %1280 = vst [vmem:[#allocation3 + $0x230] sm:$0xff] %v1264
      %1281 = vst [vmem:[#allocation3 + $0x238] sm:$0xff] %v1265
      %v1282 = vld [vmem:[#allocation3] sm:$0xff]
      %v1283 = vld [vmem:[#allocation3 + $0x8] sm:$0xff]
      %v1284 = vld [vmem:[#allocation3 + $0x10] sm:$0xff]
      %v1285 = vld [vmem:[#allocation3 + $0x18] sm:$0xff]
      %v1286 = vld [vmem:[#allocation3 + $0x20] sm:$0xff]
      %v1287 = vld [vmem:[#allocation3 + $0x28] sm:$0xff]
      %v1288 = vld [vmem:[#allocation3 + $0x30] sm:$0xff]
      %v1289 = vld [vmem:[#allocation3 + $0x38] sm:$0xff]
      %v1290 = vld [vmem:[#allocation3 + $0x40] sm:$0xff]
      %v1291 = vld [vmem:[#allocation3 + $0x48] sm:$0xff]
      %v1292 = vld [vmem:[#allocation3 + $0x50] sm:$0xff]
      %v1293 = vld [vmem:[#allocation3 + $0x58] sm:$0xff]
      %v1294 = vld [vmem:[#allocation3 + $0x60] sm:$0xff]
      %v1295 = vld [vmem:[#allocation3 + $0x68] sm:$0xff]
      %v1296 = vld [vmem:[#allocation3 + $0x70] sm:$0xff]
      %v1297 = vld [vmem:[#allocation3 + $0x78] sm:$0xff]
      %v1298 = vld [vmem:[#allocation3 + $0x80] sm:$0xff]
      %v1299 = vld [vmem:[#allocation3 + $0x88] sm:$0xff]
      %v1300 = vld [vmem:[#allocation3 + $0x90] sm:$0xff]
      %v1301 = vld [vmem:[#allocation3 + $0x98] sm:$0xff]
      %v1302 = vld [vmem:[#allocation3 + $0xa0] sm:$0xff]
      %v1303 = vld [vmem:[#allocation3 + $0xa8] sm:$0xff]
      %v1304 = vld [vmem:[#allocation3 + $0xb0] sm:$0xff]
      %v1305 = vld [vmem:[#allocation3 + $0xb8] sm:$0xff]
      %v1306 = vld [vmem:[#allocation3 + $0xc0] sm:$0xff]
      %v1307 = vld [vmem:[#allocation3 + $0xc8] sm:$0xff]
      %v1308 = vld [vmem:[#allocation3 + $0xd0] sm:$0xff]
      %v1309 = vld [vmem:[#allocation3 + $0xd8] sm:$0xff]
      %v1310 = vld [vmem:[#allocation3 + $0xe0] sm:$0xff]
      %v1311 = vld [vmem:[#allocation3 + $0xe8] sm:$0xff]
      %v1312 = vld [vmem:[#allocation3 + $0xf0] sm:$0xff]
      %v1313 = vld [vmem:[#allocation3 + $0xf8] sm:$0xff]
      %v1314 = vld [vmem:[#allocation3 + $0x100] sm:$0xff]
      %v1315 = vld [vmem:[#allocation3 + $0x108] sm:$0xff]
      %v1316 = vld [vmem:[#allocation3 + $0x110] sm:$0xff]
      %v1317 = vld [vmem:[#allocation3 + $0x118] sm:$0xff]
      %v1318 = vld [vmem:[#allocation3 + $0x120] sm:$0xff]
      %v1319 = vld [vmem:[#allocation3 + $0x128] sm:$0xff]
      %v1320 = vld [vmem:[#allocation3 + $0x130] sm:$0xff]
      %v1321 = vld [vmem:[#allocation3 + $0x138] sm:$0xff]
      %v1322 = vld [vmem:[#allocation3 + $0x140] sm:$0xff]
      %v1323 = vld [vmem:[#allocation3 + $0x148] sm:$0xff]
      %v1324 = vld [vmem:[#allocation3 + $0x150] sm:$0xff]
      %v1325 = vld [vmem:[#allocation3 + $0x158] sm:$0xff]
      %v1326 = vld [vmem:[#allocation3 + $0x160] sm:$0xff]
      %v1327 = vld [vmem:[#allocation3 + $0x168] sm:$0xff]
      %v1328 = vld [vmem:[#allocation3 + $0x170] sm:$0xff]
      %v1329 = vld [vmem:[#allocation3 + $0x178] sm:$0xff]
      %v1330 = vld [vmem:[#allocation3 + $0x180] sm:$0xff]
      %v1331 = vld [vmem:[#allocation3 + $0x188] sm:$0xff]
      %v1332 = vld [vmem:[#allocation3 + $0x190] sm:$0xff]
      %v1333 = vld [vmem:[#allocation3 + $0x198] sm:$0xff]
      %v1334 = vld [vmem:[#allocation3 + $0x1a0] sm:$0xff]
      %v1335 = vld [vmem:[#allocation3 + $0x1a8] sm:$0xff]
      %v1336 = vld [vmem:[#allocation3 + $0x1b0] sm:$0xff]
      %v1337 = vld [vmem:[#allocation3 + $0x1b8] sm:$0xff]
      %v1338 = vld [vmem:[#allocation3 + $0x1c0] sm:$0xff]
      %v1339 = vld [vmem:[#allocation3 + $0x1c8] sm:$0xff]
      %v1340 = vld [vmem:[#allocation3 + $0x1d0] sm:$0xff]
      %v1341 = vld [vmem:[#allocation3 + $0x1d8] sm:$0xff]
      %v1342 = vld [vmem:[#allocation3 + $0x1e0] sm:$0xff]
      %v1343 = vld [vmem:[#allocation3 + $0x1e8] sm:$0xff]
      %v1344 = vld [vmem:[#allocation3 + $0x1f0] sm:$0xff]
      %v1345 = vld [vmem:[#allocation3 + $0x1f8] sm:$0xff]
      %v1346 = vld [vmem:[#allocation3 + $0x200] sm:$0xff]
      %v1347 = vld [vmem:[#allocation3 + $0x208] sm:$0xff]
      %v1348 = vld [vmem:[#allocation3 + $0x210] sm:$0xff]
      %v1349 = vld [vmem:[#allocation3 + $0x218] sm:$0xff]
      %v1350 = vld [vmem:[#allocation3 + $0x220] sm:$0xff]
      %v1351 = vld [vmem:[#allocation3 + $0x228] sm:$0xff]
      %v1352 = vld [vmem:[#allocation3 + $0x230] sm:$0xff]
      %v1353 = vld [vmem:[#allocation3 + $0x238] sm:$0xff]
      %1355 = vset.pattern.permute.xlu0 0
      %1356 = vperm.xlu0 %1355, %v423
      %v1357 = vpop.permute.xlu0 %1356
      %vm1359 = vcmask 588800
      %v1361 = vsel %vm1359, %v422, 0
      %1363 = vmatprep.subr.mxu0 %v1283
      %1364 = vmatpush1.msra.mxu0 %v1282
      %1365 = vmatprep.subr.mxu0 %v1291
      %1366 = vmatpush1.msra.mxu0 %v1290
      %1367 = vmatprep.subr.mxu0 %v1299
      %1368 = vmatpush1.msra.mxu0 %v1298
      %1369 = vmatprep.subr.mxu0 %v1307
      %1370 = vmatpush1.msra.mxu0 %v1306
      %1371 = vmatprep.subr.mxu0 %v1315
      %1372 = vmatpush1.msra.mxu0 %v1314
      %1373 = vmatprep.subr.mxu0 %v1323
      %1374 = vmatpush1.msra.mxu0 %v1322
      %1375 = vmatprep.subr.mxu0 %v1331
      %1376 = vmatpush1.msra.mxu0 %v1330
      %1377 = vmatprep.subr.mxu0 %v1339
      %1378 = vmatpush1.msra.mxu0 %v1338
      %1379 = vmatprep.subr.mxu0 %v1347
      %1380 = vmatpush1.msra.mxu0 %v1346
      %1381 = vmatprep.subr.mxu0 0.0
      %1382 = vmatpush1.msra.mxu0 0.0
      %1383 = vmatprep.subr.mxu0 0.0
      %1384 = vmatpush1.msra.mxu0 0.0
      %1385 = vmatprep.subr.mxu0 0.0
      %1386 = vmatpush1.msra.mxu0 0.0
      %1387 = vmatprep.subr.mxu0 0.0
      %1388 = vmatpush1.msra.mxu0 0.0
      %1389 = vmatprep.subr.mxu0 0.0
      %1390 = vmatpush1.msra.mxu0 0.0
      %1391 = vmatprep.subr.mxu0 0.0
      %1392 = vmatpush1.msra.mxu0 0.0
      %1393 = vmatprep.subr.mxu0 0.0
      %1394 = vmatpush1.msra.mxu0 0.0
      %1395 = vmatprep.subr.mxu0 0.0
      %1396 = vmatpush1.msra.mxu0 0.0
      %1397 = vmatprep.subr.mxu0 0.0
      %1398 = vmatpush1.msra.mxu0 0.0
      %1399 = vmatprep.subr.mxu0 0.0
      %1400 = vmatpush1.msra.mxu0 0.0
      %1401 = vmatprep.subr.mxu0 0.0
      %1402 = vmatpush1.msra.mxu0 0.0
      %1403 = vmatprep.subr.mxu0 0.0
      %1404 = vmatpush1.msra.mxu0 0.0
      %1405 = vmatprep.subr.mxu0 0.0
      %1406 = vmatpush1.msra.mxu0 0.0
      %1407 = vmatprep.subr.mxu0 0.0
      %1408 = vmatpush1.msra.mxu0 0.0
      %1409 = vmatprep.subr.mxu0 0.0
      %1410 = vmatpush1.msra.mxu0 0.0
      %1411 = vmatprep.subr.mxu0 0.0
      %1412 = vmatpush1.msra.mxu0 0.0
      %1413 = vmatprep.subr.mxu0 0.0
      %1414 = vmatpush1.msra.mxu0 0.0
      %1415 = vmatprep.subr.mxu0 0.0
      %1416 = vmatpush1.msra.mxu0 0.0
      %1417 = vmatprep.subr.mxu0 0.0
      %1418 = vmatpush1.msra.mxu0 0.0
      %1419 = vmatprep.subr.mxu0 0.0
      %1420 = vmatpush1.msra.mxu0 0.0
      %1421 = vmatprep.subr.mxu0 0.0
      %1422 = vmatpush1.msra.mxu0 0.0
      %1423 = vmatprep.subr.mxu0 0.0
      %1424 = vmatpush1.msra.mxu0 0.0
      %1425 = vmatprep.subr.mxu0 0.0
      %1426 = vmatpush1.msra.mxu0 0.0
      %1427 = vmatprep.mubr.f32.mxu0 0.0
      %1428 = vmatmul.mubr.f32.gmra.mrb[0].mxu0 %v1361
      %v1429 = vpop.f32.mrb[0].mxu0
      %v1430 = vadd.f32 %v1357, %v1429
      %v1431 = vpop.f32.mrb[0].mxu0
      %v1432 = vadd.f32 %v1357, %v1431
      %1433 = vdwg.mxu0
      %1434 = vmatprep.subr.mxu0 %v1285
      %1435 = vmatpush1.msra.mxu0 %v1284
      %1436 = vmatprep.subr.mxu0 %v1293
      %1437 = vmatpush1.msra.mxu0 %v1292
      %1438 = vmatprep.subr.mxu0 %v1301
      %1439 = vmatpush1.msra.mxu0 %v1300
      %1440 = vmatprep.subr.mxu0 %v1309
      %1441 = vmatpush1.msra.mxu0 %v1308
      %1442 = vmatprep.subr.mxu0 %v1317
      %1443 = vmatpush1.msra.mxu0 %v1316
      %1444 = vmatprep.subr.mxu0 %v1325
      %1445 = vmatpush1.msra.mxu0 %v1324
      %1446 = vmatprep.subr.mxu0 %v1333
      %1447 = vmatpush1.msra.mxu0 %v1332
      %1448 = vmatprep.subr.mxu0 %v1341
      %1449 = vmatpush1.msra.mxu0 %v1340
      %1450 = vmatprep.subr.mxu0 %v1349
      %1451 = vmatpush1.msra.mxu0 %v1348
      %1452 = vmatprep.subr.mxu0 0.0
      %1453 = vmatpush1.msra.mxu0 0.0
      %1454 = vmatprep.subr.mxu0 0.0
      %1455 = vmatpush1.msra.mxu0 0.0
      %1456 = vmatprep.subr.mxu0 0.0
      %1457 = vmatpush1.msra.mxu0 0.0
      %1458 = vmatprep.subr.mxu0 0.0
      %1459 = vmatpush1.msra.mxu0 0.0
      %1460 = vmatprep.subr.mxu0 0.0
      %1461 = vmatpush1.msra.mxu0 0.0
      %1462 = vmatprep.subr.mxu0 0.0
      %1463 = vmatpush1.msra.mxu0 0.0
      %1464 = vmatprep.subr.mxu0 0.0
      %1465 = vmatpush1.msra.mxu0 0.0
      %1466 = vmatprep.subr.mxu0 0.0
      %1467 = vmatpush1.msra.mxu0 0.0
      %1468 = vmatprep.subr.mxu0 0.0
      %1469 = vmatpush1.msra.mxu0 0.0
      %1470 = vmatprep.subr.mxu0 0.0
      %1471 = vmatpush1.msra.mxu0 0.0
      %1472 = vmatprep.subr.mxu0 0.0
      %1473 = vmatpush1.msra.mxu0 0.0
      %1474 = vmatprep.subr.mxu0 0.0
      %1475 = vmatpush1.msra.mxu0 0.0
      %1476 = vmatprep.subr.mxu0 0.0
      %1477 = vmatpush1.msra.mxu0 0.0
      %1478 = vmatprep.subr.mxu0 0.0
      %1479 = vmatpush1.msra.mxu0 0.0
      %1480 = vmatprep.subr.mxu0 0.0
      %1481 = vmatpush1.msra.mxu0 0.0
      %1482 = vmatprep.subr.mxu0 0.0
      %1483 = vmatpush1.msra.mxu0 0.0
      %1484 = vmatprep.subr.mxu0 0.0
      %1485 = vmatpush1.msra.mxu0 0.0
      %1486 = vmatprep.subr.mxu0 0.0
      %1487 = vmatpush1.msra.mxu0 0.0
      %1488 = vmatprep.subr.mxu0 0.0
      %1489 = vmatpush1.msra.mxu0 0.0
      %1490 = vmatprep.subr.mxu0 0.0
      %1491 = vmatpush1.msra.mxu0 0.0
      %1492 = vmatprep.subr.mxu0 0.0
      %1493 = vmatpush1.msra.mxu0 0.0
      %1494 = vmatprep.subr.mxu0 0.0
      %1495 = vmatpush1.msra.mxu0 0.0
      %1496 = vmatprep.subr.mxu0 0.0
      %1497 = vmatpush1.msra.mxu0 0.0
      %1498 = vmatprep.mubr.f32.mxu0 0.0
      %1499 = vmatmul.mubr.f32.gmra.mrb[0].mxu0 %v1361
      %v1500 = vpop.f32.mrb[0].mxu0
      %v1501 = vadd.f32 %v1357, %v1500
      %v1502 = vpop.f32.mrb[0].mxu0
      %v1503 = vadd.f32 %v1357, %v1502
      %1504 = vdwg.mxu0
      %1505 = vmatprep.subr.mxu0 %v1287
      %1506 = vmatpush1.msra.mxu0 %v1286
      %1507 = vmatprep.subr.mxu0 %v1295
      %1508 = vmatpush1.msra.mxu0 %v1294
      %1509 = vmatprep.subr.mxu0 %v1303
      %1510 = vmatpush1.msra.mxu0 %v1302
      %1511 = vmatprep.subr.mxu0 %v1311
      %1512 = vmatpush1.msra.mxu0 %v1310
      %1513 = vmatprep.subr.mxu0 %v1319
      %1514 = vmatpush1.msra.mxu0 %v1318
      %1515 = vmatprep.subr.mxu0 %v1327
      %1516 = vmatpush1.msra.mxu0 %v1326
      %1517 = vmatprep.subr.mxu0 %v1335
      %1518 = vmatpush1.msra.mxu0 %v1334
      %1519 = vmatprep.subr.mxu0 %v1343
      %1520 = vmatpush1.msra.mxu0 %v1342
      %1521 = vmatprep.subr.mxu0 %v1351
      %1522 = vmatpush1.msra.mxu0 %v1350
      %1523 = vmatprep.subr.mxu0 0.0
      %1524 = vmatpush1.msra.mxu0 0.0
      %1525 = vmatprep.subr.mxu0 0.0
      %1526 = vmatpush1.msra.mxu0 0.0
      %1527 = vmatprep.subr.mxu0 0.0
      %1528 = vmatpush1.msra.mxu0 0.0
      %1529 = vmatprep.subr.mxu0 0.0
      %1530 = vmatpush1.msra.mxu0 0.0
      %1531 = vmatprep.subr.mxu0 0.0
      %1532 = vmatpush1.msra.mxu0 0.0
      %1533 = vmatprep.subr.mxu0 0.0
      %1534 = vmatpush1.msra.mxu0 0.0
      %1535 = vmatprep.subr.mxu0 0.0
      %1536 = vmatpush1.msra.mxu0 0.0
      %1537 = vmatprep.subr.mxu0 0.0
      %1538 = vmatpush1.msra.mxu0 0.0
      %1539 = vmatprep.subr.mxu0 0.0
      %1540 = vmatpush1.msra.mxu0 0.0
      %1541 = vmatprep.subr.mxu0 0.0
      %1542 = vmatpush1.msra.mxu0 0.0
      %1543 = vmatprep.subr.mxu0 0.0
      %1544 = vmatpush1.msra.mxu0 0.0
      %1545 = vmatprep.subr.mxu0 0.0
      %1546 = vmatpush1.msra.mxu0 0.0
      %1547 = vmatprep.subr.mxu0 0.0
      %1548 = vmatpush1.msra.mxu0 0.0
      %1549 = vmatprep.subr.mxu0 0.0
      %1550 = vmatpush1.msra.mxu0 0.0
      %1551 = vmatprep.subr.mxu0 0.0
      %1552 = vmatpush1.msra.mxu0 0.0
      %1553 = vmatprep.subr.mxu0 0.0
      %1554 = vmatpush1.msra.mxu0 0.0
      %1555 = vmatprep.subr.mxu0 0.0
      %1556 = vmatpush1.msra.mxu0 0.0
      %1557 = vmatprep.subr.mxu0 0.0
      %1558 = vmatpush1.msra.mxu0 0.0
      %1559 = vmatprep.subr.mxu0 0.0
      %1560 = vmatpush1.msra.mxu0 0.0
      %1561 = vmatprep.subr.mxu0 0.0
      %1562 = vmatpush1.msra.mxu0 0.0
      %1563 = vmatprep.subr.mxu0 0.0
      %1564 = vmatpush1.msra.mxu0 0.0
      %1565 = vmatprep.subr.mxu0 0.0
      %1566 = vmatpush1.msra.mxu0 0.0
      %1567 = vmatprep.subr.mxu0 0.0
      %1568 = vmatpush1.msra.mxu0 0.0
      %1569 = vmatprep.mubr.f32.mxu0 0.0
      %1570 = vmatmul.mubr.f32.gmra.mrb[0].mxu0 %v1361
      %v1571 = vpop.f32.mrb[0].mxu0
      %v1572 = vadd.f32 %v1357, %v1571
      %v1573 = vpop.f32.mrb[0].mxu0
      %v1574 = vadd.f32 %v1357, %v1573
      %1575 = vdwg.mxu0
      %1576 = vmatprep.subr.mxu0 %v1289
      %1577 = vmatpush1.msra.mxu0 %v1288
      %1578 = vmatprep.subr.mxu0 %v1297
      %1579 = vmatpush1.msra.mxu0 %v1296
      %1580 = vmatprep.subr.mxu0 %v1305
      %1581 = vmatpush1.msra.mxu0 %v1304
      %1582 = vmatprep.subr.mxu0 %v1313
      %1583 = vmatpush1.msra.mxu0 %v1312
      %1584 = vmatprep.subr.mxu0 %v1321
      %1585 = vmatpush1.msra.mxu0 %v1320
      %1586 = vmatprep.subr.mxu0 %v1329
      %1587 = vmatpush1.msra.mxu0 %v1328
      %1588 = vmatprep.subr.mxu0 %v1337
      %1589 = vmatpush1.msra.mxu0 %v1336
      %1590 = vmatprep.subr.mxu0 %v1345
      %1591 = vmatpush1.msra.mxu0 %v1344
      %1592 = vmatprep.subr.mxu0 %v1353
      %1593 = vmatpush1.msra.mxu0 %v1352
      %1594 = vmatprep.subr.mxu0 0.0
      %1595 = vmatpush1.msra.mxu0 0.0
      %1596 = vmatprep.subr.mxu0 0.0
      %1597 = vmatpush1.msra.mxu0 0.0
      %1598 = vmatprep.subr.mxu0 0.0
      %1599 = vmatpush1.msra.mxu0 0.0
      %1600 = vmatprep.subr.mxu0 0.0
      %1601 = vmatpush1.msra.mxu0 0.0
      %1602 = vmatprep.subr.mxu0 0.0
      %1603 = vmatpush1.msra.mxu0 0.0
      %1604 = vmatprep.subr.mxu0 0.0
      %1605 = vmatpush1.msra.mxu0 0.0
      %1606 = vmatprep.subr.mxu0 0.0
      %1607 = vmatpush1.msra.mxu0 0.0
      %1608 = vmatprep.subr.mxu0 0.0
      %1609 = vmatpush1.msra.mxu0 0.0
      %1610 = vmatprep.subr.mxu0 0.0
      %1611 = vmatpush1.msra.mxu0 0.0
      %1612 = vmatprep.subr.mxu0 0.0
      %1613 = vmatpush1.msra.mxu0 0.0
      %1614 = vmatprep.subr.mxu0 0.0
      %1615 = vmatpush1.msra.mxu0 0.0
      %1616 = vmatprep.subr.mxu0 0.0
      %1617 = vmatpush1.msra.mxu0 0.0
      %1618 = vmatprep.subr.mxu0 0.0
      %1619 = vmatpush1.msra.mxu0 0.0
      %1620 = vmatprep.subr.mxu0 0.0
      %1621 = vmatpush1.msra.mxu0 0.0
      %1622 = vmatprep.subr.mxu0 0.0
      %1623 = vmatpush1.msra.mxu0 0.0
      %1624 = vmatprep.subr.mxu0 0.0
      %1625 = vmatpush1.msra.mxu0 0.0
      %1626 = vmatprep.subr.mxu0 0.0
      %1627 = vmatpush1.msra.mxu0 0.0
      %1628 = vmatprep.subr.mxu0 0.0
      %1629 = vmatpush1.msra.mxu0 0.0
      %1630 = vmatprep.subr.mxu0 0.0
      %1631 = vmatpush1.msra.mxu0 0.0
      %1632 = vmatprep.subr.mxu0 0.0
      %1633 = vmatpush1.msra.mxu0 0.0
      %1634 = vmatprep.subr.mxu0 0.0
      %1635 = vmatpush1.msra.mxu0 0.0
      %1636 = vmatprep.subr.mxu0 0.0
      %1637 = vmatpush1.msra.mxu0 0.0
      %1638 = vmatprep.subr.mxu0 0.0
      %1639 = vmatpush1.msra.mxu0 0.0
      %1640 = vmatprep.mubr.f32.mxu0 0.0
      %1641 = vmatmul.mubr.f32.gmra.mrb[0].mxu0 %v1361
      %v1642 = vpop.f32.mrb[0].mxu0
      %v1643 = vadd.f32 %v1357, %v1642
      %v1644 = vpop.f32.mrb[0].mxu0
      %v1645 = vadd.f32 %v1357, %v1644
      %1646 = vdwg.mxu0
      %v1647 = vmul.f32 %v1430, 0.2
      %v1648 = vmul.f32 %v1432, 0.2
      %v1649 = vmul.f32 %v1501, 0.2
      %v1650 = vmul.f32 %v1503, 0.2
      %v1651 = vmul.f32 %v1572, 0.2
      %v1652 = vmul.f32 %v1574, 0.2
      %v1653 = vmul.f32 %v1643, 0.2
      %v1654 = vmul.f32 %v1645, 0.2
      %v1655 = vmax.f32 %v1430, %v1647
      %v1656 = vmax.f32 %v1432, %v1648
      %v1657 = vmax.f32 %v1501, %v1649
      %v1658 = vmax.f32 %v1503, %v1650
      %v1659 = vmax.f32 %v1572, %v1651
      %v1660 = vmax.f32 %v1574, %v1652
      %v1661 = vmax.f32 %v1643, %v1653
      %v1662 = vmax.f32 %v1645, %v1654
      %1663 = vst [vmem:[#allocation2] sm:$0xff] 0.0
      %1664 = vst [vmem:[#allocation2 + $0x8] sm:$0xff] 0.0
      %1665 = vst [vmem:[#allocation2 + $0x10] sm:$0xff] 0.0
      %1666 = vst [vmem:[#allocation2 + $0x18] sm:$0xff] 0.0
      %1667 = vst [vmem:[#allocation2 + $0x20] sm:$0xff] 0.0
      %1668 = vst [vmem:[#allocation2 + $0x28] sm:$0xff] 0.0
      %1669 = vst [vmem:[#allocation2 + $0x30] sm:$0xff] 0.0
      %1670 = vst [vmem:[#allocation2 + $0x38] sm:$0xff] 0.0
      %1671 = vst.msk [vmem:[#allocation2 + $0x40] sm:$0xff] %vm432, 0.0
      %1672 = vst [vmem:[#allocation2] sm:$0xff] %v1655
      %1673 = vst [vmem:[#allocation2 + $0x8] sm:$0xff] %v1656
      %1674 = vst [vmem:[#allocation2 + $0x10] sm:$0xff] %v1657
      %1675 = vst [vmem:[#allocation2 + $0x18] sm:$0xff] %v1658
      %1676 = vst [vmem:[#allocation2 + $0x20] sm:$0xff] %v1659
      %1677 = vst [vmem:[#allocation2 + $0x28] sm:$0xff] %v1660
      %1678 = vst [vmem:[#allocation2 + $0x30] sm:$0xff] %v1661
      %1679 = vst [vmem:[#allocation2 + $0x38] sm:$0xff] %v1662
      %v1680 = vld [vmem:[#allocation2] sm:$0xff]
      %v1681 = vld [vmem:[#allocation2 + $0x8] sm:$0xff]
      %v1682 = vld [vmem:[#allocation2 + $0x10] sm:$0xff]
      %v1683 = vld [vmem:[#allocation2 + $0x18] sm:$0xff]
      %v1684 = vld [vmem:[#allocation2 + $0x20] sm:$0xff]
      %v1685 = vld [vmem:[#allocation2 + $0x28] sm:$0xff]
      %v1686 = vld [vmem:[#allocation2 + $0x30] sm:$0xff]
      %v1687 = vld [vmem:[#allocation2 + $0x38] sm:$0xff]
      %v1688 = vld [vmem:[#allocation2 + $0x40] sm:$0xff]
      %1698 = vrot.lane.b32.xlu0 %v1680, 127
      %v1699 = vpop.permute.xlu0 %1698
      %1700 = vrot.lane.b32.xlu0 %v1681, 127
      %v1701 = vpop.permute.xlu0 %1700
      %1702 = vrot.lane.b32.xlu0 %v1682, 127
      %v1703 = vpop.permute.xlu0 %1702
      %1704 = vrot.lane.b32.xlu0 %v1683, 127
      %v1705 = vpop.permute.xlu0 %1704
      %1706 = vrot.lane.b32.xlu0 %v1684, 127
      %v1707 = vpop.permute.xlu0 %1706
      %1708 = vrot.lane.b32.xlu0 %v1685, 127
      %v1709 = vpop.permute.xlu0 %1708
      %1710 = vrot.lane.b32.xlu0 %v1686, 127
      %v1711 = vpop.permute.xlu0 %1710
      %1712 = vrot.lane.b32.xlu0 %v1687, 127
      %v1713 = vpop.permute.xlu0 %1712
      %1714 = vrot.lane.b32.xlu0 %v1688, 127
      %v1715 = vpop.permute.xlu0 %1714
      %v1716 = vsel %vm589, %v1699, %v1701
      %v1717 = vsel %vm589, %v1701, %v1703
      %v1718 = vsel %vm589, %v1703, %v1705
      %v1719 = vsel %vm589, %v1705, %v1707
      %v1720 = vsel %vm589, %v1707, %v1709
      %v1721 = vsel %vm589, %v1709, %v1711
      %v1722 = vsel %vm589, %v1711, %v1713
      %v1723 = vsel %vm589, %v1713, %v1715
      %v1732 = vmax.f32 %v1655, %v1716
      %v1733 = vmax.f32 %v1656, %v1717
      %v1734 = vmax.f32 %v1657, %v1718
      %v1735 = vmax.f32 %v1658, %v1719
      %v1736 = vmax.f32 %v1659, %v1720
      %v1737 = vmax.f32 %v1660, %v1721
      %v1738 = vmax.f32 %v1661, %v1722
      %v1739 = vmax.f32 %v1662, %v1723
      %v1741 = vmax.f32 %v1680, %v1716
      %v1742 = vmax.f32 %v1681, %v1717
      %v1743 = vmax.f32 %v1682, %v1718
      %v1744 = vmax.f32 %v1683, %v1719
      %v1745 = vmax.f32 %v1684, %v1720
      %v1746 = vmax.f32 %v1685, %v1721
      %v1747 = vmax.f32 %v1686, %v1722
      %v1748 = vmax.f32 %v1687, %v1723
      %v1749 = vmax.f32 %v1688, %v1715
      %1759 = vrot.lane.b32.xlu0 %v1741, 96
      %v1760 = vpop.permute.xlu0 %1759
      %1761 = vrot.lane.b32.xlu0 %v1742, 96
      %v1762 = vpop.permute.xlu0 %1761
      %1763 = vrot.lane.b32.xlu0 %v1743, 96
      %v1764 = vpop.permute.xlu0 %1763
      %1765 = vrot.lane.b32.xlu0 %v1744, 96
      %v1766 = vpop.permute.xlu0 %1765
      %1767 = vrot.lane.b32.xlu0 %v1745, 96
      %v1768 = vpop.permute.xlu0 %1767
      %1769 = vrot.lane.b32.xlu0 %v1746, 96
      %v1770 = vpop.permute.xlu0 %1769
      %1771 = vrot.lane.b32.xlu0 %v1747, 96
      %v1772 = vpop.permute.xlu0 %1771
      %1773 = vrot.lane.b32.xlu0 %v1748, 96
      %v1774 = vpop.permute.xlu0 %1773
      %1775 = vrot.lane.b32.xlu0 %v1749, 96
      %v1776 = vpop.permute.xlu0 %1775
      %v1777 = vsel %vm828, %v1760, %v1762
      %v1778 = vsel %vm828, %v1762, %v1764
      %v1779 = vsel %vm828, %v1764, %v1766
      %v1780 = vsel %vm828, %v1766, %v1768
      %v1781 = vsel %vm828, %v1768, %v1770
      %v1782 = vsel %vm828, %v1770, %v1772
      %v1783 = vsel %vm828, %v1772, %v1774
      %v1784 = vsel %vm828, %v1774, %v1776
      %v1793 = vmax.f32 %v1732, %v1777
      %v1794 = vmax.f32 %v1733, %v1778
      %v1795 = vmax.f32 %v1734, %v1779
      %v1796 = vmax.f32 %v1735, %v1780
      %v1797 = vmax.f32 %v1736, %v1781
      %v1798 = vmax.f32 %v1737, %v1782
      %v1799 = vmax.f32 %v1738, %v1783
      %v1800 = vmax.f32 %v1739, %v1784
      %v1801 = vld [vmem:[%s8] sm:$0xff]
      %v1802 = vld [vmem:[%s8 + $0x8] sm:$0xff]
      %v1803 = vld [vmem:[%s8 + $0x10] sm:$0xff]
      %v1804 = vld [vmem:[%s8 + $0x18] sm:$0xff]
      %v1805 = vld [vmem:[%s8 + $0x20] sm:$0xff]
      %v1806 = vld [vmem:[%s8 + $0x28] sm:$0xff]
      %v1807 = vld [vmem:[%s8 + $0x30] sm:$0xff]
      %v1808 = vld [vmem:[%s8 + $0x38] sm:$0xff]
      %v1809 = vld [vmem:[%s8 + $0x40] sm:$0xff]
      %v1810 = vld [vmem:[%s8 + $0x48] sm:$0xff]
      %v1811 = vld [vmem:[%s8 + $0x50] sm:$0xff]
      %v1812 = vld [vmem:[%s8 + $0x58] sm:$0xff]
      %v1813 = vld [vmem:[%s8 + $0x60] sm:$0xff]
      %v1814 = vld [vmem:[%s8 + $0x68] sm:$0xff]
      %v1815 = vld [vmem:[%s8 + $0x70] sm:$0xff]
      %v1816 = vld [vmem:[%s8 + $0x78] sm:$0xff]
      %v1817 = vld [vmem:[%s8 + $0x80] sm:$0xff]
      %v1818 = vld [vmem:[%s8 + $0x88] sm:$0xff]
      %v1819 = vld [vmem:[%s8 + $0x90] sm:$0xff]
      %v1820 = vld [vmem:[%s8 + $0x98] sm:$0xff]
      %v1821 = vld [vmem:[%s8 + $0xa0] sm:$0xff]
      %v1822 = vld [vmem:[%s8 + $0xa8] sm:$0xff]
      %v1823 = vld [vmem:[%s8 + $0xb0] sm:$0xff]
      %v1824 = vld [vmem:[%s8 + $0xb8] sm:$0xff]
      %v1825 = vld [vmem:[%s8 + $0xc0] sm:$0xff]
      %v1826 = vld [vmem:[%s8 + $0xc8] sm:$0xff]
      %v1827 = vld [vmem:[%s8 + $0xd0] sm:$0xff]
      %v1828 = vld [vmem:[%s8 + $0xd8] sm:$0xff]
      %v1829 = vld [vmem:[%s8 + $0xe0] sm:$0xff]
      %v1830 = vld [vmem:[%s8 + $0xe8] sm:$0xff]
      %v1831 = vld [vmem:[%s8 + $0xf0] sm:$0xff]
      %v1832 = vld [vmem:[%s8 + $0xf8] sm:$0xff]
      %v1833 = vld [vmem:[%s8 + $0x100] sm:$0xff]
      %v1834 = vld [vmem:[%s8 + $0x108] sm:$0xff]
      %v1835 = vld [vmem:[%s8 + $0x110] sm:$0xff]
      %v1836 = vld [vmem:[%s8 + $0x118] sm:$0xff]
      %v1837 = vld [vmem:[%s8 + $0x120] sm:$0xff]
      %v1838 = vld [vmem:[%s8 + $0x128] sm:$0xff]
      %v1839 = vld [vmem:[%s8 + $0x130] sm:$0xff]
      %v1840 = vld [vmem:[%s8 + $0x138] sm:$0xff]
      %v1841 = vld [vmem:[%s8 + $0x140] sm:$0xff]
      %v1842 = vld [vmem:[%s8 + $0x148] sm:$0xff]
      %v1843 = vld [vmem:[%s8 + $0x150] sm:$0xff]
      %v1844 = vld [vmem:[%s8 + $0x158] sm:$0xff]
      %v1845 = vld [vmem:[%s8 + $0x160] sm:$0xff]
      %v1846 = vld [vmem:[%s8 + $0x168] sm:$0xff]
      %v1847 = vld [vmem:[%s8 + $0x170] sm:$0xff]
      %v1848 = vld [vmem:[%s8 + $0x178] sm:$0xff]
      %v1849 = vld [vmem:[%s8 + $0x180] sm:$0xff]
      %v1850 = vld [vmem:[%s8 + $0x188] sm:$0xff]
      %v1851 = vld [vmem:[%s8 + $0x190] sm:$0xff]
      %v1852 = vld [vmem:[%s8 + $0x198] sm:$0xff]
      %v1853 = vld [vmem:[%s8 + $0x1a0] sm:$0xff]
      %v1854 = vld [vmem:[%s8 + $0x1a8] sm:$0xff]
      %v1855 = vld [vmem:[%s8 + $0x1b0] sm:$0xff]
      %v1856 = vld [vmem:[%s8 + $0x1b8] sm:$0xff]
      %v1857 = vld [vmem:[%s8 + $0x1c0] sm:$0xff]
      %v1858 = vld [vmem:[%s8 + $0x1c8] sm:$0xff]
      %v1859 = vld [vmem:[%s8 + $0x1d0] sm:$0xff]
      %v1860 = vld [vmem:[%s8 + $0x1d8] sm:$0xff]
      %v1861 = vld [vmem:[%s8 + $0x1e0] sm:$0xff]
      %v1862 = vld [vmem:[%s8 + $0x1e8] sm:$0xff]
      %v1863 = vld [vmem:[%s8 + $0x1f0] sm:$0xff]
      %v1864 = vld [vmem:[%s8 + $0x1f8] sm:$0xff]
      %v1865 = vld [vmem:[%s8 + $0x200] sm:$0xff]
      %v1866 = vld [vmem:[%s8 + $0x208] sm:$0xff]
      %v1867 = vld [vmem:[%s8 + $0x210] sm:$0xff]
      %v1868 = vld [vmem:[%s8 + $0x218] sm:$0xff]
      %v1869 = vld [vmem:[%s8 + $0x220] sm:$0xff]
      %v1870 = vld [vmem:[%s8 + $0x228] sm:$0xff]
      %v1871 = vld [vmem:[%s8 + $0x230] sm:$0xff]
      %v1872 = vld [vmem:[%s8 + $0x238] sm:$0xff]
      %v1873 = vld [vmem:[%s8 + $0x240] sm:$0xff]
      %v1874 = vld [vmem:[%s8 + $0x248] sm:$0xff]
      %v1875 = vld [vmem:[%s8 + $0x250] sm:$0xff]
      %v1876 = vld [vmem:[%s8 + $0x258] sm:$0xff]
      %v1877 = vld [vmem:[%s8 + $0x260] sm:$0xff]
      %v1878 = vld [vmem:[%s8 + $0x268] sm:$0xff]
      %v1879 = vld [vmem:[%s8 + $0x270] sm:$0xff]
      %v1880 = vld [vmem:[%s8 + $0x278] sm:$0xff]
      %v1881 = vld [vmem:[%s8 + $0x280] sm:$0xff]
      %v1882 = vld [vmem:[%s8 + $0x288] sm:$0xff]
      %v1883 = vld [vmem:[%s8 + $0x290] sm:$0xff]
      %v1884 = vld [vmem:[%s8 + $0x298] sm:$0xff]
      %v1885 = vld [vmem:[%s8 + $0x2a0] sm:$0xff]
      %v1886 = vld [vmem:[%s8 + $0x2a8] sm:$0xff]
      %v1887 = vld [vmem:[%s8 + $0x2b0] sm:$0xff]
      %v1888 = vld [vmem:[%s8 + $0x2b8] sm:$0xff]
      %v1889 = vld [vmem:[%s8 + $0x2c0] sm:$0xff]
      %v1890 = vld [vmem:[%s8 + $0x2c8] sm:$0xff]
      %v1891 = vld [vmem:[%s8 + $0x2d0] sm:$0xff]
      %v1892 = vld [vmem:[%s8 + $0x2d8] sm:$0xff]
      %v1893 = vld [vmem:[%s8 + $0x2e0] sm:$0xff]
      %v1894 = vld [vmem:[%s8 + $0x2e8] sm:$0xff]
      %v1895 = vld [vmem:[%s8 + $0x2f0] sm:$0xff]
      %v1896 = vld [vmem:[%s8 + $0x2f8] sm:$0xff]
      %v1897 = vld [vmem:[%s8 + $0x300] sm:$0xff]
      %v1898 = vld [vmem:[%s8 + $0x308] sm:$0xff]
      %v1899 = vld [vmem:[%s8 + $0x310] sm:$0xff]
      %v1900 = vld [vmem:[%s8 + $0x318] sm:$0xff]
      %v1901 = vld [vmem:[%s8 + $0x320] sm:$0xff]
      %v1902 = vld [vmem:[%s8 + $0x328] sm:$0xff]
      %v1903 = vld [vmem:[%s8 + $0x330] sm:$0xff]
      %v1904 = vld [vmem:[%s8 + $0x338] sm:$0xff]
      %v1905 = vld [vmem:[%s8 + $0x340] sm:$0xff]
      %v1906 = vld [vmem:[%s8 + $0x348] sm:$0xff]
      %v1907 = vld [vmem:[%s8 + $0x350] sm:$0xff]
      %v1908 = vld [vmem:[%s8 + $0x358] sm:$0xff]
      %v1909 = vld [vmem:[%s8 + $0x360] sm:$0xff]
      %v1910 = vld [vmem:[%s8 + $0x368] sm:$0xff]
      %v1911 = vld [vmem:[%s8 + $0x370] sm:$0xff]
      %v1912 = vld [vmem:[%s8 + $0x378] sm:$0xff]
      %v1913 = vld [vmem:[%s8 + $0x380] sm:$0xff]
      %v1914 = vld [vmem:[%s8 + $0x388] sm:$0xff]
      %v1915 = vld [vmem:[%s8 + $0x390] sm:$0xff]
      %v1916 = vld [vmem:[%s8 + $0x398] sm:$0xff]
      %v1917 = vld [vmem:[%s8 + $0x3a0] sm:$0xff]
      %v1918 = vld [vmem:[%s8 + $0x3a8] sm:$0xff]
      %v1919 = vld [vmem:[%s8 + $0x3b0] sm:$0xff]
      %v1920 = vld [vmem:[%s8 + $0x3b8] sm:$0xff]
      %v1921 = vld [vmem:[%s8 + $0x3c0] sm:$0xff]
      %v1922 = vld [vmem:[%s8 + $0x3c8] sm:$0xff]
      %v1923 = vld [vmem:[%s8 + $0x3d0] sm:$0xff]
      %v1924 = vld [vmem:[%s8 + $0x3d8] sm:$0xff]
      %v1925 = vld [vmem:[%s8 + $0x3e0] sm:$0xff]
      %v1926 = vld [vmem:[%s8 + $0x3e8] sm:$0xff]
      %v1927 = vld [vmem:[%s8 + $0x3f0] sm:$0xff]
      %v1928 = vld [vmem:[%s8 + $0x3f8] sm:$0xff]
      %v1929 = vld [vmem:[%s8 + $0x400] sm:$0xff]
      %v1930 = vld [vmem:[%s8 + $0x408] sm:$0xff]
      %v1931 = vld [vmem:[%s8 + $0x410] sm:$0xff]
      %v1932 = vld [vmem:[%s8 + $0x418] sm:$0xff]
      %v1933 = vld [vmem:[%s8 + $0x420] sm:$0xff]
      %v1934 = vld [vmem:[%s8 + $0x428] sm:$0xff]
      %v1935 = vld [vmem:[%s8 + $0x430] sm:$0xff]
      %v1936 = vld [vmem:[%s8 + $0x438] sm:$0xff]
      %v1937 = vld [vmem:[%s8 + $0x440] sm:$0xff]
      %v1938 = vld [vmem:[%s8 + $0x448] sm:$0xff]
      %v1939 = vld [vmem:[%s8 + $0x450] sm:$0xff]
      %v1940 = vld [vmem:[%s8 + $0x458] sm:$0xff]
      %v1941 = vld [vmem:[%s8 + $0x460] sm:$0xff]
      %v1942 = vld [vmem:[%s8 + $0x468] sm:$0xff]
      %v1943 = vld [vmem:[%s8 + $0x470] sm:$0xff]
      %v1944 = vld [vmem:[%s8 + $0x478] sm:$0xff]
      %v1945 = vld [vmem:[%s8 + $0x480] sm:$0xff]
      %v1946 = vld [vmem:[%s8 + $0x488] sm:$0xff]
      %v1947 = vld [vmem:[%s8 + $0x490] sm:$0xff]
      %v1948 = vld [vmem:[%s8 + $0x498] sm:$0xff]
      %v1949 = vld [vmem:[%s8 + $0x4a0] sm:$0xff]
      %v1950 = vld [vmem:[%s8 + $0x4a8] sm:$0xff]
      %v1951 = vld [vmem:[%s8 + $0x4b0] sm:$0xff]
      %v1952 = vld [vmem:[%s8 + $0x4b8] sm:$0xff]
      %v1953 = vld [vmem:[%s8 + $0x4c0] sm:$0xff]
      %v1954 = vld [vmem:[%s8 + $0x4c8] sm:$0xff]
      %v1955 = vld [vmem:[%s8 + $0x4d0] sm:$0xff]
      %v1956 = vld [vmem:[%s8 + $0x4d8] sm:$0xff]
      %v1957 = vld [vmem:[%s8 + $0x4e0] sm:$0xff]
      %v1958 = vld [vmem:[%s8 + $0x4e8] sm:$0xff]
      %v1959 = vld [vmem:[%s8 + $0x4f0] sm:$0xff]
      %v1960 = vld [vmem:[%s8 + $0x4f8] sm:$0xff]
      %v1961 = vld [vmem:[%s8 + $0x500] sm:$0xff]
      %v1962 = vld [vmem:[%s8 + $0x508] sm:$0xff]
      %v1963 = vld [vmem:[%s8 + $0x510] sm:$0xff]
      %v1964 = vld [vmem:[%s8 + $0x518] sm:$0xff]
      %v1965 = vld [vmem:[%s8 + $0x520] sm:$0xff]
      %v1966 = vld [vmem:[%s8 + $0x528] sm:$0xff]
      %v1967 = vld [vmem:[%s8 + $0x530] sm:$0xff]
      %v1968 = vld [vmem:[%s8 + $0x538] sm:$0xff]
      %v1969 = vld [vmem:[%s8 + $0x540] sm:$0xff]
      %v1970 = vld [vmem:[%s8 + $0x548] sm:$0xff]
      %v1971 = vld [vmem:[%s8 + $0x550] sm:$0xff]
      %v1972 = vld [vmem:[%s8 + $0x558] sm:$0xff]
      %v1973 = vld [vmem:[%s8 + $0x560] sm:$0xff]
      %v1974 = vld [vmem:[%s8 + $0x568] sm:$0xff]
      %v1975 = vld [vmem:[%s8 + $0x570] sm:$0xff]
      %v1976 = vld [vmem:[%s8 + $0x578] sm:$0xff]
      %v1977 = vld [vmem:[%s8 + $0x580] sm:$0xff]
      %v1978 = vld [vmem:[%s8 + $0x588] sm:$0xff]
      %v1979 = vld [vmem:[%s8 + $0x590] sm:$0xff]
      %v1980 = vld [vmem:[%s8 + $0x598] sm:$0xff]
      %v1981 = vld [vmem:[%s8 + $0x5a0] sm:$0xff]
      %v1982 = vld [vmem:[%s8 + $0x5a8] sm:$0xff]
      %v1983 = vld [vmem:[%s8 + $0x5b0] sm:$0xff]
      %v1984 = vld [vmem:[%s8 + $0x5b8] sm:$0xff]
      %v1985 = vld [vmem:[%s8 + $0x5c0] sm:$0xff]
      %v1986 = vld [vmem:[%s8 + $0x5c8] sm:$0xff]
      %v1987 = vld [vmem:[%s8 + $0x5d0] sm:$0xff]
      %v1988 = vld [vmem:[%s8 + $0x5d8] sm:$0xff]
      %v1989 = vld [vmem:[%s8 + $0x5e0] sm:$0xff]
      %v1990 = vld [vmem:[%s8 + $0x5e8] sm:$0xff]
      %v1991 = vld [vmem:[%s8 + $0x5f0] sm:$0xff]
      %v1992 = vld [vmem:[%s8 + $0x5f8] sm:$0xff]
      %v1993 = vld [vmem:[%s8 + $0x600] sm:$0xff]
      %v1994 = vld [vmem:[%s8 + $0x608] sm:$0xff]
      %v1995 = vld [vmem:[%s8 + $0x610] sm:$0xff]
      %v1996 = vld [vmem:[%s8 + $0x618] sm:$0xff]
      %v1997 = vld [vmem:[%s8 + $0x620] sm:$0xff]
      %v1998 = vld [vmem:[%s8 + $0x628] sm:$0xff]
      %v1999 = vld [vmem:[%s8 + $0x630] sm:$0xff]
      %v2000 = vld [vmem:[%s8 + $0x638] sm:$0xff]
      %v2001 = vld [vmem:[%s8 + $0x640] sm:$0xff]
      %v2002 = vld [vmem:[%s8 + $0x648] sm:$0xff]
      %v2003 = vld [vmem:[%s8 + $0x650] sm:$0xff]
      %v2004 = vld [vmem:[%s8 + $0x658] sm:$0xff]
      %v2005 = vld [vmem:[%s8 + $0x660] sm:$0xff]
      %v2006 = vld [vmem:[%s8 + $0x668] sm:$0xff]
      %v2007 = vld [vmem:[%s8 + $0x670] sm:$0xff]
      %v2008 = vld [vmem:[%s8 + $0x678] sm:$0xff]
      %v2009 = vld [vmem:[%s8 + $0x680] sm:$0xff]
      %v2010 = vld [vmem:[%s8 + $0x688] sm:$0xff]
      %v2011 = vld [vmem:[%s8 + $0x690] sm:$0xff]
      %v2012 = vld [vmem:[%s8 + $0x698] sm:$0xff]
      %v2013 = vld [vmem:[%s8 + $0x6a0] sm:$0xff]
      %v2014 = vld [vmem:[%s8 + $0x6a8] sm:$0xff]
      %v2015 = vld [vmem:[%s8 + $0x6b0] sm:$0xff]
      %v2016 = vld [vmem:[%s8 + $0x6b8] sm:$0xff]
      %v2017 = vld [vmem:[%s8 + $0x6c0] sm:$0xff]
      %v2018 = vld [vmem:[%s8 + $0x6c8] sm:$0xff]
      %v2019 = vld [vmem:[%s8 + $0x6d0] sm:$0xff]
      %v2020 = vld [vmem:[%s8 + $0x6d8] sm:$0xff]
      %v2021 = vld [vmem:[%s8 + $0x6e0] sm:$0xff]
      %v2022 = vld [vmem:[%s8 + $0x6e8] sm:$0xff]
      %v2023 = vld [vmem:[%s8 + $0x6f0] sm:$0xff]
      %v2024 = vld [vmem:[%s8 + $0x6f8] sm:$0xff]
      %v2025 = vld [vmem:[%s8 + $0x700] sm:$0xff]
      %v2026 = vld [vmem:[%s8 + $0x708] sm:$0xff]
      %v2027 = vld [vmem:[%s8 + $0x710] sm:$0xff]
      %v2028 = vld [vmem:[%s8 + $0x718] sm:$0xff]
      %v2029 = vld [vmem:[%s8 + $0x720] sm:$0xff]
      %v2030 = vld [vmem:[%s8 + $0x728] sm:$0xff]
      %v2031 = vld [vmem:[%s8 + $0x730] sm:$0xff]
      %v2032 = vld [vmem:[%s8 + $0x738] sm:$0xff]
      %v2033 = vld [vmem:[%s8 + $0x740] sm:$0xff]
      %v2034 = vld [vmem:[%s8 + $0x748] sm:$0xff]
      %v2035 = vld [vmem:[%s8 + $0x750] sm:$0xff]
      %v2036 = vld [vmem:[%s8 + $0x758] sm:$0xff]
      %v2037 = vld [vmem:[%s8 + $0x760] sm:$0xff]
      %v2038 = vld [vmem:[%s8 + $0x768] sm:$0xff]
      %v2039 = vld [vmem:[%s8 + $0x770] sm:$0xff]
      %v2040 = vld [vmem:[%s8 + $0x778] sm:$0xff]
      %v2041 = vld [vmem:[%s8 + $0x780] sm:$0xff]
      %v2042 = vld [vmem:[%s8 + $0x788] sm:$0xff]
      %v2043 = vld [vmem:[%s8 + $0x790] sm:$0xff]
      %v2044 = vld [vmem:[%s8 + $0x798] sm:$0xff]
      %v2045 = vld [vmem:[%s8 + $0x7a0] sm:$0xff]
      %v2046 = vld [vmem:[%s8 + $0x7a8] sm:$0xff]
      %v2047 = vld [vmem:[%s8 + $0x7b0] sm:$0xff]
      %v2048 = vld [vmem:[%s8 + $0x7b8] sm:$0xff]
      %v2049 = vld [vmem:[%s8 + $0x7c0] sm:$0xff]
      %v2050 = vld [vmem:[%s8 + $0x7c8] sm:$0xff]
      %v2051 = vld [vmem:[%s8 + $0x7d0] sm:$0xff]
      %v2052 = vld [vmem:[%s8 + $0x7d8] sm:$0xff]
      %v2053 = vld [vmem:[%s8 + $0x7e0] sm:$0xff]
      %v2054 = vld [vmem:[%s8 + $0x7e8] sm:$0xff]
      %v2055 = vld [vmem:[%s8 + $0x7f0] sm:$0xff]
      %v2056 = vld [vmem:[%s8 + $0x7f8] sm:$0xff]
      %2057 = vmatprep.subr.mxu0 %v1802
      %2058 = vmatpush1.msra.mxu0 %v1801
      %2059 = vmatprep.subr.mxu0 %v1804
      %2060 = vmatpush1.msra.mxu0 %v1803
      %2061 = vmatprep.subr.mxu0 %v1806
      %2062 = vmatpush1.msra.mxu0 %v1805
      %2063 = vmatprep.subr.mxu0 %v1808
      %2064 = vmatpush1.msra.mxu0 %v1807
      %2065 = vmatprep.subr.mxu0 %v1810
      %2066 = vmatpush1.msra.mxu0 %v1809
      %2067 = vmatprep.subr.mxu0 %v1812
      %2068 = vmatpush1.msra.mxu0 %v1811
      %2069 = vmatprep.subr.mxu0 %v1814
      %2070 = vmatpush1.msra.mxu0 %v1813
      %2071 = vmatprep.subr.mxu0 %v1816
      %2072 = vmatpush1.msra.mxu0 %v1815
      %2073 = vmatprep.subr.mxu0 %v1818
      %2074 = vmatpush1.msra.mxu0 %v1817
      %2075 = vmatprep.subr.mxu0 %v1820
      %2076 = vmatpush1.msra.mxu0 %v1819
      %2077 = vmatprep.subr.mxu0 %v1822
      %2078 = vmatpush1.msra.mxu0 %v1821
      %2079 = vmatprep.subr.mxu0 %v1824
      %2080 = vmatpush1.msra.mxu0 %v1823
      %2081 = vmatprep.subr.mxu0 %v1826
      %2082 = vmatpush1.msra.mxu0 %v1825
      %2083 = vmatprep.subr.mxu0 %v1828
      %2084 = vmatpush1.msra.mxu0 %v1827
      %2085 = vmatprep.subr.mxu0 %v1830
      %2086 = vmatpush1.msra.mxu0 %v1829
      %2087 = vmatprep.subr.mxu0 %v1832
      %2088 = vmatpush1.msra.mxu0 %v1831
      %2089 = vmatprep.subr.mxu0 %v1834
      %2090 = vmatpush1.msra.mxu0 %v1833
      %2091 = vmatprep.subr.mxu0 %v1836
      %2092 = vmatpush1.msra.mxu0 %v1835
      %2093 = vmatprep.subr.mxu0 %v1838
      %2094 = vmatpush1.msra.mxu0 %v1837
      %2095 = vmatprep.subr.mxu0 %v1840
      %2096 = vmatpush1.msra.mxu0 %v1839
      %2097 = vmatprep.subr.mxu0 %v1842
      %2098 = vmatpush1.msra.mxu0 %v1841
      %2099 = vmatprep.subr.mxu0 %v1844
      %2100 = vmatpush1.msra.mxu0 %v1843
      %2101 = vmatprep.subr.mxu0 %v1846
      %2102 = vmatpush1.msra.mxu0 %v1845
      %2103 = vmatprep.subr.mxu0 %v1848
      %2104 = vmatpush1.msra.mxu0 %v1847
      %2105 = vmatprep.subr.mxu0 %v1850
      %2106 = vmatpush1.msra.mxu0 %v1849
      %2107 = vmatprep.subr.mxu0 %v1852
      %2108 = vmatpush1.msra.mxu0 %v1851
      %2109 = vmatprep.subr.mxu0 %v1854
      %2110 = vmatpush1.msra.mxu0 %v1853
      %2111 = vmatprep.subr.mxu0 %v1856
      %2112 = vmatpush1.msra.mxu0 %v1855
      %2113 = vmatprep.subr.mxu0 %v1858
      %2114 = vmatpush1.msra.mxu0 %v1857
      %2115 = vmatprep.subr.mxu0 %v1860
      %2116 = vmatpush1.msra.mxu0 %v1859
      %2117 = vmatprep.subr.mxu0 %v1862
      %2118 = vmatpush1.msra.mxu0 %v1861
      %2119 = vmatprep.subr.mxu0 %v1864
      %2120 = vmatpush1.msra.mxu0 %v1863
      %2121 = vmatprep.mubr.f32.mxu0 %v1794
      %2122 = vmatmul.mubr.f32.gmra.mrb[0].mxu0 %v1793
      %v2123 = vpop.f32.mrb[0].mxu0
      %v2124 = vadd.f32 0.0, %v2123
      %v2125 = vpop.f32.mrb[0].mxu0
      %v2126 = vadd.f32 0.0, %v2125
      %2127 = vdwg.mxu0
      %2128 = vmatprep.subr.mxu0 %v1866
      %2129 = vmatpush1.msra.mxu0 %v1865
      %2130 = vmatprep.subr.mxu0 %v1868
      %2131 = vmatpush1.msra.mxu0 %v1867
      %2132 = vmatprep.subr.mxu0 %v1870
      %2133 = vmatpush1.msra.mxu0 %v1869
      %2134 = vmatprep.subr.mxu0 %v1872
      %2135 = vmatpush1.msra.mxu0 %v1871
      %2136 = vmatprep.subr.mxu0 %v1874
      %2137 = vmatpush1.msra.mxu0 %v1873
      %2138 = vmatprep.subr.mxu0 %v1876
      %2139 = vmatpush1.msra.mxu0 %v1875
      %2140 = vmatprep.subr.mxu0 %v1878
      %2141 = vmatpush1.msra.mxu0 %v1877
      %2142 = vmatprep.subr.mxu0 %v1880
      %2143 = vmatpush1.msra.mxu0 %v1879
      %2144 = vmatprep.subr.mxu0 %v1882
      %2145 = vmatpush1.msra.mxu0 %v1881
      %2146 = vmatprep.subr.mxu0 %v1884
      %2147 = vmatpush1.msra.mxu0 %v1883
      %2148 = vmatprep.subr.mxu0 %v1886
      %2149 = vmatpush1.msra.mxu0 %v1885
      %2150 = vmatprep.subr.mxu0 %v1888
      %2151 = vmatpush1.msra.mxu0 %v1887
      %2152 = vmatprep.subr.mxu0 %v1890
      %2153 = vmatpush1.msra.mxu0 %v1889
      %2154 = vmatprep.subr.mxu0 %v1892
      %2155 = vmatpush1.msra.mxu0 %v1891
      %2156 = vmatprep.subr.mxu0 %v1894
      %2157 = vmatpush1.msra.mxu0 %v1893
      %2158 = vmatprep.subr.mxu0 %v1896
      %2159 = vmatpush1.msra.mxu0 %v1895
      %2160 = vmatprep.subr.mxu0 %v1898
      %2161 = vmatpush1.msra.mxu0 %v1897
      %2162 = vmatprep.subr.mxu0 %v1900
      %2163 = vmatpush1.msra.mxu0 %v1899
      %2164 = vmatprep.subr.mxu0 %v1902
      %2165 = vmatpush1.msra.mxu0 %v1901
      %2166 = vmatprep.subr.mxu0 %v1904
      %2167 = vmatpush1.msra.mxu0 %v1903
      %2168 = vmatprep.subr.mxu0 %v1906
      %2169 = vmatpush1.msra.mxu0 %v1905
      %2170 = vmatprep.subr.mxu0 %v1908
      %2171 = vmatpush1.msra.mxu0 %v1907
      %2172 = vmatprep.subr.mxu0 %v1910
      %2173 = vmatpush1.msra.mxu0 %v1909
      %2174 = vmatprep.subr.mxu0 %v1912
      %2175 = vmatpush1.msra.mxu0 %v1911
      %2176 = vmatprep.subr.mxu0 %v1914
      %2177 = vmatpush1.msra.mxu0 %v1913
      %2178 = vmatprep.subr.mxu0 %v1916
      %2179 = vmatpush1.msra.mxu0 %v1915
      %2180 = vmatprep.subr.mxu0 %v1918
      %2181 = vmatpush1.msra.mxu0 %v1917
      %2182 = vmatprep.subr.mxu0 %v1920
      %2183 = vmatpush1.msra.mxu0 %v1919
      %2184 = vmatprep.subr.mxu0 %v1922
      %2185 = vmatpush1.msra.mxu0 %v1921
      %2186 = vmatprep.subr.mxu0 %v1924
      %2187 = vmatpush1.msra.mxu0 %v1923
      %2188 = vmatprep.subr.mxu0 %v1926
      %2189 = vmatpush1.msra.mxu0 %v1925
      %2190 = vmatprep.subr.mxu0 %v1928
      %2191 = vmatpush1.msra.mxu0 %v1927
      %2192 = vmatprep.mubr.f32.mxu0 %v1796
      %2193 = vmatmul.mubr.f32.gmra.mrb[0].mxu0 %v1795
      %v2194 = vpop.f32.mrb[0].mxu0
      %v2195 = vadd.f32 %v2124, %v2194
      %v2196 = vpop.f32.mrb[0].mxu0
      %v2197 = vadd.f32 %v2126, %v2196
      %2198 = vdwg.mxu0
      %2199 = vmatprep.subr.mxu0 %v1930
      %2200 = vmatpush1.msra.mxu0 %v1929
      %2201 = vmatprep.subr.mxu0 %v1932
      %2202 = vmatpush1.msra.mxu0 %v1931
      %2203 = vmatprep.subr.mxu0 %v1934
      %2204 = vmatpush1.msra.mxu0 %v1933
      %2205 = vmatprep.subr.mxu0 %v1936
      %2206 = vmatpush1.msra.mxu0 %v1935
      %2207 = vmatprep.subr.mxu0 %v1938
      %2208 = vmatpush1.msra.mxu0 %v1937
      %2209 = vmatprep.subr.mxu0 %v1940
      %2210 = vmatpush1.msra.mxu0 %v1939
      %2211 = vmatprep.subr.mxu0 %v1942
      %2212 = vmatpush1.msra.mxu0 %v1941
      %2213 = vmatprep.subr.mxu0 %v1944
      %2214 = vmatpush1.msra.mxu0 %v1943
      %2215 = vmatprep.subr.mxu0 %v1946
      %2216 = vmatpush1.msra.mxu0 %v1945
      %2217 = vmatprep.subr.mxu0 %v1948
      %2218 = vmatpush1.msra.mxu0 %v1947
      %2219 = vmatprep.subr.mxu0 %v1950
      %2220 = vmatpush1.msra.mxu0 %v1949
      %2221 = vmatprep.subr.mxu0 %v1952
      %2222 = vmatpush1.msra.mxu0 %v1951
      %2223 = vmatprep.subr.mxu0 %v1954
      %2224 = vmatpush1.msra.mxu0 %v1953
      %2225 = vmatprep.subr.mxu0 %v1956
      %2226 = vmatpush1.msra.mxu0 %v1955
      %2227 = vmatprep.subr.mxu0 %v1958
      %2228 = vmatpush1.msra.mxu0 %v1957
      %2229 = vmatprep.subr.mxu0 %v1960
      %2230 = vmatpush1.msra.mxu0 %v1959
      %2231 = vmatprep.subr.mxu0 %v1962
      %2232 = vmatpush1.msra.mxu0 %v1961
      %2233 = vmatprep.subr.mxu0 %v1964
      %2234 = vmatpush1.msra.mxu0 %v1963
      %2235 = vmatprep.subr.mxu0 %v1966
      %2236 = vmatpush1.msra.mxu0 %v1965
      %2237 = vmatprep.subr.mxu0 %v1968
      %2238 = vmatpush1.msra.mxu0 %v1967
      %2239 = vmatprep.subr.mxu0 %v1970
      %2240 = vmatpush1.msra.mxu0 %v1969
      %2241 = vmatprep.subr.mxu0 %v1972
      %2242 = vmatpush1.msra.mxu0 %v1971
      %2243 = vmatprep.subr.mxu0 %v1974
      %2244 = vmatpush1.msra.mxu0 %v1973
      %2245 = vmatprep.subr.mxu0 %v1976
      %2246 = vmatpush1.msra.mxu0 %v1975
      %2247 = vmatprep.subr.mxu0 %v1978
      %2248 = vmatpush1.msra.mxu0 %v1977
      %2249 = vmatprep.subr.mxu0 %v1980
      %2250 = vmatpush1.msra.mxu0 %v1979
      %2251 = vmatprep.subr.mxu0 %v1982
      %2252 = vmatpush1.msra.mxu0 %v1981
      %2253 = vmatprep.subr.mxu0 %v1984
      %2254 = vmatpush1.msra.mxu0 %v1983
      %2255 = vmatprep.subr.mxu0 %v1986
      %2256 = vmatpush1.msra.mxu0 %v1985
      %2257 = vmatprep.subr.mxu0 %v1988
      %2258 = vmatpush1.msra.mxu0 %v1987
      %2259 = vmatprep.subr.mxu0 %v1990
      %2260 = vmatpush1.msra.mxu0 %v1989
      %2261 = vmatprep.subr.mxu0 %v1992
      %2262 = vmatpush1.msra.mxu0 %v1991
      %2263 = vmatprep.mubr.f32.mxu0 %v1798
      %2264 = vmatmul.mubr.f32.gmra.mrb[0].mxu0 %v1797
      %v2265 = vpop.f32.mrb[0].mxu0
      %v2266 = vadd.f32 %v2195, %v2265
      %v2267 = vpop.f32.mrb[0].mxu0
      %v2268 = vadd.f32 %v2197, %v2267
      %2269 = vdwg.mxu0
      %2270 = vmatprep.subr.mxu0 %v1994
      %2271 = vmatpush1.msra.mxu0 %v1993
      %2272 = vmatprep.subr.mxu0 %v1996
      %2273 = vmatpush1.msra.mxu0 %v1995
      %2274 = vmatprep.subr.mxu0 %v1998
      %2275 = vmatpush1.msra.mxu0 %v1997
      %2276 = vmatprep.subr.mxu0 %v2000
      %2277 = vmatpush1.msra.mxu0 %v1999
      %2278 = vmatprep.subr.mxu0 %v2002
      %2279 = vmatpush1.msra.mxu0 %v2001
      %2280 = vmatprep.subr.mxu0 %v2004
      %2281 = vmatpush1.msra.mxu0 %v2003
      %2282 = vmatprep.subr.mxu0 %v2006
      %2283 = vmatpush1.msra.mxu0 %v2005
      %2284 = vmatprep.subr.mxu0 %v2008
      %2285 = vmatpush1.msra.mxu0 %v2007
      %2286 = vmatprep.subr.mxu0 %v2010
      %2287 = vmatpush1.msra.mxu0 %v2009
      %2288 = vmatprep.subr.mxu0 %v2012
      %2289 = vmatpush1.msra.mxu0 %v2011
      %2290 = vmatprep.subr.mxu0 %v2014
      %2291 = vmatpush1.msra.mxu0 %v2013
      %2292 = vmatprep.subr.mxu0 %v2016
      %2293 = vmatpush1.msra.mxu0 %v2015
      %2294 = vmatprep.subr.mxu0 %v2018
      %2295 = vmatpush1.msra.mxu0 %v2017
      %2296 = vmatprep.subr.mxu0 %v2020
      %2297 = vmatpush1.msra.mxu0 %v2019
      %2298 = vmatprep.subr.mxu0 %v2022
      %2299 = vmatpush1.msra.mxu0 %v2021
      %2300 = vmatprep.subr.mxu0 %v2024
      %2301 = vmatpush1.msra.mxu0 %v2023
      %2302 = vmatprep.subr.mxu0 %v2026
      %2303 = vmatpush1.msra.mxu0 %v2025
      %2304 = vmatprep.subr.mxu0 %v2028
      %2305 = vmatpush1.msra.mxu0 %v2027
      %2306 = vmatprep.subr.mxu0 %v2030
      %2307 = vmatpush1.msra.mxu0 %v2029
      %2308 = vmatprep.subr.mxu0 %v2032
      %2309 = vmatpush1.msra.mxu0 %v2031
      %2310 = vmatprep.subr.mxu0 %v2034
      %2311 = vmatpush1.msra.mxu0 %v2033
      %2312 = vmatprep.subr.mxu0 %v2036
      %2313 = vmatpush1.msra.mxu0 %v2035
      %2314 = vmatprep.subr.mxu0 %v2038
      %2315 = vmatpush1.msra.mxu0 %v2037
      %2316 = vmatprep.subr.mxu0 %v2040
      %2317 = vmatpush1.msra.mxu0 %v2039
      %2318 = vmatprep.subr.mxu0 %v2042
      %2319 = vmatpush1.msra.mxu0 %v2041
      %2320 = vmatprep.subr.mxu0 %v2044
      %2321 = vmatpush1.msra.mxu0 %v2043
      %2322 = vmatprep.subr.mxu0 %v2046
      %2323 = vmatpush1.msra.mxu0 %v2045
      %2324 = vmatprep.subr.mxu0 %v2048
      %2325 = vmatpush1.msra.mxu0 %v2047
      %2326 = vmatprep.subr.mxu0 %v2050
      %2327 = vmatpush1.msra.mxu0 %v2049
      %2328 = vmatprep.subr.mxu0 %v2052
      %2329 = vmatpush1.msra.mxu0 %v2051
      %2330 = vmatprep.subr.mxu0 %v2054
      %2331 = vmatpush1.msra.mxu0 %v2053
      %2332 = vmatprep.subr.mxu0 %v2056
      %2333 = vmatpush1.msra.mxu0 %v2055
      %2334 = vmatprep.mubr.f32.mxu0 %v1800
      %2335 = vmatmul.mubr.f32.gmra.mrb[0].mxu0 %v1799
      %v2336 = vpop.f32.mrb[0].mxu0
      %v2337 = vadd.f32 %v2266, %v2336
      %v2338 = vpop.f32.mrb[0].mxu0
      %v2339 = vadd.f32 %v2268, %v2338
      %2340 = vdwg.mxu0
      %s2341 = scalar_lea.vmem %s1, 8
      %v2342 = vld [vmem:[%s2341] sm:$0xff]
      %s2343 = scalar_lea.vmem %s2, 8
      %v2344 = vld [vmem:[%s2343] sm:$0xff]
      %2345 = vst [vmem:[#allocation2] sm:$0xff] 0.0
      %2346 = vst [vmem:[#allocation2 + $0x8] sm:$0xff] 0.0
      %2347 = vst [vmem:[#allocation2 + $0x10] sm:$0xff] 0.0
      %2348 = vst [vmem:[#allocation2 + $0x18] sm:$0xff] 0.0
      %2349 = vst [vmem:[#allocation2 + $0x20] sm:$0xff] 0.0
      %2350 = vst [vmem:[#allocation2 + $0x28] sm:$0xff] 0.0
      %2351 = vst [vmem:[#allocation2 + $0x30] sm:$0xff] 0.0
      %2352 = vst [vmem:[#allocation2 + $0x38] sm:$0xff] 0.0
      %2353 = vst.msk [vmem:[#allocation2 + $0x40] sm:$0xff] %vm432, 0.0
      %2356 = vrot.lane.b32.xlu0 %v2337, 17
      %v2357 = vpop.permute.xlu0 %2356
      %2358 = vrot.lane.b32.xlu0 %v2339, 17
      %v2359 = vpop.permute.xlu0 %2358
      %vm2360 = vcmask 138240
      %v2361 = vsel %vm2360, %v2357, %v2359
      %vm2365 = vcmask 1047688
      %2366 = vst.msk [vmem:[#allocation2] sm:$0xff] %vm2365, %v2357
      %2367 = vst [vmem:[#allocation2 + $0x8] sm:$0xff] %v2361
      %2368 = vst.msk [vmem:[#allocation2 + $0x10] sm:$0xff] %vm2360, %v2359
      %v2369 = vld [vmem:[%s6] sm:$0x3]
      %s2370 = scalar_lea.vmem %s6, 2
      %v2371 = vld [vmem:[%s2370] sm:$0x3]
      %v2372 = vld [vmem:[#allocation2] sm:$0xff]
      %v2373 = vld [vmem:[#allocation2 + $0x8] sm:$0xff]
      %v2375 = vlaneseq
      %v2376 = vshrl.u32 %v2375, 7
      %v2377 = vsub.s32 0, %v2376
      %v2378 = vrot.slane %v2369, %v2377
      %v2379 = vlaneseq
      %v2380 = vshrl.u32 %v2379, 7
      %v2381 = vsub.s32 1, %v2380
      %v2382 = vrot.slane %v2369, %v2381
      %v2385 = vmul.f32 %v2372, %v2378
      %v2386 = vmul.f32 %v2373, %v2382
      %2387 = vst [vmem:[#allocation3] sm:$0xff] %v2385
      %2388 = vst [vmem:[#allocation3 + $0x8] sm:$0xff] %v2386
      %v2389 = vld [vmem:[#allocation2] sm:$0xff]
      %v2390 = vld [vmem:[#allocation2 + $0x8] sm:$0xff]
      %v2391 = vld [vmem:[#allocation2 + $0x10] sm:$0xff]
      %2395 = vrot.lane.b32.xlu0 %v2389, 127
      %v2396 = vpop.permute.xlu0 %2395
      %2397 = vrot.lane.b32.xlu0 %v2390, 127
      %v2398 = vpop.permute.xlu0 %2397
      %2399 = vrot.lane.b32.xlu0 %v2391, 127
      %v2400 = vpop.permute.xlu0 %2399
      %v2401 = vsel %vm589, %v2396, %v2398
      %v2402 = vsel %vm589, %v2398, %v2400
      %2405 = vst [vmem:[#allocation3 + $0x40] sm:$0xff] %v2401
      %2406 = vst [vmem:[#allocation3 + $0x48] sm:$0xff] %v2402
      %v2407 = vld [vmem:[#allocation2] sm:$0xff]
      %v2408 = vld [vmem:[#allocation2 + $0x8] sm:$0xff]
      %v2409 = vld [vmem:[#allocation2 + $0x10] sm:$0xff]
      %v2411 = vlaneseq
      %v2412 = vshrl.u32 %v2411, 7
      %v2413 = vsub.s32 0, %v2412
      %v2414 = vrot.slane %v2371, %v2413
      %v2415 = vlaneseq
      %v2416 = vshrl.u32 %v2415, 7
      %v2417 = vsub.s32 1, %v2416
      %v2418 = vrot.slane %v2371, %v2417
      %2419 = vrot.lane.b32.xlu0 %v2414, 2
      %v2420 = vpop.permute.xlu0 %2419
      %2421 = vrot.lane.b32.xlu0 %v2418, 2
      %v2422 = vpop.permute.xlu0 %2421
      %v2423 = vsel %vm672, %v2420, %v2422
      %v2427 = vmul.f32 %v2407, %v2420
      %v2428 = vmul.f32 %v2408, %v2423
      %v2429 = vmul.f32 %v2409, %v2422
      %2433 = vrot.lane.b32.xlu0 %v2427, 126
      %v2434 = vpop.permute.xlu0 %2433
      %2435 = vrot.lane.b32.xlu0 %v2428, 126
      %v2436 = vpop.permute.xlu0 %2435
      %2437 = vrot.lane.b32.xlu0 %v2429, 126
      %v2438 = vpop.permute.xlu0 %2437
      %v2439 = vsel %vm725, %v2434, %v2436
      %v2440 = vsel %vm725, %v2436, %v2438
      %2443 = vst [vmem:[#allocation3 + $0x80] sm:$0xff] %v2439
      %2444 = vst [vmem:[#allocation3 + $0x88] sm:$0xff] %v2440
      %v2445 = vld [vmem:[#allocation2] sm:$0xff]
      %v2446 = vld [vmem:[#allocation2 + $0x8] sm:$0xff]
      %v2447 = vld [vmem:[#allocation2 + $0x10] sm:$0xff]
      %2448 = vrot.lane.b32.xlu0 %v2378, 16
      %v2449 = vpop.permute.xlu0 %2448
      %2450 = vrot.lane.b32.xlu0 %v2382, 16
      %v2451 = vpop.permute.xlu0 %2450
      %vm2452 = vcmask 130048
      %v2453 = vsel %vm2452, %v2449, %v2451
      %v2457 = vmul.f32 %v2445, %v2449
      %v2458 = vmul.f32 %v2446, %v2453
      %v2459 = vmul.f32 %v2447, %v2451
      %2463 = vrot.lane.b32.xlu0 %v2457, 112
      %v2464 = vpop.permute.xlu0 %2463
      %2465 = vrot.lane.b32.xlu0 %v2458, 112
      %v2466 = vpop.permute.xlu0 %2465
      %2467 = vrot.lane.b32.xlu0 %v2459, 112
      %v2468 = vpop.permute.xlu0 %2467
      %vm2469 = vcmask 916480
      %v2470 = vsel %vm2469, %v2464, %v2466
      %v2471 = vsel %vm2469, %v2466, %v2468
      %2474 = vst [vmem:[#allocation3 + $0xc0] sm:$0xff] %v2470
      %2475 = vst [vmem:[#allocation3 + $0xc8] sm:$0xff] %v2471
      %v2476 = vld [vmem:[#allocation2] sm:$0xff]
      %v2477 = vld [vmem:[#allocation2 + $0x8] sm:$0xff]
      %v2478 = vld [vmem:[#allocation2 + $0x10] sm:$0xff]
      %2482 = vrot.lane.b32.xlu0 %v2476, 111
      %v2483 = vpop.permute.xlu0 %2482
      %2484 = vrot.lane.b32.xlu0 %v2477, 111
      %v2485 = vpop.permute.xlu0 %2484
      %2486 = vrot.lane.b32.xlu0 %v2478, 111
      %v2487 = vpop.permute.xlu0 %2486
      %vm2488 = vcmask 908288
      %v2489 = vsel %vm2488, %v2483, %v2485
      %v2490 = vsel %vm2488, %v2485, %v2487
      %2493 = vst [vmem:[#allocation3 + $0x100] sm:$0xff] %v2489
      %2494 = vst [vmem:[#allocation3 + $0x108] sm:$0xff] %v2490
      %v2495 = vld [vmem:[#allocation2] sm:$0xff]
      %v2496 = vld [vmem:[#allocation2 + $0x8] sm:$0xff]
      %v2497 = vld [vmem:[#allocation2 + $0x10] sm:$0xff]
      %2498 = vrot.lane.b32.xlu0 %v2414, 18
      %v2499 = vpop.permute.xlu0 %2498
      %2500 = vrot.lane.b32.xlu0 %v2418, 18
      %v2501 = vpop.permute.xlu0 %2500
      %vm2502 = vcmask 146432
      %v2503 = vsel %vm2502, %v2499, %v2501
      %v2507 = vmul.f32 %v2495, %v2499
      %v2508 = vmul.f32 %v2496, %v2503
      %v2509 = vmul.f32 %v2497, %v2501
      %2513 = vrot.lane.b32.xlu0 %v2507, 110
      %v2514 = vpop.permute.xlu0 %2513
      %2515 = vrot.lane.b32.xlu0 %v2508, 110
      %v2516 = vpop.permute.xlu0 %2515
      %2517 = vrot.lane.b32.xlu0 %v2509, 110
      %v2518 = vpop.permute.xlu0 %2517
      %vm2519 = vcmask 900096
      %v2520 = vsel %vm2519, %v2514, %v2516
      %v2521 = vsel %vm2519, %v2516, %v2518
      %2524 = vst [vmem:[#allocation3 + $0x140] sm:$0xff] %v2520
      %2525 = vst [vmem:[#allocation3 + $0x148] sm:$0xff] %v2521
      %v2526 = vld [vmem:[#allocation2] sm:$0xff]
      %v2527 = vld [vmem:[#allocation2 + $0x8] sm:$0xff]
      %v2528 = vld [vmem:[#allocation2 + $0x10] sm:$0xff]
      %2529 = vrot.lane.b32.xlu0 %v2378, 32
      %v2530 = vpop.permute.xlu0 %2529
      %2531 = vrot.lane.b32.xlu0 %v2382, 32
      %v2532 = vpop.permute.xlu0 %2531
      %v2533 = vsel %vm775, %v2530, %v2532
      %v2537 = vmul.f32 %v2526, %v2530
      %v2538 = vmul.f32 %v2527, %v2533
      %v2539 = vmul.f32 %v2528, %v2532
      %2543 = vrot.lane.b32.xlu0 %v2537, 96
      %v2544 = vpop.permute.xlu0 %2543
      %2545 = vrot.lane.b32.xlu0 %v2538, 96
      %v2546 = vpop.permute.xlu0 %2545
      %2547 = vrot.lane.b32.xlu0 %v2539, 96
      %v2548 = vpop.permute.xlu0 %2547
      %v2549 = vsel %vm828, %v2544, %v2546
      %v2550 = vsel %vm828, %v2546, %v2548
      %2553 = vst [vmem:[#allocation3 + $0x180] sm:$0xff] %v2549
      %2554 = vst [vmem:[#allocation3 + $0x188] sm:$0xff] %v2550
      %v2555 = vld [vmem:[#allocation2] sm:$0xff]
      %v2556 = vld [vmem:[#allocation2 + $0x8] sm:$0xff]
      %v2557 = vld [vmem:[#allocation2 + $0x10] sm:$0xff]
      %2561 = vrot.lane.b32.xlu0 %v2555, 95
      %v2562 = vpop.permute.xlu0 %2561
      %2563 = vrot.lane.b32.xlu0 %v2556, 95
      %v2564 = vpop.permute.xlu0 %2563
      %2565 = vrot.lane.b32.xlu0 %v2557, 95
      %v2566 = vpop.permute.xlu0 %2565
      %v2567 = vsel %vm889, %v2562, %v2564
      %v2568 = vsel %vm889, %v2564, %v2566
      %2571 = vst [vmem:[#allocation3 + $0x1c0] sm:$0xff] %v2567
      %2572 = vst [vmem:[#allocation3 + $0x1c8] sm:$0xff] %v2568
      %v2573 = vld [vmem:[#allocation2] sm:$0xff]
      %v2574 = vld [vmem:[#allocation2 + $0x8] sm:$0xff]
      %v2575 = vld [vmem:[#allocation2 + $0x10] sm:$0xff]
      %2576 = vrot.lane.b32.xlu0 %v2414, 34
      %v2577 = vpop.permute.xlu0 %2576
      %2578 = vrot.lane.b32.xlu0 %v2418, 34
      %v2579 = vpop.permute.xlu0 %2578
      %v2580 = vsel %vm939, %v2577, %v2579
      %v2584 = vmul.f32 %v2573, %v2577
      %v2585 = vmul.f32 %v2574, %v2580
      %v2586 = vmul.f32 %v2575, %v2579
      %2590 = vrot.lane.b32.xlu0 %v2584, 94
      %v2591 = vpop.permute.xlu0 %2590
      %2592 = vrot.lane.b32.xlu0 %v2585, 94
      %v2593 = vpop.permute.xlu0 %2592
      %2594 = vrot.lane.b32.xlu0 %v2586, 94
      %v2595 = vpop.permute.xlu0 %2594
      %v2596 = vsel %vm992, %v2591, %v2593
      %v2597 = vsel %vm992, %v2593, %v2595
      %2600 = vst [vmem:[#allocation3 + $0x200] sm:$0xff] %v2596
      %2601 = vst [vmem:[#allocation3 + $0x208] sm:$0xff] %v2597
      %v2602 = vld [vmem:[#allocation3] sm:$0xff]
      %v2603 = vld [vmem:[#allocation3 + $0x8] sm:$0xff]
      %v2604 = vld [vmem:[#allocation3 + $0x40] sm:$0xff]
      %v2605 = vld [vmem:[#allocation3 + $0x48] sm:$0xff]
      %v2606 = vld [vmem:[#allocation3 + $0x80] sm:$0xff]
      %v2607 = vld [vmem:[#allocation3 + $0x88] sm:$0xff]
      %v2608 = vld [vmem:[#allocation3 + $0xc0] sm:$0xff]
      %v2609 = vld [vmem:[#allocation3 + $0xc8] sm:$0xff]
      %v2610 = vld [vmem:[#allocation3 + $0x100] sm:$0xff]
      %v2611 = vld [vmem:[#allocation3 + $0x108] sm:$0xff]
      %v2612 = vld [vmem:[#allocation3 + $0x140] sm:$0xff]
      %v2613 = vld [vmem:[#allocation3 + $0x148] sm:$0xff]
      %v2614 = vld [vmem:[#allocation3 + $0x180] sm:$0xff]
      %v2615 = vld [vmem:[#allocation3 + $0x188] sm:$0xff]
      %v2616 = vld [vmem:[#allocation3 + $0x1c0] sm:$0xff]
      %v2617 = vld [vmem:[#allocation3 + $0x1c8] sm:$0xff]
      %v2618 = vld [vmem:[#allocation3 + $0x200] sm:$0xff]
      %v2619 = vld [vmem:[#allocation3 + $0x208] sm:$0xff]
      %2621 = vset.pattern.permute.xlu0 0
      %2622 = vperm.xlu0 %2621, %v2344
      %v2623 = vpop.permute.xlu0 %2622
      %v2626 = vsel %vm1359, %v2342, 0
      %2628 = vmatprep.subr.mxu0 %v2603
      %2629 = vmatpush1.msra.mxu0 %v2602
      %2630 = vmatprep.subr.mxu0 %v2605
      %2631 = vmatpush1.msra.mxu0 %v2604
      %2632 = vmatprep.subr.mxu0 %v2607
      %2633 = vmatpush1.msra.mxu0 %v2606
      %2634 = vmatprep.subr.mxu0 %v2609
      %2635 = vmatpush1.msra.mxu0 %v2608
      %2636 = vmatprep.subr.mxu0 %v2611
      %2637 = vmatpush1.msra.mxu0 %v2610
      %2638 = vmatprep.subr.mxu0 %v2613
      %2639 = vmatpush1.msra.mxu0 %v2612
      %2640 = vmatprep.subr.mxu0 %v2615
      %2641 = vmatpush1.msra.mxu0 %v2614
      %2642 = vmatprep.subr.mxu0 %v2617
      %2643 = vmatpush1.msra.mxu0 %v2616
      %2644 = vmatprep.subr.mxu0 %v2619
      %2645 = vmatpush1.msra.mxu0 %v2618
      %2646 = vmatprep.subr.mxu0 0.0
      %2647 = vmatpush1.msra.mxu0 0.0
      %2648 = vmatprep.subr.mxu0 0.0
      %2649 = vmatpush1.msra.mxu0 0.0
      %2650 = vmatprep.subr.mxu0 0.0
      %2651 = vmatpush1.msra.mxu0 0.0
      %2652 = vmatprep.subr.mxu0 0.0
      %2653 = vmatpush1.msra.mxu0 0.0
      %2654 = vmatprep.subr.mxu0 0.0
      %2655 = vmatpush1.msra.mxu0 0.0
      %2656 = vmatprep.subr.mxu0 0.0
      %2657 = vmatpush1.msra.mxu0 0.0
      %2658 = vmatprep.subr.mxu0 0.0
      %2659 = vmatpush1.msra.mxu0 0.0
      %2660 = vmatprep.subr.mxu0 0.0
      %2661 = vmatpush1.msra.mxu0 0.0
      %2662 = vmatprep.subr.mxu0 0.0
      %2663 = vmatpush1.msra.mxu0 0.0
      %2664 = vmatprep.subr.mxu0 0.0
      %2665 = vmatpush1.msra.mxu0 0.0
      %2666 = vmatprep.subr.mxu0 0.0
      %2667 = vmatpush1.msra.mxu0 0.0
      %2668 = vmatprep.subr.mxu0 0.0
      %2669 = vmatpush1.msra.mxu0 0.0
      %2670 = vmatprep.subr.mxu0 0.0
      %2671 = vmatpush1.msra.mxu0 0.0
      %2672 = vmatprep.subr.mxu0 0.0
      %2673 = vmatpush1.msra.mxu0 0.0
      %2674 = vmatprep.subr.mxu0 0.0
      %2675 = vmatpush1.msra.mxu0 0.0
      %2676 = vmatprep.subr.mxu0 0.0
      %2677 = vmatpush1.msra.mxu0 0.0
      %2678 = vmatprep.subr.mxu0 0.0
      %2679 = vmatpush1.msra.mxu0 0.0
      %2680 = vmatprep.subr.mxu0 0.0
      %2681 = vmatpush1.msra.mxu0 0.0
      %2682 = vmatprep.subr.mxu0 0.0
      %2683 = vmatpush1.msra.mxu0 0.0
      %2684 = vmatprep.subr.mxu0 0.0
      %2685 = vmatpush1.msra.mxu0 0.0
      %2686 = vmatprep.subr.mxu0 0.0
      %2687 = vmatpush1.msra.mxu0 0.0
      %2688 = vmatprep.subr.mxu0 0.0
      %2689 = vmatpush1.msra.mxu0 0.0
      %2690 = vmatprep.subr.mxu0 0.0
      %2691 = vmatpush1.msra.mxu0 0.0
      %2692 = vmatprep.mubr.f32.mxu0 0.0
      %2693 = vmatmul.mubr.f32.gmra.mrb[0].mxu0 %v2626
      %v2694 = vpop.f32.mrb[0].mxu0
      %v2695 = vadd.f32 %v2623, %v2694
      %v2696 = vpop.f32.mrb[0].mxu0
      %v2697 = vadd.f32 %v2623, %v2696
      %2698 = vdwg.mxu0
      %v2699 = vmul.f32 %v2695, 0.2
      %v2700 = vmul.f32 %v2697, 0.2
      %v2701 = vmax.f32 %v2695, %v2699
      %v2702 = vmax.f32 %v2697, %v2700
      %2703 = vst [vmem:[#allocation2] sm:$0xff] 0.0
      %2704 = vst [vmem:[#allocation2 + $0x8] sm:$0xff] 0.0
      %2705 = vst [vmem:[#allocation2 + $0x10] sm:$0xff] 0.0
      %2706 = vst [vmem:[#allocation2 + $0x18] sm:$0xff] 0.0
      %2707 = vst [vmem:[#allocation2 + $0x20] sm:$0xff] 0.0
      %2708 = vst [vmem:[#allocation2 + $0x28] sm:$0xff] 0.0
      %2709 = vst [vmem:[#allocation2 + $0x30] sm:$0xff] 0.0
      %2710 = vst [vmem:[#allocation2 + $0x38] sm:$0xff] 0.0
      %2711 = vst.msk [vmem:[#allocation2 + $0x40] sm:$0xff] %vm432, 0.0
      %2712 = vst [vmem:[#allocation2] sm:$0xff] %v2701
      %2713 = vst [vmem:[#allocation2 + $0x8] sm:$0xff] %v2702
      %v2714 = vld [vmem:[#allocation2] sm:$0xff]
      %v2715 = vld [vmem:[#allocation2 + $0x8] sm:$0xff]
      %v2716 = vld [vmem:[#allocation2 + $0x10] sm:$0xff]
      %2720 = vrot.lane.b32.xlu0 %v2714, 127
      %v2721 = vpop.permute.xlu0 %2720
      %2722 = vrot.lane.b32.xlu0 %v2715, 127
      %v2723 = vpop.permute.xlu0 %2722
      %2724 = vrot.lane.b32.xlu0 %v2716, 127
      %v2725 = vpop.permute.xlu0 %2724
      %v2726 = vsel %vm589, %v2721, %v2723
      %v2727 = vsel %vm589, %v2723, %v2725
      %v2730 = vmax.f32 %v2701, %v2726
      %v2731 = vmax.f32 %v2702, %v2727
      %v2733 = vmax.f32 %v2714, %v2726
      %v2734 = vmax.f32 %v2715, %v2727
      %v2735 = vmax.f32 %v2716, %v2725
      %2739 = vrot.lane.b32.xlu0 %v2733, 112
      %v2740 = vpop.permute.xlu0 %2739
      %2741 = vrot.lane.b32.xlu0 %v2734, 112
      %v2742 = vpop.permute.xlu0 %2741
      %2743 = vrot.lane.b32.xlu0 %v2735, 112
      %v2744 = vpop.permute.xlu0 %2743
      %v2745 = vsel %vm2469, %v2740, %v2742
      %v2746 = vsel %vm2469, %v2742, %v2744
      %v2749 = vmax.f32 %v2730, %v2745
      %v2750 = vmax.f32 %v2731, %v2746
      %v2751 = vld [vmem:[%s9] sm:$0xff]
      %v2752 = vld [vmem:[%s9 + $0x8] sm:$0xff]
      %v2753 = vld [vmem:[%s9 + $0x10] sm:$0xff]
      %v2754 = vld [vmem:[%s9 + $0x18] sm:$0xff]
      %v2755 = vld [vmem:[%s9 + $0x20] sm:$0xff]
      %v2756 = vld [vmem:[%s9 + $0x28] sm:$0xff]
      %v2757 = vld [vmem:[%s9 + $0x30] sm:$0xff]
      %v2758 = vld [vmem:[%s9 + $0x38] sm:$0xff]
      %v2759 = vld [vmem:[%s9 + $0x40] sm:$0xff]
      %v2760 = vld [vmem:[%s9 + $0x48] sm:$0xff]
      %v2761 = vld [vmem:[%s9 + $0x50] sm:$0xff]
      %v2762 = vld [vmem:[%s9 + $0x58] sm:$0xff]
      %v2763 = vld [vmem:[%s9 + $0x60] sm:$0xff]
      %v2764 = vld [vmem:[%s9 + $0x68] sm:$0xff]
      %v2765 = vld [vmem:[%s9 + $0x70] sm:$0xff]
      %v2766 = vld [vmem:[%s9 + $0x78] sm:$0xff]
      %v2767 = vld [vmem:[%s9 + $0x80] sm:$0xff]
      %v2768 = vld [vmem:[%s9 + $0x88] sm:$0xff]
      %v2769 = vld [vmem:[%s9 + $0x90] sm:$0xff]
      %v2770 = vld [vmem:[%s9 + $0x98] sm:$0xff]
      %v2771 = vld [vmem:[%s9 + $0xa0] sm:$0xff]
      %v2772 = vld [vmem:[%s9 + $0xa8] sm:$0xff]
      %v2773 = vld [vmem:[%s9 + $0xb0] sm:$0xff]
      %v2774 = vld [vmem:[%s9 + $0xb8] sm:$0xff]
      %v2775 = vld [vmem:[%s9 + $0xc0] sm:$0xff]
      %v2776 = vld [vmem:[%s9 + $0xc8] sm:$0xff]
      %v2777 = vld [vmem:[%s9 + $0xd0] sm:$0xff]
      %v2778 = vld [vmem:[%s9 + $0xd8] sm:$0xff]
      %v2779 = vld [vmem:[%s9 + $0xe0] sm:$0xff]
      %v2780 = vld [vmem:[%s9 + $0xe8] sm:$0xff]
      %v2781 = vld [vmem:[%s9 + $0xf0] sm:$0xff]
      %v2782 = vld [vmem:[%s9 + $0xf8] sm:$0xff]
      %2783 = vmatprep.subr.mxu0 0.0
      %2784 = vmatpush1.msra.mxu0 %v2751
      %2785 = vmatprep.subr.mxu0 0.0
      %2786 = vmatpush1.msra.mxu0 %v2752
      %2787 = vmatprep.subr.mxu0 0.0
      %2788 = vmatpush1.msra.mxu0 %v2753
      %2789 = vmatprep.subr.mxu0 0.0
      %2790 = vmatpush1.msra.mxu0 %v2754
      %2791 = vmatprep.subr.mxu0 0.0
      %2792 = vmatpush1.msra.mxu0 %v2755
      %2793 = vmatprep.subr.mxu0 0.0
      %2794 = vmatpush1.msra.mxu0 %v2756
      %2795 = vmatprep.subr.mxu0 0.0
      %2796 = vmatpush1.msra.mxu0 %v2757
      %2797 = vmatprep.subr.mxu0 0.0
      %2798 = vmatpush1.msra.mxu0 %v2758
      %2799 = vmatprep.subr.mxu0 0.0
      %2800 = vmatpush1.msra.mxu0 %v2759
      %2801 = vmatprep.subr.mxu0 0.0
      %2802 = vmatpush1.msra.mxu0 %v2760
      %2803 = vmatprep.subr.mxu0 0.0
      %2804 = vmatpush1.msra.mxu0 %v2761
      %2805 = vmatprep.subr.mxu0 0.0
      %2806 = vmatpush1.msra.mxu0 %v2762
      %2807 = vmatprep.subr.mxu0 0.0
      %2808 = vmatpush1.msra.mxu0 %v2763
      %2809 = vmatprep.subr.mxu0 0.0
      %2810 = vmatpush1.msra.mxu0 %v2764
      %2811 = vmatprep.subr.mxu0 0.0
      %2812 = vmatpush1.msra.mxu0 %v2765
      %2813 = vmatprep.subr.mxu0 0.0
      %2814 = vmatpush1.msra.mxu0 %v2766
      %2815 = vmatprep.subr.mxu0 0.0
      %2816 = vmatpush1.msra.mxu0 %v2767
      %2817 = vmatprep.subr.mxu0 0.0
      %2818 = vmatpush1.msra.mxu0 %v2768
      %2819 = vmatprep.subr.mxu0 0.0
      %2820 = vmatpush1.msra.mxu0 %v2769
      %2821 = vmatprep.subr.mxu0 0.0
      %2822 = vmatpush1.msra.mxu0 %v2770
      %2823 = vmatprep.subr.mxu0 0.0
      %2824 = vmatpush1.msra.mxu0 %v2771
      %2825 = vmatprep.subr.mxu0 0.0
      %2826 = vmatpush1.msra.mxu0 %v2772
      %2827 = vmatprep.subr.mxu0 0.0
      %2828 = vmatpush1.msra.mxu0 %v2773
      %2829 = vmatprep.subr.mxu0 0.0
      %2830 = vmatpush1.msra.mxu0 %v2774
      %2831 = vmatprep.subr.mxu0 0.0
      %2832 = vmatpush1.msra.mxu0 %v2775
      %2833 = vmatprep.subr.mxu0 0.0
      %2834 = vmatpush1.msra.mxu0 %v2776
      %2835 = vmatprep.subr.mxu0 0.0
      %2836 = vmatpush1.msra.mxu0 %v2777
      %2837 = vmatprep.subr.mxu0 0.0
      %2838 = vmatpush1.msra.mxu0 %v2778
      %2839 = vmatprep.subr.mxu0 0.0
      %2840 = vmatpush1.msra.mxu0 %v2779
      %2841 = vmatprep.subr.mxu0 0.0
      %2842 = vmatpush1.msra.mxu0 %v2780
      %2843 = vmatprep.subr.mxu0 0.0
      %2844 = vmatpush1.msra.mxu0 %v2781
      %2845 = vmatprep.subr.mxu0 0.0
      %2846 = vmatpush1.msra.mxu0 %v2782
      %2847 = vmatprep.mubr.f32.mxu0 %v2750
      %2848 = vmatmul.mubr.f32.gmra.mrb[0].mxu0 %v2749
      %v2849 = vpop.f32.mrb[0].mxu0
      %v2850 = vadd.f32 0.0, %v2849
      %v2851 = vpop.f32.mrb[0].mxu0
      %2852 = vdwg.mxu0
      %s2853 = scalar_lea.vmem %s1, 16
      %v2854 = vld [vmem:[%s2853] sm:$0xff]
      %s2855 = scalar_lea.vmem %s2, 16
      %v2856 = vld [vmem:[%s2855] sm:$0xff]
      %2857 = vst [vmem:[#allocation2] sm:$0xff] 0.0
      %2858 = vst [vmem:[#allocation2 + $0x8] sm:$0xff] 0.0
      %2859 = vst [vmem:[#allocation2 + $0x10] sm:$0xff] 0.0
      %2860 = vst [vmem:[#allocation2 + $0x18] sm:$0xff] 0.0
      %2861 = vst [vmem:[#allocation2 + $0x20] sm:$0xff] 0.0
      %2862 = vst [vmem:[#allocation2 + $0x28] sm:$0xff] 0.0
      %2863 = vst [vmem:[#allocation2 + $0x30] sm:$0xff] 0.0
      %2864 = vst [vmem:[#allocation2 + $0x38] sm:$0xff] 0.0
      %2865 = vst.msk [vmem:[#allocation2 + $0x40] sm:$0xff] %vm432, 0.0
      %2867 = vrot.lane.b32.xlu0 %v2850, 9
      %v2868 = vpop.permute.xlu0 %2867
      %vm2870 = vcmask 597064
      %2871 = vst.msk [vmem:[#allocation2] sm:$0xff] %vm2870, %v2868
      %v2872 = vld [vmem:[%s7] sm:$0x1]
      %s2873 = scalar_lea.vmem %s7, 1
      %v2874 = vld [vmem:[%s2873] sm:$0x1]
      %v2875 = vld [vmem:[#allocation2] sm:$0xff]
      %v2877 = vlaneseq
      %v2878 = vshrl.u32 %v2877, 7
      %v2879 = vsub.s32 0, %v2878
      %v2880 = vrot.slane %v2872, %v2879
      %v2882 = vmul.f32 %v2875, %v2880
      %2883 = vst.msk [vmem:[#allocation3] sm:$0xff] %vm1042, %v2882
      %v2884 = vld [vmem:[#allocation2] sm:$0xff]
      %2886 = vrot.lane.b32.xlu0 %v2884, 127
      %v2887 = vpop.permute.xlu0 %2886
      %2889 = vst.msk [vmem:[#allocation3 + $0x40] sm:$0xff] %vm1042, %v2887
      %v2890 = vld [vmem:[#allocation2] sm:$0xff]
      %v2892 = vlaneseq
      %v2893 = vshrl.u32 %v2892, 7
      %v2894 = vsub.s32 0, %v2893
      %v2895 = vrot.slane %v2874, %v2894
      %2896 = vrot.lane.b32.xlu0 %v2895, 2
      %v2897 = vpop.permute.xlu0 %2896
      %v2899 = vmul.f32 %v2890, %v2897
      %2901 = vrot.lane.b32.xlu0 %v2899, 126
      %v2902 = vpop.permute.xlu0 %2901
      %2904 = vst.msk [vmem:[#allocation3 + $0x80] sm:$0xff] %vm1042, %v2902
      %v2905 = vld [vmem:[#allocation2] sm:$0xff]
      %2906 = vrot.lane.b32.xlu0 %v2880, 8
      %v2907 = vpop.permute.xlu0 %2906
      %v2909 = vmul.f32 %v2905, %v2907
      %2911 = vrot.lane.b32.xlu0 %v2909, 120
      %v2912 = vpop.permute.xlu0 %2911
      %2914 = vst.msk [vmem:[#allocation3 + $0xc0] sm:$0xff] %vm1042, %v2912
      %v2915 = vld [vmem:[#allocation2] sm:$0xff]
      %2917 = vrot.lane.b32.xlu0 %v2915, 119
      %v2918 = vpop.permute.xlu0 %2917
      %2920 = vst.msk [vmem:[#allocation3 + $0x100] sm:$0xff] %vm1042, %v2918
      %v2921 = vld [vmem:[#allocation2] sm:$0xff]
      %2922 = vrot.lane.b32.xlu0 %v2895, 10
      %v2923 = vpop.permute.xlu0 %2922
      %v2925 = vmul.f32 %v2921, %v2923
      %2927 = vrot.lane.b32.xlu0 %v2925, 118
      %v2928 = vpop.permute.xlu0 %2927
      %2930 = vst.msk [vmem:[#allocation3 + $0x140] sm:$0xff] %vm1042, %v2928
      %v2931 = vld [vmem:[#allocation2] sm:$0xff]
      %2932 = vrot.lane.b32.xlu0 %v2880, 16
      %v2933 = vpop.permute.xlu0 %2932
      %v2935 = vmul.f32 %v2931, %v2933
      %2937 = vrot.lane.b32.xlu0 %v2935, 112
      %v2938 = vpop.permute.xlu0 %2937
      %2940 = vst.msk [vmem:[#allocation3 + $0x180] sm:$0xff] %vm1042, %v2938
      %v2941 = vld [vmem:[#allocation2] sm:$0xff]
      %2943 = vrot.lane.b32.xlu0 %v2941, 111
      %v2944 = vpop.permute.xlu0 %2943
      %2946 = vst.msk [vmem:[#allocation3 + $0x1c0] sm:$0xff] %vm1042, %v2944
      %v2947 = vld [vmem:[#allocation2] sm:$0xff]
      %2948 = vrot.lane.b32.xlu0 %v2895, 18
      %v2949 = vpop.permute.xlu0 %2948
      %v2951 = vmul.f32 %v2947, %v2949
      %2953 = vrot.lane.b32.xlu0 %v2951, 110
      %v2954 = vpop.permute.xlu0 %2953
      %2956 = vst.msk [vmem:[#allocation3 + $0x200] sm:$0xff] %vm1042, %v2954
      %v2957 = vld [vmem:[#allocation3] sm:$0xff]
      %v2958 = vld [vmem:[#allocation3 + $0x40] sm:$0xff]
      %v2959 = vld [vmem:[#allocation3 + $0x80] sm:$0xff]
      %v2960 = vld [vmem:[#allocation3 + $0xc0] sm:$0xff]
      %v2961 = vld [vmem:[#allocation3 + $0x100] sm:$0xff]
      %v2962 = vld [vmem:[#allocation3 + $0x140] sm:$0xff]
      %v2963 = vld [vmem:[#allocation3 + $0x180] sm:$0xff]
      %v2964 = vld [vmem:[#allocation3 + $0x1c0] sm:$0xff]
      %v2965 = vld [vmem:[#allocation3 + $0x200] sm:$0xff]
      %2967 = vset.pattern.permute.xlu0 0
      %2968 = vperm.xlu0 %2967, %v2856
      %v2969 = vpop.permute.xlu0 %2968
      %v2972 = vsel %vm1359, %v2854, 0
      %2974 = vmatprep.subr.mxu0 0.0
      %2975 = vmatpush1.msra.mxu0 %v2957
      %2976 = vmatprep.subr.mxu0 0.0
      %2977 = vmatpush1.msra.mxu0 %v2958
      %2978 = vmatprep.subr.mxu0 0.0
      %2979 = vmatpush1.msra.mxu0 %v2959
      %2980 = vmatprep.subr.mxu0 0.0
      %2981 = vmatpush1.msra.mxu0 %v2960
      %2982 = vmatprep.subr.mxu0 0.0
      %2983 = vmatpush1.msra.mxu0 %v2961
      %2984 = vmatprep.subr.mxu0 0.0
      %2985 = vmatpush1.msra.mxu0 %v2962
      %2986 = vmatprep.subr.mxu0 0.0
      %2987 = vmatpush1.msra.mxu0 %v2963
      %2988 = vmatprep.subr.mxu0 0.0
      %2989 = vmatpush1.msra.mxu0 %v2964
      %2990 = vmatprep.subr.mxu0 0.0
      %2991 = vmatpush1.msra.mxu0 %v2965
      %2992 = vmatprep.subr.mxu0 0.0
      %2993 = vmatpush1.msra.mxu0 0.0
      %2994 = vmatprep.subr.mxu0 0.0
      %2995 = vmatpush1.msra.mxu0 0.0
      %2996 = vmatprep.subr.mxu0 0.0
      %2997 = vmatpush1.msra.mxu0 0.0
      %2998 = vmatprep.subr.mxu0 0.0
      %2999 = vmatpush1.msra.mxu0 0.0
      %3000 = vmatprep.subr.mxu0 0.0
      %3001 = vmatpush1.msra.mxu0 0.0
      %3002 = vmatprep.subr.mxu0 0.0
      %3003 = vmatpush1.msra.mxu0 0.0
      %3004 = vmatprep.subr.mxu0 0.0
      %3005 = vmatpush1.msra.mxu0 0.0
      %3006 = vmatprep.subr.mxu0 0.0
      %3007 = vmatpush1.msra.mxu0 0.0
      %3008 = vmatprep.subr.mxu0 0.0
      %3009 = vmatpush1.msra.mxu0 0.0
      %3010 = vmatprep.subr.mxu0 0.0
      %3011 = vmatpush1.msra.mxu0 0.0
      %3012 = vmatprep.subr.mxu0 0.0
      %3013 = vmatpush1.msra.mxu0 0.0
      %3014 = vmatprep.subr.mxu0 0.0
      %3015 = vmatpush1.msra.mxu0 0.0
      %3016 = vmatprep.subr.mxu0 0.0
      %3017 = vmatpush1.msra.mxu0 0.0
      %3018 = vmatprep.subr.mxu0 0.0
      %3019 = vmatpush1.msra.mxu0 0.0
      %3020 = vmatprep.subr.mxu0 0.0
      %3021 = vmatpush1.msra.mxu0 0.0
      %3022 = vmatprep.subr.mxu0 0.0
      %3023 = vmatpush1.msra.mxu0 0.0
      %3024 = vmatprep.subr.mxu0 0.0
      %3025 = vmatpush1.msra.mxu0 0.0
      %3026 = vmatprep.subr.mxu0 0.0
      %3027 = vmatpush1.msra.mxu0 0.0
      %3028 = vmatprep.subr.mxu0 0.0
      %3029 = vmatpush1.msra.mxu0 0.0
      %3030 = vmatprep.subr.mxu0 0.0
      %3031 = vmatpush1.msra.mxu0 0.0
      %3032 = vmatprep.subr.mxu0 0.0
      %3033 = vmatpush1.msra.mxu0 0.0
      %3034 = vmatprep.subr.mxu0 0.0
      %3035 = vmatpush1.msra.mxu0 0.0
      %3036 = vmatprep.subr.mxu0 0.0
      %3037 = vmatpush1.msra.mxu0 0.0
      %3038 = vmatprep.mubr.f32.mxu0 0.0
      %3039 = vmatmul.mubr.f32.gmra.mrb[0].mxu0 %v2972
      %v3040 = vpop.f32.mrb[0].mxu0
      %v3041 = vadd.f32 %v2969, %v3040
      %v3042 = vpop.f32.mrb[0].mxu0
      %3043 = vdwg.mxu0
      %v3044 = vmul.f32 %v3041, 0.2
      %v3045 = vmax.f32 %v3041, %v3044
      %s3046 = scalar_lea.vmem %s1, 24
      %v3047 = vld [vmem:[%s3046] sm:$0xff]
      %s3048 = scalar_lea.vmem %s2, 24
      %v3049 = vld [vmem:[%s3048] sm:$0xff]
      %3050 = vst [vmem:[#allocation2] sm:$0xff] 0.0
      %3051 = vst [vmem:[#allocation2 + $0x8] sm:$0xff] 0.0
      %3052 = vst [vmem:[#allocation2 + $0x10] sm:$0xff] 0.0
      %3053 = vst [vmem:[#allocation2 + $0x18] sm:$0xff] 0.0
      %3054 = vst [vmem:[#allocation2 + $0x20] sm:$0xff] 0.0
      %3055 = vst [vmem:[#allocation2 + $0x28] sm:$0xff] 0.0
      %3056 = vst [vmem:[#allocation2 + $0x30] sm:$0xff] 0.0
      %3057 = vst [vmem:[#allocation2 + $0x38] sm:$0xff] 0.0
      %3058 = vst.msk [vmem:[#allocation2 + $0x40] sm:$0xff] %vm432, 0.0
      %3060 = vrot.lane.b32.xlu0 %v3045, 9
      %v3061 = vpop.permute.xlu0 %3060
      %3063 = vst.msk [vmem:[#allocation2] sm:$0xff] %vm2870, %v3061
      %v3064 = vld [vmem:[%s7] sm:$0x1]
      %v3065 = vld [vmem:[%s2873] sm:$0x1]
      %v3066 = vld [vmem:[#allocation2] sm:$0xff]
      %v3068 = vlaneseq
      %v3069 = vshrl.u32 %v3068, 7
      %v3070 = vsub.s32 0, %v3069
      %v3071 = vrot.slane %v3064, %v3070
      %v3073 = vmul.f32 %v3066, %v3071
      %3074 = vst.msk [vmem:[#allocation3] sm:$0xff] %vm1042, %v3073
      %v3075 = vld [vmem:[#allocation2] sm:$0xff]
      %3077 = vrot.lane.b32.xlu0 %v3075, 127
      %v3078 = vpop.permute.xlu0 %3077
      %3080 = vst.msk [vmem:[#allocation3 + $0x40] sm:$0xff] %vm1042, %v3078
      %v3081 = vld [vmem:[#allocation2] sm:$0xff]
      %v3083 = vlaneseq
      %v3084 = vshrl.u32 %v3083, 7
      %v3085 = vsub.s32 0, %v3084
      %v3086 = vrot.slane %v3065, %v3085
      %3087 = vrot.lane.b32.xlu0 %v3086, 2
      %v3088 = vpop.permute.xlu0 %3087
      %v3090 = vmul.f32 %v3081, %v3088
      %3092 = vrot.lane.b32.xlu0 %v3090, 126
      %v3093 = vpop.permute.xlu0 %3092
      %3095 = vst.msk [vmem:[#allocation3 + $0x80] sm:$0xff] %vm1042, %v3093
      %v3096 = vld [vmem:[#allocation2] sm:$0xff]
      %3097 = vrot.lane.b32.xlu0 %v3071, 8
      %v3098 = vpop.permute.xlu0 %3097
      %v3100 = vmul.f32 %v3096, %v3098
      %3102 = vrot.lane.b32.xlu0 %v3100, 120
      %v3103 = vpop.permute.xlu0 %3102
      %3105 = vst.msk [vmem:[#allocation3 + $0xc0] sm:$0xff] %vm1042, %v3103
      %v3106 = vld [vmem:[#allocation2] sm:$0xff]
      %3108 = vrot.lane.b32.xlu0 %v3106, 119
      %v3109 = vpop.permute.xlu0 %3108
      %3111 = vst.msk [vmem:[#allocation3 + $0x100] sm:$0xff] %vm1042, %v3109
      %v3112 = vld [vmem:[#allocation2] sm:$0xff]
      %3113 = vrot.lane.b32.xlu0 %v3086, 10
      %v3114 = vpop.permute.xlu0 %3113
      %v3116 = vmul.f32 %v3112, %v3114
      %3118 = vrot.lane.b32.xlu0 %v3116, 118
      %v3119 = vpop.permute.xlu0 %3118
      %3121 = vst.msk [vmem:[#allocation3 + $0x140] sm:$0xff] %vm1042, %v3119
      %v3122 = vld [vmem:[#allocation2] sm:$0xff]
      %3123 = vrot.lane.b32.xlu0 %v3071, 16
      %v3124 = vpop.permute.xlu0 %3123
      %v3126 = vmul.f32 %v3122, %v3124
      %3128 = vrot.lane.b32.xlu0 %v3126, 112
      %v3129 = vpop.permute.xlu0 %3128
      %3131 = vst.msk [vmem:[#allocation3 + $0x180] sm:$0xff] %vm1042, %v3129
      %v3132 = vld [vmem:[#allocation2] sm:$0xff]
      %3134 = vrot.lane.b32.xlu0 %v3132, 111
      %v3135 = vpop.permute.xlu0 %3134
      %3137 = vst.msk [vmem:[#allocation3 + $0x1c0] sm:$0xff] %vm1042, %v3135
      %v3138 = vld [vmem:[#allocation2] sm:$0xff]
      %3139 = vrot.lane.b32.xlu0 %v3086, 18
      %v3140 = vpop.permute.xlu0 %3139
      %v3142 = vmul.f32 %v3138, %v3140
      %3144 = vrot.lane.b32.xlu0 %v3142, 110
      %v3145 = vpop.permute.xlu0 %3144
      %3147 = vst.msk [vmem:[#allocation3 + $0x200] sm:$0xff] %vm1042, %v3145
      %v3148 = vld [vmem:[#allocation3] sm:$0xff]
      %v3149 = vld [vmem:[#allocation3 + $0x40] sm:$0xff]
      %v3150 = vld [vmem:[#allocation3 + $0x80] sm:$0xff]
      %v3151 = vld [vmem:[#allocation3 + $0xc0] sm:$0xff]
      %v3152 = vld [vmem:[#allocation3 + $0x100] sm:$0xff]
      %v3153 = vld [vmem:[#allocation3 + $0x140] sm:$0xff]
      %v3154 = vld [vmem:[#allocation3 + $0x180] sm:$0xff]
      %v3155 = vld [vmem:[#allocation3 + $0x1c0] sm:$0xff]
      %v3156 = vld [vmem:[#allocation3 + $0x200] sm:$0xff]
      %3158 = vset.pattern.permute.xlu0 0
      %3159 = vperm.xlu0 %3158, %v3049
      %v3160 = vpop.permute.xlu0 %3159
      %v3163 = vsel %vm1359, %v3047, 0
      %3165 = vmatprep.subr.mxu0 0.0
      %3166 = vmatpush1.msra.mxu0 %v3148
      %3167 = vmatprep.subr.mxu0 0.0
      %3168 = vmatpush1.msra.mxu0 %v3149
      %3169 = vmatprep.subr.mxu0 0.0
      %3170 = vmatpush1.msra.mxu0 %v3150
      %3171 = vmatprep.subr.mxu0 0.0
      %3172 = vmatpush1.msra.mxu0 %v3151
      %3173 = vmatprep.subr.mxu0 0.0
      %3174 = vmatpush1.msra.mxu0 %v3152
      %3175 = vmatprep.subr.mxu0 0.0
      %3176 = vmatpush1.msra.mxu0 %v3153
      %3177 = vmatprep.subr.mxu0 0.0
      %3178 = vmatpush1.msra.mxu0 %v3154
      %3179 = vmatprep.subr.mxu0 0.0
      %3180 = vmatpush1.msra.mxu0 %v3155
      %3181 = vmatprep.subr.mxu0 0.0
      %3182 = vmatpush1.msra.mxu0 %v3156
      %3183 = vmatprep.subr.mxu0 0.0
      %3184 = vmatpush1.msra.mxu0 0.0
      %3185 = vmatprep.subr.mxu0 0.0
      %3186 = vmatpush1.msra.mxu0 0.0
      %3187 = vmatprep.subr.mxu0 0.0
      %3188 = vmatpush1.msra.mxu0 0.0
      %3189 = vmatprep.subr.mxu0 0.0
      %3190 = vmatpush1.msra.mxu0 0.0
      %3191 = vmatprep.subr.mxu0 0.0
      %3192 = vmatpush1.msra.mxu0 0.0
      %3193 = vmatprep.subr.mxu0 0.0
      %3194 = vmatpush1.msra.mxu0 0.0
      %3195 = vmatprep.subr.mxu0 0.0
      %3196 = vmatpush1.msra.mxu0 0.0
      %3197 = vmatprep.subr.mxu0 0.0
      %3198 = vmatpush1.msra.mxu0 0.0
      %3199 = vmatprep.subr.mxu0 0.0
      %3200 = vmatpush1.msra.mxu0 0.0
      %3201 = vmatprep.subr.mxu0 0.0
      %3202 = vmatpush1.msra.mxu0 0.0
      %3203 = vmatprep.subr.mxu0 0.0
      %3204 = vmatpush1.msra.mxu0 0.0
      %3205 = vmatprep.subr.mxu0 0.0
      %3206 = vmatpush1.msra.mxu0 0.0
      %3207 = vmatprep.subr.mxu0 0.0
      %3208 = vmatpush1.msra.mxu0 0.0
      %3209 = vmatprep.subr.mxu0 0.0
      %3210 = vmatpush1.msra.mxu0 0.0
      %3211 = vmatprep.subr.mxu0 0.0
      %3212 = vmatpush1.msra.mxu0 0.0
      %3213 = vmatprep.subr.mxu0 0.0
      %3214 = vmatpush1.msra.mxu0 0.0
      %3215 = vmatprep.subr.mxu0 0.0
      %3216 = vmatpush1.msra.mxu0 0.0
      %3217 = vmatprep.subr.mxu0 0.0
      %3218 = vmatpush1.msra.mxu0 0.0
      %3219 = vmatprep.subr.mxu0 0.0
      %3220 = vmatpush1.msra.mxu0 0.0
      %3221 = vmatprep.subr.mxu0 0.0
      %3222 = vmatpush1.msra.mxu0 0.0
      %3223 = vmatprep.subr.mxu0 0.0
      %3224 = vmatpush1.msra.mxu0 0.0
      %3225 = vmatprep.subr.mxu0 0.0
      %3226 = vmatpush1.msra.mxu0 0.0
      %3227 = vmatprep.subr.mxu0 0.0
      %3228 = vmatpush1.msra.mxu0 0.0
      %3229 = vmatprep.mubr.f32.mxu0 0.0
      %3230 = vmatmul.mubr.f32.gmra.mrb[0].mxu0 %v3163
      %v3231 = vpop.f32.mrb[0].mxu0
      %v3232 = vadd.f32 %v3160, %v3231
      %v3233 = vpop.f32.mrb[0].mxu0
      %3234 = vdwg.mxu0
      %v3235 = vmul.f32 %v3232, 0.2
      %v3236 = vmax.f32 %v3232, %v3235
      %v3237 = vld [vmem:[%s3] sm:$0xff]
      %s3238 = scalar_lea.vmem %s3, 8
      %v3239 = vld [vmem:[%s3238] sm:$0xff]
      %v3240 = vld [vmem:[%s4] sm:$0xff]
      %vm3241 = vcmask 64512
      %v3243 = vsel %vm3241, %v3239, 0
      %3245 = vmatprep.subr.mxu0 0.0
      %3246 = vmatpush1.msra.mxu0 %v3236
      %3247 = vmatprep.subr.mxu0 0.0
      %3248 = vmatpush1.msra.mxu0 0.0
      %3249 = vmatprep.subr.mxu0 0.0
      %3250 = vmatpush1.msra.mxu0 0.0
      %3251 = vmatprep.subr.mxu0 0.0
      %3252 = vmatpush1.msra.mxu0 0.0
      %3253 = vmatprep.subr.mxu0 0.0
      %3254 = vmatpush1.msra.mxu0 0.0
      %3255 = vmatprep.subr.mxu0 0.0
      %3256 = vmatpush1.msra.mxu0 0.0
      %3257 = vmatprep.subr.mxu0 0.0
      %3258 = vmatpush1.msra.mxu0 0.0
      %3259 = vmatprep.subr.mxu0 0.0
      %3260 = vmatpush1.msra.mxu0 0.0
      %3261 = vmatprep.subr.mxu0 0.0
      %3262 = vmatpush1.msra.mxu0 0.0
      %3263 = vmatprep.subr.mxu0 0.0
      %3264 = vmatpush1.msra.mxu0 0.0
      %3265 = vmatprep.subr.mxu0 0.0
      %3266 = vmatpush1.msra.mxu0 0.0
      %3267 = vmatprep.subr.mxu0 0.0
      %3268 = vmatpush1.msra.mxu0 0.0
      %3269 = vmatprep.subr.mxu0 0.0
      %3270 = vmatpush1.msra.mxu0 0.0
      %3271 = vmatprep.subr.mxu0 0.0
      %3272 = vmatpush1.msra.mxu0 0.0
      %3273 = vmatprep.subr.mxu0 0.0
      %3274 = vmatpush1.msra.mxu0 0.0
      %3275 = vmatprep.subr.mxu0 0.0
      %3276 = vmatpush1.msra.mxu0 0.0
      %3277 = vmatprep.subr.mxu0 0.0
      %3278 = vmatpush1.msra.mxu0 0.0
      %3279 = vmatprep.subr.mxu0 0.0
      %3280 = vmatpush1.msra.mxu0 0.0
      %3281 = vmatprep.subr.mxu0 0.0
      %3282 = vmatpush1.msra.mxu0 0.0
      %3283 = vmatprep.subr.mxu0 0.0
      %3284 = vmatpush1.msra.mxu0 0.0
      %3285 = vmatprep.subr.mxu0 0.0
      %3286 = vmatpush1.msra.mxu0 0.0
      %3287 = vmatprep.subr.mxu0 0.0
      %3288 = vmatpush1.msra.mxu0 0.0
      %3289 = vmatprep.subr.mxu0 0.0
      %3290 = vmatpush1.msra.mxu0 0.0
      %3291 = vmatprep.subr.mxu0 0.0
      %3292 = vmatpush1.msra.mxu0 0.0
      %3293 = vmatprep.subr.mxu0 0.0
      %3294 = vmatpush1.msra.mxu0 0.0
      %3295 = vmatprep.subr.mxu0 0.0
      %3296 = vmatpush1.msra.mxu0 0.0
      %3297 = vmatprep.subr.mxu0 0.0
      %3298 = vmatpush1.msra.mxu0 0.0
      %3299 = vmatprep.subr.mxu0 0.0
      %3300 = vmatpush1.msra.mxu0 0.0
      %3301 = vmatprep.subr.mxu0 0.0
      %3302 = vmatpush1.msra.mxu0 0.0
      %3303 = vmatprep.subr.mxu0 0.0
      %3304 = vmatpush1.msra.mxu0 0.0
      %3305 = vmatprep.subr.mxu0 0.0
      %3306 = vmatpush1.msra.mxu0 0.0
      %3307 = vmatprep.subr.mxu0 0.0
      %3308 = vmatpush1.msra.mxu0 0.0
      %3309 = vmatprep.mubr.f32.mxu0 0.0
      %3310 = vmatmul.mubr.f32.gmra.mrb[0].mxu0 %v3243
      %v3311 = vpop.f32.mrb[0].mxu0
      %v3312 = vadd.f32 0.0, %v3311
      %v3313 = vpop.f32.mrb[0].mxu0
      %3314 = vdwg.mxu0
      %v3315 = vld [vmem:[%s10] sm:$0xff]
      %v3316 = vld [vmem:[%s10 + $0x8] sm:$0xff]
      %v3317 = vld [vmem:[%s10 + $0x10] sm:$0xff]
      %v3318 = vld [vmem:[%s10 + $0x18] sm:$0xff]
      %v3319 = vld [vmem:[%s10 + $0x20] sm:$0xff]
      %v3320 = vld [vmem:[%s10 + $0x28] sm:$0xff]
      %v3321 = vld [vmem:[%s10 + $0x30] sm:$0xff]
      %v3322 = vld [vmem:[%s10 + $0x38] sm:$0xff]
      %v3323 = vld [vmem:[%s10 + $0x40] sm:$0xff]
      %v3324 = vld [vmem:[%s10 + $0x48] sm:$0xff]
      %v3325 = vld [vmem:[%s10 + $0x50] sm:$0xff]
      %v3326 = vld [vmem:[%s10 + $0x58] sm:$0xff]
      %v3327 = vld [vmem:[%s10 + $0x60] sm:$0xff]
      %v3328 = vld [vmem:[%s10 + $0x68] sm:$0xff]
      %v3329 = vld [vmem:[%s10 + $0x70] sm:$0xff]
      %v3330 = vld [vmem:[%s10 + $0x78] sm:$0xff]
      %v3332 = vsel %vm1042, %v3312, 0
      %3334 = vmatprep.subr.mxu0 %v3316
      %3335 = vmatpush1.msra.mxu0 %v3315
      %3336 = vmatprep.subr.mxu0 %v3318
      %3337 = vmatpush1.msra.mxu0 %v3317
      %3338 = vmatprep.subr.mxu0 %v3320
      %3339 = vmatpush1.msra.mxu0 %v3319
      %3340 = vmatprep.subr.mxu0 %v3322
      %3341 = vmatpush1.msra.mxu0 %v3321
      %3342 = vmatprep.subr.mxu0 %v3324
      %3343 = vmatpush1.msra.mxu0 %v3323
      %3344 = vmatprep.subr.mxu0 %v3326
      %3345 = vmatpush1.msra.mxu0 %v3325
      %3346 = vmatprep.subr.mxu0 %v3328
      %3347 = vmatpush1.msra.mxu0 %v3327
      %3348 = vmatprep.subr.mxu0 %v3330
      %3349 = vmatpush1.msra.mxu0 %v3329
      %3350 = vmatprep.subr.mxu0 0.0
      %3351 = vmatpush1.msra.mxu0 0.0
      %3352 = vmatprep.subr.mxu0 0.0
      %3353 = vmatpush1.msra.mxu0 0.0
      %3354 = vmatprep.subr.mxu0 0.0
      %3355 = vmatpush1.msra.mxu0 0.0
      %3356 = vmatprep.subr.mxu0 0.0
      %3357 = vmatpush1.msra.mxu0 0.0
      %3358 = vmatprep.subr.mxu0 0.0
      %3359 = vmatpush1.msra.mxu0 0.0
      %3360 = vmatprep.subr.mxu0 0.0
      %3361 = vmatpush1.msra.mxu0 0.0
      %3362 = vmatprep.subr.mxu0 0.0
      %3363 = vmatpush1.msra.mxu0 0.0
      %3364 = vmatprep.subr.mxu0 0.0
      %3365 = vmatpush1.msra.mxu0 0.0
      %3366 = vmatprep.subr.mxu0 0.0
      %3367 = vmatpush1.msra.mxu0 0.0
      %3368 = vmatprep.subr.mxu0 0.0
      %3369 = vmatpush1.msra.mxu0 0.0
      %3370 = vmatprep.subr.mxu0 0.0
      %3371 = vmatpush1.msra.mxu0 0.0
      %3372 = vmatprep.subr.mxu0 0.0
      %3373 = vmatpush1.msra.mxu0 0.0
      %3374 = vmatprep.subr.mxu0 0.0
      %3375 = vmatpush1.msra.mxu0 0.0
      %3376 = vmatprep.subr.mxu0 0.0
      %3377 = vmatpush1.msra.mxu0 0.0
      %3378 = vmatprep.subr.mxu0 0.0
      %3379 = vmatpush1.msra.mxu0 0.0
      %3380 = vmatprep.subr.mxu0 0.0
      %3381 = vmatpush1.msra.mxu0 0.0
      %3382 = vmatprep.subr.mxu0 0.0
      %3383 = vmatpush1.msra.mxu0 0.0
      %3384 = vmatprep.subr.mxu0 0.0
      %3385 = vmatpush1.msra.mxu0 0.0
      %3386 = vmatprep.subr.mxu0 0.0
      %3387 = vmatpush1.msra.mxu0 0.0
      %3388 = vmatprep.subr.mxu0 0.0
      %3389 = vmatpush1.msra.mxu0 0.0
      %3390 = vmatprep.subr.mxu0 0.0
      %3391 = vmatpush1.msra.mxu0 0.0
      %3392 = vmatprep.subr.mxu0 0.0
      %3393 = vmatpush1.msra.mxu0 0.0
      %3394 = vmatprep.subr.mxu0 0.0
      %3395 = vmatpush1.msra.mxu0 0.0
      %3396 = vmatprep.subr.mxu0 0.0
      %3397 = vmatpush1.msra.mxu0 0.0
      %3398 = vmatprep.mubr.f32.mxu0 0.0
      %3399 = vmatmul.mubr.f32.gmra.mrb[0].mxu0 %v3332
      %v3400 = vpop.f32.mrb[0].mxu0
      %v3401 = vadd.f32 0.0, %v3400
      %v3402 = vpop.f32.mrb[0].mxu0
      %v3403 = vadd.f32 0.0, %v3402
      %3404 = vdwg.mxu0
      %v3406 = vsel %vm3241, %v3237, 0
      %3408 = vmatprep.subr.mxu0 %v2702
      %3409 = vmatpush1.msra.mxu0 %v2701
      %3410 = vmatprep.subr.mxu0 0.0
      %3411 = vmatpush1.msra.mxu0 0.0
      %3412 = vmatprep.subr.mxu0 0.0
      %3413 = vmatpush1.msra.mxu0 0.0
      %3414 = vmatprep.subr.mxu0 0.0
      %3415 = vmatpush1.msra.mxu0 0.0
      %3416 = vmatprep.subr.mxu0 0.0
      %3417 = vmatpush1.msra.mxu0 0.0
      %3418 = vmatprep.subr.mxu0 0.0
      %3419 = vmatpush1.msra.mxu0 0.0
      %3420 = vmatprep.subr.mxu0 0.0
      %3421 = vmatpush1.msra.mxu0 0.0
      %3422 = vmatprep.subr.mxu0 0.0
      %3423 = vmatpush1.msra.mxu0 0.0
      %3424 = vmatprep.subr.mxu0 0.0
      %3425 = vmatpush1.msra.mxu0 0.0
      %3426 = vmatprep.subr.mxu0 0.0
      %3427 = vmatpush1.msra.mxu0 0.0
      %3428 = vmatprep.subr.mxu0 0.0
      %3429 = vmatpush1.msra.mxu0 0.0
      %3430 = vmatprep.subr.mxu0 0.0
      %3431 = vmatpush1.msra.mxu0 0.0
      %3432 = vmatprep.subr.mxu0 0.0
      %3433 = vmatpush1.msra.mxu0 0.0
      %3434 = vmatprep.subr.mxu0 0.0
      %3435 = vmatpush1.msra.mxu0 0.0
      %3436 = vmatprep.subr.mxu0 0.0
      %3437 = vmatpush1.msra.mxu0 0.0
      %3438 = vmatprep.subr.mxu0 0.0
      %3439 = vmatpush1.msra.mxu0 0.0
      %3440 = vmatprep.subr.mxu0 0.0
      %3441 = vmatpush1.msra.mxu0 0.0
      %3442 = vmatprep.subr.mxu0 0.0
      %3443 = vmatpush1.msra.mxu0 0.0
      %3444 = vmatprep.subr.mxu0 0.0
      %3445 = vmatpush1.msra.mxu0 0.0
      %3446 = vmatprep.subr.mxu0 0.0
      %3447 = vmatpush1.msra.mxu0 0.0
      %3448 = vmatprep.subr.mxu0 0.0
      %3449 = vmatpush1.msra.mxu0 0.0
      %3450 = vmatprep.subr.mxu0 0.0
      %3451 = vmatpush1.msra.mxu0 0.0
      %3452 = vmatprep.subr.mxu0 0.0
      %3453 = vmatpush1.msra.mxu0 0.0
      %3454 = vmatprep.subr.mxu0 0.0
      %3455 = vmatpush1.msra.mxu0 0.0
      %3456 = vmatprep.subr.mxu0 0.0
      %3457 = vmatpush1.msra.mxu0 0.0
      %3458 = vmatprep.subr.mxu0 0.0
      %3459 = vmatpush1.msra.mxu0 0.0
      %3460 = vmatprep.subr.mxu0 0.0
      %3461 = vmatpush1.msra.mxu0 0.0
      %3462 = vmatprep.subr.mxu0 0.0
      %3463 = vmatpush1.msra.mxu0 0.0
      %3464 = vmatprep.subr.mxu0 0.0
      %3465 = vmatpush1.msra.mxu0 0.0
      %3466 = vmatprep.subr.mxu0 0.0
      %3467 = vmatpush1.msra.mxu0 0.0
      %3468 = vmatprep.subr.mxu0 0.0
      %3469 = vmatpush1.msra.mxu0 0.0
      %3470 = vmatprep.subr.mxu0 0.0
      %3471 = vmatpush1.msra.mxu0 0.0
      %3472 = vmatprep.mubr.f32.mxu0 0.0
      %3473 = vmatmul.mubr.f32.gmra.mrb[0].mxu0 %v3406
      %v3474 = vpop.f32.mrb[0].mxu0
      %v3475 = vadd.f32 %v3401, %v3474
      %v3476 = vpop.f32.mrb[0].mxu0
      %v3477 = vadd.f32 %v3403, %v3476
      %3478 = vdwg.mxu0
      %3480 = vset.pattern.permute.xlu0 0
      %3481 = vperm.xlu0 %3480, %v3240
      %v3482 = vpop.permute.xlu0 %3481
      %v3484 = vadd.f32 %v3475, %v3482
      %v3485 = vadd.f32 %v3477, %v3482
      %v3486 = vmul.f32 %v3484, 0.2
      %v3487 = vmul.f32 %v3485, 0.2
      %v3488 = vmax.f32 %v3484, %v3486
      %v3489 = vmax.f32 %v3485, %v3487
      %s3490 = scalar_lea.vmem %s1, 32
      %v3491 = vld [vmem:[%s3490] sm:$0xff]
      %s3492 = scalar_lea.vmem %s2, 32
      %v3493 = vld [vmem:[%s3492] sm:$0xff]
      %3494 = vst [vmem:[#allocation2] sm:$0xff] 0.0
      %3495 = vst [vmem:[#allocation2 + $0x8] sm:$0xff] 0.0
      %3496 = vst [vmem:[#allocation2 + $0x10] sm:$0xff] 0.0
      %3497 = vst [vmem:[#allocation2 + $0x18] sm:$0xff] 0.0
      %3498 = vst [vmem:[#allocation2 + $0x20] sm:$0xff] 0.0
      %3499 = vst [vmem:[#allocation2 + $0x28] sm:$0xff] 0.0
      %3500 = vst [vmem:[#allocation2 + $0x30] sm:$0xff] 0.0
      %3501 = vst [vmem:[#allocation2 + $0x38] sm:$0xff] 0.0
      %3502 = vst.msk [vmem:[#allocation2 + $0x40] sm:$0xff] %vm432, 0.0
      %3505 = vrot.lane.b32.xlu0 %v3488, 17
      %v3506 = vpop.permute.xlu0 %3505
      %3507 = vrot.lane.b32.xlu0 %v3489, 17
      %v3508 = vpop.permute.xlu0 %3507
      %v3509 = vsel %vm2360, %v3506, %v3508
      %3513 = vst.msk [vmem:[#allocation2] sm:$0xff] %vm2365, %v3506
      %3514 = vst [vmem:[#allocation2 + $0x8] sm:$0xff] %v3509
      %3515 = vst.msk [vmem:[#allocation2 + $0x10] sm:$0xff] %vm2360, %v3508
      %v3516 = vld [vmem:[%s6] sm:$0x3]
      %v3517 = vld [vmem:[%s2370] sm:$0x3]
      %v3518 = vld [vmem:[#allocation2] sm:$0xff]
      %v3519 = vld [vmem:[#allocation2 + $0x8] sm:$0xff]
      %v3521 = vlaneseq
      %v3522 = vshrl.u32 %v3521, 7
      %v3523 = vsub.s32 0, %v3522
      %v3524 = vrot.slane %v3516, %v3523
      %v3525 = vlaneseq
      %v3526 = vshrl.u32 %v3525, 7
      %v3527 = vsub.s32 1, %v3526
      %v3528 = vrot.slane %v3516, %v3527
      %v3531 = vmul.f32 %v3518, %v3524
      %v3532 = vmul.f32 %v3519, %v3528
      %3533 = vst [vmem:[#allocation3] sm:$0xff] %v3531
      %3534 = vst [vmem:[#allocation3 + $0x8] sm:$0xff] %v3532
      %v3535 = vld [vmem:[#allocation2] sm:$0xff]
      %v3536 = vld [vmem:[#allocation2 + $0x8] sm:$0xff]
      %v3537 = vld [vmem:[#allocation2 + $0x10] sm:$0xff]
      %3541 = vrot.lane.b32.xlu0 %v3535, 127
      %v3542 = vpop.permute.xlu0 %3541
      %3543 = vrot.lane.b32.xlu0 %v3536, 127
      %v3544 = vpop.permute.xlu0 %3543
      %3545 = vrot.lane.b32.xlu0 %v3537, 127
      %v3546 = vpop.permute.xlu0 %3545
      %v3547 = vsel %vm589, %v3542, %v3544
      %v3548 = vsel %vm589, %v3544, %v3546
      %3551 = vst [vmem:[#allocation3 + $0x40] sm:$0xff] %v3547
      %3552 = vst [vmem:[#allocation3 + $0x48] sm:$0xff] %v3548
      %v3553 = vld [vmem:[#allocation2] sm:$0xff]
      %v3554 = vld [vmem:[#allocation2 + $0x8] sm:$0xff]
      %v3555 = vld [vmem:[#allocation2 + $0x10] sm:$0xff]
      %v3557 = vlaneseq
      %v3558 = vshrl.u32 %v3557, 7
      %v3559 = vsub.s32 0, %v3558
      %v3560 = vrot.slane %v3517, %v3559
      %v3561 = vlaneseq
      %v3562 = vshrl.u32 %v3561, 7
      %v3563 = vsub.s32 1, %v3562
      %v3564 = vrot.slane %v3517, %v3563
      %3565 = vrot.lane.b32.xlu0 %v3560, 2
      %v3566 = vpop.permute.xlu0 %3565
      %3567 = vrot.lane.b32.xlu0 %v3564, 2
      %v3568 = vpop.permute.xlu0 %3567
      %v3569 = vsel %vm672, %v3566, %v3568
      %v3573 = vmul.f32 %v3553, %v3566
      %v3574 = vmul.f32 %v3554, %v3569
      %v3575 = vmul.f32 %v3555, %v3568
      %3579 = vrot.lane.b32.xlu0 %v3573, 126
      %v3580 = vpop.permute.xlu0 %3579
      %3581 = vrot.lane.b32.xlu0 %v3574, 126
      %v3582 = vpop.permute.xlu0 %3581
      %3583 = vrot.lane.b32.xlu0 %v3575, 126
      %v3584 = vpop.permute.xlu0 %3583
      %v3585 = vsel %vm725, %v3580, %v3582
      %v3586 = vsel %vm725, %v3582, %v3584
      %3589 = vst [vmem:[#allocation3 + $0x80] sm:$0xff] %v3585
      %3590 = vst [vmem:[#allocation3 + $0x88] sm:$0xff] %v3586
      %v3591 = vld [vmem:[#allocation2] sm:$0xff]
      %v3592 = vld [vmem:[#allocation2 + $0x8] sm:$0xff]
      %v3593 = vld [vmem:[#allocation2 + $0x10] sm:$0xff]
      %3594 = vrot.lane.b32.xlu0 %v3524, 16
      %v3595 = vpop.permute.xlu0 %3594
      %3596 = vrot.lane.b32.xlu0 %v3528, 16
      %v3597 = vpop.permute.xlu0 %3596
      %v3598 = vsel %vm2452, %v3595, %v3597
      %v3602 = vmul.f32 %v3591, %v3595
      %v3603 = vmul.f32 %v3592, %v3598
      %v3604 = vmul.f32 %v3593, %v3597
      %3608 = vrot.lane.b32.xlu0 %v3602, 112
      %v3609 = vpop.permute.xlu0 %3608
      %3610 = vrot.lane.b32.xlu0 %v3603, 112
      %v3611 = vpop.permute.xlu0 %3610
      %3612 = vrot.lane.b32.xlu0 %v3604, 112
      %v3613 = vpop.permute.xlu0 %3612
      %v3614 = vsel %vm2469, %v3609, %v3611
      %v3615 = vsel %vm2469, %v3611, %v3613
      %3618 = vst [vmem:[#allocation3 + $0xc0] sm:$0xff] %v3614
      %3619 = vst [vmem:[#allocation3 + $0xc8] sm:$0xff] %v3615
      %v3620 = vld [vmem:[#allocation2] sm:$0xff]
      %v3621 = vld [vmem:[#allocation2 + $0x8] sm:$0xff]
      %v3622 = vld [vmem:[#allocation2 + $0x10] sm:$0xff]
      %3626 = vrot.lane.b32.xlu0 %v3620, 111
      %v3627 = vpop.permute.xlu0 %3626
      %3628 = vrot.lane.b32.xlu0 %v3621, 111
      %v3629 = vpop.permute.xlu0 %3628
      %3630 = vrot.lane.b32.xlu0 %v3622, 111
      %v3631 = vpop.permute.xlu0 %3630
      %v3632 = vsel %vm2488, %v3627, %v3629
      %v3633 = vsel %vm2488, %v3629, %v3631
      %3636 = vst [vmem:[#allocation3 + $0x100] sm:$0xff] %v3632
      %3637 = vst [vmem:[#allocation3 + $0x108] sm:$0xff] %v3633
      %v3638 = vld [vmem:[#allocation2] sm:$0xff]
      %v3639 = vld [vmem:[#allocation2 + $0x8] sm:$0xff]
      %v3640 = vld [vmem:[#allocation2 + $0x10] sm:$0xff]
      %3641 = vrot.lane.b32.xlu0 %v3560, 18
      %v3642 = vpop.permute.xlu0 %3641
      %3643 = vrot.lane.b32.xlu0 %v3564, 18
      %v3644 = vpop.permute.xlu0 %3643
      %v3645 = vsel %vm2502, %v3642, %v3644
      %v3649 = vmul.f32 %v3638, %v3642
      %v3650 = vmul.f32 %v3639, %v3645
      %v3651 = vmul.f32 %v3640, %v3644
      %3655 = vrot.lane.b32.xlu0 %v3649, 110
      %v3656 = vpop.permute.xlu0 %3655
      %3657 = vrot.lane.b32.xlu0 %v3650, 110
      %v3658 = vpop.permute.xlu0 %3657
      %3659 = vrot.lane.b32.xlu0 %v3651, 110
      %v3660 = vpop.permute.xlu0 %3659
      %v3661 = vsel %vm2519, %v3656, %v3658
      %v3662 = vsel %vm2519, %v3658, %v3660
      %3665 = vst [vmem:[#allocation3 + $0x140] sm:$0xff] %v3661
      %3666 = vst [vmem:[#allocation3 + $0x148] sm:$0xff] %v3662
      %v3667 = vld [vmem:[#allocation2] sm:$0xff]
      %v3668 = vld [vmem:[#allocation2 + $0x8] sm:$0xff]
      %v3669 = vld [vmem:[#allocation2 + $0x10] sm:$0xff]
      %3670 = vrot.lane.b32.xlu0 %v3524, 32
      %v3671 = vpop.permute.xlu0 %3670
      %3672 = vrot.lane.b32.xlu0 %v3528, 32
      %v3673 = vpop.permute.xlu0 %3672
      %v3674 = vsel %vm775, %v3671, %v3673
      %v3678 = vmul.f32 %v3667, %v3671
      %v3679 = vmul.f32 %v3668, %v3674
      %v3680 = vmul.f32 %v3669, %v3673
      %3684 = vrot.lane.b32.xlu0 %v3678, 96
      %v3685 = vpop.permute.xlu0 %3684
      %3686 = vrot.lane.b32.xlu0 %v3679, 96
      %v3687 = vpop.permute.xlu0 %3686
      %3688 = vrot.lane.b32.xlu0 %v3680, 96
      %v3689 = vpop.permute.xlu0 %3688
      %v3690 = vsel %vm828, %v3685, %v3687
      %v3691 = vsel %vm828, %v3687, %v3689
      %3694 = vst [vmem:[#allocation3 + $0x180] sm:$0xff] %v3690
      %3695 = vst [vmem:[#allocation3 + $0x188] sm:$0xff] %v3691
      %v3696 = vld [vmem:[#allocation2] sm:$0xff]
      %v3697 = vld [vmem:[#allocation2 + $0x8] sm:$0xff]
      %v3698 = vld [vmem:[#allocation2 + $0x10] sm:$0xff]
      %3702 = vrot.lane.b32.xlu0 %v3696, 95
      %v3703 = vpop.permute.xlu0 %3702
      %3704 = vrot.lane.b32.xlu0 %v3697, 95
      %v3705 = vpop.permute.xlu0 %3704
      %3706 = vrot.lane.b32.xlu0 %v3698, 95
      %v3707 = vpop.permute.xlu0 %3706
      %v3708 = vsel %vm889, %v3703, %v3705
      %v3709 = vsel %vm889, %v3705, %v3707
      %3712 = vst [vmem:[#allocation3 + $0x1c0] sm:$0xff] %v3708
      %3713 = vst [vmem:[#allocation3 + $0x1c8] sm:$0xff] %v3709
      %v3714 = vld [vmem:[#allocation2] sm:$0xff]
      %v3715 = vld [vmem:[#allocation2 + $0x8] sm:$0xff]
      %v3716 = vld [vmem:[#allocation2 + $0x10] sm:$0xff]
      %3717 = vrot.lane.b32.xlu0 %v3560, 34
      %v3718 = vpop.permute.xlu0 %3717
      %3719 = vrot.lane.b32.xlu0 %v3564, 34
      %v3720 = vpop.permute.xlu0 %3719
      %v3721 = vsel %vm939, %v3718, %v3720
      %v3725 = vmul.f32 %v3714, %v3718
      %v3726 = vmul.f32 %v3715, %v3721
      %v3727 = vmul.f32 %v3716, %v3720
      %3731 = vrot.lane.b32.xlu0 %v3725, 94
      %v3732 = vpop.permute.xlu0 %3731
      %3733 = vrot.lane.b32.xlu0 %v3726, 94
      %v3734 = vpop.permute.xlu0 %3733
      %3735 = vrot.lane.b32.xlu0 %v3727, 94
      %v3736 = vpop.permute.xlu0 %3735
      %v3737 = vsel %vm992, %v3732, %v3734
      %v3738 = vsel %vm992, %v3734, %v3736
      %3741 = vst [vmem:[#allocation3 + $0x200] sm:$0xff] %v3737
      %3742 = vst [vmem:[#allocation3 + $0x208] sm:$0xff] %v3738
      %v3743 = vld [vmem:[#allocation3] sm:$0xff]
      %v3744 = vld [vmem:[#allocation3 + $0x8] sm:$0xff]
      %v3745 = vld [vmem:[#allocation3 + $0x40] sm:$0xff]
      %v3746 = vld [vmem:[#allocation3 + $0x48] sm:$0xff]
      %v3747 = vld [vmem:[#allocation3 + $0x80] sm:$0xff]
      %v3748 = vld [vmem:[#allocation3 + $0x88] sm:$0xff]
      %v3749 = vld [vmem:[#allocation3 + $0xc0] sm:$0xff]
      %v3750 = vld [vmem:[#allocation3 + $0xc8] sm:$0xff]
      %v3751 = vld [vmem:[#allocation3 + $0x100] sm:$0xff]
      %v3752 = vld [vmem:[#allocation3 + $0x108] sm:$0xff]
      %v3753 = vld [vmem:[#allocation3 + $0x140] sm:$0xff]
      %v3754 = vld [vmem:[#allocation3 + $0x148] sm:$0xff]
      %v3755 = vld [vmem:[#allocation3 + $0x180] sm:$0xff]
      %v3756 = vld [vmem:[#allocation3 + $0x188] sm:$0xff]
      %v3757 = vld [vmem:[#allocation3 + $0x1c0] sm:$0xff]
      %v3758 = vld [vmem:[#allocation3 + $0x1c8] sm:$0xff]
      %v3759 = vld [vmem:[#allocation3 + $0x200] sm:$0xff]
      %v3760 = vld [vmem:[#allocation3 + $0x208] sm:$0xff]
      %3762 = vset.pattern.permute.xlu0 0
      %3763 = vperm.xlu0 %3762, %v3493
      %v3764 = vpop.permute.xlu0 %3763
      %v3767 = vsel %vm1359, %v3491, 0
      %3769 = vmatprep.subr.mxu0 %v3744
      %3770 = vmatpush1.msra.mxu0 %v3743
      %3771 = vmatprep.subr.mxu0 %v3746
      %3772 = vmatpush1.msra.mxu0 %v3745
      %3773 = vmatprep.subr.mxu0 %v3748
      %3774 = vmatpush1.msra.mxu0 %v3747
      %3775 = vmatprep.subr.mxu0 %v3750
      %3776 = vmatpush1.msra.mxu0 %v3749
      %3777 = vmatprep.subr.mxu0 %v3752
      %3778 = vmatpush1.msra.mxu0 %v3751
      %3779 = vmatprep.subr.mxu0 %v3754
      %3780 = vmatpush1.msra.mxu0 %v3753
      %3781 = vmatprep.subr.mxu0 %v3756
      %3782 = vmatpush1.msra.mxu0 %v3755
      %3783 = vmatprep.subr.mxu0 %v3758
      %3784 = vmatpush1.msra.mxu0 %v3757
      %3785 = vmatprep.subr.mxu0 %v3760
      %3786 = vmatpush1.msra.mxu0 %v3759
      %3787 = vmatprep.subr.mxu0 0.0
      %3788 = vmatpush1.msra.mxu0 0.0
      %3789 = vmatprep.subr.mxu0 0.0
      %3790 = vmatpush1.msra.mxu0 0.0
      %3791 = vmatprep.subr.mxu0 0.0
      %3792 = vmatpush1.msra.mxu0 0.0
      %3793 = vmatprep.subr.mxu0 0.0
      %3794 = vmatpush1.msra.mxu0 0.0
      %3795 = vmatprep.subr.mxu0 0.0
      %3796 = vmatpush1.msra.mxu0 0.0
      %3797 = vmatprep.subr.mxu0 0.0
      %3798 = vmatpush1.msra.mxu0 0.0
      %3799 = vmatprep.subr.mxu0 0.0
      %3800 = vmatpush1.msra.mxu0 0.0
      %3801 = vmatprep.subr.mxu0 0.0
      %3802 = vmatpush1.msra.mxu0 0.0
      %3803 = vmatprep.subr.mxu0 0.0
      %3804 = vmatpush1.msra.mxu0 0.0
      %3805 = vmatprep.subr.mxu0 0.0
      %3806 = vmatpush1.msra.mxu0 0.0
      %3807 = vmatprep.subr.mxu0 0.0
      %3808 = vmatpush1.msra.mxu0 0.0
      %3809 = vmatprep.subr.mxu0 0.0
      %3810 = vmatpush1.msra.mxu0 0.0
      %3811 = vmatprep.subr.mxu0 0.0
      %3812 = vmatpush1.msra.mxu0 0.0
      %3813 = vmatprep.subr.mxu0 0.0
      %3814 = vmatpush1.msra.mxu0 0.0
      %3815 = vmatprep.subr.mxu0 0.0
      %3816 = vmatpush1.msra.mxu0 0.0
      %3817 = vmatprep.subr.mxu0 0.0
      %3818 = vmatpush1.msra.mxu0 0.0
      %3819 = vmatprep.subr.mxu0 0.0
      %3820 = vmatpush1.msra.mxu0 0.0
      %3821 = vmatprep.subr.mxu0 0.0
      %3822 = vmatpush1.msra.mxu0 0.0
      %3823 = vmatprep.subr.mxu0 0.0
      %3824 = vmatpush1.msra.mxu0 0.0
      %3825 = vmatprep.subr.mxu0 0.0
      %3826 = vmatpush1.msra.mxu0 0.0
      %3827 = vmatprep.subr.mxu0 0.0
      %3828 = vmatpush1.msra.mxu0 0.0
      %3829 = vmatprep.subr.mxu0 0.0
      %3830 = vmatpush1.msra.mxu0 0.0
      %3831 = vmatprep.subr.mxu0 0.0
      %3832 = vmatpush1.msra.mxu0 0.0
      %3833 = vmatprep.mubr.f32.mxu0 0.0
      %3834 = vmatmul.mubr.f32.gmra.mrb[0].mxu0 %v3767
      %v3835 = vpop.f32.mrb[0].mxu0
      %v3836 = vadd.f32 %v3764, %v3835
      %v3837 = vpop.f32.mrb[0].mxu0
      %v3838 = vadd.f32 %v3764, %v3837
      %3839 = vdwg.mxu0
      %v3840 = vmul.f32 %v3836, 0.2
      %v3841 = vmul.f32 %v3838, 0.2
      %v3842 = vmax.f32 %v3836, %v3840
      %v3843 = vmax.f32 %v3838, %v3841
      %s3844 = scalar_lea.vmem %s3, 16
      %v3845 = vld [vmem:[%s3844] sm:$0xff]
      %s3846 = scalar_lea.vmem %s3, 24
      %v3847 = vld [vmem:[%s3846] sm:$0xff]
      %s3848 = scalar_lea.vmem %s4, 8
      %v3849 = vld [vmem:[%s3848] sm:$0xff]
      %v3851 = vsel %vm3241, %v3847, 0
      %3853 = vmatprep.subr.mxu0 %v3843
      %3854 = vmatpush1.msra.mxu0 %v3842
      %3855 = vmatprep.subr.mxu0 0.0
      %3856 = vmatpush1.msra.mxu0 0.0
      %3857 = vmatprep.subr.mxu0 0.0
      %3858 = vmatpush1.msra.mxu0 0.0
      %3859 = vmatprep.subr.mxu0 0.0
      %3860 = vmatpush1.msra.mxu0 0.0
      %3861 = vmatprep.subr.mxu0 0.0
      %3862 = vmatpush1.msra.mxu0 0.0
      %3863 = vmatprep.subr.mxu0 0.0
      %3864 = vmatpush1.msra.mxu0 0.0
      %3865 = vmatprep.subr.mxu0 0.0
      %3866 = vmatpush1.msra.mxu0 0.0
      %3867 = vmatprep.subr.mxu0 0.0
      %3868 = vmatpush1.msra.mxu0 0.0
      %3869 = vmatprep.subr.mxu0 0.0
      %3870 = vmatpush1.msra.mxu0 0.0
      %3871 = vmatprep.subr.mxu0 0.0
      %3872 = vmatpush1.msra.mxu0 0.0
      %3873 = vmatprep.subr.mxu0 0.0
      %3874 = vmatpush1.msra.mxu0 0.0
      %3875 = vmatprep.subr.mxu0 0.0
      %3876 = vmatpush1.msra.mxu0 0.0
      %3877 = vmatprep.subr.mxu0 0.0
      %3878 = vmatpush1.msra.mxu0 0.0
      %3879 = vmatprep.subr.mxu0 0.0
      %3880 = vmatpush1.msra.mxu0 0.0
      %3881 = vmatprep.subr.mxu0 0.0
      %3882 = vmatpush1.msra.mxu0 0.0
      %3883 = vmatprep.subr.mxu0 0.0
      %3884 = vmatpush1.msra.mxu0 0.0
      %3885 = vmatprep.subr.mxu0 0.0
      %3886 = vmatpush1.msra.mxu0 0.0
      %3887 = vmatprep.subr.mxu0 0.0
      %3888 = vmatpush1.msra.mxu0 0.0
      %3889 = vmatprep.subr.mxu0 0.0
      %3890 = vmatpush1.msra.mxu0 0.0
      %3891 = vmatprep.subr.mxu0 0.0
      %3892 = vmatpush1.msra.mxu0 0.0
      %3893 = vmatprep.subr.mxu0 0.0
      %3894 = vmatpush1.msra.mxu0 0.0
      %3895 = vmatprep.subr.mxu0 0.0
      %3896 = vmatpush1.msra.mxu0 0.0
      %3897 = vmatprep.subr.mxu0 0.0
      %3898 = vmatpush1.msra.mxu0 0.0
      %3899 = vmatprep.subr.mxu0 0.0
      %3900 = vmatpush1.msra.mxu0 0.0
      %3901 = vmatprep.subr.mxu0 0.0
      %3902 = vmatpush1.msra.mxu0 0.0
      %3903 = vmatprep.subr.mxu0 0.0
      %3904 = vmatpush1.msra.mxu0 0.0
      %3905 = vmatprep.subr.mxu0 0.0
      %3906 = vmatpush1.msra.mxu0 0.0
      %3907 = vmatprep.subr.mxu0 0.0
      %3908 = vmatpush1.msra.mxu0 0.0
      %3909 = vmatprep.subr.mxu0 0.0
      %3910 = vmatpush1.msra.mxu0 0.0
      %3911 = vmatprep.subr.mxu0 0.0
      %3912 = vmatpush1.msra.mxu0 0.0
      %3913 = vmatprep.subr.mxu0 0.0
      %3914 = vmatpush1.msra.mxu0 0.0
      %3915 = vmatprep.subr.mxu0 0.0
      %3916 = vmatpush1.msra.mxu0 0.0
      %3917 = vmatprep.mubr.f32.mxu0 0.0
      %3918 = vmatmul.mubr.f32.gmra.mrb[0].mxu0 %v3851
      %v3919 = vpop.f32.mrb[0].mxu0
      %v3920 = vadd.f32 0.0, %v3919
      %v3921 = vpop.f32.mrb[0].mxu0
      %v3922 = vadd.f32 0.0, %v3921
      %3923 = vdwg.mxu0
      %v3924 = vld [vmem:[%s11] sm:$0xff]
      %v3925 = vld [vmem:[%s11 + $0x8] sm:$0xff]
      %v3926 = vld [vmem:[%s11 + $0x10] sm:$0xff]
      %v3927 = vld [vmem:[%s11 + $0x18] sm:$0xff]
      %v3928 = vld [vmem:[%s11 + $0x20] sm:$0xff]
      %v3929 = vld [vmem:[%s11 + $0x28] sm:$0xff]
      %v3930 = vld [vmem:[%s11 + $0x30] sm:$0xff]
      %v3931 = vld [vmem:[%s11 + $0x38] sm:$0xff]
      %v3932 = vld [vmem:[%s11 + $0x40] sm:$0xff]
      %v3933 = vld [vmem:[%s11 + $0x48] sm:$0xff]
      %v3934 = vld [vmem:[%s11 + $0x50] sm:$0xff]
      %v3935 = vld [vmem:[%s11 + $0x58] sm:$0xff]
      %v3936 = vld [vmem:[%s11 + $0x60] sm:$0xff]
      %v3937 = vld [vmem:[%s11 + $0x68] sm:$0xff]
      %v3938 = vld [vmem:[%s11 + $0x70] sm:$0xff]
      %v3939 = vld [vmem:[%s11 + $0x78] sm:$0xff]
      %v3940 = vld [vmem:[%s11 + $0x80] sm:$0xff]
      %v3941 = vld [vmem:[%s11 + $0x88] sm:$0xff]
      %v3942 = vld [vmem:[%s11 + $0x90] sm:$0xff]
      %v3943 = vld [vmem:[%s11 + $0x98] sm:$0xff]
      %v3944 = vld [vmem:[%s11 + $0xa0] sm:$0xff]
      %v3945 = vld [vmem:[%s11 + $0xa8] sm:$0xff]
      %v3946 = vld [vmem:[%s11 + $0xb0] sm:$0xff]
      %v3947 = vld [vmem:[%s11 + $0xb8] sm:$0xff]
      %v3948 = vld [vmem:[%s11 + $0xc0] sm:$0xff]
      %v3949 = vld [vmem:[%s11 + $0xc8] sm:$0xff]
      %v3950 = vld [vmem:[%s11 + $0xd0] sm:$0xff]
      %v3951 = vld [vmem:[%s11 + $0xd8] sm:$0xff]
      %v3952 = vld [vmem:[%s11 + $0xe0] sm:$0xff]
      %v3953 = vld [vmem:[%s11 + $0xe8] sm:$0xff]
      %v3954 = vld [vmem:[%s11 + $0xf0] sm:$0xff]
      %v3955 = vld [vmem:[%s11 + $0xf8] sm:$0xff]
      %v3956 = vld [vmem:[%s11 + $0x100] sm:$0xff]
      %v3957 = vld [vmem:[%s11 + $0x108] sm:$0xff]
      %v3958 = vld [vmem:[%s11 + $0x110] sm:$0xff]
      %v3959 = vld [vmem:[%s11 + $0x118] sm:$0xff]
      %v3960 = vld [vmem:[%s11 + $0x120] sm:$0xff]
      %v3961 = vld [vmem:[%s11 + $0x128] sm:$0xff]
      %v3962 = vld [vmem:[%s11 + $0x130] sm:$0xff]
      %v3963 = vld [vmem:[%s11 + $0x138] sm:$0xff]
      %v3964 = vld [vmem:[%s11 + $0x140] sm:$0xff]
      %v3965 = vld [vmem:[%s11 + $0x148] sm:$0xff]
      %v3966 = vld [vmem:[%s11 + $0x150] sm:$0xff]
      %v3967 = vld [vmem:[%s11 + $0x158] sm:$0xff]
      %v3968 = vld [vmem:[%s11 + $0x160] sm:$0xff]
      %v3969 = vld [vmem:[%s11 + $0x168] sm:$0xff]
      %v3970 = vld [vmem:[%s11 + $0x170] sm:$0xff]
      %v3971 = vld [vmem:[%s11 + $0x178] sm:$0xff]
      %v3972 = vld [vmem:[%s11 + $0x180] sm:$0xff]
      %v3973 = vld [vmem:[%s11 + $0x188] sm:$0xff]
      %v3974 = vld [vmem:[%s11 + $0x190] sm:$0xff]
      %v3975 = vld [vmem:[%s11 + $0x198] sm:$0xff]
      %v3976 = vld [vmem:[%s11 + $0x1a0] sm:$0xff]
      %v3977 = vld [vmem:[%s11 + $0x1a8] sm:$0xff]
      %v3978 = vld [vmem:[%s11 + $0x1b0] sm:$0xff]
      %v3979 = vld [vmem:[%s11 + $0x1b8] sm:$0xff]
      %v3980 = vld [vmem:[%s11 + $0x1c0] sm:$0xff]
      %v3981 = vld [vmem:[%s11 + $0x1c8] sm:$0xff]
      %v3982 = vld [vmem:[%s11 + $0x1d0] sm:$0xff]
      %v3983 = vld [vmem:[%s11 + $0x1d8] sm:$0xff]
      %v3984 = vld [vmem:[%s11 + $0x1e0] sm:$0xff]
      %v3985 = vld [vmem:[%s11 + $0x1e8] sm:$0xff]
      %v3986 = vld [vmem:[%s11 + $0x1f0] sm:$0xff]
      %v3987 = vld [vmem:[%s11 + $0x1f8] sm:$0xff]
      %v3988 = vld [vmem:[%s11 + $0x200] sm:$0xff]
      %v3989 = vld [vmem:[%s11 + $0x208] sm:$0xff]
      %v3990 = vld [vmem:[%s11 + $0x210] sm:$0xff]
      %v3991 = vld [vmem:[%s11 + $0x218] sm:$0xff]
      %v3992 = vld [vmem:[%s11 + $0x220] sm:$0xff]
      %v3993 = vld [vmem:[%s11 + $0x228] sm:$0xff]
      %v3994 = vld [vmem:[%s11 + $0x230] sm:$0xff]
      %v3995 = vld [vmem:[%s11 + $0x238] sm:$0xff]
      %v3996 = vld [vmem:[%s11 + $0x240] sm:$0xff]
      %v3997 = vld [vmem:[%s11 + $0x248] sm:$0xff]
      %v3998 = vld [vmem:[%s11 + $0x250] sm:$0xff]
      %v3999 = vld [vmem:[%s11 + $0x258] sm:$0xff]
      %v4000 = vld [vmem:[%s11 + $0x260] sm:$0xff]
      %v4001 = vld [vmem:[%s11 + $0x268] sm:$0xff]
      %v4002 = vld [vmem:[%s11 + $0x270] sm:$0xff]
      %v4003 = vld [vmem:[%s11 + $0x278] sm:$0xff]
      %v4004 = vld [vmem:[%s11 + $0x280] sm:$0xff]
      %v4005 = vld [vmem:[%s11 + $0x288] sm:$0xff]
      %v4006 = vld [vmem:[%s11 + $0x290] sm:$0xff]
      %v4007 = vld [vmem:[%s11 + $0x298] sm:$0xff]
      %v4008 = vld [vmem:[%s11 + $0x2a0] sm:$0xff]
      %v4009 = vld [vmem:[%s11 + $0x2a8] sm:$0xff]
      %v4010 = vld [vmem:[%s11 + $0x2b0] sm:$0xff]
      %v4011 = vld [vmem:[%s11 + $0x2b8] sm:$0xff]
      %v4012 = vld [vmem:[%s11 + $0x2c0] sm:$0xff]
      %v4013 = vld [vmem:[%s11 + $0x2c8] sm:$0xff]
      %v4014 = vld [vmem:[%s11 + $0x2d0] sm:$0xff]
      %v4015 = vld [vmem:[%s11 + $0x2d8] sm:$0xff]
      %v4016 = vld [vmem:[%s11 + $0x2e0] sm:$0xff]
      %v4017 = vld [vmem:[%s11 + $0x2e8] sm:$0xff]
      %v4018 = vld [vmem:[%s11 + $0x2f0] sm:$0xff]
      %v4019 = vld [vmem:[%s11 + $0x2f8] sm:$0xff]
      %v4020 = vld [vmem:[%s11 + $0x300] sm:$0xff]
      %v4021 = vld [vmem:[%s11 + $0x308] sm:$0xff]
      %v4022 = vld [vmem:[%s11 + $0x310] sm:$0xff]
      %v4023 = vld [vmem:[%s11 + $0x318] sm:$0xff]
      %v4024 = vld [vmem:[%s11 + $0x320] sm:$0xff]
      %v4025 = vld [vmem:[%s11 + $0x328] sm:$0xff]
      %v4026 = vld [vmem:[%s11 + $0x330] sm:$0xff]
      %v4027 = vld [vmem:[%s11 + $0x338] sm:$0xff]
      %v4028 = vld [vmem:[%s11 + $0x340] sm:$0xff]
      %v4029 = vld [vmem:[%s11 + $0x348] sm:$0xff]
      %v4030 = vld [vmem:[%s11 + $0x350] sm:$0xff]
      %v4031 = vld [vmem:[%s11 + $0x358] sm:$0xff]
      %v4032 = vld [vmem:[%s11 + $0x360] sm:$0xff]
      %v4033 = vld [vmem:[%s11 + $0x368] sm:$0xff]
      %v4034 = vld [vmem:[%s11 + $0x370] sm:$0xff]
      %v4035 = vld [vmem:[%s11 + $0x378] sm:$0xff]
      %v4036 = vld [vmem:[%s11 + $0x380] sm:$0xff]
      %v4037 = vld [vmem:[%s11 + $0x388] sm:$0xff]
      %v4038 = vld [vmem:[%s11 + $0x390] sm:$0xff]
      %v4039 = vld [vmem:[%s11 + $0x398] sm:$0xff]
      %v4040 = vld [vmem:[%s11 + $0x3a0] sm:$0xff]
      %v4041 = vld [vmem:[%s11 + $0x3a8] sm:$0xff]
      %v4042 = vld [vmem:[%s11 + $0x3b0] sm:$0xff]
      %v4043 = vld [vmem:[%s11 + $0x3b8] sm:$0xff]
      %v4044 = vld [vmem:[%s11 + $0x3c0] sm:$0xff]
      %v4045 = vld [vmem:[%s11 + $0x3c8] sm:$0xff]
      %v4046 = vld [vmem:[%s11 + $0x3d0] sm:$0xff]
      %v4047 = vld [vmem:[%s11 + $0x3d8] sm:$0xff]
      %v4048 = vld [vmem:[%s11 + $0x3e0] sm:$0xff]
      %v4049 = vld [vmem:[%s11 + $0x3e8] sm:$0xff]
      %v4050 = vld [vmem:[%s11 + $0x3f0] sm:$0xff]
      %v4051 = vld [vmem:[%s11 + $0x3f8] sm:$0xff]
      %v4052 = vld [vmem:[%s11 + $0x400] sm:$0xff]
      %v4053 = vld [vmem:[%s11 + $0x408] sm:$0xff]
      %v4054 = vld [vmem:[%s11 + $0x410] sm:$0xff]
      %v4055 = vld [vmem:[%s11 + $0x418] sm:$0xff]
      %v4056 = vld [vmem:[%s11 + $0x420] sm:$0xff]
      %v4057 = vld [vmem:[%s11 + $0x428] sm:$0xff]
      %v4058 = vld [vmem:[%s11 + $0x430] sm:$0xff]
      %v4059 = vld [vmem:[%s11 + $0x438] sm:$0xff]
      %v4060 = vld [vmem:[%s11 + $0x440] sm:$0xff]
      %v4061 = vld [vmem:[%s11 + $0x448] sm:$0xff]
      %v4062 = vld [vmem:[%s11 + $0x450] sm:$0xff]
      %v4063 = vld [vmem:[%s11 + $0x458] sm:$0xff]
      %v4064 = vld [vmem:[%s11 + $0x460] sm:$0xff]
      %v4065 = vld [vmem:[%s11 + $0x468] sm:$0xff]
      %v4066 = vld [vmem:[%s11 + $0x470] sm:$0xff]
      %v4067 = vld [vmem:[%s11 + $0x478] sm:$0xff]
      %v4068 = vld [vmem:[%s11 + $0x480] sm:$0xff]
      %v4069 = vld [vmem:[%s11 + $0x488] sm:$0xff]
      %v4070 = vld [vmem:[%s11 + $0x490] sm:$0xff]
      %v4071 = vld [vmem:[%s11 + $0x498] sm:$0xff]
      %v4072 = vld [vmem:[%s11 + $0x4a0] sm:$0xff]
      %v4073 = vld [vmem:[%s11 + $0x4a8] sm:$0xff]
      %v4074 = vld [vmem:[%s11 + $0x4b0] sm:$0xff]
      %v4075 = vld [vmem:[%s11 + $0x4b8] sm:$0xff]
      %v4076 = vld [vmem:[%s11 + $0x4c0] sm:$0xff]
      %v4077 = vld [vmem:[%s11 + $0x4c8] sm:$0xff]
      %v4078 = vld [vmem:[%s11 + $0x4d0] sm:$0xff]
      %v4079 = vld [vmem:[%s11 + $0x4d8] sm:$0xff]
      %v4080 = vld [vmem:[%s11 + $0x4e0] sm:$0xff]
      %v4081 = vld [vmem:[%s11 + $0x4e8] sm:$0xff]
      %v4082 = vld [vmem:[%s11 + $0x4f0] sm:$0xff]
      %v4083 = vld [vmem:[%s11 + $0x4f8] sm:$0xff]
      %v4084 = vld [vmem:[%s11 + $0x500] sm:$0xff]
      %v4085 = vld [vmem:[%s11 + $0x508] sm:$0xff]
      %v4086 = vld [vmem:[%s11 + $0x510] sm:$0xff]
      %v4087 = vld [vmem:[%s11 + $0x518] sm:$0xff]
      %v4088 = vld [vmem:[%s11 + $0x520] sm:$0xff]
      %v4089 = vld [vmem:[%s11 + $0x528] sm:$0xff]
      %v4090 = vld [vmem:[%s11 + $0x530] sm:$0xff]
      %v4091 = vld [vmem:[%s11 + $0x538] sm:$0xff]
      %v4092 = vld [vmem:[%s11 + $0x540] sm:$0xff]
      %v4093 = vld [vmem:[%s11 + $0x548] sm:$0xff]
      %v4094 = vld [vmem:[%s11 + $0x550] sm:$0xff]
      %v4095 = vld [vmem:[%s11 + $0x558] sm:$0xff]
      %v4096 = vld [vmem:[%s11 + $0x560] sm:$0xff]
      %v4097 = vld [vmem:[%s11 + $0x568] sm:$0xff]
      %v4098 = vld [vmem:[%s11 + $0x570] sm:$0xff]
      %v4099 = vld [vmem:[%s11 + $0x578] sm:$0xff]
      %v4100 = vld [vmem:[%s11 + $0x580] sm:$0xff]
      %v4101 = vld [vmem:[%s11 + $0x588] sm:$0xff]
      %v4102 = vld [vmem:[%s11 + $0x590] sm:$0xff]
      %v4103 = vld [vmem:[%s11 + $0x598] sm:$0xff]
      %v4104 = vld [vmem:[%s11 + $0x5a0] sm:$0xff]
      %v4105 = vld [vmem:[%s11 + $0x5a8] sm:$0xff]
      %v4106 = vld [vmem:[%s11 + $0x5b0] sm:$0xff]
      %v4107 = vld [vmem:[%s11 + $0x5b8] sm:$0xff]
      %v4108 = vld [vmem:[%s11 + $0x5c0] sm:$0xff]
      %v4109 = vld [vmem:[%s11 + $0x5c8] sm:$0xff]
      %v4110 = vld [vmem:[%s11 + $0x5d0] sm:$0xff]
      %v4111 = vld [vmem:[%s11 + $0x5d8] sm:$0xff]
      %v4112 = vld [vmem:[%s11 + $0x5e0] sm:$0xff]
      %v4113 = vld [vmem:[%s11 + $0x5e8] sm:$0xff]
      %v4114 = vld [vmem:[%s11 + $0x5f0] sm:$0xff]
      %v4115 = vld [vmem:[%s11 + $0x5f8] sm:$0xff]
      %v4116 = vld [vmem:[%s11 + $0x600] sm:$0xff]
      %v4117 = vld [vmem:[%s11 + $0x608] sm:$0xff]
      %v4118 = vld [vmem:[%s11 + $0x610] sm:$0xff]
      %v4119 = vld [vmem:[%s11 + $0x618] sm:$0xff]
      %v4120 = vld [vmem:[%s11 + $0x620] sm:$0xff]
      %v4121 = vld [vmem:[%s11 + $0x628] sm:$0xff]
      %v4122 = vld [vmem:[%s11 + $0x630] sm:$0xff]
      %v4123 = vld [vmem:[%s11 + $0x638] sm:$0xff]
      %v4124 = vld [vmem:[%s11 + $0x640] sm:$0xff]
      %v4125 = vld [vmem:[%s11 + $0x648] sm:$0xff]
      %v4126 = vld [vmem:[%s11 + $0x650] sm:$0xff]
      %v4127 = vld [vmem:[%s11 + $0x658] sm:$0xff]
      %v4128 = vld [vmem:[%s11 + $0x660] sm:$0xff]
      %v4129 = vld [vmem:[%s11 + $0x668] sm:$0xff]
      %v4130 = vld [vmem:[%s11 + $0x670] sm:$0xff]
      %v4131 = vld [vmem:[%s11 + $0x678] sm:$0xff]
      %v4132 = vld [vmem:[%s11 + $0x680] sm:$0xff]
      %v4133 = vld [vmem:[%s11 + $0x688] sm:$0xff]
      %v4134 = vld [vmem:[%s11 + $0x690] sm:$0xff]
      %v4135 = vld [vmem:[%s11 + $0x698] sm:$0xff]
      %v4136 = vld [vmem:[%s11 + $0x6a0] sm:$0xff]
      %v4137 = vld [vmem:[%s11 + $0x6a8] sm:$0xff]
      %v4138 = vld [vmem:[%s11 + $0x6b0] sm:$0xff]
      %v4139 = vld [vmem:[%s11 + $0x6b8] sm:$0xff]
      %v4140 = vld [vmem:[%s11 + $0x6c0] sm:$0xff]
      %v4141 = vld [vmem:[%s11 + $0x6c8] sm:$0xff]
      %v4142 = vld [vmem:[%s11 + $0x6d0] sm:$0xff]
      %v4143 = vld [vmem:[%s11 + $0x6d8] sm:$0xff]
      %v4144 = vld [vmem:[%s11 + $0x6e0] sm:$0xff]
      %v4145 = vld [vmem:[%s11 + $0x6e8] sm:$0xff]
      %v4146 = vld [vmem:[%s11 + $0x6f0] sm:$0xff]
      %v4147 = vld [vmem:[%s11 + $0x6f8] sm:$0xff]
      %v4148 = vld [vmem:[%s11 + $0x700] sm:$0xff]
      %v4149 = vld [vmem:[%s11 + $0x708] sm:$0xff]
      %v4150 = vld [vmem:[%s11 + $0x710] sm:$0xff]
      %v4151 = vld [vmem:[%s11 + $0x718] sm:$0xff]
      %v4152 = vld [vmem:[%s11 + $0x720] sm:$0xff]
      %v4153 = vld [vmem:[%s11 + $0x728] sm:$0xff]
      %v4154 = vld [vmem:[%s11 + $0x730] sm:$0xff]
      %v4155 = vld [vmem:[%s11 + $0x738] sm:$0xff]
      %v4156 = vld [vmem:[%s11 + $0x740] sm:$0xff]
      %v4157 = vld [vmem:[%s11 + $0x748] sm:$0xff]
      %v4158 = vld [vmem:[%s11 + $0x750] sm:$0xff]
      %v4159 = vld [vmem:[%s11 + $0x758] sm:$0xff]
      %v4160 = vld [vmem:[%s11 + $0x760] sm:$0xff]
      %v4161 = vld [vmem:[%s11 + $0x768] sm:$0xff]
      %v4162 = vld [vmem:[%s11 + $0x770] sm:$0xff]
      %v4163 = vld [vmem:[%s11 + $0x778] sm:$0xff]
      %v4164 = vld [vmem:[%s11 + $0x780] sm:$0xff]
      %v4165 = vld [vmem:[%s11 + $0x788] sm:$0xff]
      %v4166 = vld [vmem:[%s11 + $0x790] sm:$0xff]
      %v4167 = vld [vmem:[%s11 + $0x798] sm:$0xff]
      %v4168 = vld [vmem:[%s11 + $0x7a0] sm:$0xff]
      %v4169 = vld [vmem:[%s11 + $0x7a8] sm:$0xff]
      %v4170 = vld [vmem:[%s11 + $0x7b0] sm:$0xff]
      %v4171 = vld [vmem:[%s11 + $0x7b8] sm:$0xff]
      %v4172 = vld [vmem:[%s11 + $0x7c0] sm:$0xff]
      %v4173 = vld [vmem:[%s11 + $0x7c8] sm:$0xff]
      %v4174 = vld [vmem:[%s11 + $0x7d0] sm:$0xff]
      %v4175 = vld [vmem:[%s11 + $0x7d8] sm:$0xff]
      %v4176 = vld [vmem:[%s11 + $0x7e0] sm:$0xff]
      %v4177 = vld [vmem:[%s11 + $0x7e8] sm:$0xff]
      %v4178 = vld [vmem:[%s11 + $0x7f0] sm:$0xff]
      %v4179 = vld [vmem:[%s11 + $0x7f8] sm:$0xff]
      %4180 = vmatprep.subr.mxu0 %v3925
      %4181 = vmatpush1.msra.mxu0 %v3924
      %4182 = vmatprep.subr.mxu0 %v3933
      %4183 = vmatpush1.msra.mxu0 %v3932
      %4184 = vmatprep.subr.mxu0 %v3941
      %4185 = vmatpush1.msra.mxu0 %v3940
      %4186 = vmatprep.subr.mxu0 %v3949
      %4187 = vmatpush1.msra.mxu0 %v3948
      %4188 = vmatprep.subr.mxu0 %v3957
      %4189 = vmatpush1.msra.mxu0 %v3956
      %4190 = vmatprep.subr.mxu0 %v3965
      %4191 = vmatpush1.msra.mxu0 %v3964
      %4192 = vmatprep.subr.mxu0 %v3973
      %4193 = vmatpush1.msra.mxu0 %v3972
      %4194 = vmatprep.subr.mxu0 %v3981
      %4195 = vmatpush1.msra.mxu0 %v3980
      %4196 = vmatprep.subr.mxu0 %v3989
      %4197 = vmatpush1.msra.mxu0 %v3988
      %4198 = vmatprep.subr.mxu0 %v3997
      %4199 = vmatpush1.msra.mxu0 %v3996
      %4200 = vmatprep.subr.mxu0 %v4005
      %4201 = vmatpush1.msra.mxu0 %v4004
      %4202 = vmatprep.subr.mxu0 %v4013
      %4203 = vmatpush1.msra.mxu0 %v4012
      %4204 = vmatprep.subr.mxu0 %v4021
      %4205 = vmatpush1.msra.mxu0 %v4020
      %4206 = vmatprep.subr.mxu0 %v4029
      %4207 = vmatpush1.msra.mxu0 %v4028
      %4208 = vmatprep.subr.mxu0 %v4037
      %4209 = vmatpush1.msra.mxu0 %v4036
      %4210 = vmatprep.subr.mxu0 %v4045
      %4211 = vmatpush1.msra.mxu0 %v4044
      %4212 = vmatprep.subr.mxu0 %v4053
      %4213 = vmatpush1.msra.mxu0 %v4052
      %4214 = vmatprep.subr.mxu0 %v4061
      %4215 = vmatpush1.msra.mxu0 %v4060
      %4216 = vmatprep.subr.mxu0 %v4069
      %4217 = vmatpush1.msra.mxu0 %v4068
      %4218 = vmatprep.subr.mxu0 %v4077
      %4219 = vmatpush1.msra.mxu0 %v4076
      %4220 = vmatprep.subr.mxu0 %v4085
      %4221 = vmatpush1.msra.mxu0 %v4084
      %4222 = vmatprep.subr.mxu0 %v4093
      %4223 = vmatpush1.msra.mxu0 %v4092
      %4224 = vmatprep.subr.mxu0 %v4101
      %4225 = vmatpush1.msra.mxu0 %v4100
      %4226 = vmatprep.subr.mxu0 %v4109
      %4227 = vmatpush1.msra.mxu0 %v4108
      %4228 = vmatprep.subr.mxu0 %v4117
      %4229 = vmatpush1.msra.mxu0 %v4116
      %4230 = vmatprep.subr.mxu0 %v4125
      %4231 = vmatpush1.msra.mxu0 %v4124
      %4232 = vmatprep.subr.mxu0 %v4133
      %4233 = vmatpush1.msra.mxu0 %v4132
      %4234 = vmatprep.subr.mxu0 %v4141
      %4235 = vmatpush1.msra.mxu0 %v4140
      %4236 = vmatprep.subr.mxu0 %v4149
      %4237 = vmatpush1.msra.mxu0 %v4148
      %4238 = vmatprep.subr.mxu0 %v4157
      %4239 = vmatpush1.msra.mxu0 %v4156
      %4240 = vmatprep.subr.mxu0 %v4165
      %4241 = vmatpush1.msra.mxu0 %v4164
      %4242 = vmatprep.subr.mxu0 %v4173
      %4243 = vmatpush1.msra.mxu0 %v4172
      %4244 = vmatprep.mubr.f32.mxu0 %v3922
      %4245 = vmatmul.mubr.f32.gmra.mrb[0].mxu0 %v3920
      %v4246 = vpop.f32.mrb[0].mxu0
      %v4247 = vadd.f32 0.0, %v4246
      %v4248 = vpop.f32.mrb[0].mxu0
      %v4249 = vadd.f32 0.0, %v4248
      %4250 = vdwg.mxu0
      %4251 = vmatprep.subr.mxu0 %v3927
      %4252 = vmatpush1.msra.mxu0 %v3926
      %4253 = vmatprep.subr.mxu0 %v3935
      %4254 = vmatpush1.msra.mxu0 %v3934
      %4255 = vmatprep.subr.mxu0 %v3943
      %4256 = vmatpush1.msra.mxu0 %v3942
      %4257 = vmatprep.subr.mxu0 %v3951
      %4258 = vmatpush1.msra.mxu0 %v3950
      %4259 = vmatprep.subr.mxu0 %v3959
      %4260 = vmatpush1.msra.mxu0 %v3958
      %4261 = vmatprep.subr.mxu0 %v3967
      %4262 = vmatpush1.msra.mxu0 %v3966
      %4263 = vmatprep.subr.mxu0 %v3975
      %4264 = vmatpush1.msra.mxu0 %v3974
      %4265 = vmatprep.subr.mxu0 %v3983
      %4266 = vmatpush1.msra.mxu0 %v3982
      %4267 = vmatprep.subr.mxu0 %v3991
      %4268 = vmatpush1.msra.mxu0 %v3990
      %4269 = vmatprep.subr.mxu0 %v3999
      %4270 = vmatpush1.msra.mxu0 %v3998
      %4271 = vmatprep.subr.mxu0 %v4007
      %4272 = vmatpush1.msra.mxu0 %v4006
      %4273 = vmatprep.subr.mxu0 %v4015
      %4274 = vmatpush1.msra.mxu0 %v4014
      %4275 = vmatprep.subr.mxu0 %v4023
      %4276 = vmatpush1.msra.mxu0 %v4022
      %4277 = vmatprep.subr.mxu0 %v4031
      %4278 = vmatpush1.msra.mxu0 %v4030
      %4279 = vmatprep.subr.mxu0 %v4039
      %4280 = vmatpush1.msra.mxu0 %v4038
      %4281 = vmatprep.subr.mxu0 %v4047
      %4282 = vmatpush1.msra.mxu0 %v4046
      %4283 = vmatprep.subr.mxu0 %v4055
      %4284 = vmatpush1.msra.mxu0 %v4054
      %4285 = vmatprep.subr.mxu0 %v4063
      %4286 = vmatpush1.msra.mxu0 %v4062
      %4287 = vmatprep.subr.mxu0 %v4071
      %4288 = vmatpush1.msra.mxu0 %v4070
      %4289 = vmatprep.subr.mxu0 %v4079
      %4290 = vmatpush1.msra.mxu0 %v4078
      %4291 = vmatprep.subr.mxu0 %v4087
      %4292 = vmatpush1.msra.mxu0 %v4086
      %4293 = vmatprep.subr.mxu0 %v4095
      %4294 = vmatpush1.msra.mxu0 %v4094
      %4295 = vmatprep.subr.mxu0 %v4103
      %4296 = vmatpush1.msra.mxu0 %v4102
      %4297 = vmatprep.subr.mxu0 %v4111
      %4298 = vmatpush1.msra.mxu0 %v4110
      %4299 = vmatprep.subr.mxu0 %v4119
      %4300 = vmatpush1.msra.mxu0 %v4118
      %4301 = vmatprep.subr.mxu0 %v4127
      %4302 = vmatpush1.msra.mxu0 %v4126
      %4303 = vmatprep.subr.mxu0 %v4135
      %4304 = vmatpush1.msra.mxu0 %v4134
      %4305 = vmatprep.subr.mxu0 %v4143
      %4306 = vmatpush1.msra.mxu0 %v4142
      %4307 = vmatprep.subr.mxu0 %v4151
      %4308 = vmatpush1.msra.mxu0 %v4150
      %4309 = vmatprep.subr.mxu0 %v4159
      %4310 = vmatpush1.msra.mxu0 %v4158
      %4311 = vmatprep.subr.mxu0 %v4167
      %4312 = vmatpush1.msra.mxu0 %v4166
      %4313 = vmatprep.subr.mxu0 %v4175
      %4314 = vmatpush1.msra.mxu0 %v4174
      %4315 = vmatprep.mubr.f32.mxu0 %v3922
      %4316 = vmatmul.mubr.f32.gmra.mrb[0].mxu0 %v3920
      %v4317 = vpop.f32.mrb[0].mxu0
      %v4318 = vadd.f32 0.0, %v4317
      %v4319 = vpop.f32.mrb[0].mxu0
      %v4320 = vadd.f32 0.0, %v4319
      %4321 = vdwg.mxu0
      %4322 = vmatprep.subr.mxu0 %v3929
      %4323 = vmatpush1.msra.mxu0 %v3928
      %4324 = vmatprep.subr.mxu0 %v3937
      %4325 = vmatpush1.msra.mxu0 %v3936
      %4326 = vmatprep.subr.mxu0 %v3945
      %4327 = vmatpush1.msra.mxu0 %v3944
      %4328 = vmatprep.subr.mxu0 %v3953
      %4329 = vmatpush1.msra.mxu0 %v3952
      %4330 = vmatprep.subr.mxu0 %v3961
      %4331 = vmatpush1.msra.mxu0 %v3960
      %4332 = vmatprep.subr.mxu0 %v3969
      %4333 = vmatpush1.msra.mxu0 %v3968
      %4334 = vmatprep.subr.mxu0 %v3977
      %4335 = vmatpush1.msra.mxu0 %v3976
      %4336 = vmatprep.subr.mxu0 %v3985
      %4337 = vmatpush1.msra.mxu0 %v3984
      %4338 = vmatprep.subr.mxu0 %v3993
      %4339 = vmatpush1.msra.mxu0 %v3992
      %4340 = vmatprep.subr.mxu0 %v4001
      %4341 = vmatpush1.msra.mxu0 %v4000
      %4342 = vmatprep.subr.mxu0 %v4009
      %4343 = vmatpush1.msra.mxu0 %v4008
      %4344 = vmatprep.subr.mxu0 %v4017
      %4345 = vmatpush1.msra.mxu0 %v4016
      %4346 = vmatprep.subr.mxu0 %v4025
      %4347 = vmatpush1.msra.mxu0 %v4024
      %4348 = vmatprep.subr.mxu0 %v4033
      %4349 = vmatpush1.msra.mxu0 %v4032
      %4350 = vmatprep.subr.mxu0 %v4041
      %4351 = vmatpush1.msra.mxu0 %v4040
      %4352 = vmatprep.subr.mxu0 %v4049
      %4353 = vmatpush1.msra.mxu0 %v4048
      %4354 = vmatprep.subr.mxu0 %v4057
      %4355 = vmatpush1.msra.mxu0 %v4056
      %4356 = vmatprep.subr.mxu0 %v4065
      %4357 = vmatpush1.msra.mxu0 %v4064
      %4358 = vmatprep.subr.mxu0 %v4073
      %4359 = vmatpush1.msra.mxu0 %v4072
      %4360 = vmatprep.subr.mxu0 %v4081
      %4361 = vmatpush1.msra.mxu0 %v4080
      %4362 = vmatprep.subr.mxu0 %v4089
      %4363 = vmatpush1.msra.mxu0 %v4088
      %4364 = vmatprep.subr.mxu0 %v4097
      %4365 = vmatpush1.msra.mxu0 %v4096
      %4366 = vmatprep.subr.mxu0 %v4105
      %4367 = vmatpush1.msra.mxu0 %v4104
      %4368 = vmatprep.subr.mxu0 %v4113
      %4369 = vmatpush1.msra.mxu0 %v4112
      %4370 = vmatprep.subr.mxu0 %v4121
      %4371 = vmatpush1.msra.mxu0 %v4120
      %4372 = vmatprep.subr.mxu0 %v4129
      %4373 = vmatpush1.msra.mxu0 %v4128
      %4374 = vmatprep.subr.mxu0 %v4137
      %4375 = vmatpush1.msra.mxu0 %v4136
      %4376 = vmatprep.subr.mxu0 %v4145
      %4377 = vmatpush1.msra.mxu0 %v4144
      %4378 = vmatprep.subr.mxu0 %v4153
      %4379 = vmatpush1.msra.mxu0 %v4152
      %4380 = vmatprep.subr.mxu0 %v4161
      %4381 = vmatpush1.msra.mxu0 %v4160
      %4382 = vmatprep.subr.mxu0 %v4169
      %4383 = vmatpush1.msra.mxu0 %v4168
      %4384 = vmatprep.subr.mxu0 %v4177
      %4385 = vmatpush1.msra.mxu0 %v4176
      %4386 = vmatprep.mubr.f32.mxu0 %v3922
      %4387 = vmatmul.mubr.f32.gmra.mrb[0].mxu0 %v3920
      %v4388 = vpop.f32.mrb[0].mxu0
      %v4389 = vadd.f32 0.0, %v4388
      %v4390 = vpop.f32.mrb[0].mxu0
      %v4391 = vadd.f32 0.0, %v4390
      %4392 = vdwg.mxu0
      %4393 = vmatprep.subr.mxu0 %v3931
      %4394 = vmatpush1.msra.mxu0 %v3930
      %4395 = vmatprep.subr.mxu0 %v3939
      %4396 = vmatpush1.msra.mxu0 %v3938
      %4397 = vmatprep.subr.mxu0 %v3947
      %4398 = vmatpush1.msra.mxu0 %v3946
      %4399 = vmatprep.subr.mxu0 %v3955
      %4400 = vmatpush1.msra.mxu0 %v3954
      %4401 = vmatprep.subr.mxu0 %v3963
      %4402 = vmatpush1.msra.mxu0 %v3962
      %4403 = vmatprep.subr.mxu0 %v3971
      %4404 = vmatpush1.msra.mxu0 %v3970
      %4405 = vmatprep.subr.mxu0 %v3979
      %4406 = vmatpush1.msra.mxu0 %v3978
      %4407 = vmatprep.subr.mxu0 %v3987
      %4408 = vmatpush1.msra.mxu0 %v3986
      %4409 = vmatprep.subr.mxu0 %v3995
      %4410 = vmatpush1.msra.mxu0 %v3994
      %4411 = vmatprep.subr.mxu0 %v4003
      %4412 = vmatpush1.msra.mxu0 %v4002
      %4413 = vmatprep.subr.mxu0 %v4011
      %4414 = vmatpush1.msra.mxu0 %v4010
      %4415 = vmatprep.subr.mxu0 %v4019
      %4416 = vmatpush1.msra.mxu0 %v4018
      %4417 = vmatprep.subr.mxu0 %v4027
      %4418 = vmatpush1.msra.mxu0 %v4026
      %4419 = vmatprep.subr.mxu0 %v4035
      %4420 = vmatpush1.msra.mxu0 %v4034
      %4421 = vmatprep.subr.mxu0 %v4043
      %4422 = vmatpush1.msra.mxu0 %v4042
      %4423 = vmatprep.subr.mxu0 %v4051
      %4424 = vmatpush1.msra.mxu0 %v4050
      %4425 = vmatprep.subr.mxu0 %v4059
      %4426 = vmatpush1.msra.mxu0 %v4058
      %4427 = vmatprep.subr.mxu0 %v4067
      %4428 = vmatpush1.msra.mxu0 %v4066
      %4429 = vmatprep.subr.mxu0 %v4075
      %4430 = vmatpush1.msra.mxu0 %v4074
      %4431 = vmatprep.subr.mxu0 %v4083
      %4432 = vmatpush1.msra.mxu0 %v4082
      %4433 = vmatprep.subr.mxu0 %v4091
      %4434 = vmatpush1.msra.mxu0 %v4090
      %4435 = vmatprep.subr.mxu0 %v4099
      %4436 = vmatpush1.msra.mxu0 %v4098
      %4437 = vmatprep.subr.mxu0 %v4107
      %4438 = vmatpush1.msra.mxu0 %v4106
      %4439 = vmatprep.subr.mxu0 %v4115
      %4440 = vmatpush1.msra.mxu0 %v4114
      %4441 = vmatprep.subr.mxu0 %v4123
      %4442 = vmatpush1.msra.mxu0 %v4122
      %4443 = vmatprep.subr.mxu0 %v4131
      %4444 = vmatpush1.msra.mxu0 %v4130
      %4445 = vmatprep.subr.mxu0 %v4139
      %4446 = vmatpush1.msra.mxu0 %v4138
      %4447 = vmatprep.subr.mxu0 %v4147
      %4448 = vmatpush1.msra.mxu0 %v4146
      %4449 = vmatprep.subr.mxu0 %v4155
      %4450 = vmatpush1.msra.mxu0 %v4154
      %4451 = vmatprep.subr.mxu0 %v4163
      %4452 = vmatpush1.msra.mxu0 %v4162
      %4453 = vmatprep.subr.mxu0 %v4171
      %4454 = vmatpush1.msra.mxu0 %v4170
      %4455 = vmatprep.subr.mxu0 %v4179
      %4456 = vmatpush1.msra.mxu0 %v4178
      %4457 = vmatprep.mubr.f32.mxu0 %v3922
      %4458 = vmatmul.mubr.f32.gmra.mrb[0].mxu0 %v3920
      %v4459 = vpop.f32.mrb[0].mxu0
      %v4460 = vadd.f32 0.0, %v4459
      %v4461 = vpop.f32.mrb[0].mxu0
      %v4462 = vadd.f32 0.0, %v4461
      %4463 = vdwg.mxu0
      %v4465 = vsel %vm3241, %v3845, 0
      %4467 = vmatprep.subr.mxu0 %v1656
      %4468 = vmatpush1.msra.mxu0 %v1655
      %4469 = vmatprep.subr.mxu0 0.0
      %4470 = vmatpush1.msra.mxu0 0.0
      %4471 = vmatprep.subr.mxu0 0.0
      %4472 = vmatpush1.msra.mxu0 0.0
      %4473 = vmatprep.subr.mxu0 0.0
      %4474 = vmatpush1.msra.mxu0 0.0
      %4475 = vmatprep.subr.mxu0 0.0
      %4476 = vmatpush1.msra.mxu0 0.0
      %4477 = vmatprep.subr.mxu0 0.0
      %4478 = vmatpush1.msra.mxu0 0.0
      %4479 = vmatprep.subr.mxu0 0.0
      %4480 = vmatpush1.msra.mxu0 0.0
      %4481 = vmatprep.subr.mxu0 0.0
      %4482 = vmatpush1.msra.mxu0 0.0
      %4483 = vmatprep.subr.mxu0 0.0
      %4484 = vmatpush1.msra.mxu0 0.0
      %4485 = vmatprep.subr.mxu0 0.0
      %4486 = vmatpush1.msra.mxu0 0.0
      %4487 = vmatprep.subr.mxu0 0.0
      %4488 = vmatpush1.msra.mxu0 0.0
      %4489 = vmatprep.subr.mxu0 0.0
      %4490 = vmatpush1.msra.mxu0 0.0
      %4491 = vmatprep.subr.mxu0 0.0
      %4492 = vmatpush1.msra.mxu0 0.0
      %4493 = vmatprep.subr.mxu0 0.0
      %4494 = vmatpush1.msra.mxu0 0.0
      %4495 = vmatprep.subr.mxu0 0.0
      %4496 = vmatpush1.msra.mxu0 0.0
      %4497 = vmatprep.subr.mxu0 0.0
      %4498 = vmatpush1.msra.mxu0 0.0
      %4499 = vmatprep.subr.mxu0 0.0
      %4500 = vmatpush1.msra.mxu0 0.0
      %4501 = vmatprep.subr.mxu0 0.0
      %4502 = vmatpush1.msra.mxu0 0.0
      %4503 = vmatprep.subr.mxu0 0.0
      %4504 = vmatpush1.msra.mxu0 0.0
      %4505 = vmatprep.subr.mxu0 0.0
      %4506 = vmatpush1.msra.mxu0 0.0
      %4507 = vmatprep.subr.mxu0 0.0
      %4508 = vmatpush1.msra.mxu0 0.0
      %4509 = vmatprep.subr.mxu0 0.0
      %4510 = vmatpush1.msra.mxu0 0.0
      %4511 = vmatprep.subr.mxu0 0.0
      %4512 = vmatpush1.msra.mxu0 0.0
      %4513 = vmatprep.subr.mxu0 0.0
      %4514 = vmatpush1.msra.mxu0 0.0
      %4515 = vmatprep.subr.mxu0 0.0
      %4516 = vmatpush1.msra.mxu0 0.0
      %4517 = vmatprep.subr.mxu0 0.0
      %4518 = vmatpush1.msra.mxu0 0.0
      %4519 = vmatprep.subr.mxu0 0.0
      %4520 = vmatpush1.msra.mxu0 0.0
      %4521 = vmatprep.subr.mxu0 0.0
      %4522 = vmatpush1.msra.mxu0 0.0
      %4523 = vmatprep.subr.mxu0 0.0
      %4524 = vmatpush1.msra.mxu0 0.0
      %4525 = vmatprep.subr.mxu0 0.0
      %4526 = vmatpush1.msra.mxu0 0.0
      %4527 = vmatprep.subr.mxu0 0.0
      %4528 = vmatpush1.msra.mxu0 0.0
      %4529 = vmatprep.subr.mxu0 0.0
      %4530 = vmatpush1.msra.mxu0 0.0
      %4531 = vmatprep.mubr.f32.mxu0 0.0
      %4532 = vmatmul.mubr.f32.gmra.mrb[0].mxu0 %v4465
      %v4533 = vpop.f32.mrb[0].mxu0
      %v4534 = vadd.f32 %v4247, %v4533
      %v4535 = vpop.f32.mrb[0].mxu0
      %v4536 = vadd.f32 %v4249, %v4535
      %4537 = vdwg.mxu0
      %4538 = vmatprep.subr.mxu0 %v1658
      %4539 = vmatpush1.msra.mxu0 %v1657
      %4540 = vmatprep.subr.mxu0 0.0
      %4541 = vmatpush1.msra.mxu0 0.0
      %4542 = vmatprep.subr.mxu0 0.0
      %4543 = vmatpush1.msra.mxu0 0.0
      %4544 = vmatprep.subr.mxu0 0.0
      %4545 = vmatpush1.msra.mxu0 0.0
      %4546 = vmatprep.subr.mxu0 0.0
      %4547 = vmatpush1.msra.mxu0 0.0
      %4548 = vmatprep.subr.mxu0 0.0
      %4549 = vmatpush1.msra.mxu0 0.0
      %4550 = vmatprep.subr.mxu0 0.0
      %4551 = vmatpush1.msra.mxu0 0.0
      %4552 = vmatprep.subr.mxu0 0.0
      %4553 = vmatpush1.msra.mxu0 0.0
      %4554 = vmatprep.subr.mxu0 0.0
      %4555 = vmatpush1.msra.mxu0 0.0
      %4556 = vmatprep.subr.mxu0 0.0
      %4557 = vmatpush1.msra.mxu0 0.0
      %4558 = vmatprep.subr.mxu0 0.0
      %4559 = vmatpush1.msra.mxu0 0.0
      %4560 = vmatprep.subr.mxu0 0.0
      %4561 = vmatpush1.msra.mxu0 0.0
      %4562 = vmatprep.subr.mxu0 0.0
      %4563 = vmatpush1.msra.mxu0 0.0
      %4564 = vmatprep.subr.mxu0 0.0
      %4565 = vmatpush1.msra.mxu0 0.0
      %4566 = vmatprep.subr.mxu0 0.0
      %4567 = vmatpush1.msra.mxu0 0.0
      %4568 = vmatprep.subr.mxu0 0.0
      %4569 = vmatpush1.msra.mxu0 0.0
      %4570 = vmatprep.subr.mxu0 0.0
      %4571 = vmatpush1.msra.mxu0 0.0
      %4572 = vmatprep.subr.mxu0 0.0
      %4573 = vmatpush1.msra.mxu0 0.0
      %4574 = vmatprep.subr.mxu0 0.0
      %4575 = vmatpush1.msra.mxu0 0.0
      %4576 = vmatprep.subr.mxu0 0.0
      %4577 = vmatpush1.msra.mxu0 0.0
      %4578 = vmatprep.subr.mxu0 0.0
      %4579 = vmatpush1.msra.mxu0 0.0
      %4580 = vmatprep.subr.mxu0 0.0
      %4581 = vmatpush1.msra.mxu0 0.0
      %4582 = vmatprep.subr.mxu0 0.0
      %4583 = vmatpush1.msra.mxu0 0.0
      %4584 = vmatprep.subr.mxu0 0.0
      %4585 = vmatpush1.msra.mxu0 0.0
      %4586 = vmatprep.subr.mxu0 0.0
      %4587 = vmatpush1.msra.mxu0 0.0
      %4588 = vmatprep.subr.mxu0 0.0
      %4589 = vmatpush1.msra.mxu0 0.0
      %4590 = vmatprep.subr.mxu0 0.0
      %4591 = vmatpush1.msra.mxu0 0.0
      %4592 = vmatprep.subr.mxu0 0.0
      %4593 = vmatpush1.msra.mxu0 0.0
      %4594 = vmatprep.subr.mxu0 0.0
      %4595 = vmatpush1.msra.mxu0 0.0
      %4596 = vmatprep.subr.mxu0 0.0
      %4597 = vmatpush1.msra.mxu0 0.0
      %4598 = vmatprep.subr.mxu0 0.0
      %4599 = vmatpush1.msra.mxu0 0.0
      %4600 = vmatprep.subr.mxu0 0.0
      %4601 = vmatpush1.msra.mxu0 0.0
      %4602 = vmatprep.mubr.f32.mxu0 0.0
      %4603 = vmatmul.mubr.f32.gmra.mrb[0].mxu0 %v4465
      %v4604 = vpop.f32.mrb[0].mxu0
      %v4605 = vadd.f32 %v4318, %v4604
      %v4606 = vpop.f32.mrb[0].mxu0
      %v4607 = vadd.f32 %v4320, %v4606
      %4608 = vdwg.mxu0
      %4609 = vmatprep.subr.mxu0 %v1660
      %4610 = vmatpush1.msra.mxu0 %v1659
      %4611 = vmatprep.subr.mxu0 0.0
      %4612 = vmatpush1.msra.mxu0 0.0
      %4613 = vmatprep.subr.mxu0 0.0
      %4614 = vmatpush1.msra.mxu0 0.0
      %4615 = vmatprep.subr.mxu0 0.0
      %4616 = vmatpush1.msra.mxu0 0.0
      %4617 = vmatprep.subr.mxu0 0.0
      %4618 = vmatpush1.msra.mxu0 0.0
      %4619 = vmatprep.subr.mxu0 0.0
      %4620 = vmatpush1.msra.mxu0 0.0
      %4621 = vmatprep.subr.mxu0 0.0
      %4622 = vmatpush1.msra.mxu0 0.0
      %4623 = vmatprep.subr.mxu0 0.0
      %4624 = vmatpush1.msra.mxu0 0.0
      %4625 = vmatprep.subr.mxu0 0.0
      %4626 = vmatpush1.msra.mxu0 0.0
      %4627 = vmatprep.subr.mxu0 0.0
      %4628 = vmatpush1.msra.mxu0 0.0
      %4629 = vmatprep.subr.mxu0 0.0
      %4630 = vmatpush1.msra.mxu0 0.0
      %4631 = vmatprep.subr.mxu0 0.0
      %4632 = vmatpush1.msra.mxu0 0.0
      %4633 = vmatprep.subr.mxu0 0.0
      %4634 = vmatpush1.msra.mxu0 0.0
      %4635 = vmatprep.subr.mxu0 0.0
      %4636 = vmatpush1.msra.mxu0 0.0
      %4637 = vmatprep.subr.mxu0 0.0
      %4638 = vmatpush1.msra.mxu0 0.0
      %4639 = vmatprep.subr.mxu0 0.0
      %4640 = vmatpush1.msra.mxu0 0.0
      %4641 = vmatprep.subr.mxu0 0.0
      %4642 = vmatpush1.msra.mxu0 0.0
      %4643 = vmatprep.subr.mxu0 0.0
      %4644 = vmatpush1.msra.mxu0 0.0
      %4645 = vmatprep.subr.mxu0 0.0
      %4646 = vmatpush1.msra.mxu0 0.0
      %4647 = vmatprep.subr.mxu0 0.0
      %4648 = vmatpush1.msra.mxu0 0.0
      %4649 = vmatprep.subr.mxu0 0.0
      %4650 = vmatpush1.msra.mxu0 0.0
      %4651 = vmatprep.subr.mxu0 0.0
      %4652 = vmatpush1.msra.mxu0 0.0
      %4653 = vmatprep.subr.mxu0 0.0
      %4654 = vmatpush1.msra.mxu0 0.0
      %4655 = vmatprep.subr.mxu0 0.0
      %4656 = vmatpush1.msra.mxu0 0.0
      %4657 = vmatprep.subr.mxu0 0.0
      %4658 = vmatpush1.msra.mxu0 0.0
      %4659 = vmatprep.subr.mxu0 0.0
      %4660 = vmatpush1.msra.mxu0 0.0
      %4661 = vmatprep.subr.mxu0 0.0
      %4662 = vmatpush1.msra.mxu0 0.0
      %4663 = vmatprep.subr.mxu0 0.0
      %4664 = vmatpush1.msra.mxu0 0.0
      %4665 = vmatprep.subr.mxu0 0.0
      %4666 = vmatpush1.msra.mxu0 0.0
      %4667 = vmatprep.subr.mxu0 0.0
      %4668 = vmatpush1.msra.mxu0 0.0
      %4669 = vmatprep.subr.mxu0 0.0
      %4670 = vmatpush1.msra.mxu0 0.0
      %4671 = vmatprep.subr.mxu0 0.0
      %4672 = vmatpush1.msra.mxu0 0.0
      %4673 = vmatprep.mubr.f32.mxu0 0.0
      %4674 = vmatmul.mubr.f32.gmra.mrb[0].mxu0 %v4465
      %v4675 = vpop.f32.mrb[0].mxu0
      %v4676 = vadd.f32 %v4389, %v4675
      %v4677 = vpop.f32.mrb[0].mxu0
      %v4678 = vadd.f32 %v4391, %v4677
      %4679 = vdwg.mxu0
      %4680 = vmatprep.subr.mxu0 %v1662
      %4681 = vmatpush1.msra.mxu0 %v1661
      %4682 = vmatprep.subr.mxu0 0.0
      %4683 = vmatpush1.msra.mxu0 0.0
      %4684 = vmatprep.subr.mxu0 0.0
      %4685 = vmatpush1.msra.mxu0 0.0
      %4686 = vmatprep.subr.mxu0 0.0
      %4687 = vmatpush1.msra.mxu0 0.0
      %4688 = vmatprep.subr.mxu0 0.0
      %4689 = vmatpush1.msra.mxu0 0.0
      %4690 = vmatprep.subr.mxu0 0.0
      %4691 = vmatpush1.msra.mxu0 0.0
      %4692 = vmatprep.subr.mxu0 0.0
      %4693 = vmatpush1.msra.mxu0 0.0
      %4694 = vmatprep.subr.mxu0 0.0
      %4695 = vmatpush1.msra.mxu0 0.0
      %4696 = vmatprep.subr.mxu0 0.0
      %4697 = vmatpush1.msra.mxu0 0.0
      %4698 = vmatprep.subr.mxu0 0.0
      %4699 = vmatpush1.msra.mxu0 0.0
      %4700 = vmatprep.subr.mxu0 0.0
      %4701 = vmatpush1.msra.mxu0 0.0
      %4702 = vmatprep.subr.mxu0 0.0
      %4703 = vmatpush1.msra.mxu0 0.0
      %4704 = vmatprep.subr.mxu0 0.0
      %4705 = vmatpush1.msra.mxu0 0.0
      %4706 = vmatprep.subr.mxu0 0.0
      %4707 = vmatpush1.msra.mxu0 0.0
      %4708 = vmatprep.subr.mxu0 0.0
      %4709 = vmatpush1.msra.mxu0 0.0
      %4710 = vmatprep.subr.mxu0 0.0
      %4711 = vmatpush1.msra.mxu0 0.0
      %4712 = vmatprep.subr.mxu0 0.0
      %4713 = vmatpush1.msra.mxu0 0.0
      %4714 = vmatprep.subr.mxu0 0.0
      %4715 = vmatpush1.msra.mxu0 0.0
      %4716 = vmatprep.subr.mxu0 0.0
      %4717 = vmatpush1.msra.mxu0 0.0
      %4718 = vmatprep.subr.mxu0 0.0
      %4719 = vmatpush1.msra.mxu0 0.0
      %4720 = vmatprep.subr.mxu0 0.0
      %4721 = vmatpush1.msra.mxu0 0.0
      %4722 = vmatprep.subr.mxu0 0.0
      %4723 = vmatpush1.msra.mxu0 0.0
      %4724 = vmatprep.subr.mxu0 0.0
      %4725 = vmatpush1.msra.mxu0 0.0
      %4726 = vmatprep.subr.mxu0 0.0
      %4727 = vmatpush1.msra.mxu0 0.0
      %4728 = vmatprep.subr.mxu0 0.0
      %4729 = vmatpush1.msra.mxu0 0.0
      %4730 = vmatprep.subr.mxu0 0.0
      %4731 = vmatpush1.msra.mxu0 0.0
      %4732 = vmatprep.subr.mxu0 0.0
      %4733 = vmatpush1.msra.mxu0 0.0
      %4734 = vmatprep.subr.mxu0 0.0
      %4735 = vmatpush1.msra.mxu0 0.0
      %4736 = vmatprep.subr.mxu0 0.0
      %4737 = vmatpush1.msra.mxu0 0.0
      %4738 = vmatprep.subr.mxu0 0.0
      %4739 = vmatpush1.msra.mxu0 0.0
      %4740 = vmatprep.subr.mxu0 0.0
      %4741 = vmatpush1.msra.mxu0 0.0
      %4742 = vmatprep.subr.mxu0 0.0
      %4743 = vmatpush1.msra.mxu0 0.0
      %4744 = vmatprep.mubr.f32.mxu0 0.0
      %4745 = vmatmul.mubr.f32.gmra.mrb[0].mxu0 %v4465
      %v4746 = vpop.f32.mrb[0].mxu0
      %v4747 = vadd.f32 %v4460, %v4746
      %v4748 = vpop.f32.mrb[0].mxu0
      %v4749 = vadd.f32 %v4462, %v4748
      %4750 = vdwg.mxu0
      %4752 = vset.pattern.permute.xlu0 0
      %4753 = vperm.xlu0 %4752, %v3849
      %v4754 = vpop.permute.xlu0 %4753
      %v4756 = vadd.f32 %v4534, %v4754
      %v4757 = vadd.f32 %v4536, %v4754
      %v4758 = vadd.f32 %v4605, %v4754
      %v4759 = vadd.f32 %v4607, %v4754
      %v4760 = vadd.f32 %v4676, %v4754
      %v4761 = vadd.f32 %v4678, %v4754
      %v4762 = vadd.f32 %v4747, %v4754
      %v4763 = vadd.f32 %v4749, %v4754
      %v4764 = vmul.f32 %v4756, 0.2
      %v4765 = vmul.f32 %v4757, 0.2
      %v4766 = vmul.f32 %v4758, 0.2
      %v4767 = vmul.f32 %v4759, 0.2
      %v4768 = vmul.f32 %v4760, 0.2
      %v4769 = vmul.f32 %v4761, 0.2
      %v4770 = vmul.f32 %v4762, 0.2
      %v4771 = vmul.f32 %v4763, 0.2
      %v4772 = vmax.f32 %v4756, %v4764
      %v4773 = vmax.f32 %v4757, %v4765
      %v4774 = vmax.f32 %v4758, %v4766
      %v4775 = vmax.f32 %v4759, %v4767
      %v4776 = vmax.f32 %v4760, %v4768
      %v4777 = vmax.f32 %v4761, %v4769
      %v4778 = vmax.f32 %v4762, %v4770
      %v4779 = vmax.f32 %v4763, %v4771
      %s4780 = scalar_lea.vmem %s1, 40
      %v4781 = vld [vmem:[%s4780] sm:$0xff]
      %s4782 = scalar_lea.vmem %s2, 40
      %v4783 = vld [vmem:[%s4782] sm:$0xff]
      %4784 = vst [vmem:[#allocation2] sm:$0xff] 0.0
      %4785 = vst [vmem:[#allocation2 + $0x8] sm:$0xff] 0.0
      %4786 = vst [vmem:[#allocation2 + $0x10] sm:$0xff] 0.0
      %4787 = vst [vmem:[#allocation2 + $0x18] sm:$0xff] 0.0
      %4788 = vst [vmem:[#allocation2 + $0x20] sm:$0xff] 0.0
      %4789 = vst [vmem:[#allocation2 + $0x28] sm:$0xff] 0.0
      %4790 = vst [vmem:[#allocation2 + $0x30] sm:$0xff] 0.0
      %4791 = vst [vmem:[#allocation2 + $0x38] sm:$0xff] 0.0
      %4792 = vst.msk [vmem:[#allocation2 + $0x40] sm:$0xff] %vm432, 0.0
      %4801 = vrot.lane.b32.xlu0 %v4772, 33
      %v4802 = vpop.permute.xlu0 %4801
      %4803 = vrot.lane.b32.xlu0 %v4773, 33
      %v4804 = vpop.permute.xlu0 %4803
      %4805 = vrot.lane.b32.xlu0 %v4774, 33
      %v4806 = vpop.permute.xlu0 %4805
      %4807 = vrot.lane.b32.xlu0 %v4775, 33
      %v4808 = vpop.permute.xlu0 %4807
      %4809 = vrot.lane.b32.xlu0 %v4776, 33
      %v4810 = vpop.permute.xlu0 %4809
      %4811 = vrot.lane.b32.xlu0 %v4777, 33
      %v4812 = vpop.permute.xlu0 %4811
      %4813 = vrot.lane.b32.xlu0 %v4778, 33
      %v4814 = vpop.permute.xlu0 %4813
      %4815 = vrot.lane.b32.xlu0 %v4779, 33
      %v4816 = vpop.permute.xlu0 %4815
      %v4817 = vsel %vm458, %v4802, %v4804
      %v4818 = vsel %vm458, %v4804, %v4806
      %v4819 = vsel %vm458, %v4806, %v4808
      %v4820 = vsel %vm458, %v4808, %v4810
      %v4821 = vsel %vm458, %v4810, %v4812
      %v4822 = vsel %vm458, %v4812, %v4814
      %v4823 = vsel %vm458, %v4814, %v4816
      %4833 = vst.msk [vmem:[#allocation2] sm:$0xff] %vm475, %v4802
      %4834 = vst [vmem:[#allocation2 + $0x8] sm:$0xff] %v4817
      %4835 = vst [vmem:[#allocation2 + $0x10] sm:$0xff] %v4818
      %4836 = vst [vmem:[#allocation2 + $0x18] sm:$0xff] %v4819
      %4837 = vst [vmem:[#allocation2 + $0x20] sm:$0xff] %v4820
      %4838 = vst [vmem:[#allocation2 + $0x28] sm:$0xff] %v4821
      %4839 = vst [vmem:[#allocation2 + $0x30] sm:$0xff] %v4822
      %4840 = vst [vmem:[#allocation2 + $0x38] sm:$0xff] %v4823
      %4841 = vst.msk [vmem:[#allocation2 + $0x40] sm:$0xff] %vm458, %v4816
      %v4842 = vld [vmem:[%s5] sm:$0xff]
      %v4843 = vld [vmem:[%s486] sm:$0xff]
      %v4844 = vld [vmem:[#allocation2] sm:$0xff]
      %v4845 = vld [vmem:[#allocation2 + $0x8] sm:$0xff]
      %v4846 = vld [vmem:[#allocation2 + $0x10] sm:$0xff]
      %v4847 = vld [vmem:[#allocation2 + $0x18] sm:$0xff]
      %v4848 = vld [vmem:[#allocation2 + $0x20] sm:$0xff]
      %v4849 = vld [vmem:[#allocation2 + $0x28] sm:$0xff]
      %v4850 = vld [vmem:[#allocation2 + $0x30] sm:$0xff]
      %v4851 = vld [vmem:[#allocation2 + $0x38] sm:$0xff]
      %v4853 = vlaneseq
      %v4854 = vshrl.u32 %v4853, 7
      %v4855 = vsub.s32 0, %v4854
      %v4856 = vrot.slane %v4842, %v4855
      %v4857 = vlaneseq
      %v4858 = vshrl.u32 %v4857, 7
      %v4859 = vsub.s32 1, %v4858
      %v4860 = vrot.slane %v4842, %v4859
      %v4861 = vlaneseq
      %v4862 = vshrl.u32 %v4861, 7
      %v4863 = vsub.s32 2, %v4862
      %v4864 = vrot.slane %v4842, %v4863
      %v4865 = vlaneseq
      %v4866 = vshrl.u32 %v4865, 7
      %v4867 = vsub.s32 3, %v4866
      %v4868 = vrot.slane %v4842, %v4867
      %v4869 = vlaneseq
      %v4870 = vshrl.u32 %v4869, 7
      %v4871 = vsub.s32 4, %v4870
      %v4872 = vrot.slane %v4842, %v4871
      %v4873 = vlaneseq
      %v4874 = vshrl.u32 %v4873, 7
      %v4875 = vsub.s32 5, %v4874
      %v4876 = vrot.slane %v4842, %v4875
      %v4877 = vlaneseq
      %v4878 = vshrl.u32 %v4877, 7
      %v4879 = vsub.s32 6, %v4878
      %v4880 = vrot.slane %v4842, %v4879
      %v4881 = vlaneseq
      %v4882 = vshrl.u32 %v4881, 7
      %v4883 = vsub.s32 7, %v4882
      %v4884 = vrot.slane %v4842, %v4883
      %v4893 = vmul.f32 %v4844, %v4856
      %v4894 = vmul.f32 %v4845, %v4860
      %v4895 = vmul.f32 %v4846, %v4864
      %v4896 = vmul.f32 %v4847, %v4868
      %v4897 = vmul.f32 %v4848, %v4872
      %v4898 = vmul.f32 %v4849, %v4876
      %v4899 = vmul.f32 %v4850, %v4880
      %v4900 = vmul.f32 %v4851, %v4884
      %4901 = vst [vmem:[#allocation3] sm:$0xff] %v4893
      %4902 = vst [vmem:[#allocation3 + $0x8] sm:$0xff] %v4894
      %4903 = vst [vmem:[#allocation3 + $0x10] sm:$0xff] %v4895
      %4904 = vst [vmem:[#allocation3 + $0x18] sm:$0xff] %v4896
      %4905 = vst [vmem:[#allocation3 + $0x20] sm:$0xff] %v4897
      %4906 = vst [vmem:[#allocation3 + $0x28] sm:$0xff] %v4898
      %4907 = vst [vmem:[#allocation3 + $0x30] sm:$0xff] %v4899
      %4908 = vst [vmem:[#allocation3 + $0x38] sm:$0xff] %v4900
      %v4909 = vld [vmem:[#allocation2] sm:$0xff]
      %v4910 = vld [vmem:[#allocation2 + $0x8] sm:$0xff]
      %v4911 = vld [vmem:[#allocation2 + $0x10] sm:$0xff]
      %v4912 = vld [vmem:[#allocation2 + $0x18] sm:$0xff]
      %v4913 = vld [vmem:[#allocation2 + $0x20] sm:$0xff]
      %v4914 = vld [vmem:[#allocation2 + $0x28] sm:$0xff]
      %v4915 = vld [vmem:[#allocation2 + $0x30] sm:$0xff]
      %v4916 = vld [vmem:[#allocation2 + $0x38] sm:$0xff]
      %v4917 = vld [vmem:[#allocation2 + $0x40] sm:$0xff]
      %4927 = vrot.lane.b32.xlu0 %v4909, 127
      %v4928 = vpop.permute.xlu0 %4927
      %4929 = vrot.lane.b32.xlu0 %v4910, 127
      %v4930 = vpop.permute.xlu0 %4929
      %4931 = vrot.lane.b32.xlu0 %v4911, 127
      %v4932 = vpop.permute.xlu0 %4931
      %4933 = vrot.lane.b32.xlu0 %v4912, 127
      %v4934 = vpop.permute.xlu0 %4933
      %4935 = vrot.lane.b32.xlu0 %v4913, 127
      %v4936 = vpop.permute.xlu0 %4935
      %4937 = vrot.lane.b32.xlu0 %v4914, 127
      %v4938 = vpop.permute.xlu0 %4937
      %4939 = vrot.lane.b32.xlu0 %v4915, 127
      %v4940 = vpop.permute.xlu0 %4939
      %4941 = vrot.lane.b32.xlu0 %v4916, 127
      %v4942 = vpop.permute.xlu0 %4941
      %4943 = vrot.lane.b32.xlu0 %v4917, 127
      %v4944 = vpop.permute.xlu0 %4943
      %v4945 = vsel %vm589, %v4928, %v4930
      %v4946 = vsel %vm589, %v4930, %v4932
      %v4947 = vsel %vm589, %v4932, %v4934
      %v4948 = vsel %vm589, %v4934, %v4936
      %v4949 = vsel %vm589, %v4936, %v4938
      %v4950 = vsel %vm589, %v4938, %v4940
      %v4951 = vsel %vm589, %v4940, %v4942
      %v4952 = vsel %vm589, %v4942, %v4944
      %4961 = vst [vmem:[#allocation3 + $0x40] sm:$0xff] %v4945
      %4962 = vst [vmem:[#allocation3 + $0x48] sm:$0xff] %v4946
      %4963 = vst [vmem:[#allocation3 + $0x50] sm:$0xff] %v4947
      %4964 = vst [vmem:[#allocation3 + $0x58] sm:$0xff] %v4948
      %4965 = vst [vmem:[#allocation3 + $0x60] sm:$0xff] %v4949
      %4966 = vst [vmem:[#allocation3 + $0x68] sm:$0xff] %v4950
      %4967 = vst [vmem:[#allocation3 + $0x70] sm:$0xff] %v4951
      %4968 = vst [vmem:[#allocation3 + $0x78] sm:$0xff] %v4952
      %v4969 = vld [vmem:[#allocation2] sm:$0xff]
      %v4970 = vld [vmem:[#allocation2 + $0x8] sm:$0xff]
      %v4971 = vld [vmem:[#allocation2 + $0x10] sm:$0xff]
      %v4972 = vld [vmem:[#allocation2 + $0x18] sm:$0xff]
      %v4973 = vld [vmem:[#allocation2 + $0x20] sm:$0xff]
      %v4974 = vld [vmem:[#allocation2 + $0x28] sm:$0xff]
      %v4975 = vld [vmem:[#allocation2 + $0x30] sm:$0xff]
      %v4976 = vld [vmem:[#allocation2 + $0x38] sm:$0xff]
      %v4977 = vld [vmem:[#allocation2 + $0x40] sm:$0xff]
      %v4979 = vlaneseq
      %v4980 = vshrl.u32 %v4979, 7
      %v4981 = vsub.s32 0, %v4980
      %v4982 = vrot.slane %v4843, %v4981
      %v4983 = vlaneseq
      %v4984 = vshrl.u32 %v4983, 7
      %v4985 = vsub.s32 1, %v4984
      %v4986 = vrot.slane %v4843, %v4985
      %v4987 = vlaneseq
      %v4988 = vshrl.u32 %v4987, 7
      %v4989 = vsub.s32 2, %v4988
      %v4990 = vrot.slane %v4843, %v4989
      %v4991 = vlaneseq
      %v4992 = vshrl.u32 %v4991, 7
      %v4993 = vsub.s32 3, %v4992
      %v4994 = vrot.slane %v4843, %v4993
      %v4995 = vlaneseq
      %v4996 = vshrl.u32 %v4995, 7
      %v4997 = vsub.s32 4, %v4996
      %v4998 = vrot.slane %v4843, %v4997
      %v4999 = vlaneseq
      %v5000 = vshrl.u32 %v4999, 7
      %v5001 = vsub.s32 5, %v5000
      %v5002 = vrot.slane %v4843, %v5001
      %v5003 = vlaneseq
      %v5004 = vshrl.u32 %v5003, 7
      %v5005 = vsub.s32 6, %v5004
      %v5006 = vrot.slane %v4843, %v5005
      %v5007 = vlaneseq
      %v5008 = vshrl.u32 %v5007, 7
      %v5009 = vsub.s32 7, %v5008
      %v5010 = vrot.slane %v4843, %v5009
      %5011 = vrot.lane.b32.xlu0 %v4982, 2
      %v5012 = vpop.permute.xlu0 %5011
      %5013 = vrot.lane.b32.xlu0 %v4986, 2
      %v5014 = vpop.permute.xlu0 %5013
      %5015 = vrot.lane.b32.xlu0 %v4990, 2
      %v5016 = vpop.permute.xlu0 %5015
      %5017 = vrot.lane.b32.xlu0 %v4994, 2
      %v5018 = vpop.permute.xlu0 %5017
      %5019 = vrot.lane.b32.xlu0 %v4998, 2
      %v5020 = vpop.permute.xlu0 %5019
      %5021 = vrot.lane.b32.xlu0 %v5002, 2
      %v5022 = vpop.permute.xlu0 %5021
      %5023 = vrot.lane.b32.xlu0 %v5006, 2
      %v5024 = vpop.permute.xlu0 %5023
      %5025 = vrot.lane.b32.xlu0 %v5010, 2
      %v5026 = vpop.permute.xlu0 %5025
      %v5027 = vsel %vm672, %v5012, %v5014
      %v5028 = vsel %vm672, %v5014, %v5016
      %v5029 = vsel %vm672, %v5016, %v5018
      %v5030 = vsel %vm672, %v5018, %v5020
      %v5031 = vsel %vm672, %v5020, %v5022
      %v5032 = vsel %vm672, %v5022, %v5024
      %v5033 = vsel %vm672, %v5024, %v5026
      %v5043 = vmul.f32 %v4969, %v5012
      %v5044 = vmul.f32 %v4970, %v5027
      %v5045 = vmul.f32 %v4971, %v5028
      %v5046 = vmul.f32 %v4972, %v5029
      %v5047 = vmul.f32 %v4973, %v5030
      %v5048 = vmul.f32 %v4974, %v5031
      %v5049 = vmul.f32 %v4975, %v5032
      %v5050 = vmul.f32 %v4976, %v5033
      %v5051 = vmul.f32 %v4977, %v5026
      %5061 = vrot.lane.b32.xlu0 %v5043, 126
      %v5062 = vpop.permute.xlu0 %5061
      %5063 = vrot.lane.b32.xlu0 %v5044, 126
      %v5064 = vpop.permute.xlu0 %5063
      %5065 = vrot.lane.b32.xlu0 %v5045, 126
      %v5066 = vpop.permute.xlu0 %5065
      %5067 = vrot.lane.b32.xlu0 %v5046, 126
      %v5068 = vpop.permute.xlu0 %5067
      %5069 = vrot.lane.b32.xlu0 %v5047, 126
      %v5070 = vpop.permute.xlu0 %5069
      %5071 = vrot.lane.b32.xlu0 %v5048, 126
      %v5072 = vpop.permute.xlu0 %5071
      %5073 = vrot.lane.b32.xlu0 %v5049, 126
      %v5074 = vpop.permute.xlu0 %5073
      %5075 = vrot.lane.b32.xlu0 %v5050, 126
      %v5076 = vpop.permute.xlu0 %5075
      %5077 = vrot.lane.b32.xlu0 %v5051, 126
      %v5078 = vpop.permute.xlu0 %5077
      %v5079 = vsel %vm725, %v5062, %v5064
      %v5080 = vsel %vm725, %v5064, %v5066
      %v5081 = vsel %vm725, %v5066, %v5068
      %v5082 = vsel %vm725, %v5068, %v5070
      %v5083 = vsel %vm725, %v5070, %v5072
      %v5084 = vsel %vm725, %v5072, %v5074
      %v5085 = vsel %vm725, %v5074, %v5076
      %v5086 = vsel %vm725, %v5076, %v5078
      %5095 = vst [vmem:[#allocation3 + $0x80] sm:$0xff] %v5079
      %5096 = vst [vmem:[#allocation3 + $0x88] sm:$0xff] %v5080
      %5097 = vst [vmem:[#allocation3 + $0x90] sm:$0xff] %v5081
      %5098 = vst [vmem:[#allocation3 + $0x98] sm:$0xff] %v5082
      %5099 = vst [vmem:[#allocation3 + $0xa0] sm:$0xff] %v5083
      %5100 = vst [vmem:[#allocation3 + $0xa8] sm:$0xff] %v5084
      %5101 = vst [vmem:[#allocation3 + $0xb0] sm:$0xff] %v5085
      %5102 = vst [vmem:[#allocation3 + $0xb8] sm:$0xff] %v5086
      %v5103 = vld [vmem:[#allocation2] sm:$0xff]
      %v5104 = vld [vmem:[#allocation2 + $0x8] sm:$0xff]
      %v5105 = vld [vmem:[#allocation2 + $0x10] sm:$0xff]
      %v5106 = vld [vmem:[#allocation2 + $0x18] sm:$0xff]
      %v5107 = vld [vmem:[#allocation2 + $0x20] sm:$0xff]
      %v5108 = vld [vmem:[#allocation2 + $0x28] sm:$0xff]
      %v5109 = vld [vmem:[#allocation2 + $0x30] sm:$0xff]
      %v5110 = vld [vmem:[#allocation2 + $0x38] sm:$0xff]
      %v5111 = vld [vmem:[#allocation2 + $0x40] sm:$0xff]
      %5112 = vrot.lane.b32.xlu0 %v4856, 32
      %v5113 = vpop.permute.xlu0 %5112
      %5114 = vrot.lane.b32.xlu0 %v4860, 32
      %v5115 = vpop.permute.xlu0 %5114
      %5116 = vrot.lane.b32.xlu0 %v4864, 32
      %v5117 = vpop.permute.xlu0 %5116
      %5118 = vrot.lane.b32.xlu0 %v4868, 32
      %v5119 = vpop.permute.xlu0 %5118
      %5120 = vrot.lane.b32.xlu0 %v4872, 32
      %v5121 = vpop.permute.xlu0 %5120
      %5122 = vrot.lane.b32.xlu0 %v4876, 32
      %v5123 = vpop.permute.xlu0 %5122
      %5124 = vrot.lane.b32.xlu0 %v4880, 32
      %v5125 = vpop.permute.xlu0 %5124
      %5126 = vrot.lane.b32.xlu0 %v4884, 32
      %v5127 = vpop.permute.xlu0 %5126
      %v5128 = vsel %vm775, %v5113, %v5115
      %v5129 = vsel %vm775, %v5115, %v5117
      %v5130 = vsel %vm775, %v5117, %v5119
      %v5131 = vsel %vm775, %v5119, %v5121
      %v5132 = vsel %vm775, %v5121, %v5123
      %v5133 = vsel %vm775, %v5123, %v5125
      %v5134 = vsel %vm775, %v5125, %v5127
      %v5144 = vmul.f32 %v5103, %v5113
      %v5145 = vmul.f32 %v5104, %v5128
      %v5146 = vmul.f32 %v5105, %v5129
      %v5147 = vmul.f32 %v5106, %v5130
      %v5148 = vmul.f32 %v5107, %v5131
      %v5149 = vmul.f32 %v5108, %v5132
      %v5150 = vmul.f32 %v5109, %v5133
      %v5151 = vmul.f32 %v5110, %v5134
      %v5152 = vmul.f32 %v5111, %v5127
      %5162 = vrot.lane.b32.xlu0 %v5144, 96
      %v5163 = vpop.permute.xlu0 %5162
      %5164 = vrot.lane.b32.xlu0 %v5145, 96
      %v5165 = vpop.permute.xlu0 %5164
      %5166 = vrot.lane.b32.xlu0 %v5146, 96
      %v5167 = vpop.permute.xlu0 %5166
      %5168 = vrot.lane.b32.xlu0 %v5147, 96
      %v5169 = vpop.permute.xlu0 %5168
      %5170 = vrot.lane.b32.xlu0 %v5148, 96
      %v5171 = vpop.permute.xlu0 %5170
      %5172 = vrot.lane.b32.xlu0 %v5149, 96
      %v5173 = vpop.permute.xlu0 %5172
      %5174 = vrot.lane.b32.xlu0 %v5150, 96
      %v5175 = vpop.permute.xlu0 %5174
      %5176 = vrot.lane.b32.xlu0 %v5151, 96
      %v5177 = vpop.permute.xlu0 %5176
      %5178 = vrot.lane.b32.xlu0 %v5152, 96
      %v5179 = vpop.permute.xlu0 %5178
      %v5180 = vsel %vm828, %v5163, %v5165
      %v5181 = vsel %vm828, %v5165, %v5167
      %v5182 = vsel %vm828, %v5167, %v5169
      %v5183 = vsel %vm828, %v5169, %v5171
      %v5184 = vsel %vm828, %v5171, %v5173
      %v5185 = vsel %vm828, %v5173, %v5175
      %v5186 = vsel %vm828, %v5175, %v5177
      %v5187 = vsel %vm828, %v5177, %v5179
      %5196 = vst [vmem:[#allocation3 + $0xc0] sm:$0xff] %v5180
      %5197 = vst [vmem:[#allocation3 + $0xc8] sm:$0xff] %v5181
      %5198 = vst [vmem:[#allocation3 + $0xd0] sm:$0xff] %v5182
      %5199 = vst [vmem:[#allocation3 + $0xd8] sm:$0xff] %v5183
      %5200 = vst [vmem:[#allocation3 + $0xe0] sm:$0xff] %v5184
      %5201 = vst [vmem:[#allocation3 + $0xe8] sm:$0xff] %v5185
      %5202 = vst [vmem:[#allocation3 + $0xf0] sm:$0xff] %v5186
      %5203 = vst [vmem:[#allocation3 + $0xf8] sm:$0xff] %v5187
      %v5204 = vld [vmem:[#allocation2] sm:$0xff]
      %v5205 = vld [vmem:[#allocation2 + $0x8] sm:$0xff]
      %v5206 = vld [vmem:[#allocation2 + $0x10] sm:$0xff]
      %v5207 = vld [vmem:[#allocation2 + $0x18] sm:$0xff]
      %v5208 = vld [vmem:[#allocation2 + $0x20] sm:$0xff]
      %v5209 = vld [vmem:[#allocation2 + $0x28] sm:$0xff]
      %v5210 = vld [vmem:[#allocation2 + $0x30] sm:$0xff]
      %v5211 = vld [vmem:[#allocation2 + $0x38] sm:$0xff]
      %v5212 = vld [vmem:[#allocation2 + $0x40] sm:$0xff]
      %5222 = vrot.lane.b32.xlu0 %v5204, 95
      %v5223 = vpop.permute.xlu0 %5222
      %5224 = vrot.lane.b32.xlu0 %v5205, 95
      %v5225 = vpop.permute.xlu0 %5224
      %5226 = vrot.lane.b32.xlu0 %v5206, 95
      %v5227 = vpop.permute.xlu0 %5226
      %5228 = vrot.lane.b32.xlu0 %v5207, 95
      %v5229 = vpop.permute.xlu0 %5228
      %5230 = vrot.lane.b32.xlu0 %v5208, 95
      %v5231 = vpop.permute.xlu0 %5230
      %5232 = vrot.lane.b32.xlu0 %v5209, 95
      %v5233 = vpop.permute.xlu0 %5232
      %5234 = vrot.lane.b32.xlu0 %v5210, 95
      %v5235 = vpop.permute.xlu0 %5234
      %5236 = vrot.lane.b32.xlu0 %v5211, 95
      %v5237 = vpop.permute.xlu0 %5236
      %5238 = vrot.lane.b32.xlu0 %v5212, 95
      %v5239 = vpop.permute.xlu0 %5238
      %v5240 = vsel %vm889, %v5223, %v5225
      %v5241 = vsel %vm889, %v5225, %v5227
      %v5242 = vsel %vm889, %v5227, %v5229
      %v5243 = vsel %vm889, %v5229, %v5231
      %v5244 = vsel %vm889, %v5231, %v5233
      %v5245 = vsel %vm889, %v5233, %v5235
      %v5246 = vsel %vm889, %v5235, %v5237
      %v5247 = vsel %vm889, %v5237, %v5239
      %5256 = vst [vmem:[#allocation3 + $0x100] sm:$0xff] %v5240
      %5257 = vst [vmem:[#allocation3 + $0x108] sm:$0xff] %v5241
      %5258 = vst [vmem:[#allocation3 + $0x110] sm:$0xff] %v5242
      %5259 = vst [vmem:[#allocation3 + $0x118] sm:$0xff] %v5243
      %5260 = vst [vmem:[#allocation3 + $0x120] sm:$0xff] %v5244
      %5261 = vst [vmem:[#allocation3 + $0x128] sm:$0xff] %v5245
      %5262 = vst [vmem:[#allocation3 + $0x130] sm:$0xff] %v5246
      %5263 = vst [vmem:[#allocation3 + $0x138] sm:$0xff] %v5247
      %v5264 = vld [vmem:[#allocation2] sm:$0xff]
      %v5265 = vld [vmem:[#allocation2 + $0x8] sm:$0xff]
      %v5266 = vld [vmem:[#allocation2 + $0x10] sm:$0xff]
      %v5267 = vld [vmem:[#allocation2 + $0x18] sm:$0xff]
      %v5268 = vld [vmem:[#allocation2 + $0x20] sm:$0xff]
      %v5269 = vld [vmem:[#allocation2 + $0x28] sm:$0xff]
      %v5270 = vld [vmem:[#allocation2 + $0x30] sm:$0xff]
      %v5271 = vld [vmem:[#allocation2 + $0x38] sm:$0xff]
      %v5272 = vld [vmem:[#allocation2 + $0x40] sm:$0xff]
      %5273 = vrot.lane.b32.xlu0 %v4982, 34
      %v5274 = vpop.permute.xlu0 %5273
      %5275 = vrot.lane.b32.xlu0 %v4986, 34
      %v5276 = vpop.permute.xlu0 %5275
      %5277 = vrot.lane.b32.xlu0 %v4990, 34
      %v5278 = vpop.permute.xlu0 %5277
      %5279 = vrot.lane.b32.xlu0 %v4994, 34
      %v5280 = vpop.permute.xlu0 %5279
      %5281 = vrot.lane.b32.xlu0 %v4998, 34
      %v5282 = vpop.permute.xlu0 %5281
      %5283 = vrot.lane.b32.xlu0 %v5002, 34
      %v5284 = vpop.permute.xlu0 %5283
      %5285 = vrot.lane.b32.xlu0 %v5006, 34
      %v5286 = vpop.permute.xlu0 %5285
      %5287 = vrot.lane.b32.xlu0 %v5010, 34
      %v5288 = vpop.permute.xlu0 %5287
      %v5289 = vsel %vm939, %v5274, %v5276
      %v5290 = vsel %vm939, %v5276, %v5278
      %v5291 = vsel %vm939, %v5278, %v5280
      %v5292 = vsel %vm939, %v5280, %v5282
      %v5293 = vsel %vm939, %v5282, %v5284
      %v5294 = vsel %vm939, %v5284, %v5286
      %v5295 = vsel %vm939, %v5286, %v5288
      %v5305 = vmul.f32 %v5264, %v5274
      %v5306 = vmul.f32 %v5265, %v5289
      %v5307 = vmul.f32 %v5266, %v5290
      %v5308 = vmul.f32 %v5267, %v5291
      %v5309 = vmul.f32 %v5268, %v5292
      %v5310 = vmul.f32 %v5269, %v5293
      %v5311 = vmul.f32 %v5270, %v5294
      %v5312 = vmul.f32 %v5271, %v5295
      %v5313 = vmul.f32 %v5272, %v5288
      %5323 = vrot.lane.b32.xlu0 %v5305, 94
      %v5324 = vpop.permute.xlu0 %5323
      %5325 = vrot.lane.b32.xlu0 %v5306, 94
      %v5326 = vpop.permute.xlu0 %5325
      %5327 = vrot.lane.b32.xlu0 %v5307, 94
      %v5328 = vpop.permute.xlu0 %5327
      %5329 = vrot.lane.b32.xlu0 %v5308, 94
      %v5330 = vpop.permute.xlu0 %5329
      %5331 = vrot.lane.b32.xlu0 %v5309, 94
      %v5332 = vpop.permute.xlu0 %5331
      %5333 = vrot.lane.b32.xlu0 %v5310, 94
      %v5334 = vpop.permute.xlu0 %5333
      %5335 = vrot.lane.b32.xlu0 %v5311, 94
      %v5336 = vpop.permute.xlu0 %5335
      %5337 = vrot.lane.b32.xlu0 %v5312, 94
      %v5338 = vpop.permute.xlu0 %5337
      %5339 = vrot.lane.b32.xlu0 %v5313, 94
      %v5340 = vpop.permute.xlu0 %5339
      %v5341 = vsel %vm992, %v5324, %v5326
      %v5342 = vsel %vm992, %v5326, %v5328
      %v5343 = vsel %vm992, %v5328, %v5330
      %v5344 = vsel %vm992, %v5330, %v5332
      %v5345 = vsel %vm992, %v5332, %v5334
      %v5346 = vsel %vm992, %v5334, %v5336
      %v5347 = vsel %vm992, %v5336, %v5338
      %v5348 = vsel %vm992, %v5338, %v5340
      %5357 = vst [vmem:[#allocation3 + $0x140] sm:$0xff] %v5341
      %5358 = vst [vmem:[#allocation3 + $0x148] sm:$0xff] %v5342
      %5359 = vst [vmem:[#allocation3 + $0x150] sm:$0xff] %v5343
      %5360 = vst [vmem:[#allocation3 + $0x158] sm:$0xff] %v5344
      %5361 = vst [vmem:[#allocation3 + $0x160] sm:$0xff] %v5345
      %5362 = vst [vmem:[#allocation3 + $0x168] sm:$0xff] %v5346
      %5363 = vst [vmem:[#allocation3 + $0x170] sm:$0xff] %v5347
      %5364 = vst [vmem:[#allocation3 + $0x178] sm:$0xff] %v5348
      %v5365 = vld [vmem:[#allocation2] sm:$0xff]
      %v5366 = vld [vmem:[#allocation2 + $0x8] sm:$0xff]
      %v5367 = vld [vmem:[#allocation2 + $0x10] sm:$0xff]
      %v5368 = vld [vmem:[#allocation2 + $0x18] sm:$0xff]
      %v5369 = vld [vmem:[#allocation2 + $0x20] sm:$0xff]
      %v5370 = vld [vmem:[#allocation2 + $0x28] sm:$0xff]
      %v5371 = vld [vmem:[#allocation2 + $0x30] sm:$0xff]
      %v5372 = vld [vmem:[#allocation2 + $0x38] sm:$0xff]
      %v5373 = vld [vmem:[#allocation2 + $0x40] sm:$0xff]
      %5374 = vrot.lane.b32.xlu0 %v4856, 64
      %v5375 = vpop.permute.xlu0 %5374
      %5376 = vrot.lane.b32.xlu0 %v4860, 64
      %v5377 = vpop.permute.xlu0 %5376
      %5378 = vrot.lane.b32.xlu0 %v4864, 64
      %v5379 = vpop.permute.xlu0 %5378
      %5380 = vrot.lane.b32.xlu0 %v4868, 64
      %v5381 = vpop.permute.xlu0 %5380
      %5382 = vrot.lane.b32.xlu0 %v4872, 64
      %v5383 = vpop.permute.xlu0 %5382
      %5384 = vrot.lane.b32.xlu0 %v4876, 64
      %v5385 = vpop.permute.xlu0 %5384
      %5386 = vrot.lane.b32.xlu0 %v4880, 64
      %v5387 = vpop.permute.xlu0 %5386
      %5388 = vrot.lane.b32.xlu0 %v4884, 64
      %v5389 = vpop.permute.xlu0 %5388
      %v5390 = vsel %vm1042, %v5375, %v5377
      %v5391 = vsel %vm1042, %v5377, %v5379
      %v5392 = vsel %vm1042, %v5379, %v5381
      %v5393 = vsel %vm1042, %v5381, %v5383
      %v5394 = vsel %vm1042, %v5383, %v5385
      %v5395 = vsel %vm1042, %v5385, %v5387
      %v5396 = vsel %vm1042, %v5387, %v5389
      %v5406 = vmul.f32 %v5365, %v5375
      %v5407 = vmul.f32 %v5366, %v5390
      %v5408 = vmul.f32 %v5367, %v5391
      %v5409 = vmul.f32 %v5368, %v5392
      %v5410 = vmul.f32 %v5369, %v5393
      %v5411 = vmul.f32 %v5370, %v5394
      %v5412 = vmul.f32 %v5371, %v5395
      %v5413 = vmul.f32 %v5372, %v5396
      %v5414 = vmul.f32 %v5373, %v5389
      %5424 = vrot.lane.b32.xlu0 %v5406, 64
      %v5425 = vpop.permute.xlu0 %5424
      %5426 = vrot.lane.b32.xlu0 %v5407, 64
      %v5427 = vpop.permute.xlu0 %5426
      %5428 = vrot.lane.b32.xlu0 %v5408, 64
      %v5429 = vpop.permute.xlu0 %5428
      %5430 = vrot.lane.b32.xlu0 %v5409, 64
      %v5431 = vpop.permute.xlu0 %5430
      %5432 = vrot.lane.b32.xlu0 %v5410, 64
      %v5433 = vpop.permute.xlu0 %5432
      %5434 = vrot.lane.b32.xlu0 %v5411, 64
      %v5435 = vpop.permute.xlu0 %5434
      %5436 = vrot.lane.b32.xlu0 %v5412, 64
      %v5437 = vpop.permute.xlu0 %5436
      %5438 = vrot.lane.b32.xlu0 %v5413, 64
      %v5439 = vpop.permute.xlu0 %5438
      %5440 = vrot.lane.b32.xlu0 %v5414, 64
      %v5441 = vpop.permute.xlu0 %5440
      %v5442 = vsel %vm1042, %v5425, %v5427
      %v5443 = vsel %vm1042, %v5427, %v5429
      %v5444 = vsel %vm1042, %v5429, %v5431
      %v5445 = vsel %vm1042, %v5431, %v5433
      %v5446 = vsel %vm1042, %v5433, %v5435
      %v5447 = vsel %vm1042, %v5435, %v5437
      %v5448 = vsel %vm1042, %v5437, %v5439
      %v5449 = vsel %vm1042, %v5439, %v5441
      %5458 = vst [vmem:[#allocation3 + $0x180] sm:$0xff] %v5442
      %5459 = vst [vmem:[#allocation3 + $0x188] sm:$0xff] %v5443
      %5460 = vst [vmem:[#allocation3 + $0x190] sm:$0xff] %v5444
      %5461 = vst [vmem:[#allocation3 + $0x198] sm:$0xff] %v5445
      %5462 = vst [vmem:[#allocation3 + $0x1a0] sm:$0xff] %v5446
      %5463 = vst [vmem:[#allocation3 + $0x1a8] sm:$0xff] %v5447
      %5464 = vst [vmem:[#allocation3 + $0x1b0] sm:$0xff] %v5448
      %5465 = vst [vmem:[#allocation3 + $0x1b8] sm:$0xff] %v5449
      %v5466 = vld [vmem:[#allocation2] sm:$0xff]
      %v5467 = vld [vmem:[#allocation2 + $0x8] sm:$0xff]
      %v5468 = vld [vmem:[#allocation2 + $0x10] sm:$0xff]
      %v5469 = vld [vmem:[#allocation2 + $0x18] sm:$0xff]
      %v5470 = vld [vmem:[#allocation2 + $0x20] sm:$0xff]
      %v5471 = vld [vmem:[#allocation2 + $0x28] sm:$0xff]
      %v5472 = vld [vmem:[#allocation2 + $0x30] sm:$0xff]
      %v5473 = vld [vmem:[#allocation2 + $0x38] sm:$0xff]
      %v5474 = vld [vmem:[#allocation2 + $0x40] sm:$0xff]
      %5484 = vrot.lane.b32.xlu0 %v5466, 63
      %v5485 = vpop.permute.xlu0 %5484
      %5486 = vrot.lane.b32.xlu0 %v5467, 63
      %v5487 = vpop.permute.xlu0 %5486
      %5488 = vrot.lane.b32.xlu0 %v5468, 63
      %v5489 = vpop.permute.xlu0 %5488
      %5490 = vrot.lane.b32.xlu0 %v5469, 63
      %v5491 = vpop.permute.xlu0 %5490
      %5492 = vrot.lane.b32.xlu0 %v5470, 63
      %v5493 = vpop.permute.xlu0 %5492
      %5494 = vrot.lane.b32.xlu0 %v5471, 63
      %v5495 = vpop.permute.xlu0 %5494
      %5496 = vrot.lane.b32.xlu0 %v5472, 63
      %v5497 = vpop.permute.xlu0 %5496
      %5498 = vrot.lane.b32.xlu0 %v5473, 63
      %v5499 = vpop.permute.xlu0 %5498
      %5500 = vrot.lane.b32.xlu0 %v5474, 63
      %v5501 = vpop.permute.xlu0 %5500
      %v5502 = vsel %vm1155, %v5485, %v5487
      %v5503 = vsel %vm1155, %v5487, %v5489
      %v5504 = vsel %vm1155, %v5489, %v5491
      %v5505 = vsel %vm1155, %v5491, %v5493
      %v5506 = vsel %vm1155, %v5493, %v5495
      %v5507 = vsel %vm1155, %v5495, %v5497
      %v5508 = vsel %vm1155, %v5497, %v5499
      %v5509 = vsel %vm1155, %v5499, %v5501
      %5518 = vst [vmem:[#allocation3 + $0x1c0] sm:$0xff] %v5502
      %5519 = vst [vmem:[#allocation3 + $0x1c8] sm:$0xff] %v5503
      %5520 = vst [vmem:[#allocation3 + $0x1d0] sm:$0xff] %v5504
      %5521 = vst [vmem:[#allocation3 + $0x1d8] sm:$0xff] %v5505
      %5522 = vst [vmem:[#allocation3 + $0x1e0] sm:$0xff] %v5506
      %5523 = vst [vmem:[#allocation3 + $0x1e8] sm:$0xff] %v5507
      %5524 = vst [vmem:[#allocation3 + $0x1f0] sm:$0xff] %v5508
      %5525 = vst [vmem:[#allocation3 + $0x1f8] sm:$0xff] %v5509
      %v5526 = vld [vmem:[#allocation2] sm:$0xff]
      %v5527 = vld [vmem:[#allocation2 + $0x8] sm:$0xff]
      %v5528 = vld [vmem:[#allocation2 + $0x10] sm:$0xff]
      %v5529 = vld [vmem:[#allocation2 + $0x18] sm:$0xff]
      %v5530 = vld [vmem:[#allocation2 + $0x20] sm:$0xff]
      %v5531 = vld [vmem:[#allocation2 + $0x28] sm:$0xff]
      %v5532 = vld [vmem:[#allocation2 + $0x30] sm:$0xff]
      %v5533 = vld [vmem:[#allocation2 + $0x38] sm:$0xff]
      %v5534 = vld [vmem:[#allocation2 + $0x40] sm:$0xff]
      %5535 = vrot.lane.b32.xlu0 %v4982, 66
      %v5536 = vpop.permute.xlu0 %5535
      %5537 = vrot.lane.b32.xlu0 %v4986, 66
      %v5538 = vpop.permute.xlu0 %5537
      %5539 = vrot.lane.b32.xlu0 %v4990, 66
      %v5540 = vpop.permute.xlu0 %5539
      %5541 = vrot.lane.b32.xlu0 %v4994, 66
      %v5542 = vpop.permute.xlu0 %5541
      %5543 = vrot.lane.b32.xlu0 %v4998, 66
      %v5544 = vpop.permute.xlu0 %5543
      %5545 = vrot.lane.b32.xlu0 %v5002, 66
      %v5546 = vpop.permute.xlu0 %5545
      %5547 = vrot.lane.b32.xlu0 %v5006, 66
      %v5548 = vpop.permute.xlu0 %5547
      %5549 = vrot.lane.b32.xlu0 %v5010, 66
      %v5550 = vpop.permute.xlu0 %5549
      %v5551 = vsel %vm432, %v5536, %v5538
      %v5552 = vsel %vm432, %v5538, %v5540
      %v5553 = vsel %vm432, %v5540, %v5542
      %v5554 = vsel %vm432, %v5542, %v5544
      %v5555 = vsel %vm432, %v5544, %v5546
      %v5556 = vsel %vm432, %v5546, %v5548
      %v5557 = vsel %vm432, %v5548, %v5550
      %v5567 = vmul.f32 %v5526, %v5536
      %v5568 = vmul.f32 %v5527, %v5551
      %v5569 = vmul.f32 %v5528, %v5552
      %v5570 = vmul.f32 %v5529, %v5553
      %v5571 = vmul.f32 %v5530, %v5554
      %v5572 = vmul.f32 %v5531, %v5555
      %v5573 = vmul.f32 %v5532, %v5556
      %v5574 = vmul.f32 %v5533, %v5557
      %v5575 = vmul.f32 %v5534, %v5550
      %5585 = vrot.lane.b32.xlu0 %v5567, 62
      %v5586 = vpop.permute.xlu0 %5585
      %5587 = vrot.lane.b32.xlu0 %v5568, 62
      %v5588 = vpop.permute.xlu0 %5587
      %5589 = vrot.lane.b32.xlu0 %v5569, 62
      %v5590 = vpop.permute.xlu0 %5589
      %5591 = vrot.lane.b32.xlu0 %v5570, 62
      %v5592 = vpop.permute.xlu0 %5591
      %5593 = vrot.lane.b32.xlu0 %v5571, 62
      %v5594 = vpop.permute.xlu0 %5593
      %5595 = vrot.lane.b32.xlu0 %v5572, 62
      %v5596 = vpop.permute.xlu0 %5595
      %5597 = vrot.lane.b32.xlu0 %v5573, 62
      %v5598 = vpop.permute.xlu0 %5597
      %5599 = vrot.lane.b32.xlu0 %v5574, 62
      %v5600 = vpop.permute.xlu0 %5599
      %5601 = vrot.lane.b32.xlu0 %v5575, 62
      %v5602 = vpop.permute.xlu0 %5601
      %v5603 = vsel %vm1257, %v5586, %v5588
      %v5604 = vsel %vm1257, %v5588, %v5590
      %v5605 = vsel %vm1257, %v5590, %v5592
      %v5606 = vsel %vm1257, %v5592, %v5594
      %v5607 = vsel %vm1257, %v5594, %v5596
      %v5608 = vsel %vm1257, %v5596, %v5598
      %v5609 = vsel %vm1257, %v5598, %v5600
      %v5610 = vsel %vm1257, %v5600, %v5602
      %5619 = vst [vmem:[#allocation3 + $0x200] sm:$0xff] %v5603
      %5620 = vst [vmem:[#allocation3 + $0x208] sm:$0xff] %v5604
      %5621 = vst [vmem:[#allocation3 + $0x210] sm:$0xff] %v5605
      %5622 = vst [vmem:[#allocation3 + $0x218] sm:$0xff] %v5606
      %5623 = vst [vmem:[#allocation3 + $0x220] sm:$0xff] %v5607
      %5624 = vst [vmem:[#allocation3 + $0x228] sm:$0xff] %v5608
      %5625 = vst [vmem:[#allocation3 + $0x230] sm:$0xff] %v5609
      %5626 = vst [vmem:[#allocation3 + $0x238] sm:$0xff] %v5610
      %v5627 = vld [vmem:[#allocation3] sm:$0xff]
      %v5628 = vld [vmem:[#allocation3 + $0x8] sm:$0xff]
      %v5629 = vld [vmem:[#allocation3 + $0x10] sm:$0xff]
      %v5630 = vld [vmem:[#allocation3 + $0x18] sm:$0xff]
      %v5631 = vld [vmem:[#allocation3 + $0x20] sm:$0xff]
      %v5632 = vld [vmem:[#allocation3 + $0x28] sm:$0xff]
      %v5633 = vld [vmem:[#allocation3 + $0x30] sm:$0xff]
      %v5634 = vld [vmem:[#allocation3 + $0x38] sm:$0xff]
      %v5635 = vld [vmem:[#allocation3 + $0x40] sm:$0xff]
      %v5636 = vld [vmem:[#allocation3 + $0x48] sm:$0xff]
      %v5637 = vld [vmem:[#allocation3 + $0x50] sm:$0xff]
      %v5638 = vld [vmem:[#allocation3 + $0x58] sm:$0xff]
      %v5639 = vld [vmem:[#allocation3 + $0x60] sm:$0xff]
      %v5640 = vld [vmem:[#allocation3 + $0x68] sm:$0xff]
      %v5641 = vld [vmem:[#allocation3 + $0x70] sm:$0xff]
      %v5642 = vld [vmem:[#allocation3 + $0x78] sm:$0xff]
      %v5643 = vld [vmem:[#allocation3 + $0x80] sm:$0xff]
      %v5644 = vld [vmem:[#allocation3 + $0x88] sm:$0xff]
      %v5645 = vld [vmem:[#allocation3 + $0x90] sm:$0xff]
      %v5646 = vld [vmem:[#allocation3 + $0x98] sm:$0xff]
      %v5647 = vld [vmem:[#allocation3 + $0xa0] sm:$0xff]
      %v5648 = vld [vmem:[#allocation3 + $0xa8] sm:$0xff]
      %v5649 = vld [vmem:[#allocation3 + $0xb0] sm:$0xff]
      %v5650 = vld [vmem:[#allocation3 + $0xb8] sm:$0xff]
      %v5651 = vld [vmem:[#allocation3 + $0xc0] sm:$0xff]
      %v5652 = vld [vmem:[#allocation3 + $0xc8] sm:$0xff]
      %v5653 = vld [vmem:[#allocation3 + $0xd0] sm:$0xff]
      %v5654 = vld [vmem:[#allocation3 + $0xd8] sm:$0xff]
      %v5655 = vld [vmem:[#allocation3 + $0xe0] sm:$0xff]
      %v5656 = vld [vmem:[#allocation3 + $0xe8] sm:$0xff]
      %v5657 = vld [vmem:[#allocation3 + $0xf0] sm:$0xff]
      %v5658 = vld [vmem:[#allocation3 + $0xf8] sm:$0xff]
      %v5659 = vld [vmem:[#allocation3 + $0x100] sm:$0xff]
      %v5660 = vld [vmem:[#allocation3 + $0x108] sm:$0xff]
      %v5661 = vld [vmem:[#allocation3 + $0x110] sm:$0xff]
      %v5662 = vld [vmem:[#allocation3 + $0x118] sm:$0xff]
      %v5663 = vld [vmem:[#allocation3 + $0x120] sm:$0xff]
      %v5664 = vld [vmem:[#allocation3 + $0x128] sm:$0xff]
      %v5665 = vld [vmem:[#allocation3 + $0x130] sm:$0xff]
      %v5666 = vld [vmem:[#allocation3 + $0x138] sm:$0xff]
      %v5667 = vld [vmem:[#allocation3 + $0x140] sm:$0xff]
      %v5668 = vld [vmem:[#allocation3 + $0x148] sm:$0xff]
      %v5669 = vld [vmem:[#allocation3 + $0x150] sm:$0xff]
      %v5670 = vld [vmem:[#allocation3 + $0x158] sm:$0xff]
      %v5671 = vld [vmem:[#allocation3 + $0x160] sm:$0xff]
      %v5672 = vld [vmem:[#allocation3 + $0x168] sm:$0xff]
      %v5673 = vld [vmem:[#allocation3 + $0x170] sm:$0xff]
      %v5674 = vld [vmem:[#allocation3 + $0x178] sm:$0xff]
      %v5675 = vld [vmem:[#allocation3 + $0x180] sm:$0xff]
      %v5676 = vld [vmem:[#allocation3 + $0x188] sm:$0xff]
      %v5677 = vld [vmem:[#allocation3 + $0x190] sm:$0xff]
      %v5678 = vld [vmem:[#allocation3 + $0x198] sm:$0xff]
      %v5679 = vld [vmem:[#allocation3 + $0x1a0] sm:$0xff]
      %v5680 = vld [vmem:[#allocation3 + $0x1a8] sm:$0xff]
      %v5681 = vld [vmem:[#allocation3 + $0x1b0] sm:$0xff]
      %v5682 = vld [vmem:[#allocation3 + $0x1b8] sm:$0xff]
      %v5683 = vld [vmem:[#allocation3 + $0x1c0] sm:$0xff]
      %v5684 = vld [vmem:[#allocation3 + $0x1c8] sm:$0xff]
      %v5685 = vld [vmem:[#allocation3 + $0x1d0] sm:$0xff]
      %v5686 = vld [vmem:[#allocation3 + $0x1d8] sm:$0xff]
      %v5687 = vld [vmem:[#allocation3 + $0x1e0] sm:$0xff]
      %v5688 = vld [vmem:[#allocation3 + $0x1e8] sm:$0xff]
      %v5689 = vld [vmem:[#allocation3 + $0x1f0] sm:$0xff]
      %v5690 = vld [vmem:[#allocation3 + $0x1f8] sm:$0xff]
      %v5691 = vld [vmem:[#allocation3 + $0x200] sm:$0xff]
      %v5692 = vld [vmem:[#allocation3 + $0x208] sm:$0xff]
      %v5693 = vld [vmem:[#allocation3 + $0x210] sm:$0xff]
      %v5694 = vld [vmem:[#allocation3 + $0x218] sm:$0xff]
      %v5695 = vld [vmem:[#allocation3 + $0x220] sm:$0xff]
      %v5696 = vld [vmem:[#allocation3 + $0x228] sm:$0xff]
      %v5697 = vld [vmem:[#allocation3 + $0x230] sm:$0xff]
      %v5698 = vld [vmem:[#allocation3 + $0x238] sm:$0xff]
      %5700 = vset.pattern.permute.xlu0 0
      %5701 = vperm.xlu0 %5700, %v4783
      %v5702 = vpop.permute.xlu0 %5701
      %v5705 = vsel %vm1359, %v4781, 0
      %5707 = vmatprep.subr.mxu0 %v5628
      %5708 = vmatpush1.msra.mxu0 %v5627
      %5709 = vmatprep.subr.mxu0 %v5636
      %5710 = vmatpush1.msra.mxu0 %v5635
      %5711 = vmatprep.subr.mxu0 %v5644
      %5712 = vmatpush1.msra.mxu0 %v5643
      %5713 = vmatprep.subr.mxu0 %v5652
      %5714 = vmatpush1.msra.mxu0 %v5651
      %5715 = vmatprep.subr.mxu0 %v5660
      %5716 = vmatpush1.msra.mxu0 %v5659
      %5717 = vmatprep.subr.mxu0 %v5668
      %5718 = vmatpush1.msra.mxu0 %v5667
      %5719 = vmatprep.subr.mxu0 %v5676
      %5720 = vmatpush1.msra.mxu0 %v5675
      %5721 = vmatprep.subr.mxu0 %v5684
      %5722 = vmatpush1.msra.mxu0 %v5683
      %5723 = vmatprep.subr.mxu0 %v5692
      %5724 = vmatpush1.msra.mxu0 %v5691
      %5725 = vmatprep.subr.mxu0 0.0
      %5726 = vmatpush1.msra.mxu0 0.0
      %5727 = vmatprep.subr.mxu0 0.0
      %5728 = vmatpush1.msra.mxu0 0.0
      %5729 = vmatprep.subr.mxu0 0.0
      %5730 = vmatpush1.msra.mxu0 0.0
      %5731 = vmatprep.subr.mxu0 0.0
      %5732 = vmatpush1.msra.mxu0 0.0
      %5733 = vmatprep.subr.mxu0 0.0
      %5734 = vmatpush1.msra.mxu0 0.0
      %5735 = vmatprep.subr.mxu0 0.0
      %5736 = vmatpush1.msra.mxu0 0.0
      %5737 = vmatprep.subr.mxu0 0.0
      %5738 = vmatpush1.msra.mxu0 0.0
      %5739 = vmatprep.subr.mxu0 0.0
      %5740 = vmatpush1.msra.mxu0 0.0
      %5741 = vmatprep.subr.mxu0 0.0
      %5742 = vmatpush1.msra.mxu0 0.0
      %5743 = vmatprep.subr.mxu0 0.0
      %5744 = vmatpush1.msra.mxu0 0.0
      %5745 = vmatprep.subr.mxu0 0.0
      %5746 = vmatpush1.msra.mxu0 0.0
      %5747 = vmatprep.subr.mxu0 0.0
      %5748 = vmatpush1.msra.mxu0 0.0
      %5749 = vmatprep.subr.mxu0 0.0
      %5750 = vmatpush1.msra.mxu0 0.0
      %5751 = vmatprep.subr.mxu0 0.0
      %5752 = vmatpush1.msra.mxu0 0.0
      %5753 = vmatprep.subr.mxu0 0.0
      %5754 = vmatpush1.msra.mxu0 0.0
      %5755 = vmatprep.subr.mxu0 0.0
      %5756 = vmatpush1.msra.mxu0 0.0
      %5757 = vmatprep.subr.mxu0 0.0
      %5758 = vmatpush1.msra.mxu0 0.0
      %5759 = vmatprep.subr.mxu0 0.0
      %5760 = vmatpush1.msra.mxu0 0.0
      %5761 = vmatprep.subr.mxu0 0.0
      %5762 = vmatpush1.msra.mxu0 0.0
      %5763 = vmatprep.subr.mxu0 0.0
      %5764 = vmatpush1.msra.mxu0 0.0
      %5765 = vmatprep.subr.mxu0 0.0
      %5766 = vmatpush1.msra.mxu0 0.0
      %5767 = vmatprep.subr.mxu0 0.0
      %5768 = vmatpush1.msra.mxu0 0.0
      %5769 = vmatprep.subr.mxu0 0.0
      %5770 = vmatpush1.msra.mxu0 0.0
      %5771 = vmatprep.mubr.f32.mxu0 0.0
      %5772 = vmatmul.mubr.f32.gmra.mrb[0].mxu0 %v5705
      %v5773 = vpop.f32.mrb[0].mxu0
      %v5774 = vadd.f32 %v5702, %v5773
      %v5775 = vpop.f32.mrb[0].mxu0
      %v5776 = vadd.f32 %v5702, %v5775
      %5777 = vdwg.mxu0
      %5778 = vmatprep.subr.mxu0 %v5630
      %5779 = vmatpush1.msra.mxu0 %v5629
      %5780 = vmatprep.subr.mxu0 %v5638
      %5781 = vmatpush1.msra.mxu0 %v5637
      %5782 = vmatprep.subr.mxu0 %v5646
      %5783 = vmatpush1.msra.mxu0 %v5645
      %5784 = vmatprep.subr.mxu0 %v5654
      %5785 = vmatpush1.msra.mxu0 %v5653
      %5786 = vmatprep.subr.mxu0 %v5662
      %5787 = vmatpush1.msra.mxu0 %v5661
      %5788 = vmatprep.subr.mxu0 %v5670
      %5789 = vmatpush1.msra.mxu0 %v5669
      %5790 = vmatprep.subr.mxu0 %v5678
      %5791 = vmatpush1.msra.mxu0 %v5677
      %5792 = vmatprep.subr.mxu0 %v5686
      %5793 = vmatpush1.msra.mxu0 %v5685
      %5794 = vmatprep.subr.mxu0 %v5694
      %5795 = vmatpush1.msra.mxu0 %v5693
      %5796 = vmatprep.subr.mxu0 0.0
      %5797 = vmatpush1.msra.mxu0 0.0
      %5798 = vmatprep.subr.mxu0 0.0
      %5799 = vmatpush1.msra.mxu0 0.0
      %5800 = vmatprep.subr.mxu0 0.0
      %5801 = vmatpush1.msra.mxu0 0.0
      %5802 = vmatprep.subr.mxu0 0.0
      %5803 = vmatpush1.msra.mxu0 0.0
      %5804 = vmatprep.subr.mxu0 0.0
      %5805 = vmatpush1.msra.mxu0 0.0
      %5806 = vmatprep.subr.mxu0 0.0
      %5807 = vmatpush1.msra.mxu0 0.0
      %5808 = vmatprep.subr.mxu0 0.0
      %5809 = vmatpush1.msra.mxu0 0.0
      %5810 = vmatprep.subr.mxu0 0.0
      %5811 = vmatpush1.msra.mxu0 0.0
      %5812 = vmatprep.subr.mxu0 0.0
      %5813 = vmatpush1.msra.mxu0 0.0
      %5814 = vmatprep.subr.mxu0 0.0
      %5815 = vmatpush1.msra.mxu0 0.0
      %5816 = vmatprep.subr.mxu0 0.0
      %5817 = vmatpush1.msra.mxu0 0.0
      %5818 = vmatprep.subr.mxu0 0.0
      %5819 = vmatpush1.msra.mxu0 0.0
      %5820 = vmatprep.subr.mxu0 0.0
      %5821 = vmatpush1.msra.mxu0 0.0
      %5822 = vmatprep.subr.mxu0 0.0
      %5823 = vmatpush1.msra.mxu0 0.0
      %5824 = vmatprep.subr.mxu0 0.0
      %5825 = vmatpush1.msra.mxu0 0.0
      %5826 = vmatprep.subr.mxu0 0.0
      %5827 = vmatpush1.msra.mxu0 0.0
      %5828 = vmatprep.subr.mxu0 0.0
      %5829 = vmatpush1.msra.mxu0 0.0
      %5830 = vmatprep.subr.mxu0 0.0
      %5831 = vmatpush1.msra.mxu0 0.0
      %5832 = vmatprep.subr.mxu0 0.0
      %5833 = vmatpush1.msra.mxu0 0.0
      %5834 = vmatprep.subr.mxu0 0.0
      %5835 = vmatpush1.msra.mxu0 0.0
      %5836 = vmatprep.subr.mxu0 0.0
      %5837 = vmatpush1.msra.mxu0 0.0
      %5838 = vmatprep.subr.mxu0 0.0
      %5839 = vmatpush1.msra.mxu0 0.0
      %5840 = vmatprep.subr.mxu0 0.0
      %5841 = vmatpush1.msra.mxu0 0.0
      %5842 = vmatprep.mubr.f32.mxu0 0.0
      %5843 = vmatmul.mubr.f32.gmra.mrb[0].mxu0 %v5705
      %v5844 = vpop.f32.mrb[0].mxu0
      %v5845 = vadd.f32 %v5702, %v5844
      %v5846 = vpop.f32.mrb[0].mxu0
      %v5847 = vadd.f32 %v5702, %v5846
      %5848 = vdwg.mxu0
      %5849 = vmatprep.subr.mxu0 %v5632
      %5850 = vmatpush1.msra.mxu0 %v5631
      %5851 = vmatprep.subr.mxu0 %v5640
      %5852 = vmatpush1.msra.mxu0 %v5639
      %5853 = vmatprep.subr.mxu0 %v5648
      %5854 = vmatpush1.msra.mxu0 %v5647
      %5855 = vmatprep.subr.mxu0 %v5656
      %5856 = vmatpush1.msra.mxu0 %v5655
      %5857 = vmatprep.subr.mxu0 %v5664
      %5858 = vmatpush1.msra.mxu0 %v5663
      %5859 = vmatprep.subr.mxu0 %v5672
      %5860 = vmatpush1.msra.mxu0 %v5671
      %5861 = vmatprep.subr.mxu0 %v5680
      %5862 = vmatpush1.msra.mxu0 %v5679
      %5863 = vmatprep.subr.mxu0 %v5688
      %5864 = vmatpush1.msra.mxu0 %v5687
      %5865 = vmatprep.subr.mxu0 %v5696
      %5866 = vmatpush1.msra.mxu0 %v5695
      %5867 = vmatprep.subr.mxu0 0.0
      %5868 = vmatpush1.msra.mxu0 0.0
      %5869 = vmatprep.subr.mxu0 0.0
      %5870 = vmatpush1.msra.mxu0 0.0
      %5871 = vmatprep.subr.mxu0 0.0
      %5872 = vmatpush1.msra.mxu0 0.0
      %5873 = vmatprep.subr.mxu0 0.0
      %5874 = vmatpush1.msra.mxu0 0.0
      %5875 = vmatprep.subr.mxu0 0.0
      %5876 = vmatpush1.msra.mxu0 0.0
      %5877 = vmatprep.subr.mxu0 0.0
      %5878 = vmatpush1.msra.mxu0 0.0
      %5879 = vmatprep.subr.mxu0 0.0
      %5880 = vmatpush1.msra.mxu0 0.0
      %5881 = vmatprep.subr.mxu0 0.0
      %5882 = vmatpush1.msra.mxu0 0.0
      %5883 = vmatprep.subr.mxu0 0.0
      %5884 = vmatpush1.msra.mxu0 0.0
      %5885 = vmatprep.subr.mxu0 0.0
      %5886 = vmatpush1.msra.mxu0 0.0
      %5887 = vmatprep.subr.mxu0 0.0
      %5888 = vmatpush1.msra.mxu0 0.0
      %5889 = vmatprep.subr.mxu0 0.0
      %5890 = vmatpush1.msra.mxu0 0.0
      %5891 = vmatprep.subr.mxu0 0.0
      %5892 = vmatpush1.msra.mxu0 0.0
      %5893 = vmatprep.subr.mxu0 0.0
      %5894 = vmatpush1.msra.mxu0 0.0
      %5895 = vmatprep.subr.mxu0 0.0
      %5896 = vmatpush1.msra.mxu0 0.0
      %5897 = vmatprep.subr.mxu0 0.0
      %5898 = vmatpush1.msra.mxu0 0.0
      %5899 = vmatprep.subr.mxu0 0.0
      %5900 = vmatpush1.msra.mxu0 0.0
      %5901 = vmatprep.subr.mxu0 0.0
      %5902 = vmatpush1.msra.mxu0 0.0
      %5903 = vmatprep.subr.mxu0 0.0
      %5904 = vmatpush1.msra.mxu0 0.0
      %5905 = vmatprep.subr.mxu0 0.0
      %5906 = vmatpush1.msra.mxu0 0.0
      %5907 = vmatprep.subr.mxu0 0.0
      %5908 = vmatpush1.msra.mxu0 0.0
      %5909 = vmatprep.subr.mxu0 0.0
      %5910 = vmatpush1.msra.mxu0 0.0
      %5911 = vmatprep.subr.mxu0 0.0
      %5912 = vmatpush1.msra.mxu0 0.0
      %5913 = vmatprep.mubr.f32.mxu0 0.0
      %5914 = vmatmul.mubr.f32.gmra.mrb[0].mxu0 %v5705
      %v5915 = vpop.f32.mrb[0].mxu0
      %v5916 = vadd.f32 %v5702, %v5915
      %v5917 = vpop.f32.mrb[0].mxu0
      %v5918 = vadd.f32 %v5702, %v5917
      %5919 = vdwg.mxu0
      %5920 = vmatprep.subr.mxu0 %v5634
      %5921 = vmatpush1.msra.mxu0 %v5633
      %5922 = vmatprep.subr.mxu0 %v5642
      %5923 = vmatpush1.msra.mxu0 %v5641
      %5924 = vmatprep.subr.mxu0 %v5650
      %5925 = vmatpush1.msra.mxu0 %v5649
      %5926 = vmatprep.subr.mxu0 %v5658
      %5927 = vmatpush1.msra.mxu0 %v5657
      %5928 = vmatprep.subr.mxu0 %v5666
      %5929 = vmatpush1.msra.mxu0 %v5665
      %5930 = vmatprep.subr.mxu0 %v5674
      %5931 = vmatpush1.msra.mxu0 %v5673
      %5932 = vmatprep.subr.mxu0 %v5682
      %5933 = vmatpush1.msra.mxu0 %v5681
      %5934 = vmatprep.subr.mxu0 %v5690
      %5935 = vmatpush1.msra.mxu0 %v5689
      %5936 = vmatprep.subr.mxu0 %v5698
      %5937 = vmatpush1.msra.mxu0 %v5697
      %5938 = vmatprep.subr.mxu0 0.0
      %5939 = vmatpush1.msra.mxu0 0.0
      %5940 = vmatprep.subr.mxu0 0.0
      %5941 = vmatpush1.msra.mxu0 0.0
      %5942 = vmatprep.subr.mxu0 0.0
      %5943 = vmatpush1.msra.mxu0 0.0
      %5944 = vmatprep.subr.mxu0 0.0
      %5945 = vmatpush1.msra.mxu0 0.0
      %5946 = vmatprep.subr.mxu0 0.0
      %5947 = vmatpush1.msra.mxu0 0.0
      %5948 = vmatprep.subr.mxu0 0.0
      %5949 = vmatpush1.msra.mxu0 0.0
      %5950 = vmatprep.subr.mxu0 0.0
      %5951 = vmatpush1.msra.mxu0 0.0
      %5952 = vmatprep.subr.mxu0 0.0
      %5953 = vmatpush1.msra.mxu0 0.0
      %5954 = vmatprep.subr.mxu0 0.0
      %5955 = vmatpush1.msra.mxu0 0.0
      %5956 = vmatprep.subr.mxu0 0.0
      %5957 = vmatpush1.msra.mxu0 0.0
      %5958 = vmatprep.subr.mxu0 0.0
      %5959 = vmatpush1.msra.mxu0 0.0
      %5960 = vmatprep.subr.mxu0 0.0
      %5961 = vmatpush1.msra.mxu0 0.0
      %5962 = vmatprep.subr.mxu0 0.0
      %5963 = vmatpush1.msra.mxu0 0.0
      %5964 = vmatprep.subr.mxu0 0.0
      %5965 = vmatpush1.msra.mxu0 0.0
      %5966 = vmatprep.subr.mxu0 0.0
      %5967 = vmatpush1.msra.mxu0 0.0
      %5968 = vmatprep.subr.mxu0 0.0
      %5969 = vmatpush1.msra.mxu0 0.0
      %5970 = vmatprep.subr.mxu0 0.0
      %5971 = vmatpush1.msra.mxu0 0.0
      %5972 = vmatprep.subr.mxu0 0.0
      %5973 = vmatpush1.msra.mxu0 0.0
      %5974 = vmatprep.subr.mxu0 0.0
      %5975 = vmatpush1.msra.mxu0 0.0
      %5976 = vmatprep.subr.mxu0 0.0
      %5977 = vmatpush1.msra.mxu0 0.0
      %5978 = vmatprep.subr.mxu0 0.0
      %5979 = vmatpush1.msra.mxu0 0.0
      %5980 = vmatprep.subr.mxu0 0.0
      %5981 = vmatpush1.msra.mxu0 0.0
      %5982 = vmatprep.subr.mxu0 0.0
      %5983 = vmatpush1.msra.mxu0 0.0
      %5984 = vmatprep.mubr.f32.mxu0 0.0
      %5985 = vmatmul.mubr.f32.gmra.mrb[0].mxu0 %v5705
      %v5986 = vpop.f32.mrb[0].mxu0
      %v5987 = vadd.f32 %v5702, %v5986
      %v5988 = vpop.f32.mrb[0].mxu0
      %v5989 = vadd.f32 %v5702, %v5988
      %5990 = vdwg.mxu0
      %v5991 = vmul.f32 %v5774, 0.2
      %v5992 = vmul.f32 %v5776, 0.2
      %v5993 = vmul.f32 %v5845, 0.2
      %v5994 = vmul.f32 %v5847, 0.2
      %v5995 = vmul.f32 %v5916, 0.2
      %v5996 = vmul.f32 %v5918, 0.2
      %v5997 = vmul.f32 %v5987, 0.2
      %v5998 = vmul.f32 %v5989, 0.2
      %v5999 = vmax.f32 %v5774, %v5991
      %v6000 = vmax.f32 %v5776, %v5992
      %v6001 = vmax.f32 %v5845, %v5993
      %v6002 = vmax.f32 %v5847, %v5994
      %v6003 = vmax.f32 %v5916, %v5995
      %v6004 = vmax.f32 %v5918, %v5996
      %v6005 = vmax.f32 %v5987, %v5997
      %v6006 = vmax.f32 %v5989, %v5998
      %v6007 = vadd.f32 %v5999, %v414
      %v6008 = vadd.f32 %v6000, %v415
      %v6009 = vadd.f32 %v6001, %v416
      %v6010 = vadd.f32 %v6002, %v417
      %v6011 = vadd.f32 %v6003, %v418
      %v6012 = vadd.f32 %v6004, %v419
      %v6013 = vadd.f32 %v6005, %v420
      %v6014 = vadd.f32 %v6006, %v421
      %6015 = vst [vmem:[%s413] sm:$0xff] %v6007
      %6016 = vst [vmem:[%s413 + $0x8] sm:$0xff] %v6008
      %6017 = vst [vmem:[%s413 + $0x10] sm:$0xff] %v6009
      %6018 = vst [vmem:[%s413 + $0x18] sm:$0xff] %v6010
      %6019 = vst [vmem:[%s413 + $0x20] sm:$0xff] %v6011
      %6020 = vst [vmem:[%s413 + $0x28] sm:$0xff] %v6012
      %6021 = vst [vmem:[%s413 + $0x30] sm:$0xff] %v6013
      %6022 = vst [vmem:[%s413 + $0x38] sm:$0xff] %v6014
      %p6023 = scmp.lt.s32.totalorder %s23, 1
      %s6024 = scalar_select %p6023, %s23, 1
      %s6025 = smul.addr %s6024, 8
      %s6026 = smul.addr %s6025, 8
      %s6027 = scalar_lea.vmem %s12, %s6026
      // Predicated region
      $region69: #{encoder_decoder_block.1} parent=67 // pred_check
        %p6028 = pneg %p298
      $region70: #{encoder_decoder_block.1} parent=67 // pred_check_branch
        %6030 = sbr.rel (%p6028) target = $region72
      $region71: #{encoder_decoder_block.1} parent=67 // pred_region
        _
      $region72: #{encoder_decoder_block.1} parent=67 // pred_fallthru
        _
    $region68: #{encoder_decoder_block.1} parent=5 // pred_fallthru
      _
    %p6031 = scmp.le.s32.totalorder 2, %s18
    // Predicated region
    $region73: #{encoder_decoder_block.1} parent=5 // pred_check
      %p6032 = pneg %p6031
    $region74: #{encoder_decoder_block.1} parent=5 // pred_check_branch
      %6034 = sbr.rel (%p6032) target = $region76
    $region75: #{encoder_decoder_block.1} parent=5 // pred_region
      %s6035 = ssub.s32 %s18, 2
      // Predicated region
      $region77: #{encoder_decoder_block.1} parent=75 // pred_check
        %p6036 = pneg %p304
      $region78: #{encoder_decoder_block.1} parent=75 // pred_check_branch
        %6038 = sbr.rel (%p6036) target = $region80
      $region79: #{encoder_decoder_block.1} parent=75 // pred_region
        %p6039 = scmp.lt.s32.totalorder %s24, 1
        %s6040 = scalar_select %p6039, %s24, 1
        %s6041 = smul.addr %s6040, 8
        %s6042 = smul.addr %s6041, 8
        %s6043 = scalar_lea.vmem %s12, %s6042
      $region80: #{encoder_decoder_block.1} parent=75 // pred_fallthru
        _
    $region76: #{encoder_decoder_block.1} parent=5 // pred_fallthru
      _
  $region6: #{encoder_decoder_block.1} parent=0 // loop_footer
    %s22 = sadd.s32 1, %s18
  $region7: #{encoder_decoder_block.1} parent=0 // loop_footer_branch
    %17 = sbr.rel target = $region3
  $region8: #{encoder_decoder_block.1} parent=0 // loop_exit
    _

</llo_original>
